<compile_context>
chip_gen: v6e
topology: v6e:2x2x1
jax: 0.10.0
libtpu: 0.0.40
codegen_flags: <defaults>
</compile_context>

<pallas_src>
import numpy as np
import jax
import jax.numpy as jnp
from jax.experimental import pallas as pl
from jax.experimental.pallas import tpu as pltpu

# ---------------------------------------------------------------------------
# model dims (token_dim % num_heads == 0 as in the module)
# ---------------------------------------------------------------------------
TOKEN_DIM = 32        # embed_dim
ACTION_DIM = 2
NUM_HEADS = 4
HEAD_DIM = TOKEN_DIM // NUM_HEADS
HIDDEN = 256          # hidden_sizes = [256, 256]
NEG_INF = -1e30
TILE_B = 256          # batch rows per grid step (lane dimension), multiple of 128
APPROX_RECIP = True   # EUP approx reciprocal for softmax / mean divides


def _round_up(x, m):
    return ((x + m - 1) // m) * m


# ---------------------------------------------------------------------------
# Pallas kernel: one batch tile of TB elements, everything batch-in-lanes
# ---------------------------------------------------------------------------
def critic_head_kernel(x_ref, mask_ref, wqkv_ref, w1_ref, w2_ref, w3_ref,
                       bias_ref, b3_ref, out_ref):
    # x_ref:    (N, F, TB)   [tokens | actions | ones | zero pad] slab
    # mask_ref: (N, TB)      1.0 = valid token
    # wqkv_ref: (3D, F)      fused pre_attn->in_proj weights (q rows pre-scaled,
    #                        bias folded into the ones feature)
    # w1_ref:   (HIDDEN, D)  fused (out_proj @ fc1) weights, transposed
    # w2_ref:   (HIDDEN, HIDDEN)  fc2 weights, transposed
    # w3_ref:   (1, HIDDEN)  fc3 weights, transposed
    # bias_ref: (HIDDEN, 3)  columns [b1, bout @ w1, b2]
    # b3_ref:   (1, 1)
    # out_ref:  (1, 1, TB)   lane-dense critic values
    N, F, TB = x_ref.shape
    D, H, hd = TOKEN_DIM, NUM_HEADS, HEAD_DIM

    x = x_ref[...]                                   # (N, F, TB)
    mask = mask_ref[...]                             # (N, TB)
    wqkv = wqkv_ref[...]                             # (3D, F)

    # fused pre_attn + packed qkv projection: one (3D, F) @ (F, TB) MXU matmul
    # per token slot, output stays channel-in-sublane / batch-in-lane.
    qkv = [jnp.dot(wqkv, x[n], preferred_element_type=jnp.float32)
           for n in range(N)]                        # N x (3D, TB)

    key_bias = jnp.where(mask > 0.5, 0.0, NEG_INF)   # (N, TB)

    # Multi-head attention with the batch tile in the lane dimension.
    # All ops below are full-width (hd|N, TB) vreg ops: broadcast multiplies on
    # the VPU, 8-sublane reductions on the XLU, exp/reciprocal on the EUP.
    pooled_parts = []
    for h in range(H):
        qo, ko, vo = h * hd, D + h * hd, 2 * D + h * hd
        k_h = [qkv[j][ko:ko + hd] for j in range(N)]     # N x (hd, TB)
        v_h = [qkv[j][vo:vo + hd] for j in range(N)]     # N x (hd, TB)

        # sum_i mask_i * softmax_i, accumulated per key j (the value
        # contraction and the masked token-mean pooling commute, so v is
        # applied once per head instead of once per query).
        wacc = jnp.zeros((N, TB), jnp.float32)
        for i in range(N):
            q_i = qkv[i][qo:qo + hd]                     # (hd, TB), scale folded
            rows = [jnp.sum(q_i * k_h[j], axis=0, keepdims=True)
                    for j in range(N)]                   # N x (1, TB)
            s = jnp.concatenate(rows, axis=0) + key_bias  # (N, TB)
            s = s - jnp.max(s, axis=0, keepdims=True)
            p = jnp.exp(s)
            p = p * pl.reciprocal(jnp.sum(p, axis=0, keepdims=True),
                                  approx=APPROX_RECIP)
            wacc = wacc + p * mask[i:i + 1, :]

        pooled_h = wacc[0:1, :] * v_h[0]                 # (hd, TB)
        for j in range(1, N):
            pooled_h = pooled_h + wacc[j:j + 1, :] * v_h[j]
        pooled_parts.append(pooled_h)

    pooled = jnp.concatenate(pooled_parts, axis=0)       # (D, TB)

    # masked mean pooling over tokens
    nvalid = jnp.sum(mask, axis=0, keepdims=True)        # (1, TB)
    pooled = pooled * pl.reciprocal(jnp.maximum(nvalid, 1.0),
                                    approx=APPROX_RECIP)
    has_valid = jnp.minimum(nvalid, 1.0)                 # 0 iff no valid token

    # MLP head in the transposed (feature-in-sublane) flow; out_proj is folded
    # into fc1, the bout contribution is gated by has_valid so the fold stays
    # exact even for all-masked rows.
    b1 = bias_ref[:, 0:1]                                # (HIDDEN, 1)
    bw1 = bias_ref[:, 1:2]
    b2 = bias_ref[:, 2:3]
    h1 = jnp.dot(w1_ref[...], pooled, preferred_element_type=jnp.float32)
    h1 = jnp.maximum(h1 + b1 + bw1 * has_valid, 0.0)     # (HIDDEN, TB)
    h2 = jnp.dot(w2_ref[...], h1, preferred_element_type=jnp.float32)
    h2 = jnp.maximum(h2 + b2, 0.0)                       # (HIDDEN, TB)
    val = jnp.dot(w3_ref[...], h2, preferred_element_type=jnp.float32)
    val = val + b3_ref[...]                              # (1, TB)
    out_ref[...] = val.reshape(1, 1, TB)                 # lane-dense store


# ---------------------------------------------------------------------------
# host-side algebraic weight folding (zero runtime cost)
# ---------------------------------------------------------------------------
def fold_params(params):
    D, A, Hd = TOKEN_DIM, ACTION_DIM, HEAD_DIM
    # pre_attn fused into in_proj; bias folded into the 'ones' input feature.
    w_tok = params["wpre_t"] @ params["win"]                  # (D, 3D)
    w_act = params["wpre_a"] @ params["win"]                  # (A, 3D)
    b_qkv = params["bpre"] @ params["win"] + params["bin"]    # (1, 3D)
    wfull = jnp.concatenate([w_tok, w_act, b_qkv], axis=0)    # (D+A+1, 3D)
    # fold 1/sqrt(head_dim) into the q output channels
    scale = 1.0 / np.sqrt(float(Hd))
    col_scale = jnp.concatenate(
        [jnp.full((D,), scale, jnp.float32),
         jnp.ones((2 * D,), jnp.float32)])
    wfull = wfull * col_scale[None, :]
    f_raw = D + A + 1
    f_pad = _round_up(f_raw, 8)
    wfull = jnp.pad(wfull, ((0, f_pad - f_raw), (0, 0)))
    wqkv_t = wfull.T                                          # (3D, f_pad)

    # out_proj folded through the (linear) masked-mean pooling into fc1
    w1f_t = (params["wout"] @ params["w1"]).T                 # (HIDDEN, D)
    bw1 = params["bout"] @ params["w1"]                       # (1, HIDDEN)
    w2_t = params["w2"].T
    w3_t = params["w3"].T                                     # (1, HIDDEN)
    bias_pack = jnp.concatenate(
        [params["b1"].T, bw1.T, params["b2"].T], axis=1)      # (HIDDEN, 3)
    b3 = params["b3"]                                         # (1, 1)
    weights = (wqkv_t.astype(jnp.float32), w1f_t.astype(jnp.float32),
               w2_t.astype(jnp.float32), w3_t.astype(jnp.float32),
               bias_pack.astype(jnp.float32), b3.astype(jnp.float32))
    return weights, f_pad


# ---------------------------------------------------------------------------
# wrapper
# ---------------------------------------------------------------------------
def critic_head_global(tokens, uav_mask, actions, params, tile_b=TILE_B):
    B, N, D = tokens.shape
    A = actions.shape[-1]
    assert D == TOKEN_DIM and A == ACTION_DIM

    weights, f_pad = fold_params(params)

    tile_b = _round_up(min(tile_b, _round_up(B, 128)), 128)
    nb = pl.cdiv(B, tile_b)
    b_pad = nb * tile_b

    # feature slab: [tokens | actions | ones | zero pad], transposed to
    # (seq, feature, batch) so the batch lives in the lane dimension.
    feat = jnp.concatenate(
        [tokens.astype(jnp.float32), actions.astype(jnp.float32),
         jnp.ones((B, N, 1), jnp.float32)], axis=-1)          # (B, N, D+A+1)
    feat = jnp.pad(feat, ((0, b_pad - B), (0, 0), (0, f_pad - (D + A + 1))))
    x_t = jnp.transpose(feat, (1, 2, 0))                      # (N, f_pad, b_pad)

    mask_t = jnp.pad(uav_mask.astype(jnp.float32), ((0, b_pad - B), (0, 0)))
    mask_t = jnp.transpose(mask_t, (1, 0))                    # (N, b_pad)

    def _full_spec(arr):
        nd = arr.ndim
        return pl.BlockSpec(arr.shape, lambda b, _nd=nd: (0,) * _nd)

    out = pl.pallas_call(
        critic_head_kernel,
        out_shape=jax.ShapeDtypeStruct((nb, 1, tile_b), jnp.float32),
        grid_spec=pltpu.PrefetchScalarGridSpec(
            num_scalar_prefetch=0,
            grid=(nb,),
            in_specs=[
                pl.BlockSpec((N, f_pad, tile_b), lambda b: (0, 0, b)),  # slab
                pl.BlockSpec((N, tile_b), lambda b: (0, b)),            # mask
            ] + [_full_spec(w) for w in weights],            # grid-resident weights
            out_specs=pl.BlockSpec((1, 1, tile_b), lambda b: (b, 0, 0)),
        ),
        compiler_params=pltpu.CompilerParams(
            dimension_semantics=("parallel",),
            vmem_limit_bytes=32 * 1024 * 1024),
    )(x_t, mask_t, *weights)
    return out.reshape(nb * tile_b)[:B]


# ---------------------------------------------------------------------------
# pure-JAX reference (mirrors torch.nn.MultiheadAttention semantics)
# ---------------------------------------------------------------------------
def critic_head_reference(tokens, uav_mask, actions, params):
    B, N, D = tokens.shape
    wpre = jnp.concatenate([params["wpre_t"], params["wpre_a"]], axis=0)
    x = jnp.concatenate([tokens, actions], axis=-1)
    ta = x @ wpre + params["bpre"]
    qkv = ta @ params["win"] + params["bin"]
    q, k, v = qkv[..., :D], qkv[..., D:2 * D], qkv[..., 2 * D:]

    def split_heads(t):  # (B, N, D) -> (B, H, N, hd)
        return t.reshape(B, N, NUM_HEADS, HEAD_DIM).transpose(0, 2, 1, 3)

    q, k, v = split_heads(q), split_heads(k), split_heads(v)
    scores = jnp.einsum("bhqd,bhkd->bhqk", q, k) / np.sqrt(float(HEAD_DIM))
    key_bias = jnp.where(uav_mask, 0.0, NEG_INF)[:, None, None, :]
    p = jax.nn.softmax(scores + key_bias, axis=-1)
    attn = jnp.einsum("bhqk,bhkd->bhqd", p, v).transpose(0, 2, 1, 3).reshape(B, N, D)
    attn = attn @ params["wout"] + params["bout"]

    maskf = uav_mask.astype(jnp.float32)
    summed = jnp.sum(attn * maskf[..., None], axis=1)
    count = jnp.maximum(jnp.sum(maskf, axis=1, keepdims=True), 1.0)
    pooled = summed / count

    h = jax.nn.relu(pooled @ params["w1"] + params["b1"])
    h = jax.nn.relu(h @ params["w2"] + params["b2"])
    return (h @ params["w3"] + params["b3"]).squeeze(-1)


# ---------------------------------------------------------------------------
# main
# ---------------------------------------------------------------------------
if __name__ == "__main__":
    B, N = 2, 8
    D, A = TOKEN_DIM, ACTION_DIM

    key = jax.random.PRNGKey(0)
    ks = jax.random.split(key, 20)

    def init(k, shape, scale=0.05):
        return (scale * jax.random.normal(k, shape)).astype(jnp.float32)

    params = {
        # pre_attn Linear(D+A -> D), weight stored as (in, out), split tok/act
        "wpre_t": init(ks[0], (D, D)),
        "wpre_a": init(ks[1], (A, D)),
        "bpre":   init(ks[2], (1, D)),
        # MultiheadAttention packed in_proj (D -> 3D) and out_proj (D -> D)
        "win":  init(ks[3], (D, 3 * D)),
        "bin":  init(ks[4], (1, 3 * D)),
        "wout": init(ks[5], (D, D)),
        "bout": init(ks[6], (1, D)),
        # MLP head
        "w1": init(ks[7], (D, HIDDEN)),
        "b1": init(ks[8], (1, HIDDEN)),
        "w2": init(ks[9], (HIDDEN, HIDDEN)),
        "b2": init(ks[10], (1, HIDDEN)),
        "w3": init(ks[11], (HIDDEN, 1)),
        "b3": init(ks[12], (1, 1)),
    }

    tokens = init(ks[13], (B, N, D), scale=1.0)
    actions = init(ks[14], (B, N, A), scale=1.0)
    uav_mask = jnp.array([[1, 1, 1, 1, 1, 0, 0, 0],
                          [1, 1, 0, 1, 1, 1, 1, 0]], dtype=bool)

    out = critic_head_global(tokens, uav_mask, actions, params)
    out = jax.block_until_ready(out)

    ref = critic_head_reference(tokens, uav_mask, actions, params)
    # tolerance covers the EUP approx-reciprocals and the algebraic weight folds
    np.testing.assert_allclose(np.asarray(out), np.asarray(ref),
                               rtol=5e-3, atol=5e-4)
    print("KERNEL_OK")
</pallas_src>

<mosaic_0001>
module attributes {stable_mosaic.version = 11 : i64} {
  func.func @critic_head_kernel(%arg0: i32, %arg1: memref<8x40x128xf32, #tpu.memory_space<vmem>>, %arg2: memref<8x128xf32, #tpu.memory_space<vmem>>, %arg3: memref<96x40xf32, #tpu.memory_space<vmem>>, %arg4: memref<256x32xf32, #tpu.memory_space<vmem>>, %arg5: memref<256x256xf32, #tpu.memory_space<vmem>>, %arg6: memref<1x256xf32, #tpu.memory_space<vmem>>, %arg7: memref<256x3xf32, #tpu.memory_space<vmem>>, %arg8: memref<1x1xf32, #tpu.memory_space<vmem>>, %arg9: memref<1x1x128xf32, #tpu.memory_space<vmem>>) attributes {dimension_semantics = [#tpu.dimension_semantics<parallel>], iteration_bounds = array<i64: 1>, scalar_prefetch = 0 : i64, scratch_operands = 0 : i64, tpu.core_type = #tpu.core_type<tc>, window_params = [{transform_indices = @transform_0, window_bounds = array<i64: 8, 40, 128>}, {transform_indices = @transform_1, window_bounds = array<i64: 8, 128>}, {pipeline_mode = #tpu.pipeline_mode<synchronous>, transform_indices = @transform_2, window_bounds = array<i64: 96, 40>}, {pipeline_mode = #tpu.pipeline_mode<synchronous>, transform_indices = @transform_3, window_bounds = array<i64: 256, 32>}, {pipeline_mode = #tpu.pipeline_mode<synchronous>, transform_indices = @transform_4, window_bounds = array<i64: 256, 256>}, {pipeline_mode = #tpu.pipeline_mode<synchronous>, transform_indices = @transform_5, window_bounds = array<i64: 1, 256>}, {pipeline_mode = #tpu.pipeline_mode<synchronous>, transform_indices = @transform_6, window_bounds = array<i64: 256, 3>}, {pipeline_mode = #tpu.pipeline_mode<synchronous>, transform_indices = @transform_7, window_bounds = array<i64: 1, 1>}, {transform_indices = @transform_8, window_bounds = array<i64: 1, 1, 128>}]} {
    %c0 = arith.constant 0 : index
    %c0_0 = arith.constant 0 : index
    %c0_1 = arith.constant 0 : index
    %0 = vector.load %arg1[%c0, %c0_0, %c0_1] : memref<8x40x128xf32, #tpu.memory_space<vmem>>, vector<8x40x128xf32>
    %c0_2 = arith.constant 0 : index
    %c0_3 = arith.constant 0 : index
    %1 = vector.load %arg2[%c0_2, %c0_3] : memref<8x128xf32, #tpu.memory_space<vmem>>, vector<8x128xf32>
    %c0_4 = arith.constant 0 : index
    %c0_5 = arith.constant 0 : index
    %2 = vector.load %arg3[%c0_4, %c0_5] : memref<96x40xf32, #tpu.memory_space<vmem>>, vector<96x40xf32>
    %3 = vector.extract_strided_slice %0 {offsets = [0, 0, 0], sizes = [1, 40, 128], strides = [1, 1, 1]} : vector<8x40x128xf32> to vector<1x40x128xf32>
    %4 = vector.shape_cast %3 : vector<1x40x128xf32> to vector<40x128xf32>
    %cst = arith.constant dense<0.000000e+00> : vector<96x128xf32>
    %5 = tpu.matmul %2, %4, %cst {dimension_numbers = #tpu.dot_dimension_numbers<[1], [0], [0], [1], [0, 0, 1, 1], [], []>} : vector<96x40xf32>, vector<40x128xf32>, vector<96x128xf32> -> vector<96x128xf32>
    %6 = vector.extract_strided_slice %0 {offsets = [1, 0, 0], sizes = [1, 40, 128], strides = [1, 1, 1]} : vector<8x40x128xf32> to vector<1x40x128xf32>
    %7 = vector.shape_cast %6 : vector<1x40x128xf32> to vector<40x128xf32>
    %cst_6 = arith.constant dense<0.000000e+00> : vector<96x128xf32>
    %8 = tpu.matmul %2, %7, %cst_6 {dimension_numbers = #tpu.dot_dimension_numbers<[1], [0], [0], [1], [0, 0, 1, 1], [], []>} : vector<96x40xf32>, vector<40x128xf32>, vector<96x128xf32> -> vector<96x128xf32>
    %9 = vector.extract_strided_slice %0 {offsets = [2, 0, 0], sizes = [1, 40, 128], strides = [1, 1, 1]} : vector<8x40x128xf32> to vector<1x40x128xf32>
    %10 = vector.shape_cast %9 : vector<1x40x128xf32> to vector<40x128xf32>
    %cst_7 = arith.constant dense<0.000000e+00> : vector<96x128xf32>
    %11 = tpu.matmul %2, %10, %cst_7 {dimension_numbers = #tpu.dot_dimension_numbers<[1], [0], [0], [1], [0, 0, 1, 1], [], []>} : vector<96x40xf32>, vector<40x128xf32>, vector<96x128xf32> -> vector<96x128xf32>
    %12 = vector.extract_strided_slice %0 {offsets = [3, 0, 0], sizes = [1, 40, 128], strides = [1, 1, 1]} : vector<8x40x128xf32> to vector<1x40x128xf32>
    %13 = vector.shape_cast %12 : vector<1x40x128xf32> to vector<40x128xf32>
    %cst_8 = arith.constant dense<0.000000e+00> : vector<96x128xf32>
    %14 = tpu.matmul %2, %13, %cst_8 {dimension_numbers = #tpu.dot_dimension_numbers<[1], [0], [0], [1], [0, 0, 1, 1], [], []>} : vector<96x40xf32>, vector<40x128xf32>, vector<96x128xf32> -> vector<96x128xf32>
    %15 = vector.extract_strided_slice %0 {offsets = [4, 0, 0], sizes = [1, 40, 128], strides = [1, 1, 1]} : vector<8x40x128xf32> to vector<1x40x128xf32>
    %16 = vector.shape_cast %15 : vector<1x40x128xf32> to vector<40x128xf32>
    %cst_9 = arith.constant dense<0.000000e+00> : vector<96x128xf32>
    %17 = tpu.matmul %2, %16, %cst_9 {dimension_numbers = #tpu.dot_dimension_numbers<[1], [0], [0], [1], [0, 0, 1, 1], [], []>} : vector<96x40xf32>, vector<40x128xf32>, vector<96x128xf32> -> vector<96x128xf32>
    %18 = vector.extract_strided_slice %0 {offsets = [5, 0, 0], sizes = [1, 40, 128], strides = [1, 1, 1]} : vector<8x40x128xf32> to vector<1x40x128xf32>
    %19 = vector.shape_cast %18 : vector<1x40x128xf32> to vector<40x128xf32>
    %cst_10 = arith.constant dense<0.000000e+00> : vector<96x128xf32>
    %20 = tpu.matmul %2, %19, %cst_10 {dimension_numbers = #tpu.dot_dimension_numbers<[1], [0], [0], [1], [0, 0, 1, 1], [], []>} : vector<96x40xf32>, vector<40x128xf32>, vector<96x128xf32> -> vector<96x128xf32>
    %21 = vector.extract_strided_slice %0 {offsets = [6, 0, 0], sizes = [1, 40, 128], strides = [1, 1, 1]} : vector<8x40x128xf32> to vector<1x40x128xf32>
    %22 = vector.shape_cast %21 : vector<1x40x128xf32> to vector<40x128xf32>
    %cst_11 = arith.constant dense<0.000000e+00> : vector<96x128xf32>
    %23 = tpu.matmul %2, %22, %cst_11 {dimension_numbers = #tpu.dot_dimension_numbers<[1], [0], [0], [1], [0, 0, 1, 1], [], []>} : vector<96x40xf32>, vector<40x128xf32>, vector<96x128xf32> -> vector<96x128xf32>
    %24 = vector.extract_strided_slice %0 {offsets = [7, 0, 0], sizes = [1, 40, 128], strides = [1, 1, 1]} : vector<8x40x128xf32> to vector<1x40x128xf32>
    %25 = vector.shape_cast %24 : vector<1x40x128xf32> to vector<40x128xf32>
    %cst_12 = arith.constant dense<0.000000e+00> : vector<96x128xf32>
    %26 = tpu.matmul %2, %25, %cst_12 {dimension_numbers = #tpu.dot_dimension_numbers<[1], [0], [0], [1], [0, 0, 1, 1], [], []>} : vector<96x40xf32>, vector<40x128xf32>, vector<96x128xf32> -> vector<96x128xf32>
    %cst_13 = arith.constant 5.000000e-01 : f32
    %27 = vector.broadcast %cst_13 : f32 to vector<8x128xf32>
    %28 = arith.cmpf ogt, %1, %27 : vector<8x128xf32>
    %cst_14 = arith.constant 0.000000e+00 : f32
    %cst_15 = arith.constant -1.000000e+30 : f32
    %29 = vector.broadcast %cst_14 : f32 to vector<8x128xf32>
    %30 = vector.broadcast %cst_15 : f32 to vector<8x128xf32>
    %31 = arith.select %28, %29, %30 : vector<8x128xi1>, vector<8x128xf32>
    %32 = vector.extract_strided_slice %5 {offsets = [32, 0], sizes = [8, 128], strides = [1, 1]} : vector<96x128xf32> to vector<8x128xf32>
    %33 = vector.extract_strided_slice %8 {offsets = [32, 0], sizes = [8, 128], strides = [1, 1]} : vector<96x128xf32> to vector<8x128xf32>
    %34 = vector.extract_strided_slice %11 {offsets = [32, 0], sizes = [8, 128], strides = [1, 1]} : vector<96x128xf32> to vector<8x128xf32>
    %35 = vector.extract_strided_slice %14 {offsets = [32, 0], sizes = [8, 128], strides = [1, 1]} : vector<96x128xf32> to vector<8x128xf32>
    %36 = vector.extract_strided_slice %17 {offsets = [32, 0], sizes = [8, 128], strides = [1, 1]} : vector<96x128xf32> to vector<8x128xf32>
    %37 = vector.extract_strided_slice %20 {offsets = [32, 0], sizes = [8, 128], strides = [1, 1]} : vector<96x128xf32> to vector<8x128xf32>
    %38 = vector.extract_strided_slice %23 {offsets = [32, 0], sizes = [8, 128], strides = [1, 1]} : vector<96x128xf32> to vector<8x128xf32>
    %39 = vector.extract_strided_slice %26 {offsets = [32, 0], sizes = [8, 128], strides = [1, 1]} : vector<96x128xf32> to vector<8x128xf32>
    %40 = vector.extract_strided_slice %5 {offsets = [64, 0], sizes = [8, 128], strides = [1, 1]} : vector<96x128xf32> to vector<8x128xf32>
    %41 = vector.extract_strided_slice %8 {offsets = [64, 0], sizes = [8, 128], strides = [1, 1]} : vector<96x128xf32> to vector<8x128xf32>
    %42 = vector.extract_strided_slice %11 {offsets = [64, 0], sizes = [8, 128], strides = [1, 1]} : vector<96x128xf32> to vector<8x128xf32>
    %43 = vector.extract_strided_slice %14 {offsets = [64, 0], sizes = [8, 128], strides = [1, 1]} : vector<96x128xf32> to vector<8x128xf32>
    %44 = vector.extract_strided_slice %17 {offsets = [64, 0], sizes = [8, 128], strides = [1, 1]} : vector<96x128xf32> to vector<8x128xf32>
    %45 = vector.extract_strided_slice %20 {offsets = [64, 0], sizes = [8, 128], strides = [1, 1]} : vector<96x128xf32> to vector<8x128xf32>
    %46 = vector.extract_strided_slice %23 {offsets = [64, 0], sizes = [8, 128], strides = [1, 1]} : vector<96x128xf32> to vector<8x128xf32>
    %47 = vector.extract_strided_slice %26 {offsets = [64, 0], sizes = [8, 128], strides = [1, 1]} : vector<96x128xf32> to vector<8x128xf32>
    %cst_16 = arith.constant 0.000000e+00 : f32
    %48 = vector.broadcast %cst_16 : f32 to vector<8x128xf32>
    %49 = vector.extract_strided_slice %5 {offsets = [0, 0], sizes = [8, 128], strides = [1, 1]} : vector<96x128xf32> to vector<8x128xf32>
    %50 = arith.mulf %49, %32 : vector<8x128xf32>
    %cst_17 = arith.constant dense<0.000000e+00> : vector<128xf32>
    %51 = vector.multi_reduction <add>, %50, %cst_17 [0] : vector<8x128xf32> to vector<128xf32>
    %52 = vector.shape_cast %51 : vector<128xf32> to vector<1x128xf32>
    %53 = arith.mulf %49, %33 : vector<8x128xf32>
    %cst_18 = arith.constant dense<0.000000e+00> : vector<128xf32>
    %54 = vector.multi_reduction <add>, %53, %cst_18 [0] : vector<8x128xf32> to vector<128xf32>
    %55 = vector.shape_cast %54 : vector<128xf32> to vector<1x128xf32>
    %56 = arith.mulf %49, %34 : vector<8x128xf32>
    %cst_19 = arith.constant dense<0.000000e+00> : vector<128xf32>
    %57 = vector.multi_reduction <add>, %56, %cst_19 [0] : vector<8x128xf32> to vector<128xf32>
    %58 = vector.shape_cast %57 : vector<128xf32> to vector<1x128xf32>
    %59 = arith.mulf %49, %35 : vector<8x128xf32>
    %cst_20 = arith.constant dense<0.000000e+00> : vector<128xf32>
    %60 = vector.multi_reduction <add>, %59, %cst_20 [0] : vector<8x128xf32> to vector<128xf32>
    %61 = vector.shape_cast %60 : vector<128xf32> to vector<1x128xf32>
    %62 = arith.mulf %49, %36 : vector<8x128xf32>
    %cst_21 = arith.constant dense<0.000000e+00> : vector<128xf32>
    %63 = vector.multi_reduction <add>, %62, %cst_21 [0] : vector<8x128xf32> to vector<128xf32>
    %64 = vector.shape_cast %63 : vector<128xf32> to vector<1x128xf32>
    %65 = arith.mulf %49, %37 : vector<8x128xf32>
    %cst_22 = arith.constant dense<0.000000e+00> : vector<128xf32>
    %66 = vector.multi_reduction <add>, %65, %cst_22 [0] : vector<8x128xf32> to vector<128xf32>
    %67 = vector.shape_cast %66 : vector<128xf32> to vector<1x128xf32>
    %68 = arith.mulf %49, %38 : vector<8x128xf32>
    %cst_23 = arith.constant dense<0.000000e+00> : vector<128xf32>
    %69 = vector.multi_reduction <add>, %68, %cst_23 [0] : vector<8x128xf32> to vector<128xf32>
    %70 = vector.shape_cast %69 : vector<128xf32> to vector<1x128xf32>
    %71 = arith.mulf %49, %39 : vector<8x128xf32>
    %cst_24 = arith.constant dense<0.000000e+00> : vector<128xf32>
    %72 = vector.multi_reduction <add>, %71, %cst_24 [0] : vector<8x128xf32> to vector<128xf32>
    %73 = vector.shape_cast %72 : vector<128xf32> to vector<1x128xf32>
    %74 = tpu.concatenate %52, %55, %58, %61, %64, %67, %70, %73 in 0 : vector<1x128xf32>, vector<1x128xf32>, vector<1x128xf32>, vector<1x128xf32>, vector<1x128xf32>, vector<1x128xf32>, vector<1x128xf32>, vector<1x128xf32> -> vector<8x128xf32>
    %75 = arith.addf %74, %31 : vector<8x128xf32>
    %cst_25 = arith.constant dense<0xFF800000> : vector<128xf32>
    %76 = vector.multi_reduction <maximumf>, %75, %cst_25 [0] : vector<8x128xf32> to vector<128xf32>
    %77 = vector.shape_cast %76 : vector<128xf32> to vector<1x128xf32>
    %78 = vector.broadcast %77 : vector<1x128xf32> to vector<8x128xf32>
    %79 = arith.subf %75, %78 : vector<8x128xf32>
    %80 = math.exp %79 : vector<8x128xf32>
    %cst_26 = arith.constant dense<0.000000e+00> : vector<128xf32>
    %81 = vector.multi_reduction <add>, %80, %cst_26 [0] : vector<8x128xf32> to vector<128xf32>
    %82 = vector.shape_cast %81 : vector<128xf32> to vector<1x128xf32>
    %83 = tpu.reciprocal %82 {approx = true} : vector<1x128xf32> -> vector<1x128xf32>
    %84 = vector.broadcast %83 : vector<1x128xf32> to vector<8x128xf32>
    %85 = arith.mulf %80, %84 : vector<8x128xf32>
    %86 = vector.extract_strided_slice %1 {offsets = [0, 0], sizes = [1, 128], strides = [1, 1]} : vector<8x128xf32> to vector<1x128xf32>
    %87 = vector.broadcast %86 : vector<1x128xf32> to vector<8x128xf32>
    %88 = arith.mulf %85, %87 : vector<8x128xf32>
    %89 = arith.addf %48, %88 : vector<8x128xf32>
    %90 = vector.extract_strided_slice %8 {offsets = [0, 0], sizes = [8, 128], strides = [1, 1]} : vector<96x128xf32> to vector<8x128xf32>
    %91 = arith.mulf %90, %32 : vector<8x128xf32>
    %cst_27 = arith.constant dense<0.000000e+00> : vector<128xf32>
    %92 = vector.multi_reduction <add>, %91, %cst_27 [0] : vector<8x128xf32> to vector<128xf32>
    %93 = vector.shape_cast %92 : vector<128xf32> to vector<1x128xf32>
    %94 = arith.mulf %90, %33 : vector<8x128xf32>
    %cst_28 = arith.constant dense<0.000000e+00> : vector<128xf32>
    %95 = vector.multi_reduction <add>, %94, %cst_28 [0] : vector<8x128xf32> to vector<128xf32>
    %96 = vector.shape_cast %95 : vector<128xf32> to vector<1x128xf32>
    %97 = arith.mulf %90, %34 : vector<8x128xf32>
    %cst_29 = arith.constant dense<0.000000e+00> : vector<128xf32>
    %98 = vector.multi_reduction <add>, %97, %cst_29 [0] : vector<8x128xf32> to vector<128xf32>
    %99 = vector.shape_cast %98 : vector<128xf32> to vector<1x128xf32>
    %100 = arith.mulf %90, %35 : vector<8x128xf32>
    %cst_30 = arith.constant dense<0.000000e+00> : vector<128xf32>
    %101 = vector.multi_reduction <add>, %100, %cst_30 [0] : vector<8x128xf32> to vector<128xf32>
    %102 = vector.shape_cast %101 : vector<128xf32> to vector<1x128xf32>
    %103 = arith.mulf %90, %36 : vector<8x128xf32>
    %cst_31 = arith.constant dense<0.000000e+00> : vector<128xf32>
    %104 = vector.multi_reduction <add>, %103, %cst_31 [0] : vector<8x128xf32> to vector<128xf32>
    %105 = vector.shape_cast %104 : vector<128xf32> to vector<1x128xf32>
    %106 = arith.mulf %90, %37 : vector<8x128xf32>
    %cst_32 = arith.constant dense<0.000000e+00> : vector<128xf32>
    %107 = vector.multi_reduction <add>, %106, %cst_32 [0] : vector<8x128xf32> to vector<128xf32>
    %108 = vector.shape_cast %107 : vector<128xf32> to vector<1x128xf32>
    %109 = arith.mulf %90, %38 : vector<8x128xf32>
    %cst_33 = arith.constant dense<0.000000e+00> : vector<128xf32>
    %110 = vector.multi_reduction <add>, %109, %cst_33 [0] : vector<8x128xf32> to vector<128xf32>
    %111 = vector.shape_cast %110 : vector<128xf32> to vector<1x128xf32>
    %112 = arith.mulf %90, %39 : vector<8x128xf32>
    %cst_34 = arith.constant dense<0.000000e+00> : vector<128xf32>
    %113 = vector.multi_reduction <add>, %112, %cst_34 [0] : vector<8x128xf32> to vector<128xf32>
    %114 = vector.shape_cast %113 : vector<128xf32> to vector<1x128xf32>
    %115 = tpu.concatenate %93, %96, %99, %102, %105, %108, %111, %114 in 0 : vector<1x128xf32>, vector<1x128xf32>, vector<1x128xf32>, vector<1x128xf32>, vector<1x128xf32>, vector<1x128xf32>, vector<1x128xf32>, vector<1x128xf32> -> vector<8x128xf32>
    %116 = arith.addf %115, %31 : vector<8x128xf32>
    %cst_35 = arith.constant dense<0xFF800000> : vector<128xf32>
    %117 = vector.multi_reduction <maximumf>, %116, %cst_35 [0] : vector<8x128xf32> to vector<128xf32>
    %118 = vector.shape_cast %117 : vector<128xf32> to vector<1x128xf32>
    %119 = vector.broadcast %118 : vector<1x128xf32> to vector<8x128xf32>
    %120 = arith.subf %116, %119 : vector<8x128xf32>
    %121 = math.exp %120 : vector<8x128xf32>
    %cst_36 = arith.constant dense<0.000000e+00> : vector<128xf32>
    %122 = vector.multi_reduction <add>, %121, %cst_36 [0] : vector<8x128xf32> to vector<128xf32>
    %123 = vector.shape_cast %122 : vector<128xf32> to vector<1x128xf32>
    %124 = tpu.reciprocal %123 {approx = true} : vector<1x128xf32> -> vector<1x128xf32>
    %125 = vector.broadcast %124 : vector<1x128xf32> to vector<8x128xf32>
    %126 = arith.mulf %121, %125 : vector<8x128xf32>
    %127 = vector.extract_strided_slice %1 {offsets = [1, 0], sizes = [1, 128], strides = [1, 1]} : vector<8x128xf32> to vector<1x128xf32>
    %128 = vector.broadcast %127 : vector<1x128xf32> to vector<8x128xf32>
    %129 = arith.mulf %126, %128 : vector<8x128xf32>
    %130 = arith.addf %89, %129 : vector<8x128xf32>
    %131 = vector.extract_strided_slice %11 {offsets = [0, 0], sizes = [8, 128], strides = [1, 1]} : vector<96x128xf32> to vector<8x128xf32>
    %132 = arith.mulf %131, %32 : vector<8x128xf32>
    %cst_37 = arith.constant dense<0.000000e+00> : vector<128xf32>
    %133 = vector.multi_reduction <add>, %132, %cst_37 [0] : vector<8x128xf32> to vector<128xf32>
    %134 = vector.shape_cast %133 : vector<128xf32> to vector<1x128xf32>
    %135 = arith.mulf %131, %33 : vector<8x128xf32>
    %cst_38 = arith.constant dense<0.000000e+00> : vector<128xf32>
    %136 = vector.multi_reduction <add>, %135, %cst_38 [0] : vector<8x128xf32> to vector<128xf32>
    %137 = vector.shape_cast %136 : vector<128xf32> to vector<1x128xf32>
    %138 = arith.mulf %131, %34 : vector<8x128xf32>
    %cst_39 = arith.constant dense<0.000000e+00> : vector<128xf32>
    %139 = vector.multi_reduction <add>, %138, %cst_39 [0] : vector<8x128xf32> to vector<128xf32>
    %140 = vector.shape_cast %139 : vector<128xf32> to vector<1x128xf32>
    %141 = arith.mulf %131, %35 : vector<8x128xf32>
    %cst_40 = arith.constant dense<0.000000e+00> : vector<128xf32>
    %142 = vector.multi_reduction <add>, %141, %cst_40 [0] : vector<8x128xf32> to vector<128xf32>
    %143 = vector.shape_cast %142 : vector<128xf32> to vector<1x128xf32>
    %144 = arith.mulf %131, %36 : vector<8x128xf32>
    %cst_41 = arith.constant dense<0.000000e+00> : vector<128xf32>
    %145 = vector.multi_reduction <add>, %144, %cst_41 [0] : vector<8x128xf32> to vector<128xf32>
    %146 = vector.shape_cast %145 : vector<128xf32> to vector<1x128xf32>
    %147 = arith.mulf %131, %37 : vector<8x128xf32>
    %cst_42 = arith.constant dense<0.000000e+00> : vector<128xf32>
    %148 = vector.multi_reduction <add>, %147, %cst_42 [0] : vector<8x128xf32> to vector<128xf32>
    %149 = vector.shape_cast %148 : vector<128xf32> to vector<1x128xf32>
    %150 = arith.mulf %131, %38 : vector<8x128xf32>
    %cst_43 = arith.constant dense<0.000000e+00> : vector<128xf32>
    %151 = vector.multi_reduction <add>, %150, %cst_43 [0] : vector<8x128xf32> to vector<128xf32>
    %152 = vector.shape_cast %151 : vector<128xf32> to vector<1x128xf32>
    %153 = arith.mulf %131, %39 : vector<8x128xf32>
    %cst_44 = arith.constant dense<0.000000e+00> : vector<128xf32>
    %154 = vector.multi_reduction <add>, %153, %cst_44 [0] : vector<8x128xf32> to vector<128xf32>
    %155 = vector.shape_cast %154 : vector<128xf32> to vector<1x128xf32>
    %156 = tpu.concatenate %134, %137, %140, %143, %146, %149, %152, %155 in 0 : vector<1x128xf32>, vector<1x128xf32>, vector<1x128xf32>, vector<1x128xf32>, vector<1x128xf32>, vector<1x128xf32>, vector<1x128xf32>, vector<1x128xf32> -> vector<8x128xf32>
    %157 = arith.addf %156, %31 : vector<8x128xf32>
    %cst_45 = arith.constant dense<0xFF800000> : vector<128xf32>
    %158 = vector.multi_reduction <maximumf>, %157, %cst_45 [0] : vector<8x128xf32> to vector<128xf32>
    %159 = vector.shape_cast %158 : vector<128xf32> to vector<1x128xf32>
    %160 = vector.broadcast %159 : vector<1x128xf32> to vector<8x128xf32>
    %161 = arith.subf %157, %160 : vector<8x128xf32>
    %162 = math.exp %161 : vector<8x128xf32>
    %cst_46 = arith.constant dense<0.000000e+00> : vector<128xf32>
    %163 = vector.multi_reduction <add>, %162, %cst_46 [0] : vector<8x128xf32> to vector<128xf32>
    %164 = vector.shape_cast %163 : vector<128xf32> to vector<1x128xf32>
    %165 = tpu.reciprocal %164 {approx = true} : vector<1x128xf32> -> vector<1x128xf32>
    %166 = vector.broadcast %165 : vector<1x128xf32> to vector<8x128xf32>
    %167 = arith.mulf %162, %166 : vector<8x128xf32>
    %168 = vector.extract_strided_slice %1 {offsets = [2, 0], sizes = [1, 128], strides = [1, 1]} : vector<8x128xf32> to vector<1x128xf32>
    %169 = vector.broadcast %168 : vector<1x128xf32> to vector<8x128xf32>
    %170 = arith.mulf %167, %169 : vector<8x128xf32>
    %171 = arith.addf %130, %170 : vector<8x128xf32>
    %172 = vector.extract_strided_slice %14 {offsets = [0, 0], sizes = [8, 128], strides = [1, 1]} : vector<96x128xf32> to vector<8x128xf32>
    %173 = arith.mulf %172, %32 : vector<8x128xf32>
    %cst_47 = arith.constant dense<0.000000e+00> : vector<128xf32>
    %174 = vector.multi_reduction <add>, %173, %cst_47 [0] : vector<8x128xf32> to vector<128xf32>
    %175 = vector.shape_cast %174 : vector<128xf32> to vector<1x128xf32>
    %176 = arith.mulf %172, %33 : vector<8x128xf32>
    %cst_48 = arith.constant dense<0.000000e+00> : vector<128xf32>
    %177 = vector.multi_reduction <add>, %176, %cst_48 [0] : vector<8x128xf32> to vector<128xf32>
    %178 = vector.shape_cast %177 : vector<128xf32> to vector<1x128xf32>
    %179 = arith.mulf %172, %34 : vector<8x128xf32>
    %cst_49 = arith.constant dense<0.000000e+00> : vector<128xf32>
    %180 = vector.multi_reduction <add>, %179, %cst_49 [0] : vector<8x128xf32> to vector<128xf32>
    %181 = vector.shape_cast %180 : vector<128xf32> to vector<1x128xf32>
    %182 = arith.mulf %172, %35 : vector<8x128xf32>
    %cst_50 = arith.constant dense<0.000000e+00> : vector<128xf32>
    %183 = vector.multi_reduction <add>, %182, %cst_50 [0] : vector<8x128xf32> to vector<128xf32>
    %184 = vector.shape_cast %183 : vector<128xf32> to vector<1x128xf32>
    %185 = arith.mulf %172, %36 : vector<8x128xf32>
    %cst_51 = arith.constant dense<0.000000e+00> : vector<128xf32>
    %186 = vector.multi_reduction <add>, %185, %cst_51 [0] : vector<8x128xf32> to vector<128xf32>
    %187 = vector.shape_cast %186 : vector<128xf32> to vector<1x128xf32>
    %188 = arith.mulf %172, %37 : vector<8x128xf32>
    %cst_52 = arith.constant dense<0.000000e+00> : vector<128xf32>
    %189 = vector.multi_reduction <add>, %188, %cst_52 [0] : vector<8x128xf32> to vector<128xf32>
    %190 = vector.shape_cast %189 : vector<128xf32> to vector<1x128xf32>
    %191 = arith.mulf %172, %38 : vector<8x128xf32>
    %cst_53 = arith.constant dense<0.000000e+00> : vector<128xf32>
    %192 = vector.multi_reduction <add>, %191, %cst_53 [0] : vector<8x128xf32> to vector<128xf32>
    %193 = vector.shape_cast %192 : vector<128xf32> to vector<1x128xf32>
    %194 = arith.mulf %172, %39 : vector<8x128xf32>
    %cst_54 = arith.constant dense<0.000000e+00> : vector<128xf32>
    %195 = vector.multi_reduction <add>, %194, %cst_54 [0] : vector<8x128xf32> to vector<128xf32>
    %196 = vector.shape_cast %195 : vector<128xf32> to vector<1x128xf32>
    %197 = tpu.concatenate %175, %178, %181, %184, %187, %190, %193, %196 in 0 : vector<1x128xf32>, vector<1x128xf32>, vector<1x128xf32>, vector<1x128xf32>, vector<1x128xf32>, vector<1x128xf32>, vector<1x128xf32>, vector<1x128xf32> -> vector<8x128xf32>
    %198 = arith.addf %197, %31 : vector<8x128xf32>
    %cst_55 = arith.constant dense<0xFF800000> : vector<128xf32>
    %199 = vector.multi_reduction <maximumf>, %198, %cst_55 [0] : vector<8x128xf32> to vector<128xf32>
    %200 = vector.shape_cast %199 : vector<128xf32> to vector<1x128xf32>
    %201 = vector.broadcast %200 : vector<1x128xf32> to vector<8x128xf32>
    %202 = arith.subf %198, %201 : vector<8x128xf32>
    %203 = math.exp %202 : vector<8x128xf32>
    %cst_56 = arith.constant dense<0.000000e+00> : vector<128xf32>
    %204 = vector.multi_reduction <add>, %203, %cst_56 [0] : vector<8x128xf32> to vector<128xf32>
    %205 = vector.shape_cast %204 : vector<128xf32> to vector<1x128xf32>
    %206 = tpu.reciprocal %205 {approx = true} : vector<1x128xf32> -> vector<1x128xf32>
    %207 = vector.broadcast %206 : vector<1x128xf32> to vector<8x128xf32>
    %208 = arith.mulf %203, %207 : vector<8x128xf32>
    %209 = vector.extract_strided_slice %1 {offsets = [3, 0], sizes = [1, 128], strides = [1, 1]} : vector<8x128xf32> to vector<1x128xf32>
    %210 = vector.broadcast %209 : vector<1x128xf32> to vector<8x128xf32>
    %211 = arith.mulf %208, %210 : vector<8x128xf32>
    %212 = arith.addf %171, %211 : vector<8x128xf32>
    %213 = vector.extract_strided_slice %17 {offsets = [0, 0], sizes = [8, 128], strides = [1, 1]} : vector<96x128xf32> to vector<8x128xf32>
    %214 = arith.mulf %213, %32 : vector<8x128xf32>
    %cst_57 = arith.constant dense<0.000000e+00> : vector<128xf32>
    %215 = vector.multi_reduction <add>, %214, %cst_57 [0] : vector<8x128xf32> to vector<128xf32>
    %216 = vector.shape_cast %215 : vector<128xf32> to vector<1x128xf32>
    %217 = arith.mulf %213, %33 : vector<8x128xf32>
    %cst_58 = arith.constant dense<0.000000e+00> : vector<128xf32>
    %218 = vector.multi_reduction <add>, %217, %cst_58 [0] : vector<8x128xf32> to vector<128xf32>
    %219 = vector.shape_cast %218 : vector<128xf32> to vector<1x128xf32>
    %220 = arith.mulf %213, %34 : vector<8x128xf32>
    %cst_59 = arith.constant dense<0.000000e+00> : vector<128xf32>
    %221 = vector.multi_reduction <add>, %220, %cst_59 [0] : vector<8x128xf32> to vector<128xf32>
    %222 = vector.shape_cast %221 : vector<128xf32> to vector<1x128xf32>
    %223 = arith.mulf %213, %35 : vector<8x128xf32>
    %cst_60 = arith.constant dense<0.000000e+00> : vector<128xf32>
    %224 = vector.multi_reduction <add>, %223, %cst_60 [0] : vector<8x128xf32> to vector<128xf32>
    %225 = vector.shape_cast %224 : vector<128xf32> to vector<1x128xf32>
    %226 = arith.mulf %213, %36 : vector<8x128xf32>
    %cst_61 = arith.constant dense<0.000000e+00> : vector<128xf32>
    %227 = vector.multi_reduction <add>, %226, %cst_61 [0] : vector<8x128xf32> to vector<128xf32>
    %228 = vector.shape_cast %227 : vector<128xf32> to vector<1x128xf32>
    %229 = arith.mulf %213, %37 : vector<8x128xf32>
    %cst_62 = arith.constant dense<0.000000e+00> : vector<128xf32>
    %230 = vector.multi_reduction <add>, %229, %cst_62 [0] : vector<8x128xf32> to vector<128xf32>
    %231 = vector.shape_cast %230 : vector<128xf32> to vector<1x128xf32>
    %232 = arith.mulf %213, %38 : vector<8x128xf32>
    %cst_63 = arith.constant dense<0.000000e+00> : vector<128xf32>
    %233 = vector.multi_reduction <add>, %232, %cst_63 [0] : vector<8x128xf32> to vector<128xf32>
    %234 = vector.shape_cast %233 : vector<128xf32> to vector<1x128xf32>
    %235 = arith.mulf %213, %39 : vector<8x128xf32>
    %cst_64 = arith.constant dense<0.000000e+00> : vector<128xf32>
    %236 = vector.multi_reduction <add>, %235, %cst_64 [0] : vector<8x128xf32> to vector<128xf32>
    %237 = vector.shape_cast %236 : vector<128xf32> to vector<1x128xf32>
    %238 = tpu.concatenate %216, %219, %222, %225, %228, %231, %234, %237 in 0 : vector<1x128xf32>, vector<1x128xf32>, vector<1x128xf32>, vector<1x128xf32>, vector<1x128xf32>, vector<1x128xf32>, vector<1x128xf32>, vector<1x128xf32> -> vector<8x128xf32>
    %239 = arith.addf %238, %31 : vector<8x128xf32>
    %cst_65 = arith.constant dense<0xFF800000> : vector<128xf32>
    %240 = vector.multi_reduction <maximumf>, %239, %cst_65 [0] : vector<8x128xf32> to vector<128xf32>
    %241 = vector.shape_cast %240 : vector<128xf32> to vector<1x128xf32>
    %242 = vector.broadcast %241 : vector<1x128xf32> to vector<8x128xf32>
    %243 = arith.subf %239, %242 : vector<8x128xf32>
    %244 = math.exp %243 : vector<8x128xf32>
    %cst_66 = arith.constant dense<0.000000e+00> : vector<128xf32>
    %245 = vector.multi_reduction <add>, %244, %cst_66 [0] : vector<8x128xf32> to vector<128xf32>
    %246 = vector.shape_cast %245 : vector<128xf32> to vector<1x128xf32>
    %247 = tpu.reciprocal %246 {approx = true} : vector<1x128xf32> -> vector<1x128xf32>
    %248 = vector.broadcast %247 : vector<1x128xf32> to vector<8x128xf32>
    %249 = arith.mulf %244, %248 : vector<8x128xf32>
    %250 = vector.extract_strided_slice %1 {offsets = [4, 0], sizes = [1, 128], strides = [1, 1]} : vector<8x128xf32> to vector<1x128xf32>
    %251 = vector.broadcast %250 : vector<1x128xf32> to vector<8x128xf32>
    %252 = arith.mulf %249, %251 : vector<8x128xf32>
    %253 = arith.addf %212, %252 : vector<8x128xf32>
    %254 = vector.extract_strided_slice %20 {offsets = [0, 0], sizes = [8, 128], strides = [1, 1]} : vector<96x128xf32> to vector<8x128xf32>
    %255 = arith.mulf %254, %32 : vector<8x128xf32>
    %cst_67 = arith.constant dense<0.000000e+00> : vector<128xf32>
    %256 = vector.multi_reduction <add>, %255, %cst_67 [0] : vector<8x128xf32> to vector<128xf32>
    %257 = vector.shape_cast %256 : vector<128xf32> to vector<1x128xf32>
    %258 = arith.mulf %254, %33 : vector<8x128xf32>
    %cst_68 = arith.constant dense<0.000000e+00> : vector<128xf32>
    %259 = vector.multi_reduction <add>, %258, %cst_68 [0] : vector<8x128xf32> to vector<128xf32>
    %260 = vector.shape_cast %259 : vector<128xf32> to vector<1x128xf32>
    %261 = arith.mulf %254, %34 : vector<8x128xf32>
    %cst_69 = arith.constant dense<0.000000e+00> : vector<128xf32>
    %262 = vector.multi_reduction <add>, %261, %cst_69 [0] : vector<8x128xf32> to vector<128xf32>
    %263 = vector.shape_cast %262 : vector<128xf32> to vector<1x128xf32>
    %264 = arith.mulf %254, %35 : vector<8x128xf32>
    %cst_70 = arith.constant dense<0.000000e+00> : vector<128xf32>
    %265 = vector.multi_reduction <add>, %264, %cst_70 [0] : vector<8x128xf32> to vector<128xf32>
    %266 = vector.shape_cast %265 : vector<128xf32> to vector<1x128xf32>
    %267 = arith.mulf %254, %36 : vector<8x128xf32>
    %cst_71 = arith.constant dense<0.000000e+00> : vector<128xf32>
    %268 = vector.multi_reduction <add>, %267, %cst_71 [0] : vector<8x128xf32> to vector<128xf32>
    %269 = vector.shape_cast %268 : vector<128xf32> to vector<1x128xf32>
    %270 = arith.mulf %254, %37 : vector<8x128xf32>
    %cst_72 = arith.constant dense<0.000000e+00> : vector<128xf32>
    %271 = vector.multi_reduction <add>, %270, %cst_72 [0] : vector<8x128xf32> to vector<128xf32>
    %272 = vector.shape_cast %271 : vector<128xf32> to vector<1x128xf32>
    %273 = arith.mulf %254, %38 : vector<8x128xf32>
    %cst_73 = arith.constant dense<0.000000e+00> : vector<128xf32>
    %274 = vector.multi_reduction <add>, %273, %cst_73 [0] : vector<8x128xf32> to vector<128xf32>
    %275 = vector.shape_cast %274 : vector<128xf32> to vector<1x128xf32>
    %276 = arith.mulf %254, %39 : vector<8x128xf32>
    %cst_74 = arith.constant dense<0.000000e+00> : vector<128xf32>
    %277 = vector.multi_reduction <add>, %276, %cst_74 [0] : vector<8x128xf32> to vector<128xf32>
    %278 = vector.shape_cast %277 : vector<128xf32> to vector<1x128xf32>
    %279 = tpu.concatenate %257, %260, %263, %266, %269, %272, %275, %278 in 0 : vector<1x128xf32>, vector<1x128xf32>, vector<1x128xf32>, vector<1x128xf32>, vector<1x128xf32>, vector<1x128xf32>, vector<1x128xf32>, vector<1x128xf32> -> vector<8x128xf32>
    %280 = arith.addf %279, %31 : vector<8x128xf32>
    %cst_75 = arith.constant dense<0xFF800000> : vector<128xf32>
    %281 = vector.multi_reduction <maximumf>, %280, %cst_75 [0] : vector<8x128xf32> to vector<128xf32>
    %282 = vector.shape_cast %281 : vector<128xf32> to vector<1x128xf32>
    %283 = vector.broadcast %282 : vector<1x128xf32> to vector<8x128xf32>
    %284 = arith.subf %280, %283 : vector<8x128xf32>
    %285 = math.exp %284 : vector<8x128xf32>
    %cst_76 = arith.constant dense<0.000000e+00> : vector<128xf32>
    %286 = vector.multi_reduction <add>, %285, %cst_76 [0] : vector<8x128xf32> to vector<128xf32>
    %287 = vector.shape_cast %286 : vector<128xf32> to vector<1x128xf32>
    %288 = tpu.reciprocal %287 {approx = true} : vector<1x128xf32> -> vector<1x128xf32>
    %289 = vector.broadcast %288 : vector<1x128xf32> to vector<8x128xf32>
    %290 = arith.mulf %285, %289 : vector<8x128xf32>
    %291 = vector.extract_strided_slice %1 {offsets = [5, 0], sizes = [1, 128], strides = [1, 1]} : vector<8x128xf32> to vector<1x128xf32>
    %292 = vector.broadcast %291 : vector<1x128xf32> to vector<8x128xf32>
    %293 = arith.mulf %290, %292 : vector<8x128xf32>
    %294 = arith.addf %253, %293 : vector<8x128xf32>
    %295 = vector.extract_strided_slice %23 {offsets = [0, 0], sizes = [8, 128], strides = [1, 1]} : vector<96x128xf32> to vector<8x128xf32>
    %296 = arith.mulf %295, %32 : vector<8x128xf32>
    %cst_77 = arith.constant dense<0.000000e+00> : vector<128xf32>
    %297 = vector.multi_reduction <add>, %296, %cst_77 [0] : vector<8x128xf32> to vector<128xf32>
    %298 = vector.shape_cast %297 : vector<128xf32> to vector<1x128xf32>
    %299 = arith.mulf %295, %33 : vector<8x128xf32>
    %cst_78 = arith.constant dense<0.000000e+00> : vector<128xf32>
    %300 = vector.multi_reduction <add>, %299, %cst_78 [0] : vector<8x128xf32> to vector<128xf32>
    %301 = vector.shape_cast %300 : vector<128xf32> to vector<1x128xf32>
    %302 = arith.mulf %295, %34 : vector<8x128xf32>
    %cst_79 = arith.constant dense<0.000000e+00> : vector<128xf32>
    %303 = vector.multi_reduction <add>, %302, %cst_79 [0] : vector<8x128xf32> to vector<128xf32>
    %304 = vector.shape_cast %303 : vector<128xf32> to vector<1x128xf32>
    %305 = arith.mulf %295, %35 : vector<8x128xf32>
    %cst_80 = arith.constant dense<0.000000e+00> : vector<128xf32>
    %306 = vector.multi_reduction <add>, %305, %cst_80 [0] : vector<8x128xf32> to vector<128xf32>
    %307 = vector.shape_cast %306 : vector<128xf32> to vector<1x128xf32>
    %308 = arith.mulf %295, %36 : vector<8x128xf32>
    %cst_81 = arith.constant dense<0.000000e+00> : vector<128xf32>
    %309 = vector.multi_reduction <add>, %308, %cst_81 [0] : vector<8x128xf32> to vector<128xf32>
    %310 = vector.shape_cast %309 : vector<128xf32> to vector<1x128xf32>
    %311 = arith.mulf %295, %37 : vector<8x128xf32>
    %cst_82 = arith.constant dense<0.000000e+00> : vector<128xf32>
    %312 = vector.multi_reduction <add>, %311, %cst_82 [0] : vector<8x128xf32> to vector<128xf32>
    %313 = vector.shape_cast %312 : vector<128xf32> to vector<1x128xf32>
    %314 = arith.mulf %295, %38 : vector<8x128xf32>
    %cst_83 = arith.constant dense<0.000000e+00> : vector<128xf32>
    %315 = vector.multi_reduction <add>, %314, %cst_83 [0] : vector<8x128xf32> to vector<128xf32>
    %316 = vector.shape_cast %315 : vector<128xf32> to vector<1x128xf32>
    %317 = arith.mulf %295, %39 : vector<8x128xf32>
    %cst_84 = arith.constant dense<0.000000e+00> : vector<128xf32>
    %318 = vector.multi_reduction <add>, %317, %cst_84 [0] : vector<8x128xf32> to vector<128xf32>
    %319 = vector.shape_cast %318 : vector<128xf32> to vector<1x128xf32>
    %320 = tpu.concatenate %298, %301, %304, %307, %310, %313, %316, %319 in 0 : vector<1x128xf32>, vector<1x128xf32>, vector<1x128xf32>, vector<1x128xf32>, vector<1x128xf32>, vector<1x128xf32>, vector<1x128xf32>, vector<1x128xf32> -> vector<8x128xf32>
    %321 = arith.addf %320, %31 : vector<8x128xf32>
    %cst_85 = arith.constant dense<0xFF800000> : vector<128xf32>
    %322 = vector.multi_reduction <maximumf>, %321, %cst_85 [0] : vector<8x128xf32> to vector<128xf32>
    %323 = vector.shape_cast %322 : vector<128xf32> to vector<1x128xf32>
    %324 = vector.broadcast %323 : vector<1x128xf32> to vector<8x128xf32>
    %325 = arith.subf %321, %324 : vector<8x128xf32>
    %326 = math.exp %325 : vector<8x128xf32>
    %cst_86 = arith.constant dense<0.000000e+00> : vector<128xf32>
    %327 = vector.multi_reduction <add>, %326, %cst_86 [0] : vector<8x128xf32> to vector<128xf32>
    %328 = vector.shape_cast %327 : vector<128xf32> to vector<1x128xf32>
    %329 = tpu.reciprocal %328 {approx = true} : vector<1x128xf32> -> vector<1x128xf32>
    %330 = vector.broadcast %329 : vector<1x128xf32> to vector<8x128xf32>
    %331 = arith.mulf %326, %330 : vector<8x128xf32>
    %332 = vector.extract_strided_slice %1 {offsets = [6, 0], sizes = [1, 128], strides = [1, 1]} : vector<8x128xf32> to vector<1x128xf32>
    %333 = vector.broadcast %332 : vector<1x128xf32> to vector<8x128xf32>
    %334 = arith.mulf %331, %333 : vector<8x128xf32>
    %335 = arith.addf %294, %334 : vector<8x128xf32>
    %336 = vector.extract_strided_slice %26 {offsets = [0, 0], sizes = [8, 128], strides = [1, 1]} : vector<96x128xf32> to vector<8x128xf32>
    %337 = arith.mulf %336, %32 : vector<8x128xf32>
    %cst_87 = arith.constant dense<0.000000e+00> : vector<128xf32>
    %338 = vector.multi_reduction <add>, %337, %cst_87 [0] : vector<8x128xf32> to vector<128xf32>
    %339 = vector.shape_cast %338 : vector<128xf32> to vector<1x128xf32>
    %340 = arith.mulf %336, %33 : vector<8x128xf32>
    %cst_88 = arith.constant dense<0.000000e+00> : vector<128xf32>
    %341 = vector.multi_reduction <add>, %340, %cst_88 [0] : vector<8x128xf32> to vector<128xf32>
    %342 = vector.shape_cast %341 : vector<128xf32> to vector<1x128xf32>
    %343 = arith.mulf %336, %34 : vector<8x128xf32>
    %cst_89 = arith.constant dense<0.000000e+00> : vector<128xf32>
    %344 = vector.multi_reduction <add>, %343, %cst_89 [0] : vector<8x128xf32> to vector<128xf32>
    %345 = vector.shape_cast %344 : vector<128xf32> to vector<1x128xf32>
    %346 = arith.mulf %336, %35 : vector<8x128xf32>
    %cst_90 = arith.constant dense<0.000000e+00> : vector<128xf32>
    %347 = vector.multi_reduction <add>, %346, %cst_90 [0] : vector<8x128xf32> to vector<128xf32>
    %348 = vector.shape_cast %347 : vector<128xf32> to vector<1x128xf32>
    %349 = arith.mulf %336, %36 : vector<8x128xf32>
    %cst_91 = arith.constant dense<0.000000e+00> : vector<128xf32>
    %350 = vector.multi_reduction <add>, %349, %cst_91 [0] : vector<8x128xf32> to vector<128xf32>
    %351 = vector.shape_cast %350 : vector<128xf32> to vector<1x128xf32>
    %352 = arith.mulf %336, %37 : vector<8x128xf32>
    %cst_92 = arith.constant dense<0.000000e+00> : vector<128xf32>
    %353 = vector.multi_reduction <add>, %352, %cst_92 [0] : vector<8x128xf32> to vector<128xf32>
    %354 = vector.shape_cast %353 : vector<128xf32> to vector<1x128xf32>
    %355 = arith.mulf %336, %38 : vector<8x128xf32>
    %cst_93 = arith.constant dense<0.000000e+00> : vector<128xf32>
    %356 = vector.multi_reduction <add>, %355, %cst_93 [0] : vector<8x128xf32> to vector<128xf32>
    %357 = vector.shape_cast %356 : vector<128xf32> to vector<1x128xf32>
    %358 = arith.mulf %336, %39 : vector<8x128xf32>
    %cst_94 = arith.constant dense<0.000000e+00> : vector<128xf32>
    %359 = vector.multi_reduction <add>, %358, %cst_94 [0] : vector<8x128xf32> to vector<128xf32>
    %360 = vector.shape_cast %359 : vector<128xf32> to vector<1x128xf32>
    %361 = tpu.concatenate %339, %342, %345, %348, %351, %354, %357, %360 in 0 : vector<1x128xf32>, vector<1x128xf32>, vector<1x128xf32>, vector<1x128xf32>, vector<1x128xf32>, vector<1x128xf32>, vector<1x128xf32>, vector<1x128xf32> -> vector<8x128xf32>
    %362 = arith.addf %361, %31 : vector<8x128xf32>
    %cst_95 = arith.constant dense<0xFF800000> : vector<128xf32>
    %363 = vector.multi_reduction <maximumf>, %362, %cst_95 [0] : vector<8x128xf32> to vector<128xf32>
    %364 = vector.shape_cast %363 : vector<128xf32> to vector<1x128xf32>
    %365 = vector.broadcast %364 : vector<1x128xf32> to vector<8x128xf32>
    %366 = arith.subf %362, %365 : vector<8x128xf32>
    %367 = math.exp %366 : vector<8x128xf32>
    %cst_96 = arith.constant dense<0.000000e+00> : vector<128xf32>
    %368 = vector.multi_reduction <add>, %367, %cst_96 [0] : vector<8x128xf32> to vector<128xf32>
    %369 = vector.shape_cast %368 : vector<128xf32> to vector<1x128xf32>
    %370 = tpu.reciprocal %369 {approx = true} : vector<1x128xf32> -> vector<1x128xf32>
    %371 = vector.broadcast %370 : vector<1x128xf32> to vector<8x128xf32>
    %372 = arith.mulf %367, %371 : vector<8x128xf32>
    %373 = vector.extract_strided_slice %1 {offsets = [7, 0], sizes = [1, 128], strides = [1, 1]} : vector<8x128xf32> to vector<1x128xf32>
    %374 = vector.broadcast %373 : vector<1x128xf32> to vector<8x128xf32>
    %375 = arith.mulf %372, %374 : vector<8x128xf32>
    %376 = arith.addf %335, %375 : vector<8x128xf32>
    %377 = vector.extract_strided_slice %376 {offsets = [0, 0], sizes = [1, 128], strides = [1, 1]} : vector<8x128xf32> to vector<1x128xf32>
    %378 = vector.broadcast %377 : vector<1x128xf32> to vector<8x128xf32>
    %379 = arith.mulf %378, %40 : vector<8x128xf32>
    %380 = vector.extract_strided_slice %376 {offsets = [1, 0], sizes = [1, 128], strides = [1, 1]} : vector<8x128xf32> to vector<1x128xf32>
    %381 = vector.broadcast %380 : vector<1x128xf32> to vector<8x128xf32>
    %382 = arith.mulf %381, %41 : vector<8x128xf32>
    %383 = arith.addf %379, %382 : vector<8x128xf32>
    %384 = vector.extract_strided_slice %376 {offsets = [2, 0], sizes = [1, 128], strides = [1, 1]} : vector<8x128xf32> to vector<1x128xf32>
    %385 = vector.broadcast %384 : vector<1x128xf32> to vector<8x128xf32>
    %386 = arith.mulf %385, %42 : vector<8x128xf32>
    %387 = arith.addf %383, %386 : vector<8x128xf32>
    %388 = vector.extract_strided_slice %376 {offsets = [3, 0], sizes = [1, 128], strides = [1, 1]} : vector<8x128xf32> to vector<1x128xf32>
    %389 = vector.broadcast %388 : vector<1x128xf32> to vector<8x128xf32>
    %390 = arith.mulf %389, %43 : vector<8x128xf32>
    %391 = arith.addf %387, %390 : vector<8x128xf32>
    %392 = vector.extract_strided_slice %376 {offsets = [4, 0], sizes = [1, 128], strides = [1, 1]} : vector<8x128xf32> to vector<1x128xf32>
    %393 = vector.broadcast %392 : vector<1x128xf32> to vector<8x128xf32>
    %394 = arith.mulf %393, %44 : vector<8x128xf32>
    %395 = arith.addf %391, %394 : vector<8x128xf32>
    %396 = vector.extract_strided_slice %376 {offsets = [5, 0], sizes = [1, 128], strides = [1, 1]} : vector<8x128xf32> to vector<1x128xf32>
    %397 = vector.broadcast %396 : vector<1x128xf32> to vector<8x128xf32>
    %398 = arith.mulf %397, %45 : vector<8x128xf32>
    %399 = arith.addf %395, %398 : vector<8x128xf32>
    %400 = vector.extract_strided_slice %376 {offsets = [6, 0], sizes = [1, 128], strides = [1, 1]} : vector<8x128xf32> to vector<1x128xf32>
    %401 = vector.broadcast %400 : vector<1x128xf32> to vector<8x128xf32>
    %402 = arith.mulf %401, %46 : vector<8x128xf32>
    %403 = arith.addf %399, %402 : vector<8x128xf32>
    %404 = vector.extract_strided_slice %376 {offsets = [7, 0], sizes = [1, 128], strides = [1, 1]} : vector<8x128xf32> to vector<1x128xf32>
    %405 = vector.broadcast %404 : vector<1x128xf32> to vector<8x128xf32>
    %406 = arith.mulf %405, %47 : vector<8x128xf32>
    %407 = arith.addf %403, %406 : vector<8x128xf32>
    %408 = vector.extract_strided_slice %5 {offsets = [40, 0], sizes = [8, 128], strides = [1, 1]} : vector<96x128xf32> to vector<8x128xf32>
    %409 = vector.extract_strided_slice %8 {offsets = [40, 0], sizes = [8, 128], strides = [1, 1]} : vector<96x128xf32> to vector<8x128xf32>
    %410 = vector.extract_strided_slice %11 {offsets = [40, 0], sizes = [8, 128], strides = [1, 1]} : vector<96x128xf32> to vector<8x128xf32>
    %411 = vector.extract_strided_slice %14 {offsets = [40, 0], sizes = [8, 128], strides = [1, 1]} : vector<96x128xf32> to vector<8x128xf32>
    %412 = vector.extract_strided_slice %17 {offsets = [40, 0], sizes = [8, 128], strides = [1, 1]} : vector<96x128xf32> to vector<8x128xf32>
    %413 = vector.extract_strided_slice %20 {offsets = [40, 0], sizes = [8, 128], strides = [1, 1]} : vector<96x128xf32> to vector<8x128xf32>
    %414 = vector.extract_strided_slice %23 {offsets = [40, 0], sizes = [8, 128], strides = [1, 1]} : vector<96x128xf32> to vector<8x128xf32>
    %415 = vector.extract_strided_slice %26 {offsets = [40, 0], sizes = [8, 128], strides = [1, 1]} : vector<96x128xf32> to vector<8x128xf32>
    %416 = vector.extract_strided_slice %5 {offsets = [72, 0], sizes = [8, 128], strides = [1, 1]} : vector<96x128xf32> to vector<8x128xf32>
    %417 = vector.extract_strided_slice %8 {offsets = [72, 0], sizes = [8, 128], strides = [1, 1]} : vector<96x128xf32> to vector<8x128xf32>
    %418 = vector.extract_strided_slice %11 {offsets = [72, 0], sizes = [8, 128], strides = [1, 1]} : vector<96x128xf32> to vector<8x128xf32>
    %419 = vector.extract_strided_slice %14 {offsets = [72, 0], sizes = [8, 128], strides = [1, 1]} : vector<96x128xf32> to vector<8x128xf32>
    %420 = vector.extract_strided_slice %17 {offsets = [72, 0], sizes = [8, 128], strides = [1, 1]} : vector<96x128xf32> to vector<8x128xf32>
    %421 = vector.extract_strided_slice %20 {offsets = [72, 0], sizes = [8, 128], strides = [1, 1]} : vector<96x128xf32> to vector<8x128xf32>
    %422 = vector.extract_strided_slice %23 {offsets = [72, 0], sizes = [8, 128], strides = [1, 1]} : vector<96x128xf32> to vector<8x128xf32>
    %423 = vector.extract_strided_slice %26 {offsets = [72, 0], sizes = [8, 128], strides = [1, 1]} : vector<96x128xf32> to vector<8x128xf32>
    %cst_97 = arith.constant 0.000000e+00 : f32
    %424 = vector.broadcast %cst_97 : f32 to vector<8x128xf32>
    %425 = vector.extract_strided_slice %5 {offsets = [8, 0], sizes = [8, 128], strides = [1, 1]} : vector<96x128xf32> to vector<8x128xf32>
    %426 = arith.mulf %425, %408 : vector<8x128xf32>
    %cst_98 = arith.constant dense<0.000000e+00> : vector<128xf32>
    %427 = vector.multi_reduction <add>, %426, %cst_98 [0] : vector<8x128xf32> to vector<128xf32>
    %428 = vector.shape_cast %427 : vector<128xf32> to vector<1x128xf32>
    %429 = arith.mulf %425, %409 : vector<8x128xf32>
    %cst_99 = arith.constant dense<0.000000e+00> : vector<128xf32>
    %430 = vector.multi_reduction <add>, %429, %cst_99 [0] : vector<8x128xf32> to vector<128xf32>
    %431 = vector.shape_cast %430 : vector<128xf32> to vector<1x128xf32>
    %432 = arith.mulf %425, %410 : vector<8x128xf32>
    %cst_100 = arith.constant dense<0.000000e+00> : vector<128xf32>
    %433 = vector.multi_reduction <add>, %432, %cst_100 [0] : vector<8x128xf32> to vector<128xf32>
    %434 = vector.shape_cast %433 : vector<128xf32> to vector<1x128xf32>
    %435 = arith.mulf %425, %411 : vector<8x128xf32>
    %cst_101 = arith.constant dense<0.000000e+00> : vector<128xf32>
    %436 = vector.multi_reduction <add>, %435, %cst_101 [0] : vector<8x128xf32> to vector<128xf32>
    %437 = vector.shape_cast %436 : vector<128xf32> to vector<1x128xf32>
    %438 = arith.mulf %425, %412 : vector<8x128xf32>
    %cst_102 = arith.constant dense<0.000000e+00> : vector<128xf32>
    %439 = vector.multi_reduction <add>, %438, %cst_102 [0] : vector<8x128xf32> to vector<128xf32>
    %440 = vector.shape_cast %439 : vector<128xf32> to vector<1x128xf32>
    %441 = arith.mulf %425, %413 : vector<8x128xf32>
    %cst_103 = arith.constant dense<0.000000e+00> : vector<128xf32>
    %442 = vector.multi_reduction <add>, %441, %cst_103 [0] : vector<8x128xf32> to vector<128xf32>
    %443 = vector.shape_cast %442 : vector<128xf32> to vector<1x128xf32>
    %444 = arith.mulf %425, %414 : vector<8x128xf32>
    %cst_104 = arith.constant dense<0.000000e+00> : vector<128xf32>
    %445 = vector.multi_reduction <add>, %444, %cst_104 [0] : vector<8x128xf32> to vector<128xf32>
    %446 = vector.shape_cast %445 : vector<128xf32> to vector<1x128xf32>
    %447 = arith.mulf %425, %415 : vector<8x128xf32>
    %cst_105 = arith.constant dense<0.000000e+00> : vector<128xf32>
    %448 = vector.multi_reduction <add>, %447, %cst_105 [0] : vector<8x128xf32> to vector<128xf32>
    %449 = vector.shape_cast %448 : vector<128xf32> to vector<1x128xf32>
    %450 = tpu.concatenate %428, %431, %434, %437, %440, %443, %446, %449 in 0 : vector<1x128xf32>, vector<1x128xf32>, vector<1x128xf32>, vector<1x128xf32>, vector<1x128xf32>, vector<1x128xf32>, vector<1x128xf32>, vector<1x128xf32> -> vector<8x128xf32>
    %451 = arith.addf %450, %31 : vector<8x128xf32>
    %cst_106 = arith.constant dense<0xFF800000> : vector<128xf32>
    %452 = vector.multi_reduction <maximumf>, %451, %cst_106 [0] : vector<8x128xf32> to vector<128xf32>
    %453 = vector.shape_cast %452 : vector<128xf32> to vector<1x128xf32>
    %454 = vector.broadcast %453 : vector<1x128xf32> to vector<8x128xf32>
    %455 = arith.subf %451, %454 : vector<8x128xf32>
    %456 = math.exp %455 : vector<8x128xf32>
    %cst_107 = arith.constant dense<0.000000e+00> : vector<128xf32>
    %457 = vector.multi_reduction <add>, %456, %cst_107 [0] : vector<8x128xf32> to vector<128xf32>
    %458 = vector.shape_cast %457 : vector<128xf32> to vector<1x128xf32>
    %459 = tpu.reciprocal %458 {approx = true} : vector<1x128xf32> -> vector<1x128xf32>
    %460 = vector.broadcast %459 : vector<1x128xf32> to vector<8x128xf32>
    %461 = arith.mulf %456, %460 : vector<8x128xf32>
    %462 = vector.extract_strided_slice %1 {offsets = [0, 0], sizes = [1, 128], strides = [1, 1]} : vector<8x128xf32> to vector<1x128xf32>
    %463 = vector.broadcast %462 : vector<1x128xf32> to vector<8x128xf32>
    %464 = arith.mulf %461, %463 : vector<8x128xf32>
    %465 = arith.addf %424, %464 : vector<8x128xf32>
    %466 = vector.extract_strided_slice %8 {offsets = [8, 0], sizes = [8, 128], strides = [1, 1]} : vector<96x128xf32> to vector<8x128xf32>
    %467 = arith.mulf %466, %408 : vector<8x128xf32>
    %cst_108 = arith.constant dense<0.000000e+00> : vector<128xf32>
    %468 = vector.multi_reduction <add>, %467, %cst_108 [0] : vector<8x128xf32> to vector<128xf32>
    %469 = vector.shape_cast %468 : vector<128xf32> to vector<1x128xf32>
    %470 = arith.mulf %466, %409 : vector<8x128xf32>
    %cst_109 = arith.constant dense<0.000000e+00> : vector<128xf32>
    %471 = vector.multi_reduction <add>, %470, %cst_109 [0] : vector<8x128xf32> to vector<128xf32>
    %472 = vector.shape_cast %471 : vector<128xf32> to vector<1x128xf32>
    %473 = arith.mulf %466, %410 : vector<8x128xf32>
    %cst_110 = arith.constant dense<0.000000e+00> : vector<128xf32>
    %474 = vector.multi_reduction <add>, %473, %cst_110 [0] : vector<8x128xf32> to vector<128xf32>
    %475 = vector.shape_cast %474 : vector<128xf32> to vector<1x128xf32>
    %476 = arith.mulf %466, %411 : vector<8x128xf32>
    %cst_111 = arith.constant dense<0.000000e+00> : vector<128xf32>
    %477 = vector.multi_reduction <add>, %476, %cst_111 [0] : vector<8x128xf32> to vector<128xf32>
    %478 = vector.shape_cast %477 : vector<128xf32> to vector<1x128xf32>
    %479 = arith.mulf %466, %412 : vector<8x128xf32>
    %cst_112 = arith.constant dense<0.000000e+00> : vector<128xf32>
    %480 = vector.multi_reduction <add>, %479, %cst_112 [0] : vector<8x128xf32> to vector<128xf32>
    %481 = vector.shape_cast %480 : vector<128xf32> to vector<1x128xf32>
    %482 = arith.mulf %466, %413 : vector<8x128xf32>
    %cst_113 = arith.constant dense<0.000000e+00> : vector<128xf32>
    %483 = vector.multi_reduction <add>, %482, %cst_113 [0] : vector<8x128xf32> to vector<128xf32>
    %484 = vector.shape_cast %483 : vector<128xf32> to vector<1x128xf32>
    %485 = arith.mulf %466, %414 : vector<8x128xf32>
    %cst_114 = arith.constant dense<0.000000e+00> : vector<128xf32>
    %486 = vector.multi_reduction <add>, %485, %cst_114 [0] : vector<8x128xf32> to vector<128xf32>
    %487 = vector.shape_cast %486 : vector<128xf32> to vector<1x128xf32>
    %488 = arith.mulf %466, %415 : vector<8x128xf32>
    %cst_115 = arith.constant dense<0.000000e+00> : vector<128xf32>
    %489 = vector.multi_reduction <add>, %488, %cst_115 [0] : vector<8x128xf32> to vector<128xf32>
    %490 = vector.shape_cast %489 : vector<128xf32> to vector<1x128xf32>
    %491 = tpu.concatenate %469, %472, %475, %478, %481, %484, %487, %490 in 0 : vector<1x128xf32>, vector<1x128xf32>, vector<1x128xf32>, vector<1x128xf32>, vector<1x128xf32>, vector<1x128xf32>, vector<1x128xf32>, vector<1x128xf32> -> vector<8x128xf32>
    %492 = arith.addf %491, %31 : vector<8x128xf32>
    %cst_116 = arith.constant dense<0xFF800000> : vector<128xf32>
    %493 = vector.multi_reduction <maximumf>, %492, %cst_116 [0] : vector<8x128xf32> to vector<128xf32>
    %494 = vector.shape_cast %493 : vector<128xf32> to vector<1x128xf32>
    %495 = vector.broadcast %494 : vector<1x128xf32> to vector<8x128xf32>
    %496 = arith.subf %492, %495 : vector<8x128xf32>
    %497 = math.exp %496 : vector<8x128xf32>
    %cst_117 = arith.constant dense<0.000000e+00> : vector<128xf32>
    %498 = vector.multi_reduction <add>, %497, %cst_117 [0] : vector<8x128xf32> to vector<128xf32>
    %499 = vector.shape_cast %498 : vector<128xf32> to vector<1x128xf32>
    %500 = tpu.reciprocal %499 {approx = true} : vector<1x128xf32> -> vector<1x128xf32>
    %501 = vector.broadcast %500 : vector<1x128xf32> to vector<8x128xf32>
    %502 = arith.mulf %497, %501 : vector<8x128xf32>
    %503 = vector.extract_strided_slice %1 {offsets = [1, 0], sizes = [1, 128], strides = [1, 1]} : vector<8x128xf32> to vector<1x128xf32>
    %504 = vector.broadcast %503 : vector<1x128xf32> to vector<8x128xf32>
    %505 = arith.mulf %502, %504 : vector<8x128xf32>
    %506 = arith.addf %465, %505 : vector<8x128xf32>
    %507 = vector.extract_strided_slice %11 {offsets = [8, 0], sizes = [8, 128], strides = [1, 1]} : vector<96x128xf32> to vector<8x128xf32>
    %508 = arith.mulf %507, %408 : vector<8x128xf32>
    %cst_118 = arith.constant dense<0.000000e+00> : vector<128xf32>
    %509 = vector.multi_reduction <add>, %508, %cst_118 [0] : vector<8x128xf32> to vector<128xf32>
    %510 = vector.shape_cast %509 : vector<128xf32> to vector<1x128xf32>
    %511 = arith.mulf %507, %409 : vector<8x128xf32>
    %cst_119 = arith.constant dense<0.000000e+00> : vector<128xf32>
    %512 = vector.multi_reduction <add>, %511, %cst_119 [0] : vector<8x128xf32> to vector<128xf32>
    %513 = vector.shape_cast %512 : vector<128xf32> to vector<1x128xf32>
    %514 = arith.mulf %507, %410 : vector<8x128xf32>
    %cst_120 = arith.constant dense<0.000000e+00> : vector<128xf32>
    %515 = vector.multi_reduction <add>, %514, %cst_120 [0] : vector<8x128xf32> to vector<128xf32>
    %516 = vector.shape_cast %515 : vector<128xf32> to vector<1x128xf32>
    %517 = arith.mulf %507, %411 : vector<8x128xf32>
    %cst_121 = arith.constant dense<0.000000e+00> : vector<128xf32>
    %518 = vector.multi_reduction <add>, %517, %cst_121 [0] : vector<8x128xf32> to vector<128xf32>
    %519 = vector.shape_cast %518 : vector<128xf32> to vector<1x128xf32>
    %520 = arith.mulf %507, %412 : vector<8x128xf32>
    %cst_122 = arith.constant dense<0.000000e+00> : vector<128xf32>
    %521 = vector.multi_reduction <add>, %520, %cst_122 [0] : vector<8x128xf32> to vector<128xf32>
    %522 = vector.shape_cast %521 : vector<128xf32> to vector<1x128xf32>
    %523 = arith.mulf %507, %413 : vector<8x128xf32>
    %cst_123 = arith.constant dense<0.000000e+00> : vector<128xf32>
    %524 = vector.multi_reduction <add>, %523, %cst_123 [0] : vector<8x128xf32> to vector<128xf32>
    %525 = vector.shape_cast %524 : vector<128xf32> to vector<1x128xf32>
    %526 = arith.mulf %507, %414 : vector<8x128xf32>
    %cst_124 = arith.constant dense<0.000000e+00> : vector<128xf32>
    %527 = vector.multi_reduction <add>, %526, %cst_124 [0] : vector<8x128xf32> to vector<128xf32>
    %528 = vector.shape_cast %527 : vector<128xf32> to vector<1x128xf32>
    %529 = arith.mulf %507, %415 : vector<8x128xf32>
    %cst_125 = arith.constant dense<0.000000e+00> : vector<128xf32>
    %530 = vector.multi_reduction <add>, %529, %cst_125 [0] : vector<8x128xf32> to vector<128xf32>
    %531 = vector.shape_cast %530 : vector<128xf32> to vector<1x128xf32>
    %532 = tpu.concatenate %510, %513, %516, %519, %522, %525, %528, %531 in 0 : vector<1x128xf32>, vector<1x128xf32>, vector<1x128xf32>, vector<1x128xf32>, vector<1x128xf32>, vector<1x128xf32>, vector<1x128xf32>, vector<1x128xf32> -> vector<8x128xf32>
    %533 = arith.addf %532, %31 : vector<8x128xf32>
    %cst_126 = arith.constant dense<0xFF800000> : vector<128xf32>
    %534 = vector.multi_reduction <maximumf>, %533, %cst_126 [0] : vector<8x128xf32> to vector<128xf32>
    %535 = vector.shape_cast %534 : vector<128xf32> to vector<1x128xf32>
    %536 = vector.broadcast %535 : vector<1x128xf32> to vector<8x128xf32>
    %537 = arith.subf %533, %536 : vector<8x128xf32>
    %538 = math.exp %537 : vector<8x128xf32>
    %cst_127 = arith.constant dense<0.000000e+00> : vector<128xf32>
    %539 = vector.multi_reduction <add>, %538, %cst_127 [0] : vector<8x128xf32> to vector<128xf32>
    %540 = vector.shape_cast %539 : vector<128xf32> to vector<1x128xf32>
    %541 = tpu.reciprocal %540 {approx = true} : vector<1x128xf32> -> vector<1x128xf32>
    %542 = vector.broadcast %541 : vector<1x128xf32> to vector<8x128xf32>
    %543 = arith.mulf %538, %542 : vector<8x128xf32>
    %544 = vector.extract_strided_slice %1 {offsets = [2, 0], sizes = [1, 128], strides = [1, 1]} : vector<8x128xf32> to vector<1x128xf32>
    %545 = vector.broadcast %544 : vector<1x128xf32> to vector<8x128xf32>
    %546 = arith.mulf %543, %545 : vector<8x128xf32>
    %547 = arith.addf %506, %546 : vector<8x128xf32>
    %548 = vector.extract_strided_slice %14 {offsets = [8, 0], sizes = [8, 128], strides = [1, 1]} : vector<96x128xf32> to vector<8x128xf32>
    %549 = arith.mulf %548, %408 : vector<8x128xf32>
    %cst_128 = arith.constant dense<0.000000e+00> : vector<128xf32>
    %550 = vector.multi_reduction <add>, %549, %cst_128 [0] : vector<8x128xf32> to vector<128xf32>
    %551 = vector.shape_cast %550 : vector<128xf32> to vector<1x128xf32>
    %552 = arith.mulf %548, %409 : vector<8x128xf32>
    %cst_129 = arith.constant dense<0.000000e+00> : vector<128xf32>
    %553 = vector.multi_reduction <add>, %552, %cst_129 [0] : vector<8x128xf32> to vector<128xf32>
    %554 = vector.shape_cast %553 : vector<128xf32> to vector<1x128xf32>
    %555 = arith.mulf %548, %410 : vector<8x128xf32>
    %cst_130 = arith.constant dense<0.000000e+00> : vector<128xf32>
    %556 = vector.multi_reduction <add>, %555, %cst_130 [0] : vector<8x128xf32> to vector<128xf32>
    %557 = vector.shape_cast %556 : vector<128xf32> to vector<1x128xf32>
    %558 = arith.mulf %548, %411 : vector<8x128xf32>
    %cst_131 = arith.constant dense<0.000000e+00> : vector<128xf32>
    %559 = vector.multi_reduction <add>, %558, %cst_131 [0] : vector<8x128xf32> to vector<128xf32>
    %560 = vector.shape_cast %559 : vector<128xf32> to vector<1x128xf32>
    %561 = arith.mulf %548, %412 : vector<8x128xf32>
    %cst_132 = arith.constant dense<0.000000e+00> : vector<128xf32>
    %562 = vector.multi_reduction <add>, %561, %cst_132 [0] : vector<8x128xf32> to vector<128xf32>
    %563 = vector.shape_cast %562 : vector<128xf32> to vector<1x128xf32>
    %564 = arith.mulf %548, %413 : vector<8x128xf32>
    %cst_133 = arith.constant dense<0.000000e+00> : vector<128xf32>
    %565 = vector.multi_reduction <add>, %564, %cst_133 [0] : vector<8x128xf32> to vector<128xf32>
    %566 = vector.shape_cast %565 : vector<128xf32> to vector<1x128xf32>
    %567 = arith.mulf %548, %414 : vector<8x128xf32>
    %cst_134 = arith.constant dense<0.000000e+00> : vector<128xf32>
    %568 = vector.multi_reduction <add>, %567, %cst_134 [0] : vector<8x128xf32> to vector<128xf32>
    %569 = vector.shape_cast %568 : vector<128xf32> to vector<1x128xf32>
    %570 = arith.mulf %548, %415 : vector<8x128xf32>
    %cst_135 = arith.constant dense<0.000000e+00> : vector<128xf32>
    %571 = vector.multi_reduction <add>, %570, %cst_135 [0] : vector<8x128xf32> to vector<128xf32>
    %572 = vector.shape_cast %571 : vector<128xf32> to vector<1x128xf32>
    %573 = tpu.concatenate %551, %554, %557, %560, %563, %566, %569, %572 in 0 : vector<1x128xf32>, vector<1x128xf32>, vector<1x128xf32>, vector<1x128xf32>, vector<1x128xf32>, vector<1x128xf32>, vector<1x128xf32>, vector<1x128xf32> -> vector<8x128xf32>
    %574 = arith.addf %573, %31 : vector<8x128xf32>
    %cst_136 = arith.constant dense<0xFF800000> : vector<128xf32>
    %575 = vector.multi_reduction <maximumf>, %574, %cst_136 [0] : vector<8x128xf32> to vector<128xf32>
    %576 = vector.shape_cast %575 : vector<128xf32> to vector<1x128xf32>
    %577 = vector.broadcast %576 : vector<1x128xf32> to vector<8x128xf32>
    %578 = arith.subf %574, %577 : vector<8x128xf32>
    %579 = math.exp %578 : vector<8x128xf32>
    %cst_137 = arith.constant dense<0.000000e+00> : vector<128xf32>
    %580 = vector.multi_reduction <add>, %579, %cst_137 [0] : vector<8x128xf32> to vector<128xf32>
    %581 = vector.shape_cast %580 : vector<128xf32> to vector<1x128xf32>
    %582 = tpu.reciprocal %581 {approx = true} : vector<1x128xf32> -> vector<1x128xf32>
    %583 = vector.broadcast %582 : vector<1x128xf32> to vector<8x128xf32>
    %584 = arith.mulf %579, %583 : vector<8x128xf32>
    %585 = vector.extract_strided_slice %1 {offsets = [3, 0], sizes = [1, 128], strides = [1, 1]} : vector<8x128xf32> to vector<1x128xf32>
    %586 = vector.broadcast %585 : vector<1x128xf32> to vector<8x128xf32>
    %587 = arith.mulf %584, %586 : vector<8x128xf32>
    %588 = arith.addf %547, %587 : vector<8x128xf32>
    %589 = vector.extract_strided_slice %17 {offsets = [8, 0], sizes = [8, 128], strides = [1, 1]} : vector<96x128xf32> to vector<8x128xf32>
    %590 = arith.mulf %589, %408 : vector<8x128xf32>
    %cst_138 = arith.constant dense<0.000000e+00> : vector<128xf32>
    %591 = vector.multi_reduction <add>, %590, %cst_138 [0] : vector<8x128xf32> to vector<128xf32>
    %592 = vector.shape_cast %591 : vector<128xf32> to vector<1x128xf32>
    %593 = arith.mulf %589, %409 : vector<8x128xf32>
    %cst_139 = arith.constant dense<0.000000e+00> : vector<128xf32>
    %594 = vector.multi_reduction <add>, %593, %cst_139 [0] : vector<8x128xf32> to vector<128xf32>
    %595 = vector.shape_cast %594 : vector<128xf32> to vector<1x128xf32>
    %596 = arith.mulf %589, %410 : vector<8x128xf32>
    %cst_140 = arith.constant dense<0.000000e+00> : vector<128xf32>
    %597 = vector.multi_reduction <add>, %596, %cst_140 [0] : vector<8x128xf32> to vector<128xf32>
    %598 = vector.shape_cast %597 : vector<128xf32> to vector<1x128xf32>
    %599 = arith.mulf %589, %411 : vector<8x128xf32>
    %cst_141 = arith.constant dense<0.000000e+00> : vector<128xf32>
    %600 = vector.multi_reduction <add>, %599, %cst_141 [0] : vector<8x128xf32> to vector<128xf32>
    %601 = vector.shape_cast %600 : vector<128xf32> to vector<1x128xf32>
    %602 = arith.mulf %589, %412 : vector<8x128xf32>
    %cst_142 = arith.constant dense<0.000000e+00> : vector<128xf32>
    %603 = vector.multi_reduction <add>, %602, %cst_142 [0] : vector<8x128xf32> to vector<128xf32>
    %604 = vector.shape_cast %603 : vector<128xf32> to vector<1x128xf32>
    %605 = arith.mulf %589, %413 : vector<8x128xf32>
    %cst_143 = arith.constant dense<0.000000e+00> : vector<128xf32>
    %606 = vector.multi_reduction <add>, %605, %cst_143 [0] : vector<8x128xf32> to vector<128xf32>
    %607 = vector.shape_cast %606 : vector<128xf32> to vector<1x128xf32>
    %608 = arith.mulf %589, %414 : vector<8x128xf32>
    %cst_144 = arith.constant dense<0.000000e+00> : vector<128xf32>
    %609 = vector.multi_reduction <add>, %608, %cst_144 [0] : vector<8x128xf32> to vector<128xf32>
    %610 = vector.shape_cast %609 : vector<128xf32> to vector<1x128xf32>
    %611 = arith.mulf %589, %415 : vector<8x128xf32>
    %cst_145 = arith.constant dense<0.000000e+00> : vector<128xf32>
    %612 = vector.multi_reduction <add>, %611, %cst_145 [0] : vector<8x128xf32> to vector<128xf32>
    %613 = vector.shape_cast %612 : vector<128xf32> to vector<1x128xf32>
    %614 = tpu.concatenate %592, %595, %598, %601, %604, %607, %610, %613 in 0 : vector<1x128xf32>, vector<1x128xf32>, vector<1x128xf32>, vector<1x128xf32>, vector<1x128xf32>, vector<1x128xf32>, vector<1x128xf32>, vector<1x128xf32> -> vector<8x128xf32>
    %615 = arith.addf %614, %31 : vector<8x128xf32>
    %cst_146 = arith.constant dense<0xFF800000> : vector<128xf32>
    %616 = vector.multi_reduction <maximumf>, %615, %cst_146 [0] : vector<8x128xf32> to vector<128xf32>
    %617 = vector.shape_cast %616 : vector<128xf32> to vector<1x128xf32>
    %618 = vector.broadcast %617 : vector<1x128xf32> to vector<8x128xf32>
    %619 = arith.subf %615, %618 : vector<8x128xf32>
    %620 = math.exp %619 : vector<8x128xf32>
    %cst_147 = arith.constant dense<0.000000e+00> : vector<128xf32>
    %621 = vector.multi_reduction <add>, %620, %cst_147 [0] : vector<8x128xf32> to vector<128xf32>
    %622 = vector.shape_cast %621 : vector<128xf32> to vector<1x128xf32>
    %623 = tpu.reciprocal %622 {approx = true} : vector<1x128xf32> -> vector<1x128xf32>
    %624 = vector.broadcast %623 : vector<1x128xf32> to vector<8x128xf32>
    %625 = arith.mulf %620, %624 : vector<8x128xf32>
    %626 = vector.extract_strided_slice %1 {offsets = [4, 0], sizes = [1, 128], strides = [1, 1]} : vector<8x128xf32> to vector<1x128xf32>
    %627 = vector.broadcast %626 : vector<1x128xf32> to vector<8x128xf32>
    %628 = arith.mulf %625, %627 : vector<8x128xf32>
    %629 = arith.addf %588, %628 : vector<8x128xf32>
    %630 = vector.extract_strided_slice %20 {offsets = [8, 0], sizes = [8, 128], strides = [1, 1]} : vector<96x128xf32> to vector<8x128xf32>
    %631 = arith.mulf %630, %408 : vector<8x128xf32>
    %cst_148 = arith.constant dense<0.000000e+00> : vector<128xf32>
    %632 = vector.multi_reduction <add>, %631, %cst_148 [0] : vector<8x128xf32> to vector<128xf32>
    %633 = vector.shape_cast %632 : vector<128xf32> to vector<1x128xf32>
    %634 = arith.mulf %630, %409 : vector<8x128xf32>
    %cst_149 = arith.constant dense<0.000000e+00> : vector<128xf32>
    %635 = vector.multi_reduction <add>, %634, %cst_149 [0] : vector<8x128xf32> to vector<128xf32>
    %636 = vector.shape_cast %635 : vector<128xf32> to vector<1x128xf32>
    %637 = arith.mulf %630, %410 : vector<8x128xf32>
    %cst_150 = arith.constant dense<0.000000e+00> : vector<128xf32>
    %638 = vector.multi_reduction <add>, %637, %cst_150 [0] : vector<8x128xf32> to vector<128xf32>
    %639 = vector.shape_cast %638 : vector<128xf32> to vector<1x128xf32>
    %640 = arith.mulf %630, %411 : vector<8x128xf32>
    %cst_151 = arith.constant dense<0.000000e+00> : vector<128xf32>
    %641 = vector.multi_reduction <add>, %640, %cst_151 [0] : vector<8x128xf32> to vector<128xf32>
    %642 = vector.shape_cast %641 : vector<128xf32> to vector<1x128xf32>
    %643 = arith.mulf %630, %412 : vector<8x128xf32>
    %cst_152 = arith.constant dense<0.000000e+00> : vector<128xf32>
    %644 = vector.multi_reduction <add>, %643, %cst_152 [0] : vector<8x128xf32> to vector<128xf32>
    %645 = vector.shape_cast %644 : vector<128xf32> to vector<1x128xf32>
    %646 = arith.mulf %630, %413 : vector<8x128xf32>
    %cst_153 = arith.constant dense<0.000000e+00> : vector<128xf32>
    %647 = vector.multi_reduction <add>, %646, %cst_153 [0] : vector<8x128xf32> to vector<128xf32>
    %648 = vector.shape_cast %647 : vector<128xf32> to vector<1x128xf32>
    %649 = arith.mulf %630, %414 : vector<8x128xf32>
    %cst_154 = arith.constant dense<0.000000e+00> : vector<128xf32>
    %650 = vector.multi_reduction <add>, %649, %cst_154 [0] : vector<8x128xf32> to vector<128xf32>
    %651 = vector.shape_cast %650 : vector<128xf32> to vector<1x128xf32>
    %652 = arith.mulf %630, %415 : vector<8x128xf32>
    %cst_155 = arith.constant dense<0.000000e+00> : vector<128xf32>
    %653 = vector.multi_reduction <add>, %652, %cst_155 [0] : vector<8x128xf32> to vector<128xf32>
    %654 = vector.shape_cast %653 : vector<128xf32> to vector<1x128xf32>
    %655 = tpu.concatenate %633, %636, %639, %642, %645, %648, %651, %654 in 0 : vector<1x128xf32>, vector<1x128xf32>, vector<1x128xf32>, vector<1x128xf32>, vector<1x128xf32>, vector<1x128xf32>, vector<1x128xf32>, vector<1x128xf32> -> vector<8x128xf32>
    %656 = arith.addf %655, %31 : vector<8x128xf32>
    %cst_156 = arith.constant dense<0xFF800000> : vector<128xf32>
    %657 = vector.multi_reduction <maximumf>, %656, %cst_156 [0] : vector<8x128xf32> to vector<128xf32>
    %658 = vector.shape_cast %657 : vector<128xf32> to vector<1x128xf32>
    %659 = vector.broadcast %658 : vector<1x128xf32> to vector<8x128xf32>
    %660 = arith.subf %656, %659 : vector<8x128xf32>
    %661 = math.exp %660 : vector<8x128xf32>
    %cst_157 = arith.constant dense<0.000000e+00> : vector<128xf32>
    %662 = vector.multi_reduction <add>, %661, %cst_157 [0] : vector<8x128xf32> to vector<128xf32>
    %663 = vector.shape_cast %662 : vector<128xf32> to vector<1x128xf32>
    %664 = tpu.reciprocal %663 {approx = true} : vector<1x128xf32> -> vector<1x128xf32>
    %665 = vector.broadcast %664 : vector<1x128xf32> to vector<8x128xf32>
    %666 = arith.mulf %661, %665 : vector<8x128xf32>
    %667 = vector.extract_strided_slice %1 {offsets = [5, 0], sizes = [1, 128], strides = [1, 1]} : vector<8x128xf32> to vector<1x128xf32>
    %668 = vector.broadcast %667 : vector<1x128xf32> to vector<8x128xf32>
    %669 = arith.mulf %666, %668 : vector<8x128xf32>
    %670 = arith.addf %629, %669 : vector<8x128xf32>
    %671 = vector.extract_strided_slice %23 {offsets = [8, 0], sizes = [8, 128], strides = [1, 1]} : vector<96x128xf32> to vector<8x128xf32>
    %672 = arith.mulf %671, %408 : vector<8x128xf32>
    %cst_158 = arith.constant dense<0.000000e+00> : vector<128xf32>
    %673 = vector.multi_reduction <add>, %672, %cst_158 [0] : vector<8x128xf32> to vector<128xf32>
    %674 = vector.shape_cast %673 : vector<128xf32> to vector<1x128xf32>
    %675 = arith.mulf %671, %409 : vector<8x128xf32>
    %cst_159 = arith.constant dense<0.000000e+00> : vector<128xf32>
    %676 = vector.multi_reduction <add>, %675, %cst_159 [0] : vector<8x128xf32> to vector<128xf32>
    %677 = vector.shape_cast %676 : vector<128xf32> to vector<1x128xf32>
    %678 = arith.mulf %671, %410 : vector<8x128xf32>
    %cst_160 = arith.constant dense<0.000000e+00> : vector<128xf32>
    %679 = vector.multi_reduction <add>, %678, %cst_160 [0] : vector<8x128xf32> to vector<128xf32>
    %680 = vector.shape_cast %679 : vector<128xf32> to vector<1x128xf32>
    %681 = arith.mulf %671, %411 : vector<8x128xf32>
    %cst_161 = arith.constant dense<0.000000e+00> : vector<128xf32>
    %682 = vector.multi_reduction <add>, %681, %cst_161 [0] : vector<8x128xf32> to vector<128xf32>
    %683 = vector.shape_cast %682 : vector<128xf32> to vector<1x128xf32>
    %684 = arith.mulf %671, %412 : vector<8x128xf32>
    %cst_162 = arith.constant dense<0.000000e+00> : vector<128xf32>
    %685 = vector.multi_reduction <add>, %684, %cst_162 [0] : vector<8x128xf32> to vector<128xf32>
    %686 = vector.shape_cast %685 : vector<128xf32> to vector<1x128xf32>
    %687 = arith.mulf %671, %413 : vector<8x128xf32>
    %cst_163 = arith.constant dense<0.000000e+00> : vector<128xf32>
    %688 = vector.multi_reduction <add>, %687, %cst_163 [0] : vector<8x128xf32> to vector<128xf32>
    %689 = vector.shape_cast %688 : vector<128xf32> to vector<1x128xf32>
    %690 = arith.mulf %671, %414 : vector<8x128xf32>
    %cst_164 = arith.constant dense<0.000000e+00> : vector<128xf32>
    %691 = vector.multi_reduction <add>, %690, %cst_164 [0] : vector<8x128xf32> to vector<128xf32>
    %692 = vector.shape_cast %691 : vector<128xf32> to vector<1x128xf32>
    %693 = arith.mulf %671, %415 : vector<8x128xf32>
    %cst_165 = arith.constant dense<0.000000e+00> : vector<128xf32>
    %694 = vector.multi_reduction <add>, %693, %cst_165 [0] : vector<8x128xf32> to vector<128xf32>
    %695 = vector.shape_cast %694 : vector<128xf32> to vector<1x128xf32>
    %696 = tpu.concatenate %674, %677, %680, %683, %686, %689, %692, %695 in 0 : vector<1x128xf32>, vector<1x128xf32>, vector<1x128xf32>, vector<1x128xf32>, vector<1x128xf32>, vector<1x128xf32>, vector<1x128xf32>, vector<1x128xf32> -> vector<8x128xf32>
    %697 = arith.addf %696, %31 : vector<8x128xf32>
    %cst_166 = arith.constant dense<0xFF800000> : vector<128xf32>
    %698 = vector.multi_reduction <maximumf>, %697, %cst_166 [0] : vector<8x128xf32> to vector<128xf32>
    %699 = vector.shape_cast %698 : vector<128xf32> to vector<1x128xf32>
    %700 = vector.broadcast %699 : vector<1x128xf32> to vector<8x128xf32>
    %701 = arith.subf %697, %700 : vector<8x128xf32>
    %702 = math.exp %701 : vector<8x128xf32>
    %cst_167 = arith.constant dense<0.000000e+00> : vector<128xf32>
    %703 = vector.multi_reduction <add>, %702, %cst_167 [0] : vector<8x128xf32> to vector<128xf32>
    %704 = vector.shape_cast %703 : vector<128xf32> to vector<1x128xf32>
    %705 = tpu.reciprocal %704 {approx = true} : vector<1x128xf32> -> vector<1x128xf32>
    %706 = vector.broadcast %705 : vector<1x128xf32> to vector<8x128xf32>
    %707 = arith.mulf %702, %706 : vector<8x128xf32>
    %708 = vector.extract_strided_slice %1 {offsets = [6, 0], sizes = [1, 128], strides = [1, 1]} : vector<8x128xf32> to vector<1x128xf32>
    %709 = vector.broadcast %708 : vector<1x128xf32> to vector<8x128xf32>
    %710 = arith.mulf %707, %709 : vector<8x128xf32>
    %711 = arith.addf %670, %710 : vector<8x128xf32>
    %712 = vector.extract_strided_slice %26 {offsets = [8, 0], sizes = [8, 128], strides = [1, 1]} : vector<96x128xf32> to vector<8x128xf32>
    %713 = arith.mulf %712, %408 : vector<8x128xf32>
    %cst_168 = arith.constant dense<0.000000e+00> : vector<128xf32>
    %714 = vector.multi_reduction <add>, %713, %cst_168 [0] : vector<8x128xf32> to vector<128xf32>
    %715 = vector.shape_cast %714 : vector<128xf32> to vector<1x128xf32>
    %716 = arith.mulf %712, %409 : vector<8x128xf32>
    %cst_169 = arith.constant dense<0.000000e+00> : vector<128xf32>
    %717 = vector.multi_reduction <add>, %716, %cst_169 [0] : vector<8x128xf32> to vector<128xf32>
    %718 = vector.shape_cast %717 : vector<128xf32> to vector<1x128xf32>
    %719 = arith.mulf %712, %410 : vector<8x128xf32>
    %cst_170 = arith.constant dense<0.000000e+00> : vector<128xf32>
    %720 = vector.multi_reduction <add>, %719, %cst_170 [0] : vector<8x128xf32> to vector<128xf32>
    %721 = vector.shape_cast %720 : vector<128xf32> to vector<1x128xf32>
    %722 = arith.mulf %712, %411 : vector<8x128xf32>
    %cst_171 = arith.constant dense<0.000000e+00> : vector<128xf32>
    %723 = vector.multi_reduction <add>, %722, %cst_171 [0] : vector<8x128xf32> to vector<128xf32>
    %724 = vector.shape_cast %723 : vector<128xf32> to vector<1x128xf32>
    %725 = arith.mulf %712, %412 : vector<8x128xf32>
    %cst_172 = arith.constant dense<0.000000e+00> : vector<128xf32>
    %726 = vector.multi_reduction <add>, %725, %cst_172 [0] : vector<8x128xf32> to vector<128xf32>
    %727 = vector.shape_cast %726 : vector<128xf32> to vector<1x128xf32>
    %728 = arith.mulf %712, %413 : vector<8x128xf32>
    %cst_173 = arith.constant dense<0.000000e+00> : vector<128xf32>
    %729 = vector.multi_reduction <add>, %728, %cst_173 [0] : vector<8x128xf32> to vector<128xf32>
    %730 = vector.shape_cast %729 : vector<128xf32> to vector<1x128xf32>
    %731 = arith.mulf %712, %414 : vector<8x128xf32>
    %cst_174 = arith.constant dense<0.000000e+00> : vector<128xf32>
    %732 = vector.multi_reduction <add>, %731, %cst_174 [0] : vector<8x128xf32> to vector<128xf32>
    %733 = vector.shape_cast %732 : vector<128xf32> to vector<1x128xf32>
    %734 = arith.mulf %712, %415 : vector<8x128xf32>
    %cst_175 = arith.constant dense<0.000000e+00> : vector<128xf32>
    %735 = vector.multi_reduction <add>, %734, %cst_175 [0] : vector<8x128xf32> to vector<128xf32>
    %736 = vector.shape_cast %735 : vector<128xf32> to vector<1x128xf32>
    %737 = tpu.concatenate %715, %718, %721, %724, %727, %730, %733, %736 in 0 : vector<1x128xf32>, vector<1x128xf32>, vector<1x128xf32>, vector<1x128xf32>, vector<1x128xf32>, vector<1x128xf32>, vector<1x128xf32>, vector<1x128xf32> -> vector<8x128xf32>
    %738 = arith.addf %737, %31 : vector<8x128xf32>
    %cst_176 = arith.constant dense<0xFF800000> : vector<128xf32>
    %739 = vector.multi_reduction <maximumf>, %738, %cst_176 [0] : vector<8x128xf32> to vector<128xf32>
    %740 = vector.shape_cast %739 : vector<128xf32> to vector<1x128xf32>
    %741 = vector.broadcast %740 : vector<1x128xf32> to vector<8x128xf32>
    %742 = arith.subf %738, %741 : vector<8x128xf32>
    %743 = math.exp %742 : vector<8x128xf32>
    %cst_177 = arith.constant dense<0.000000e+00> : vector<128xf32>
    %744 = vector.multi_reduction <add>, %743, %cst_177 [0] : vector<8x128xf32> to vector<128xf32>
    %745 = vector.shape_cast %744 : vector<128xf32> to vector<1x128xf32>
    %746 = tpu.reciprocal %745 {approx = true} : vector<1x128xf32> -> vector<1x128xf32>
    %747 = vector.broadcast %746 : vector<1x128xf32> to vector<8x128xf32>
    %748 = arith.mulf %743, %747 : vector<8x128xf32>
    %749 = vector.extract_strided_slice %1 {offsets = [7, 0], sizes = [1, 128], strides = [1, 1]} : vector<8x128xf32> to vector<1x128xf32>
    %750 = vector.broadcast %749 : vector<1x128xf32> to vector<8x128xf32>
    %751 = arith.mulf %748, %750 : vector<8x128xf32>
    %752 = arith.addf %711, %751 : vector<8x128xf32>
    %753 = vector.extract_strided_slice %752 {offsets = [0, 0], sizes = [1, 128], strides = [1, 1]} : vector<8x128xf32> to vector<1x128xf32>
    %754 = vector.broadcast %753 : vector<1x128xf32> to vector<8x128xf32>
    %755 = arith.mulf %754, %416 : vector<8x128xf32>
    %756 = vector.extract_strided_slice %752 {offsets = [1, 0], sizes = [1, 128], strides = [1, 1]} : vector<8x128xf32> to vector<1x128xf32>
    %757 = vector.broadcast %756 : vector<1x128xf32> to vector<8x128xf32>
    %758 = arith.mulf %757, %417 : vector<8x128xf32>
    %759 = arith.addf %755, %758 : vector<8x128xf32>
    %760 = vector.extract_strided_slice %752 {offsets = [2, 0], sizes = [1, 128], strides = [1, 1]} : vector<8x128xf32> to vector<1x128xf32>
    %761 = vector.broadcast %760 : vector<1x128xf32> to vector<8x128xf32>
    %762 = arith.mulf %761, %418 : vector<8x128xf32>
    %763 = arith.addf %759, %762 : vector<8x128xf32>
    %764 = vector.extract_strided_slice %752 {offsets = [3, 0], sizes = [1, 128], strides = [1, 1]} : vector<8x128xf32> to vector<1x128xf32>
    %765 = vector.broadcast %764 : vector<1x128xf32> to vector<8x128xf32>
    %766 = arith.mulf %765, %419 : vector<8x128xf32>
    %767 = arith.addf %763, %766 : vector<8x128xf32>
    %768 = vector.extract_strided_slice %752 {offsets = [4, 0], sizes = [1, 128], strides = [1, 1]} : vector<8x128xf32> to vector<1x128xf32>
    %769 = vector.broadcast %768 : vector<1x128xf32> to vector<8x128xf32>
    %770 = arith.mulf %769, %420 : vector<8x128xf32>
    %771 = arith.addf %767, %770 : vector<8x128xf32>
    %772 = vector.extract_strided_slice %752 {offsets = [5, 0], sizes = [1, 128], strides = [1, 1]} : vector<8x128xf32> to vector<1x128xf32>
    %773 = vector.broadcast %772 : vector<1x128xf32> to vector<8x128xf32>
    %774 = arith.mulf %773, %421 : vector<8x128xf32>
    %775 = arith.addf %771, %774 : vector<8x128xf32>
    %776 = vector.extract_strided_slice %752 {offsets = [6, 0], sizes = [1, 128], strides = [1, 1]} : vector<8x128xf32> to vector<1x128xf32>
    %777 = vector.broadcast %776 : vector<1x128xf32> to vector<8x128xf32>
    %778 = arith.mulf %777, %422 : vector<8x128xf32>
    %779 = arith.addf %775, %778 : vector<8x128xf32>
    %780 = vector.extract_strided_slice %752 {offsets = [7, 0], sizes = [1, 128], strides = [1, 1]} : vector<8x128xf32> to vector<1x128xf32>
    %781 = vector.broadcast %780 : vector<1x128xf32> to vector<8x128xf32>
    %782 = arith.mulf %781, %423 : vector<8x128xf32>
    %783 = arith.addf %779, %782 : vector<8x128xf32>
    %784 = vector.extract_strided_slice %5 {offsets = [48, 0], sizes = [8, 128], strides = [1, 1]} : vector<96x128xf32> to vector<8x128xf32>
    %785 = vector.extract_strided_slice %8 {offsets = [48, 0], sizes = [8, 128], strides = [1, 1]} : vector<96x128xf32> to vector<8x128xf32>
    %786 = vector.extract_strided_slice %11 {offsets = [48, 0], sizes = [8, 128], strides = [1, 1]} : vector<96x128xf32> to vector<8x128xf32>
    %787 = vector.extract_strided_slice %14 {offsets = [48, 0], sizes = [8, 128], strides = [1, 1]} : vector<96x128xf32> to vector<8x128xf32>
    %788 = vector.extract_strided_slice %17 {offsets = [48, 0], sizes = [8, 128], strides = [1, 1]} : vector<96x128xf32> to vector<8x128xf32>
    %789 = vector.extract_strided_slice %20 {offsets = [48, 0], sizes = [8, 128], strides = [1, 1]} : vector<96x128xf32> to vector<8x128xf32>
    %790 = vector.extract_strided_slice %23 {offsets = [48, 0], sizes = [8, 128], strides = [1, 1]} : vector<96x128xf32> to vector<8x128xf32>
    %791 = vector.extract_strided_slice %26 {offsets = [48, 0], sizes = [8, 128], strides = [1, 1]} : vector<96x128xf32> to vector<8x128xf32>
    %792 = vector.extract_strided_slice %5 {offsets = [80, 0], sizes = [8, 128], strides = [1, 1]} : vector<96x128xf32> to vector<8x128xf32>
    %793 = vector.extract_strided_slice %8 {offsets = [80, 0], sizes = [8, 128], strides = [1, 1]} : vector<96x128xf32> to vector<8x128xf32>
    %794 = vector.extract_strided_slice %11 {offsets = [80, 0], sizes = [8, 128], strides = [1, 1]} : vector<96x128xf32> to vector<8x128xf32>
    %795 = vector.extract_strided_slice %14 {offsets = [80, 0], sizes = [8, 128], strides = [1, 1]} : vector<96x128xf32> to vector<8x128xf32>
    %796 = vector.extract_strided_slice %17 {offsets = [80, 0], sizes = [8, 128], strides = [1, 1]} : vector<96x128xf32> to vector<8x128xf32>
    %797 = vector.extract_strided_slice %20 {offsets = [80, 0], sizes = [8, 128], strides = [1, 1]} : vector<96x128xf32> to vector<8x128xf32>
    %798 = vector.extract_strided_slice %23 {offsets = [80, 0], sizes = [8, 128], strides = [1, 1]} : vector<96x128xf32> to vector<8x128xf32>
    %799 = vector.extract_strided_slice %26 {offsets = [80, 0], sizes = [8, 128], strides = [1, 1]} : vector<96x128xf32> to vector<8x128xf32>
    %cst_178 = arith.constant 0.000000e+00 : f32
    %800 = vector.broadcast %cst_178 : f32 to vector<8x128xf32>
    %801 = vector.extract_strided_slice %5 {offsets = [16, 0], sizes = [8, 128], strides = [1, 1]} : vector<96x128xf32> to vector<8x128xf32>
    %802 = arith.mulf %801, %784 : vector<8x128xf32>
    %cst_179 = arith.constant dense<0.000000e+00> : vector<128xf32>
    %803 = vector.multi_reduction <add>, %802, %cst_179 [0] : vector<8x128xf32> to vector<128xf32>
    %804 = vector.shape_cast %803 : vector<128xf32> to vector<1x128xf32>
    %805 = arith.mulf %801, %785 : vector<8x128xf32>
    %cst_180 = arith.constant dense<0.000000e+00> : vector<128xf32>
    %806 = vector.multi_reduction <add>, %805, %cst_180 [0] : vector<8x128xf32> to vector<128xf32>
    %807 = vector.shape_cast %806 : vector<128xf32> to vector<1x128xf32>
    %808 = arith.mulf %801, %786 : vector<8x128xf32>
    %cst_181 = arith.constant dense<0.000000e+00> : vector<128xf32>
    %809 = vector.multi_reduction <add>, %808, %cst_181 [0] : vector<8x128xf32> to vector<128xf32>
    %810 = vector.shape_cast %809 : vector<128xf32> to vector<1x128xf32>
    %811 = arith.mulf %801, %787 : vector<8x128xf32>
    %cst_182 = arith.constant dense<0.000000e+00> : vector<128xf32>
    %812 = vector.multi_reduction <add>, %811, %cst_182 [0] : vector<8x128xf32> to vector<128xf32>
    %813 = vector.shape_cast %812 : vector<128xf32> to vector<1x128xf32>
    %814 = arith.mulf %801, %788 : vector<8x128xf32>
    %cst_183 = arith.constant dense<0.000000e+00> : vector<128xf32>
    %815 = vector.multi_reduction <add>, %814, %cst_183 [0] : vector<8x128xf32> to vector<128xf32>
    %816 = vector.shape_cast %815 : vector<128xf32> to vector<1x128xf32>
    %817 = arith.mulf %801, %789 : vector<8x128xf32>
    %cst_184 = arith.constant dense<0.000000e+00> : vector<128xf32>
    %818 = vector.multi_reduction <add>, %817, %cst_184 [0] : vector<8x128xf32> to vector<128xf32>
    %819 = vector.shape_cast %818 : vector<128xf32> to vector<1x128xf32>
    %820 = arith.mulf %801, %790 : vector<8x128xf32>
    %cst_185 = arith.constant dense<0.000000e+00> : vector<128xf32>
    %821 = vector.multi_reduction <add>, %820, %cst_185 [0] : vector<8x128xf32> to vector<128xf32>
    %822 = vector.shape_cast %821 : vector<128xf32> to vector<1x128xf32>
    %823 = arith.mulf %801, %791 : vector<8x128xf32>
    %cst_186 = arith.constant dense<0.000000e+00> : vector<128xf32>
    %824 = vector.multi_reduction <add>, %823, %cst_186 [0] : vector<8x128xf32> to vector<128xf32>
    %825 = vector.shape_cast %824 : vector<128xf32> to vector<1x128xf32>
    %826 = tpu.concatenate %804, %807, %810, %813, %816, %819, %822, %825 in 0 : vector<1x128xf32>, vector<1x128xf32>, vector<1x128xf32>, vector<1x128xf32>, vector<1x128xf32>, vector<1x128xf32>, vector<1x128xf32>, vector<1x128xf32> -> vector<8x128xf32>
    %827 = arith.addf %826, %31 : vector<8x128xf32>
    %cst_187 = arith.constant dense<0xFF800000> : vector<128xf32>
    %828 = vector.multi_reduction <maximumf>, %827, %cst_187 [0] : vector<8x128xf32> to vector<128xf32>
    %829 = vector.shape_cast %828 : vector<128xf32> to vector<1x128xf32>
    %830 = vector.broadcast %829 : vector<1x128xf32> to vector<8x128xf32>
    %831 = arith.subf %827, %830 : vector<8x128xf32>
    %832 = math.exp %831 : vector<8x128xf32>
    %cst_188 = arith.constant dense<0.000000e+00> : vector<128xf32>
    %833 = vector.multi_reduction <add>, %832, %cst_188 [0] : vector<8x128xf32> to vector<128xf32>
    %834 = vector.shape_cast %833 : vector<128xf32> to vector<1x128xf32>
    %835 = tpu.reciprocal %834 {approx = true} : vector<1x128xf32> -> vector<1x128xf32>
    %836 = vector.broadcast %835 : vector<1x128xf32> to vector<8x128xf32>
    %837 = arith.mulf %832, %836 : vector<8x128xf32>
    %838 = vector.extract_strided_slice %1 {offsets = [0, 0], sizes = [1, 128], strides = [1, 1]} : vector<8x128xf32> to vector<1x128xf32>
    %839 = vector.broadcast %838 : vector<1x128xf32> to vector<8x128xf32>
    %840 = arith.mulf %837, %839 : vector<8x128xf32>
    %841 = arith.addf %800, %840 : vector<8x128xf32>
    %842 = vector.extract_strided_slice %8 {offsets = [16, 0], sizes = [8, 128], strides = [1, 1]} : vector<96x128xf32> to vector<8x128xf32>
    %843 = arith.mulf %842, %784 : vector<8x128xf32>
    %cst_189 = arith.constant dense<0.000000e+00> : vector<128xf32>
    %844 = vector.multi_reduction <add>, %843, %cst_189 [0] : vector<8x128xf32> to vector<128xf32>
    %845 = vector.shape_cast %844 : vector<128xf32> to vector<1x128xf32>
    %846 = arith.mulf %842, %785 : vector<8x128xf32>
    %cst_190 = arith.constant dense<0.000000e+00> : vector<128xf32>
    %847 = vector.multi_reduction <add>, %846, %cst_190 [0] : vector<8x128xf32> to vector<128xf32>
    %848 = vector.shape_cast %847 : vector<128xf32> to vector<1x128xf32>
    %849 = arith.mulf %842, %786 : vector<8x128xf32>
    %cst_191 = arith.constant dense<0.000000e+00> : vector<128xf32>
    %850 = vector.multi_reduction <add>, %849, %cst_191 [0] : vector<8x128xf32> to vector<128xf32>
    %851 = vector.shape_cast %850 : vector<128xf32> to vector<1x128xf32>
    %852 = arith.mulf %842, %787 : vector<8x128xf32>
    %cst_192 = arith.constant dense<0.000000e+00> : vector<128xf32>
    %853 = vector.multi_reduction <add>, %852, %cst_192 [0] : vector<8x128xf32> to vector<128xf32>
    %854 = vector.shape_cast %853 : vector<128xf32> to vector<1x128xf32>
    %855 = arith.mulf %842, %788 : vector<8x128xf32>
    %cst_193 = arith.constant dense<0.000000e+00> : vector<128xf32>
    %856 = vector.multi_reduction <add>, %855, %cst_193 [0] : vector<8x128xf32> to vector<128xf32>
    %857 = vector.shape_cast %856 : vector<128xf32> to vector<1x128xf32>
    %858 = arith.mulf %842, %789 : vector<8x128xf32>
    %cst_194 = arith.constant dense<0.000000e+00> : vector<128xf32>
    %859 = vector.multi_reduction <add>, %858, %cst_194 [0] : vector<8x128xf32> to vector<128xf32>
    %860 = vector.shape_cast %859 : vector<128xf32> to vector<1x128xf32>
    %861 = arith.mulf %842, %790 : vector<8x128xf32>
    %cst_195 = arith.constant dense<0.000000e+00> : vector<128xf32>
    %862 = vector.multi_reduction <add>, %861, %cst_195 [0] : vector<8x128xf32> to vector<128xf32>
    %863 = vector.shape_cast %862 : vector<128xf32> to vector<1x128xf32>
    %864 = arith.mulf %842, %791 : vector<8x128xf32>
    %cst_196 = arith.constant dense<0.000000e+00> : vector<128xf32>
    %865 = vector.multi_reduction <add>, %864, %cst_196 [0] : vector<8x128xf32> to vector<128xf32>
    %866 = vector.shape_cast %865 : vector<128xf32> to vector<1x128xf32>
    %867 = tpu.concatenate %845, %848, %851, %854, %857, %860, %863, %866 in 0 : vector<1x128xf32>, vector<1x128xf32>, vector<1x128xf32>, vector<1x128xf32>, vector<1x128xf32>, vector<1x128xf32>, vector<1x128xf32>, vector<1x128xf32> -> vector<8x128xf32>
    %868 = arith.addf %867, %31 : vector<8x128xf32>
    %cst_197 = arith.constant dense<0xFF800000> : vector<128xf32>
    %869 = vector.multi_reduction <maximumf>, %868, %cst_197 [0] : vector<8x128xf32> to vector<128xf32>
    %870 = vector.shape_cast %869 : vector<128xf32> to vector<1x128xf32>
    %871 = vector.broadcast %870 : vector<1x128xf32> to vector<8x128xf32>
    %872 = arith.subf %868, %871 : vector<8x128xf32>
    %873 = math.exp %872 : vector<8x128xf32>
    %cst_198 = arith.constant dense<0.000000e+00> : vector<128xf32>
    %874 = vector.multi_reduction <add>, %873, %cst_198 [0] : vector<8x128xf32> to vector<128xf32>
    %875 = vector.shape_cast %874 : vector<128xf32> to vector<1x128xf32>
    %876 = tpu.reciprocal %875 {approx = true} : vector<1x128xf32> -> vector<1x128xf32>
    %877 = vector.broadcast %876 : vector<1x128xf32> to vector<8x128xf32>
    %878 = arith.mulf %873, %877 : vector<8x128xf32>
    %879 = vector.extract_strided_slice %1 {offsets = [1, 0], sizes = [1, 128], strides = [1, 1]} : vector<8x128xf32> to vector<1x128xf32>
    %880 = vector.broadcast %879 : vector<1x128xf32> to vector<8x128xf32>
    %881 = arith.mulf %878, %880 : vector<8x128xf32>
    %882 = arith.addf %841, %881 : vector<8x128xf32>
    %883 = vector.extract_strided_slice %11 {offsets = [16, 0], sizes = [8, 128], strides = [1, 1]} : vector<96x128xf32> to vector<8x128xf32>
    %884 = arith.mulf %883, %784 : vector<8x128xf32>
    %cst_199 = arith.constant dense<0.000000e+00> : vector<128xf32>
    %885 = vector.multi_reduction <add>, %884, %cst_199 [0] : vector<8x128xf32> to vector<128xf32>
    %886 = vector.shape_cast %885 : vector<128xf32> to vector<1x128xf32>
    %887 = arith.mulf %883, %785 : vector<8x128xf32>
    %cst_200 = arith.constant dense<0.000000e+00> : vector<128xf32>
    %888 = vector.multi_reduction <add>, %887, %cst_200 [0] : vector<8x128xf32> to vector<128xf32>
    %889 = vector.shape_cast %888 : vector<128xf32> to vector<1x128xf32>
    %890 = arith.mulf %883, %786 : vector<8x128xf32>
    %cst_201 = arith.constant dense<0.000000e+00> : vector<128xf32>
    %891 = vector.multi_reduction <add>, %890, %cst_201 [0] : vector<8x128xf32> to vector<128xf32>
    %892 = vector.shape_cast %891 : vector<128xf32> to vector<1x128xf32>
    %893 = arith.mulf %883, %787 : vector<8x128xf32>
    %cst_202 = arith.constant dense<0.000000e+00> : vector<128xf32>
    %894 = vector.multi_reduction <add>, %893, %cst_202 [0] : vector<8x128xf32> to vector<128xf32>
    %895 = vector.shape_cast %894 : vector<128xf32> to vector<1x128xf32>
    %896 = arith.mulf %883, %788 : vector<8x128xf32>
    %cst_203 = arith.constant dense<0.000000e+00> : vector<128xf32>
    %897 = vector.multi_reduction <add>, %896, %cst_203 [0] : vector<8x128xf32> to vector<128xf32>
    %898 = vector.shape_cast %897 : vector<128xf32> to vector<1x128xf32>
    %899 = arith.mulf %883, %789 : vector<8x128xf32>
    %cst_204 = arith.constant dense<0.000000e+00> : vector<128xf32>
    %900 = vector.multi_reduction <add>, %899, %cst_204 [0] : vector<8x128xf32> to vector<128xf32>
    %901 = vector.shape_cast %900 : vector<128xf32> to vector<1x128xf32>
    %902 = arith.mulf %883, %790 : vector<8x128xf32>
    %cst_205 = arith.constant dense<0.000000e+00> : vector<128xf32>
    %903 = vector.multi_reduction <add>, %902, %cst_205 [0] : vector<8x128xf32> to vector<128xf32>
    %904 = vector.shape_cast %903 : vector<128xf32> to vector<1x128xf32>
    %905 = arith.mulf %883, %791 : vector<8x128xf32>
    %cst_206 = arith.constant dense<0.000000e+00> : vector<128xf32>
    %906 = vector.multi_reduction <add>, %905, %cst_206 [0] : vector<8x128xf32> to vector<128xf32>
    %907 = vector.shape_cast %906 : vector<128xf32> to vector<1x128xf32>
    %908 = tpu.concatenate %886, %889, %892, %895, %898, %901, %904, %907 in 0 : vector<1x128xf32>, vector<1x128xf32>, vector<1x128xf32>, vector<1x128xf32>, vector<1x128xf32>, vector<1x128xf32>, vector<1x128xf32>, vector<1x128xf32> -> vector<8x128xf32>
    %909 = arith.addf %908, %31 : vector<8x128xf32>
    %cst_207 = arith.constant dense<0xFF800000> : vector<128xf32>
    %910 = vector.multi_reduction <maximumf>, %909, %cst_207 [0] : vector<8x128xf32> to vector<128xf32>
    %911 = vector.shape_cast %910 : vector<128xf32> to vector<1x128xf32>
    %912 = vector.broadcast %911 : vector<1x128xf32> to vector<8x128xf32>
    %913 = arith.subf %909, %912 : vector<8x128xf32>
    %914 = math.exp %913 : vector<8x128xf32>
    %cst_208 = arith.constant dense<0.000000e+00> : vector<128xf32>
    %915 = vector.multi_reduction <add>, %914, %cst_208 [0] : vector<8x128xf32> to vector<128xf32>
    %916 = vector.shape_cast %915 : vector<128xf32> to vector<1x128xf32>
    %917 = tpu.reciprocal %916 {approx = true} : vector<1x128xf32> -> vector<1x128xf32>
    %918 = vector.broadcast %917 : vector<1x128xf32> to vector<8x128xf32>
    %919 = arith.mulf %914, %918 : vector<8x128xf32>
    %920 = vector.extract_strided_slice %1 {offsets = [2, 0], sizes = [1, 128], strides = [1, 1]} : vector<8x128xf32> to vector<1x128xf32>
    %921 = vector.broadcast %920 : vector<1x128xf32> to vector<8x128xf32>
    %922 = arith.mulf %919, %921 : vector<8x128xf32>
    %923 = arith.addf %882, %922 : vector<8x128xf32>
    %924 = vector.extract_strided_slice %14 {offsets = [16, 0], sizes = [8, 128], strides = [1, 1]} : vector<96x128xf32> to vector<8x128xf32>
    %925 = arith.mulf %924, %784 : vector<8x128xf32>
    %cst_209 = arith.constant dense<0.000000e+00> : vector<128xf32>
    %926 = vector.multi_reduction <add>, %925, %cst_209 [0] : vector<8x128xf32> to vector<128xf32>
    %927 = vector.shape_cast %926 : vector<128xf32> to vector<1x128xf32>
    %928 = arith.mulf %924, %785 : vector<8x128xf32>
    %cst_210 = arith.constant dense<0.000000e+00> : vector<128xf32>
    %929 = vector.multi_reduction <add>, %928, %cst_210 [0] : vector<8x128xf32> to vector<128xf32>
    %930 = vector.shape_cast %929 : vector<128xf32> to vector<1x128xf32>
    %931 = arith.mulf %924, %786 : vector<8x128xf32>
    %cst_211 = arith.constant dense<0.000000e+00> : vector<128xf32>
    %932 = vector.multi_reduction <add>, %931, %cst_211 [0] : vector<8x128xf32> to vector<128xf32>
    %933 = vector.shape_cast %932 : vector<128xf32> to vector<1x128xf32>
    %934 = arith.mulf %924, %787 : vector<8x128xf32>
    %cst_212 = arith.constant dense<0.000000e+00> : vector<128xf32>
    %935 = vector.multi_reduction <add>, %934, %cst_212 [0] : vector<8x128xf32> to vector<128xf32>
    %936 = vector.shape_cast %935 : vector<128xf32> to vector<1x128xf32>
    %937 = arith.mulf %924, %788 : vector<8x128xf32>
    %cst_213 = arith.constant dense<0.000000e+00> : vector<128xf32>
    %938 = vector.multi_reduction <add>, %937, %cst_213 [0] : vector<8x128xf32> to vector<128xf32>
    %939 = vector.shape_cast %938 : vector<128xf32> to vector<1x128xf32>
    %940 = arith.mulf %924, %789 : vector<8x128xf32>
    %cst_214 = arith.constant dense<0.000000e+00> : vector<128xf32>
    %941 = vector.multi_reduction <add>, %940, %cst_214 [0] : vector<8x128xf32> to vector<128xf32>
    %942 = vector.shape_cast %941 : vector<128xf32> to vector<1x128xf32>
    %943 = arith.mulf %924, %790 : vector<8x128xf32>
    %cst_215 = arith.constant dense<0.000000e+00> : vector<128xf32>
    %944 = vector.multi_reduction <add>, %943, %cst_215 [0] : vector<8x128xf32> to vector<128xf32>
    %945 = vector.shape_cast %944 : vector<128xf32> to vector<1x128xf32>
    %946 = arith.mulf %924, %791 : vector<8x128xf32>
    %cst_216 = arith.constant dense<0.000000e+00> : vector<128xf32>
    %947 = vector.multi_reduction <add>, %946, %cst_216 [0] : vector<8x128xf32> to vector<128xf32>
    %948 = vector.shape_cast %947 : vector<128xf32> to vector<1x128xf32>
    %949 = tpu.concatenate %927, %930, %933, %936, %939, %942, %945, %948 in 0 : vector<1x128xf32>, vector<1x128xf32>, vector<1x128xf32>, vector<1x128xf32>, vector<1x128xf32>, vector<1x128xf32>, vector<1x128xf32>, vector<1x128xf32> -> vector<8x128xf32>
    %950 = arith.addf %949, %31 : vector<8x128xf32>
    %cst_217 = arith.constant dense<0xFF800000> : vector<128xf32>
    %951 = vector.multi_reduction <maximumf>, %950, %cst_217 [0] : vector<8x128xf32> to vector<128xf32>
    %952 = vector.shape_cast %951 : vector<128xf32> to vector<1x128xf32>
    %953 = vector.broadcast %952 : vector<1x128xf32> to vector<8x128xf32>
    %954 = arith.subf %950, %953 : vector<8x128xf32>
    %955 = math.exp %954 : vector<8x128xf32>
    %cst_218 = arith.constant dense<0.000000e+00> : vector<128xf32>
    %956 = vector.multi_reduction <add>, %955, %cst_218 [0] : vector<8x128xf32> to vector<128xf32>
    %957 = vector.shape_cast %956 : vector<128xf32> to vector<1x128xf32>
    %958 = tpu.reciprocal %957 {approx = true} : vector<1x128xf32> -> vector<1x128xf32>
    %959 = vector.broadcast %958 : vector<1x128xf32> to vector<8x128xf32>
    %960 = arith.mulf %955, %959 : vector<8x128xf32>
    %961 = vector.extract_strided_slice %1 {offsets = [3, 0], sizes = [1, 128], strides = [1, 1]} : vector<8x128xf32> to vector<1x128xf32>
    %962 = vector.broadcast %961 : vector<1x128xf32> to vector<8x128xf32>
    %963 = arith.mulf %960, %962 : vector<8x128xf32>
    %964 = arith.addf %923, %963 : vector<8x128xf32>
    %965 = vector.extract_strided_slice %17 {offsets = [16, 0], sizes = [8, 128], strides = [1, 1]} : vector<96x128xf32> to vector<8x128xf32>
    %966 = arith.mulf %965, %784 : vector<8x128xf32>
    %cst_219 = arith.constant dense<0.000000e+00> : vector<128xf32>
    %967 = vector.multi_reduction <add>, %966, %cst_219 [0] : vector<8x128xf32> to vector<128xf32>
    %968 = vector.shape_cast %967 : vector<128xf32> to vector<1x128xf32>
    %969 = arith.mulf %965, %785 : vector<8x128xf32>
    %cst_220 = arith.constant dense<0.000000e+00> : vector<128xf32>
    %970 = vector.multi_reduction <add>, %969, %cst_220 [0] : vector<8x128xf32> to vector<128xf32>
    %971 = vector.shape_cast %970 : vector<128xf32> to vector<1x128xf32>
    %972 = arith.mulf %965, %786 : vector<8x128xf32>
    %cst_221 = arith.constant dense<0.000000e+00> : vector<128xf32>
    %973 = vector.multi_reduction <add>, %972, %cst_221 [0] : vector<8x128xf32> to vector<128xf32>
    %974 = vector.shape_cast %973 : vector<128xf32> to vector<1x128xf32>
    %975 = arith.mulf %965, %787 : vector<8x128xf32>
    %cst_222 = arith.constant dense<0.000000e+00> : vector<128xf32>
    %976 = vector.multi_reduction <add>, %975, %cst_222 [0] : vector<8x128xf32> to vector<128xf32>
    %977 = vector.shape_cast %976 : vector<128xf32> to vector<1x128xf32>
    %978 = arith.mulf %965, %788 : vector<8x128xf32>
    %cst_223 = arith.constant dense<0.000000e+00> : vector<128xf32>
    %979 = vector.multi_reduction <add>, %978, %cst_223 [0] : vector<8x128xf32> to vector<128xf32>
    %980 = vector.shape_cast %979 : vector<128xf32> to vector<1x128xf32>
    %981 = arith.mulf %965, %789 : vector<8x128xf32>
    %cst_224 = arith.constant dense<0.000000e+00> : vector<128xf32>
    %982 = vector.multi_reduction <add>, %981, %cst_224 [0] : vector<8x128xf32> to vector<128xf32>
    %983 = vector.shape_cast %982 : vector<128xf32> to vector<1x128xf32>
    %984 = arith.mulf %965, %790 : vector<8x128xf32>
    %cst_225 = arith.constant dense<0.000000e+00> : vector<128xf32>
    %985 = vector.multi_reduction <add>, %984, %cst_225 [0] : vector<8x128xf32> to vector<128xf32>
    %986 = vector.shape_cast %985 : vector<128xf32> to vector<1x128xf32>
    %987 = arith.mulf %965, %791 : vector<8x128xf32>
    %cst_226 = arith.constant dense<0.000000e+00> : vector<128xf32>
    %988 = vector.multi_reduction <add>, %987, %cst_226 [0] : vector<8x128xf32> to vector<128xf32>
    %989 = vector.shape_cast %988 : vector<128xf32> to vector<1x128xf32>
    %990 = tpu.concatenate %968, %971, %974, %977, %980, %983, %986, %989 in 0 : vector<1x128xf32>, vector<1x128xf32>, vector<1x128xf32>, vector<1x128xf32>, vector<1x128xf32>, vector<1x128xf32>, vector<1x128xf32>, vector<1x128xf32> -> vector<8x128xf32>
    %991 = arith.addf %990, %31 : vector<8x128xf32>
    %cst_227 = arith.constant dense<0xFF800000> : vector<128xf32>
    %992 = vector.multi_reduction <maximumf>, %991, %cst_227 [0] : vector<8x128xf32> to vector<128xf32>
    %993 = vector.shape_cast %992 : vector<128xf32> to vector<1x128xf32>
    %994 = vector.broadcast %993 : vector<1x128xf32> to vector<8x128xf32>
    %995 = arith.subf %991, %994 : vector<8x128xf32>
    %996 = math.exp %995 : vector<8x128xf32>
    %cst_228 = arith.constant dense<0.000000e+00> : vector<128xf32>
    %997 = vector.multi_reduction <add>, %996, %cst_228 [0] : vector<8x128xf32> to vector<128xf32>
    %998 = vector.shape_cast %997 : vector<128xf32> to vector<1x128xf32>
    %999 = tpu.reciprocal %998 {approx = true} : vector<1x128xf32> -> vector<1x128xf32>
    %1000 = vector.broadcast %999 : vector<1x128xf32> to vector<8x128xf32>
    %1001 = arith.mulf %996, %1000 : vector<8x128xf32>
    %1002 = vector.extract_strided_slice %1 {offsets = [4, 0], sizes = [1, 128], strides = [1, 1]} : vector<8x128xf32> to vector<1x128xf32>
    %1003 = vector.broadcast %1002 : vector<1x128xf32> to vector<8x128xf32>
    %1004 = arith.mulf %1001, %1003 : vector<8x128xf32>
    %1005 = arith.addf %964, %1004 : vector<8x128xf32>
    %1006 = vector.extract_strided_slice %20 {offsets = [16, 0], sizes = [8, 128], strides = [1, 1]} : vector<96x128xf32> to vector<8x128xf32>
    %1007 = arith.mulf %1006, %784 : vector<8x128xf32>
    %cst_229 = arith.constant dense<0.000000e+00> : vector<128xf32>
    %1008 = vector.multi_reduction <add>, %1007, %cst_229 [0] : vector<8x128xf32> to vector<128xf32>
    %1009 = vector.shape_cast %1008 : vector<128xf32> to vector<1x128xf32>
    %1010 = arith.mulf %1006, %785 : vector<8x128xf32>
    %cst_230 = arith.constant dense<0.000000e+00> : vector<128xf32>
    %1011 = vector.multi_reduction <add>, %1010, %cst_230 [0] : vector<8x128xf32> to vector<128xf32>
    %1012 = vector.shape_cast %1011 : vector<128xf32> to vector<1x128xf32>
    %1013 = arith.mulf %1006, %786 : vector<8x128xf32>
    %cst_231 = arith.constant dense<0.000000e+00> : vector<128xf32>
    %1014 = vector.multi_reduction <add>, %1013, %cst_231 [0] : vector<8x128xf32> to vector<128xf32>
    %1015 = vector.shape_cast %1014 : vector<128xf32> to vector<1x128xf32>
    %1016 = arith.mulf %1006, %787 : vector<8x128xf32>
    %cst_232 = arith.constant dense<0.000000e+00> : vector<128xf32>
    %1017 = vector.multi_reduction <add>, %1016, %cst_232 [0] : vector<8x128xf32> to vector<128xf32>
    %1018 = vector.shape_cast %1017 : vector<128xf32> to vector<1x128xf32>
    %1019 = arith.mulf %1006, %788 : vector<8x128xf32>
    %cst_233 = arith.constant dense<0.000000e+00> : vector<128xf32>
    %1020 = vector.multi_reduction <add>, %1019, %cst_233 [0] : vector<8x128xf32> to vector<128xf32>
    %1021 = vector.shape_cast %1020 : vector<128xf32> to vector<1x128xf32>
    %1022 = arith.mulf %1006, %789 : vector<8x128xf32>
    %cst_234 = arith.constant dense<0.000000e+00> : vector<128xf32>
    %1023 = vector.multi_reduction <add>, %1022, %cst_234 [0] : vector<8x128xf32> to vector<128xf32>
    %1024 = vector.shape_cast %1023 : vector<128xf32> to vector<1x128xf32>
    %1025 = arith.mulf %1006, %790 : vector<8x128xf32>
    %cst_235 = arith.constant dense<0.000000e+00> : vector<128xf32>
    %1026 = vector.multi_reduction <add>, %1025, %cst_235 [0] : vector<8x128xf32> to vector<128xf32>
    %1027 = vector.shape_cast %1026 : vector<128xf32> to vector<1x128xf32>
    %1028 = arith.mulf %1006, %791 : vector<8x128xf32>
    %cst_236 = arith.constant dense<0.000000e+00> : vector<128xf32>
    %1029 = vector.multi_reduction <add>, %1028, %cst_236 [0] : vector<8x128xf32> to vector<128xf32>
    %1030 = vector.shape_cast %1029 : vector<128xf32> to vector<1x128xf32>
    %1031 = tpu.concatenate %1009, %1012, %1015, %1018, %1021, %1024, %1027, %1030 in 0 : vector<1x128xf32>, vector<1x128xf32>, vector<1x128xf32>, vector<1x128xf32>, vector<1x128xf32>, vector<1x128xf32>, vector<1x128xf32>, vector<1x128xf32> -> vector<8x128xf32>
    %1032 = arith.addf %1031, %31 : vector<8x128xf32>
    %cst_237 = arith.constant dense<0xFF800000> : vector<128xf32>
    %1033 = vector.multi_reduction <maximumf>, %1032, %cst_237 [0] : vector<8x128xf32> to vector<128xf32>
    %1034 = vector.shape_cast %1033 : vector<128xf32> to vector<1x128xf32>
    %1035 = vector.broadcast %1034 : vector<1x128xf32> to vector<8x128xf32>
    %1036 = arith.subf %1032, %1035 : vector<8x128xf32>
    %1037 = math.exp %1036 : vector<8x128xf32>
    %cst_238 = arith.constant dense<0.000000e+00> : vector<128xf32>
    %1038 = vector.multi_reduction <add>, %1037, %cst_238 [0] : vector<8x128xf32> to vector<128xf32>
    %1039 = vector.shape_cast %1038 : vector<128xf32> to vector<1x128xf32>
    %1040 = tpu.reciprocal %1039 {approx = true} : vector<1x128xf32> -> vector<1x128xf32>
    %1041 = vector.broadcast %1040 : vector<1x128xf32> to vector<8x128xf32>
    %1042 = arith.mulf %1037, %1041 : vector<8x128xf32>
    %1043 = vector.extract_strided_slice %1 {offsets = [5, 0], sizes = [1, 128], strides = [1, 1]} : vector<8x128xf32> to vector<1x128xf32>
    %1044 = vector.broadcast %1043 : vector<1x128xf32> to vector<8x128xf32>
    %1045 = arith.mulf %1042, %1044 : vector<8x128xf32>
    %1046 = arith.addf %1005, %1045 : vector<8x128xf32>
    %1047 = vector.extract_strided_slice %23 {offsets = [16, 0], sizes = [8, 128], strides = [1, 1]} : vector<96x128xf32> to vector<8x128xf32>
    %1048 = arith.mulf %1047, %784 : vector<8x128xf32>
    %cst_239 = arith.constant dense<0.000000e+00> : vector<128xf32>
    %1049 = vector.multi_reduction <add>, %1048, %cst_239 [0] : vector<8x128xf32> to vector<128xf32>
    %1050 = vector.shape_cast %1049 : vector<128xf32> to vector<1x128xf32>
    %1051 = arith.mulf %1047, %785 : vector<8x128xf32>
    %cst_240 = arith.constant dense<0.000000e+00> : vector<128xf32>
    %1052 = vector.multi_reduction <add>, %1051, %cst_240 [0] : vector<8x128xf32> to vector<128xf32>
    %1053 = vector.shape_cast %1052 : vector<128xf32> to vector<1x128xf32>
    %1054 = arith.mulf %1047, %786 : vector<8x128xf32>
    %cst_241 = arith.constant dense<0.000000e+00> : vector<128xf32>
    %1055 = vector.multi_reduction <add>, %1054, %cst_241 [0] : vector<8x128xf32> to vector<128xf32>
    %1056 = vector.shape_cast %1055 : vector<128xf32> to vector<1x128xf32>
    %1057 = arith.mulf %1047, %787 : vector<8x128xf32>
    %cst_242 = arith.constant dense<0.000000e+00> : vector<128xf32>
    %1058 = vector.multi_reduction <add>, %1057, %cst_242 [0] : vector<8x128xf32> to vector<128xf32>
    %1059 = vector.shape_cast %1058 : vector<128xf32> to vector<1x128xf32>
    %1060 = arith.mulf %1047, %788 : vector<8x128xf32>
    %cst_243 = arith.constant dense<0.000000e+00> : vector<128xf32>
    %1061 = vector.multi_reduction <add>, %1060, %cst_243 [0] : vector<8x128xf32> to vector<128xf32>
    %1062 = vector.shape_cast %1061 : vector<128xf32> to vector<1x128xf32>
    %1063 = arith.mulf %1047, %789 : vector<8x128xf32>
    %cst_244 = arith.constant dense<0.000000e+00> : vector<128xf32>
    %1064 = vector.multi_reduction <add>, %1063, %cst_244 [0] : vector<8x128xf32> to vector<128xf32>
    %1065 = vector.shape_cast %1064 : vector<128xf32> to vector<1x128xf32>
    %1066 = arith.mulf %1047, %790 : vector<8x128xf32>
    %cst_245 = arith.constant dense<0.000000e+00> : vector<128xf32>
    %1067 = vector.multi_reduction <add>, %1066, %cst_245 [0] : vector<8x128xf32> to vector<128xf32>
    %1068 = vector.shape_cast %1067 : vector<128xf32> to vector<1x128xf32>
    %1069 = arith.mulf %1047, %791 : vector<8x128xf32>
    %cst_246 = arith.constant dense<0.000000e+00> : vector<128xf32>
    %1070 = vector.multi_reduction <add>, %1069, %cst_246 [0] : vector<8x128xf32> to vector<128xf32>
    %1071 = vector.shape_cast %1070 : vector<128xf32> to vector<1x128xf32>
    %1072 = tpu.concatenate %1050, %1053, %1056, %1059, %1062, %1065, %1068, %1071 in 0 : vector<1x128xf32>, vector<1x128xf32>, vector<1x128xf32>, vector<1x128xf32>, vector<1x128xf32>, vector<1x128xf32>, vector<1x128xf32>, vector<1x128xf32> -> vector<8x128xf32>
    %1073 = arith.addf %1072, %31 : vector<8x128xf32>
    %cst_247 = arith.constant dense<0xFF800000> : vector<128xf32>
    %1074 = vector.multi_reduction <maximumf>, %1073, %cst_247 [0] : vector<8x128xf32> to vector<128xf32>
    %1075 = vector.shape_cast %1074 : vector<128xf32> to vector<1x128xf32>
    %1076 = vector.broadcast %1075 : vector<1x128xf32> to vector<8x128xf32>
    %1077 = arith.subf %1073, %1076 : vector<8x128xf32>
    %1078 = math.exp %1077 : vector<8x128xf32>
    %cst_248 = arith.constant dense<0.000000e+00> : vector<128xf32>
    %1079 = vector.multi_reduction <add>, %1078, %cst_248 [0] : vector<8x128xf32> to vector<128xf32>
    %1080 = vector.shape_cast %1079 : vector<128xf32> to vector<1x128xf32>
    %1081 = tpu.reciprocal %1080 {approx = true} : vector<1x128xf32> -> vector<1x128xf32>
    %1082 = vector.broadcast %1081 : vector<1x128xf32> to vector<8x128xf32>
    %1083 = arith.mulf %1078, %1082 : vector<8x128xf32>
    %1084 = vector.extract_strided_slice %1 {offsets = [6, 0], sizes = [1, 128], strides = [1, 1]} : vector<8x128xf32> to vector<1x128xf32>
    %1085 = vector.broadcast %1084 : vector<1x128xf32> to vector<8x128xf32>
    %1086 = arith.mulf %1083, %1085 : vector<8x128xf32>
    %1087 = arith.addf %1046, %1086 : vector<8x128xf32>
    %1088 = vector.extract_strided_slice %26 {offsets = [16, 0], sizes = [8, 128], strides = [1, 1]} : vector<96x128xf32> to vector<8x128xf32>
    %1089 = arith.mulf %1088, %784 : vector<8x128xf32>
    %cst_249 = arith.constant dense<0.000000e+00> : vector<128xf32>
    %1090 = vector.multi_reduction <add>, %1089, %cst_249 [0] : vector<8x128xf32> to vector<128xf32>
    %1091 = vector.shape_cast %1090 : vector<128xf32> to vector<1x128xf32>
    %1092 = arith.mulf %1088, %785 : vector<8x128xf32>
    %cst_250 = arith.constant dense<0.000000e+00> : vector<128xf32>
    %1093 = vector.multi_reduction <add>, %1092, %cst_250 [0] : vector<8x128xf32> to vector<128xf32>
    %1094 = vector.shape_cast %1093 : vector<128xf32> to vector<1x128xf32>
    %1095 = arith.mulf %1088, %786 : vector<8x128xf32>
    %cst_251 = arith.constant dense<0.000000e+00> : vector<128xf32>
    %1096 = vector.multi_reduction <add>, %1095, %cst_251 [0] : vector<8x128xf32> to vector<128xf32>
    %1097 = vector.shape_cast %1096 : vector<128xf32> to vector<1x128xf32>
    %1098 = arith.mulf %1088, %787 : vector<8x128xf32>
    %cst_252 = arith.constant dense<0.000000e+00> : vector<128xf32>
    %1099 = vector.multi_reduction <add>, %1098, %cst_252 [0] : vector<8x128xf32> to vector<128xf32>
    %1100 = vector.shape_cast %1099 : vector<128xf32> to vector<1x128xf32>
    %1101 = arith.mulf %1088, %788 : vector<8x128xf32>
    %cst_253 = arith.constant dense<0.000000e+00> : vector<128xf32>
    %1102 = vector.multi_reduction <add>, %1101, %cst_253 [0] : vector<8x128xf32> to vector<128xf32>
    %1103 = vector.shape_cast %1102 : vector<128xf32> to vector<1x128xf32>
    %1104 = arith.mulf %1088, %789 : vector<8x128xf32>
    %cst_254 = arith.constant dense<0.000000e+00> : vector<128xf32>
    %1105 = vector.multi_reduction <add>, %1104, %cst_254 [0] : vector<8x128xf32> to vector<128xf32>
    %1106 = vector.shape_cast %1105 : vector<128xf32> to vector<1x128xf32>
    %1107 = arith.mulf %1088, %790 : vector<8x128xf32>
    %cst_255 = arith.constant dense<0.000000e+00> : vector<128xf32>
    %1108 = vector.multi_reduction <add>, %1107, %cst_255 [0] : vector<8x128xf32> to vector<128xf32>
    %1109 = vector.shape_cast %1108 : vector<128xf32> to vector<1x128xf32>
    %1110 = arith.mulf %1088, %791 : vector<8x128xf32>
    %cst_256 = arith.constant dense<0.000000e+00> : vector<128xf32>
    %1111 = vector.multi_reduction <add>, %1110, %cst_256 [0] : vector<8x128xf32> to vector<128xf32>
    %1112 = vector.shape_cast %1111 : vector<128xf32> to vector<1x128xf32>
    %1113 = tpu.concatenate %1091, %1094, %1097, %1100, %1103, %1106, %1109, %1112 in 0 : vector<1x128xf32>, vector<1x128xf32>, vector<1x128xf32>, vector<1x128xf32>, vector<1x128xf32>, vector<1x128xf32>, vector<1x128xf32>, vector<1x128xf32> -> vector<8x128xf32>
    %1114 = arith.addf %1113, %31 : vector<8x128xf32>
    %cst_257 = arith.constant dense<0xFF800000> : vector<128xf32>
    %1115 = vector.multi_reduction <maximumf>, %1114, %cst_257 [0] : vector<8x128xf32> to vector<128xf32>
    %1116 = vector.shape_cast %1115 : vector<128xf32> to vector<1x128xf32>
    %1117 = vector.broadcast %1116 : vector<1x128xf32> to vector<8x128xf32>
    %1118 = arith.subf %1114, %1117 : vector<8x128xf32>
    %1119 = math.exp %1118 : vector<8x128xf32>
    %cst_258 = arith.constant dense<0.000000e+00> : vector<128xf32>
    %1120 = vector.multi_reduction <add>, %1119, %cst_258 [0] : vector<8x128xf32> to vector<128xf32>
    %1121 = vector.shape_cast %1120 : vector<128xf32> to vector<1x128xf32>
    %1122 = tpu.reciprocal %1121 {approx = true} : vector<1x128xf32> -> vector<1x128xf32>
    %1123 = vector.broadcast %1122 : vector<1x128xf32> to vector<8x128xf32>
    %1124 = arith.mulf %1119, %1123 : vector<8x128xf32>
    %1125 = vector.extract_strided_slice %1 {offsets = [7, 0], sizes = [1, 128], strides = [1, 1]} : vector<8x128xf32> to vector<1x128xf32>
    %1126 = vector.broadcast %1125 : vector<1x128xf32> to vector<8x128xf32>
    %1127 = arith.mulf %1124, %1126 : vector<8x128xf32>
    %1128 = arith.addf %1087, %1127 : vector<8x128xf32>
    %1129 = vector.extract_strided_slice %1128 {offsets = [0, 0], sizes = [1, 128], strides = [1, 1]} : vector<8x128xf32> to vector<1x128xf32>
    %1130 = vector.broadcast %1129 : vector<1x128xf32> to vector<8x128xf32>
    %1131 = arith.mulf %1130, %792 : vector<8x128xf32>
    %1132 = vector.extract_strided_slice %1128 {offsets = [1, 0], sizes = [1, 128], strides = [1, 1]} : vector<8x128xf32> to vector<1x128xf32>
    %1133 = vector.broadcast %1132 : vector<1x128xf32> to vector<8x128xf32>
    %1134 = arith.mulf %1133, %793 : vector<8x128xf32>
    %1135 = arith.addf %1131, %1134 : vector<8x128xf32>
    %1136 = vector.extract_strided_slice %1128 {offsets = [2, 0], sizes = [1, 128], strides = [1, 1]} : vector<8x128xf32> to vector<1x128xf32>
    %1137 = vector.broadcast %1136 : vector<1x128xf32> to vector<8x128xf32>
    %1138 = arith.mulf %1137, %794 : vector<8x128xf32>
    %1139 = arith.addf %1135, %1138 : vector<8x128xf32>
    %1140 = vector.extract_strided_slice %1128 {offsets = [3, 0], sizes = [1, 128], strides = [1, 1]} : vector<8x128xf32> to vector<1x128xf32>
    %1141 = vector.broadcast %1140 : vector<1x128xf32> to vector<8x128xf32>
    %1142 = arith.mulf %1141, %795 : vector<8x128xf32>
    %1143 = arith.addf %1139, %1142 : vector<8x128xf32>
    %1144 = vector.extract_strided_slice %1128 {offsets = [4, 0], sizes = [1, 128], strides = [1, 1]} : vector<8x128xf32> to vector<1x128xf32>
    %1145 = vector.broadcast %1144 : vector<1x128xf32> to vector<8x128xf32>
    %1146 = arith.mulf %1145, %796 : vector<8x128xf32>
    %1147 = arith.addf %1143, %1146 : vector<8x128xf32>
    %1148 = vector.extract_strided_slice %1128 {offsets = [5, 0], sizes = [1, 128], strides = [1, 1]} : vector<8x128xf32> to vector<1x128xf32>
    %1149 = vector.broadcast %1148 : vector<1x128xf32> to vector<8x128xf32>
    %1150 = arith.mulf %1149, %797 : vector<8x128xf32>
    %1151 = arith.addf %1147, %1150 : vector<8x128xf32>
    %1152 = vector.extract_strided_slice %1128 {offsets = [6, 0], sizes = [1, 128], strides = [1, 1]} : vector<8x128xf32> to vector<1x128xf32>
    %1153 = vector.broadcast %1152 : vector<1x128xf32> to vector<8x128xf32>
    %1154 = arith.mulf %1153, %798 : vector<8x128xf32>
    %1155 = arith.addf %1151, %1154 : vector<8x128xf32>
    %1156 = vector.extract_strided_slice %1128 {offsets = [7, 0], sizes = [1, 128], strides = [1, 1]} : vector<8x128xf32> to vector<1x128xf32>
    %1157 = vector.broadcast %1156 : vector<1x128xf32> to vector<8x128xf32>
    %1158 = arith.mulf %1157, %799 : vector<8x128xf32>
    %1159 = arith.addf %1155, %1158 : vector<8x128xf32>
    %1160 = vector.extract_strided_slice %5 {offsets = [56, 0], sizes = [8, 128], strides = [1, 1]} : vector<96x128xf32> to vector<8x128xf32>
    %1161 = vector.extract_strided_slice %8 {offsets = [56, 0], sizes = [8, 128], strides = [1, 1]} : vector<96x128xf32> to vector<8x128xf32>
    %1162 = vector.extract_strided_slice %11 {offsets = [56, 0], sizes = [8, 128], strides = [1, 1]} : vector<96x128xf32> to vector<8x128xf32>
    %1163 = vector.extract_strided_slice %14 {offsets = [56, 0], sizes = [8, 128], strides = [1, 1]} : vector<96x128xf32> to vector<8x128xf32>
    %1164 = vector.extract_strided_slice %17 {offsets = [56, 0], sizes = [8, 128], strides = [1, 1]} : vector<96x128xf32> to vector<8x128xf32>
    %1165 = vector.extract_strided_slice %20 {offsets = [56, 0], sizes = [8, 128], strides = [1, 1]} : vector<96x128xf32> to vector<8x128xf32>
    %1166 = vector.extract_strided_slice %23 {offsets = [56, 0], sizes = [8, 128], strides = [1, 1]} : vector<96x128xf32> to vector<8x128xf32>
    %1167 = vector.extract_strided_slice %26 {offsets = [56, 0], sizes = [8, 128], strides = [1, 1]} : vector<96x128xf32> to vector<8x128xf32>
    %1168 = vector.extract_strided_slice %5 {offsets = [88, 0], sizes = [8, 128], strides = [1, 1]} : vector<96x128xf32> to vector<8x128xf32>
    %1169 = vector.extract_strided_slice %8 {offsets = [88, 0], sizes = [8, 128], strides = [1, 1]} : vector<96x128xf32> to vector<8x128xf32>
    %1170 = vector.extract_strided_slice %11 {offsets = [88, 0], sizes = [8, 128], strides = [1, 1]} : vector<96x128xf32> to vector<8x128xf32>
    %1171 = vector.extract_strided_slice %14 {offsets = [88, 0], sizes = [8, 128], strides = [1, 1]} : vector<96x128xf32> to vector<8x128xf32>
    %1172 = vector.extract_strided_slice %17 {offsets = [88, 0], sizes = [8, 128], strides = [1, 1]} : vector<96x128xf32> to vector<8x128xf32>
    %1173 = vector.extract_strided_slice %20 {offsets = [88, 0], sizes = [8, 128], strides = [1, 1]} : vector<96x128xf32> to vector<8x128xf32>
    %1174 = vector.extract_strided_slice %23 {offsets = [88, 0], sizes = [8, 128], strides = [1, 1]} : vector<96x128xf32> to vector<8x128xf32>
    %1175 = vector.extract_strided_slice %26 {offsets = [88, 0], sizes = [8, 128], strides = [1, 1]} : vector<96x128xf32> to vector<8x128xf32>
    %cst_259 = arith.constant 0.000000e+00 : f32
    %1176 = vector.broadcast %cst_259 : f32 to vector<8x128xf32>
    %1177 = vector.extract_strided_slice %5 {offsets = [24, 0], sizes = [8, 128], strides = [1, 1]} : vector<96x128xf32> to vector<8x128xf32>
    %1178 = arith.mulf %1177, %1160 : vector<8x128xf32>
    %cst_260 = arith.constant dense<0.000000e+00> : vector<128xf32>
    %1179 = vector.multi_reduction <add>, %1178, %cst_260 [0] : vector<8x128xf32> to vector<128xf32>
    %1180 = vector.shape_cast %1179 : vector<128xf32> to vector<1x128xf32>
    %1181 = arith.mulf %1177, %1161 : vector<8x128xf32>
    %cst_261 = arith.constant dense<0.000000e+00> : vector<128xf32>
    %1182 = vector.multi_reduction <add>, %1181, %cst_261 [0] : vector<8x128xf32> to vector<128xf32>
    %1183 = vector.shape_cast %1182 : vector<128xf32> to vector<1x128xf32>
    %1184 = arith.mulf %1177, %1162 : vector<8x128xf32>
    %cst_262 = arith.constant dense<0.000000e+00> : vector<128xf32>
    %1185 = vector.multi_reduction <add>, %1184, %cst_262 [0] : vector<8x128xf32> to vector<128xf32>
    %1186 = vector.shape_cast %1185 : vector<128xf32> to vector<1x128xf32>
    %1187 = arith.mulf %1177, %1163 : vector<8x128xf32>
    %cst_263 = arith.constant dense<0.000000e+00> : vector<128xf32>
    %1188 = vector.multi_reduction <add>, %1187, %cst_263 [0] : vector<8x128xf32> to vector<128xf32>
    %1189 = vector.shape_cast %1188 : vector<128xf32> to vector<1x128xf32>
    %1190 = arith.mulf %1177, %1164 : vector<8x128xf32>
    %cst_264 = arith.constant dense<0.000000e+00> : vector<128xf32>
    %1191 = vector.multi_reduction <add>, %1190, %cst_264 [0] : vector<8x128xf32> to vector<128xf32>
    %1192 = vector.shape_cast %1191 : vector<128xf32> to vector<1x128xf32>
    %1193 = arith.mulf %1177, %1165 : vector<8x128xf32>
    %cst_265 = arith.constant dense<0.000000e+00> : vector<128xf32>
    %1194 = vector.multi_reduction <add>, %1193, %cst_265 [0] : vector<8x128xf32> to vector<128xf32>
    %1195 = vector.shape_cast %1194 : vector<128xf32> to vector<1x128xf32>
    %1196 = arith.mulf %1177, %1166 : vector<8x128xf32>
    %cst_266 = arith.constant dense<0.000000e+00> : vector<128xf32>
    %1197 = vector.multi_reduction <add>, %1196, %cst_266 [0] : vector<8x128xf32> to vector<128xf32>
    %1198 = vector.shape_cast %1197 : vector<128xf32> to vector<1x128xf32>
    %1199 = arith.mulf %1177, %1167 : vector<8x128xf32>
    %cst_267 = arith.constant dense<0.000000e+00> : vector<128xf32>
    %1200 = vector.multi_reduction <add>, %1199, %cst_267 [0] : vector<8x128xf32> to vector<128xf32>
    %1201 = vector.shape_cast %1200 : vector<128xf32> to vector<1x128xf32>
    %1202 = tpu.concatenate %1180, %1183, %1186, %1189, %1192, %1195, %1198, %1201 in 0 : vector<1x128xf32>, vector<1x128xf32>, vector<1x128xf32>, vector<1x128xf32>, vector<1x128xf32>, vector<1x128xf32>, vector<1x128xf32>, vector<1x128xf32> -> vector<8x128xf32>
    %1203 = arith.addf %1202, %31 : vector<8x128xf32>
    %cst_268 = arith.constant dense<0xFF800000> : vector<128xf32>
    %1204 = vector.multi_reduction <maximumf>, %1203, %cst_268 [0] : vector<8x128xf32> to vector<128xf32>
    %1205 = vector.shape_cast %1204 : vector<128xf32> to vector<1x128xf32>
    %1206 = vector.broadcast %1205 : vector<1x128xf32> to vector<8x128xf32>
    %1207 = arith.subf %1203, %1206 : vector<8x128xf32>
    %1208 = math.exp %1207 : vector<8x128xf32>
    %cst_269 = arith.constant dense<0.000000e+00> : vector<128xf32>
    %1209 = vector.multi_reduction <add>, %1208, %cst_269 [0] : vector<8x128xf32> to vector<128xf32>
    %1210 = vector.shape_cast %1209 : vector<128xf32> to vector<1x128xf32>
    %1211 = tpu.reciprocal %1210 {approx = true} : vector<1x128xf32> -> vector<1x128xf32>
    %1212 = vector.broadcast %1211 : vector<1x128xf32> to vector<8x128xf32>
    %1213 = arith.mulf %1208, %1212 : vector<8x128xf32>
    %1214 = vector.extract_strided_slice %1 {offsets = [0, 0], sizes = [1, 128], strides = [1, 1]} : vector<8x128xf32> to vector<1x128xf32>
    %1215 = vector.broadcast %1214 : vector<1x128xf32> to vector<8x128xf32>
    %1216 = arith.mulf %1213, %1215 : vector<8x128xf32>
    %1217 = arith.addf %1176, %1216 : vector<8x128xf32>
    %1218 = vector.extract_strided_slice %8 {offsets = [24, 0], sizes = [8, 128], strides = [1, 1]} : vector<96x128xf32> to vector<8x128xf32>
    %1219 = arith.mulf %1218, %1160 : vector<8x128xf32>
    %cst_270 = arith.constant dense<0.000000e+00> : vector<128xf32>
    %1220 = vector.multi_reduction <add>, %1219, %cst_270 [0] : vector<8x128xf32> to vector<128xf32>
    %1221 = vector.shape_cast %1220 : vector<128xf32> to vector<1x128xf32>
    %1222 = arith.mulf %1218, %1161 : vector<8x128xf32>
    %cst_271 = arith.constant dense<0.000000e+00> : vector<128xf32>
    %1223 = vector.multi_reduction <add>, %1222, %cst_271 [0] : vector<8x128xf32> to vector<128xf32>
    %1224 = vector.shape_cast %1223 : vector<128xf32> to vector<1x128xf32>
    %1225 = arith.mulf %1218, %1162 : vector<8x128xf32>
    %cst_272 = arith.constant dense<0.000000e+00> : vector<128xf32>
    %1226 = vector.multi_reduction <add>, %1225, %cst_272 [0] : vector<8x128xf32> to vector<128xf32>
    %1227 = vector.shape_cast %1226 : vector<128xf32> to vector<1x128xf32>
    %1228 = arith.mulf %1218, %1163 : vector<8x128xf32>
    %cst_273 = arith.constant dense<0.000000e+00> : vector<128xf32>
    %1229 = vector.multi_reduction <add>, %1228, %cst_273 [0] : vector<8x128xf32> to vector<128xf32>
    %1230 = vector.shape_cast %1229 : vector<128xf32> to vector<1x128xf32>
    %1231 = arith.mulf %1218, %1164 : vector<8x128xf32>
    %cst_274 = arith.constant dense<0.000000e+00> : vector<128xf32>
    %1232 = vector.multi_reduction <add>, %1231, %cst_274 [0] : vector<8x128xf32> to vector<128xf32>
    %1233 = vector.shape_cast %1232 : vector<128xf32> to vector<1x128xf32>
    %1234 = arith.mulf %1218, %1165 : vector<8x128xf32>
    %cst_275 = arith.constant dense<0.000000e+00> : vector<128xf32>
    %1235 = vector.multi_reduction <add>, %1234, %cst_275 [0] : vector<8x128xf32> to vector<128xf32>
    %1236 = vector.shape_cast %1235 : vector<128xf32> to vector<1x128xf32>
    %1237 = arith.mulf %1218, %1166 : vector<8x128xf32>
    %cst_276 = arith.constant dense<0.000000e+00> : vector<128xf32>
    %1238 = vector.multi_reduction <add>, %1237, %cst_276 [0] : vector<8x128xf32> to vector<128xf32>
    %1239 = vector.shape_cast %1238 : vector<128xf32> to vector<1x128xf32>
    %1240 = arith.mulf %1218, %1167 : vector<8x128xf32>
    %cst_277 = arith.constant dense<0.000000e+00> : vector<128xf32>
    %1241 = vector.multi_reduction <add>, %1240, %cst_277 [0] : vector<8x128xf32> to vector<128xf32>
    %1242 = vector.shape_cast %1241 : vector<128xf32> to vector<1x128xf32>
    %1243 = tpu.concatenate %1221, %1224, %1227, %1230, %1233, %1236, %1239, %1242 in 0 : vector<1x128xf32>, vector<1x128xf32>, vector<1x128xf32>, vector<1x128xf32>, vector<1x128xf32>, vector<1x128xf32>, vector<1x128xf32>, vector<1x128xf32> -> vector<8x128xf32>
    %1244 = arith.addf %1243, %31 : vector<8x128xf32>
    %cst_278 = arith.constant dense<0xFF800000> : vector<128xf32>
    %1245 = vector.multi_reduction <maximumf>, %1244, %cst_278 [0] : vector<8x128xf32> to vector<128xf32>
    %1246 = vector.shape_cast %1245 : vector<128xf32> to vector<1x128xf32>
    %1247 = vector.broadcast %1246 : vector<1x128xf32> to vector<8x128xf32>
    %1248 = arith.subf %1244, %1247 : vector<8x128xf32>
    %1249 = math.exp %1248 : vector<8x128xf32>
    %cst_279 = arith.constant dense<0.000000e+00> : vector<128xf32>
    %1250 = vector.multi_reduction <add>, %1249, %cst_279 [0] : vector<8x128xf32> to vector<128xf32>
    %1251 = vector.shape_cast %1250 : vector<128xf32> to vector<1x128xf32>
    %1252 = tpu.reciprocal %1251 {approx = true} : vector<1x128xf32> -> vector<1x128xf32>
    %1253 = vector.broadcast %1252 : vector<1x128xf32> to vector<8x128xf32>
    %1254 = arith.mulf %1249, %1253 : vector<8x128xf32>
    %1255 = vector.extract_strided_slice %1 {offsets = [1, 0], sizes = [1, 128], strides = [1, 1]} : vector<8x128xf32> to vector<1x128xf32>
    %1256 = vector.broadcast %1255 : vector<1x128xf32> to vector<8x128xf32>
    %1257 = arith.mulf %1254, %1256 : vector<8x128xf32>
    %1258 = arith.addf %1217, %1257 : vector<8x128xf32>
    %1259 = vector.extract_strided_slice %11 {offsets = [24, 0], sizes = [8, 128], strides = [1, 1]} : vector<96x128xf32> to vector<8x128xf32>
    %1260 = arith.mulf %1259, %1160 : vector<8x128xf32>
    %cst_280 = arith.constant dense<0.000000e+00> : vector<128xf32>
    %1261 = vector.multi_reduction <add>, %1260, %cst_280 [0] : vector<8x128xf32> to vector<128xf32>
    %1262 = vector.shape_cast %1261 : vector<128xf32> to vector<1x128xf32>
    %1263 = arith.mulf %1259, %1161 : vector<8x128xf32>
    %cst_281 = arith.constant dense<0.000000e+00> : vector<128xf32>
    %1264 = vector.multi_reduction <add>, %1263, %cst_281 [0] : vector<8x128xf32> to vector<128xf32>
    %1265 = vector.shape_cast %1264 : vector<128xf32> to vector<1x128xf32>
    %1266 = arith.mulf %1259, %1162 : vector<8x128xf32>
    %cst_282 = arith.constant dense<0.000000e+00> : vector<128xf32>
    %1267 = vector.multi_reduction <add>, %1266, %cst_282 [0] : vector<8x128xf32> to vector<128xf32>
    %1268 = vector.shape_cast %1267 : vector<128xf32> to vector<1x128xf32>
    %1269 = arith.mulf %1259, %1163 : vector<8x128xf32>
    %cst_283 = arith.constant dense<0.000000e+00> : vector<128xf32>
    %1270 = vector.multi_reduction <add>, %1269, %cst_283 [0] : vector<8x128xf32> to vector<128xf32>
    %1271 = vector.shape_cast %1270 : vector<128xf32> to vector<1x128xf32>
    %1272 = arith.mulf %1259, %1164 : vector<8x128xf32>
    %cst_284 = arith.constant dense<0.000000e+00> : vector<128xf32>
    %1273 = vector.multi_reduction <add>, %1272, %cst_284 [0] : vector<8x128xf32> to vector<128xf32>
    %1274 = vector.shape_cast %1273 : vector<128xf32> to vector<1x128xf32>
    %1275 = arith.mulf %1259, %1165 : vector<8x128xf32>
    %cst_285 = arith.constant dense<0.000000e+00> : vector<128xf32>
    %1276 = vector.multi_reduction <add>, %1275, %cst_285 [0] : vector<8x128xf32> to vector<128xf32>
    %1277 = vector.shape_cast %1276 : vector<128xf32> to vector<1x128xf32>
    %1278 = arith.mulf %1259, %1166 : vector<8x128xf32>
    %cst_286 = arith.constant dense<0.000000e+00> : vector<128xf32>
    %1279 = vector.multi_reduction <add>, %1278, %cst_286 [0] : vector<8x128xf32> to vector<128xf32>
    %1280 = vector.shape_cast %1279 : vector<128xf32> to vector<1x128xf32>
    %1281 = arith.mulf %1259, %1167 : vector<8x128xf32>
    %cst_287 = arith.constant dense<0.000000e+00> : vector<128xf32>
    %1282 = vector.multi_reduction <add>, %1281, %cst_287 [0] : vector<8x128xf32> to vector<128xf32>
    %1283 = vector.shape_cast %1282 : vector<128xf32> to vector<1x128xf32>
    %1284 = tpu.concatenate %1262, %1265, %1268, %1271, %1274, %1277, %1280, %1283 in 0 : vector<1x128xf32>, vector<1x128xf32>, vector<1x128xf32>, vector<1x128xf32>, vector<1x128xf32>, vector<1x128xf32>, vector<1x128xf32>, vector<1x128xf32> -> vector<8x128xf32>
    %1285 = arith.addf %1284, %31 : vector<8x128xf32>
    %cst_288 = arith.constant dense<0xFF800000> : vector<128xf32>
    %1286 = vector.multi_reduction <maximumf>, %1285, %cst_288 [0] : vector<8x128xf32> to vector<128xf32>
    %1287 = vector.shape_cast %1286 : vector<128xf32> to vector<1x128xf32>
    %1288 = vector.broadcast %1287 : vector<1x128xf32> to vector<8x128xf32>
    %1289 = arith.subf %1285, %1288 : vector<8x128xf32>
    %1290 = math.exp %1289 : vector<8x128xf32>
    %cst_289 = arith.constant dense<0.000000e+00> : vector<128xf32>
    %1291 = vector.multi_reduction <add>, %1290, %cst_289 [0] : vector<8x128xf32> to vector<128xf32>
    %1292 = vector.shape_cast %1291 : vector<128xf32> to vector<1x128xf32>
    %1293 = tpu.reciprocal %1292 {approx = true} : vector<1x128xf32> -> vector<1x128xf32>
    %1294 = vector.broadcast %1293 : vector<1x128xf32> to vector<8x128xf32>
    %1295 = arith.mulf %1290, %1294 : vector<8x128xf32>
    %1296 = vector.extract_strided_slice %1 {offsets = [2, 0], sizes = [1, 128], strides = [1, 1]} : vector<8x128xf32> to vector<1x128xf32>
    %1297 = vector.broadcast %1296 : vector<1x128xf32> to vector<8x128xf32>
    %1298 = arith.mulf %1295, %1297 : vector<8x128xf32>
    %1299 = arith.addf %1258, %1298 : vector<8x128xf32>
    %1300 = vector.extract_strided_slice %14 {offsets = [24, 0], sizes = [8, 128], strides = [1, 1]} : vector<96x128xf32> to vector<8x128xf32>
    %1301 = arith.mulf %1300, %1160 : vector<8x128xf32>
    %cst_290 = arith.constant dense<0.000000e+00> : vector<128xf32>
    %1302 = vector.multi_reduction <add>, %1301, %cst_290 [0] : vector<8x128xf32> to vector<128xf32>
    %1303 = vector.shape_cast %1302 : vector<128xf32> to vector<1x128xf32>
    %1304 = arith.mulf %1300, %1161 : vector<8x128xf32>
    %cst_291 = arith.constant dense<0.000000e+00> : vector<128xf32>
    %1305 = vector.multi_reduction <add>, %1304, %cst_291 [0] : vector<8x128xf32> to vector<128xf32>
    %1306 = vector.shape_cast %1305 : vector<128xf32> to vector<1x128xf32>
    %1307 = arith.mulf %1300, %1162 : vector<8x128xf32>
    %cst_292 = arith.constant dense<0.000000e+00> : vector<128xf32>
    %1308 = vector.multi_reduction <add>, %1307, %cst_292 [0] : vector<8x128xf32> to vector<128xf32>
    %1309 = vector.shape_cast %1308 : vector<128xf32> to vector<1x128xf32>
    %1310 = arith.mulf %1300, %1163 : vector<8x128xf32>
    %cst_293 = arith.constant dense<0.000000e+00> : vector<128xf32>
    %1311 = vector.multi_reduction <add>, %1310, %cst_293 [0] : vector<8x128xf32> to vector<128xf32>
    %1312 = vector.shape_cast %1311 : vector<128xf32> to vector<1x128xf32>
    %1313 = arith.mulf %1300, %1164 : vector<8x128xf32>
    %cst_294 = arith.constant dense<0.000000e+00> : vector<128xf32>
    %1314 = vector.multi_reduction <add>, %1313, %cst_294 [0] : vector<8x128xf32> to vector<128xf32>
    %1315 = vector.shape_cast %1314 : vector<128xf32> to vector<1x128xf32>
    %1316 = arith.mulf %1300, %1165 : vector<8x128xf32>
    %cst_295 = arith.constant dense<0.000000e+00> : vector<128xf32>
    %1317 = vector.multi_reduction <add>, %1316, %cst_295 [0] : vector<8x128xf32> to vector<128xf32>
    %1318 = vector.shape_cast %1317 : vector<128xf32> to vector<1x128xf32>
    %1319 = arith.mulf %1300, %1166 : vector<8x128xf32>
    %cst_296 = arith.constant dense<0.000000e+00> : vector<128xf32>
    %1320 = vector.multi_reduction <add>, %1319, %cst_296 [0] : vector<8x128xf32> to vector<128xf32>
    %1321 = vector.shape_cast %1320 : vector<128xf32> to vector<1x128xf32>
    %1322 = arith.mulf %1300, %1167 : vector<8x128xf32>
    %cst_297 = arith.constant dense<0.000000e+00> : vector<128xf32>
    %1323 = vector.multi_reduction <add>, %1322, %cst_297 [0] : vector<8x128xf32> to vector<128xf32>
    %1324 = vector.shape_cast %1323 : vector<128xf32> to vector<1x128xf32>
    %1325 = tpu.concatenate %1303, %1306, %1309, %1312, %1315, %1318, %1321, %1324 in 0 : vector<1x128xf32>, vector<1x128xf32>, vector<1x128xf32>, vector<1x128xf32>, vector<1x128xf32>, vector<1x128xf32>, vector<1x128xf32>, vector<1x128xf32> -> vector<8x128xf32>
    %1326 = arith.addf %1325, %31 : vector<8x128xf32>
    %cst_298 = arith.constant dense<0xFF800000> : vector<128xf32>
    %1327 = vector.multi_reduction <maximumf>, %1326, %cst_298 [0] : vector<8x128xf32> to vector<128xf32>
    %1328 = vector.shape_cast %1327 : vector<128xf32> to vector<1x128xf32>
    %1329 = vector.broadcast %1328 : vector<1x128xf32> to vector<8x128xf32>
    %1330 = arith.subf %1326, %1329 : vector<8x128xf32>
    %1331 = math.exp %1330 : vector<8x128xf32>
    %cst_299 = arith.constant dense<0.000000e+00> : vector<128xf32>
    %1332 = vector.multi_reduction <add>, %1331, %cst_299 [0] : vector<8x128xf32> to vector<128xf32>
    %1333 = vector.shape_cast %1332 : vector<128xf32> to vector<1x128xf32>
    %1334 = tpu.reciprocal %1333 {approx = true} : vector<1x128xf32> -> vector<1x128xf32>
    %1335 = vector.broadcast %1334 : vector<1x128xf32> to vector<8x128xf32>
    %1336 = arith.mulf %1331, %1335 : vector<8x128xf32>
    %1337 = vector.extract_strided_slice %1 {offsets = [3, 0], sizes = [1, 128], strides = [1, 1]} : vector<8x128xf32> to vector<1x128xf32>
    %1338 = vector.broadcast %1337 : vector<1x128xf32> to vector<8x128xf32>
    %1339 = arith.mulf %1336, %1338 : vector<8x128xf32>
    %1340 = arith.addf %1299, %1339 : vector<8x128xf32>
    %1341 = vector.extract_strided_slice %17 {offsets = [24, 0], sizes = [8, 128], strides = [1, 1]} : vector<96x128xf32> to vector<8x128xf32>
    %1342 = arith.mulf %1341, %1160 : vector<8x128xf32>
    %cst_300 = arith.constant dense<0.000000e+00> : vector<128xf32>
    %1343 = vector.multi_reduction <add>, %1342, %cst_300 [0] : vector<8x128xf32> to vector<128xf32>
    %1344 = vector.shape_cast %1343 : vector<128xf32> to vector<1x128xf32>
    %1345 = arith.mulf %1341, %1161 : vector<8x128xf32>
    %cst_301 = arith.constant dense<0.000000e+00> : vector<128xf32>
    %1346 = vector.multi_reduction <add>, %1345, %cst_301 [0] : vector<8x128xf32> to vector<128xf32>
    %1347 = vector.shape_cast %1346 : vector<128xf32> to vector<1x128xf32>
    %1348 = arith.mulf %1341, %1162 : vector<8x128xf32>
    %cst_302 = arith.constant dense<0.000000e+00> : vector<128xf32>
    %1349 = vector.multi_reduction <add>, %1348, %cst_302 [0] : vector<8x128xf32> to vector<128xf32>
    %1350 = vector.shape_cast %1349 : vector<128xf32> to vector<1x128xf32>
    %1351 = arith.mulf %1341, %1163 : vector<8x128xf32>
    %cst_303 = arith.constant dense<0.000000e+00> : vector<128xf32>
    %1352 = vector.multi_reduction <add>, %1351, %cst_303 [0] : vector<8x128xf32> to vector<128xf32>
    %1353 = vector.shape_cast %1352 : vector<128xf32> to vector<1x128xf32>
    %1354 = arith.mulf %1341, %1164 : vector<8x128xf32>
    %cst_304 = arith.constant dense<0.000000e+00> : vector<128xf32>
    %1355 = vector.multi_reduction <add>, %1354, %cst_304 [0] : vector<8x128xf32> to vector<128xf32>
    %1356 = vector.shape_cast %1355 : vector<128xf32> to vector<1x128xf32>
    %1357 = arith.mulf %1341, %1165 : vector<8x128xf32>
    %cst_305 = arith.constant dense<0.000000e+00> : vector<128xf32>
    %1358 = vector.multi_reduction <add>, %1357, %cst_305 [0] : vector<8x128xf32> to vector<128xf32>
    %1359 = vector.shape_cast %1358 : vector<128xf32> to vector<1x128xf32>
    %1360 = arith.mulf %1341, %1166 : vector<8x128xf32>
    %cst_306 = arith.constant dense<0.000000e+00> : vector<128xf32>
    %1361 = vector.multi_reduction <add>, %1360, %cst_306 [0] : vector<8x128xf32> to vector<128xf32>
    %1362 = vector.shape_cast %1361 : vector<128xf32> to vector<1x128xf32>
    %1363 = arith.mulf %1341, %1167 : vector<8x128xf32>
    %cst_307 = arith.constant dense<0.000000e+00> : vector<128xf32>
    %1364 = vector.multi_reduction <add>, %1363, %cst_307 [0] : vector<8x128xf32> to vector<128xf32>
    %1365 = vector.shape_cast %1364 : vector<128xf32> to vector<1x128xf32>
    %1366 = tpu.concatenate %1344, %1347, %1350, %1353, %1356, %1359, %1362, %1365 in 0 : vector<1x128xf32>, vector<1x128xf32>, vector<1x128xf32>, vector<1x128xf32>, vector<1x128xf32>, vector<1x128xf32>, vector<1x128xf32>, vector<1x128xf32> -> vector<8x128xf32>
    %1367 = arith.addf %1366, %31 : vector<8x128xf32>
    %cst_308 = arith.constant dense<0xFF800000> : vector<128xf32>
    %1368 = vector.multi_reduction <maximumf>, %1367, %cst_308 [0] : vector<8x128xf32> to vector<128xf32>
    %1369 = vector.shape_cast %1368 : vector<128xf32> to vector<1x128xf32>
    %1370 = vector.broadcast %1369 : vector<1x128xf32> to vector<8x128xf32>
    %1371 = arith.subf %1367, %1370 : vector<8x128xf32>
    %1372 = math.exp %1371 : vector<8x128xf32>
    %cst_309 = arith.constant dense<0.000000e+00> : vector<128xf32>
    %1373 = vector.multi_reduction <add>, %1372, %cst_309 [0] : vector<8x128xf32> to vector<128xf32>
    %1374 = vector.shape_cast %1373 : vector<128xf32> to vector<1x128xf32>
    %1375 = tpu.reciprocal %1374 {approx = true} : vector<1x128xf32> -> vector<1x128xf32>
    %1376 = vector.broadcast %1375 : vector<1x128xf32> to vector<8x128xf32>
    %1377 = arith.mulf %1372, %1376 : vector<8x128xf32>
    %1378 = vector.extract_strided_slice %1 {offsets = [4, 0], sizes = [1, 128], strides = [1, 1]} : vector<8x128xf32> to vector<1x128xf32>
    %1379 = vector.broadcast %1378 : vector<1x128xf32> to vector<8x128xf32>
    %1380 = arith.mulf %1377, %1379 : vector<8x128xf32>
    %1381 = arith.addf %1340, %1380 : vector<8x128xf32>
    %1382 = vector.extract_strided_slice %20 {offsets = [24, 0], sizes = [8, 128], strides = [1, 1]} : vector<96x128xf32> to vector<8x128xf32>
    %1383 = arith.mulf %1382, %1160 : vector<8x128xf32>
    %cst_310 = arith.constant dense<0.000000e+00> : vector<128xf32>
    %1384 = vector.multi_reduction <add>, %1383, %cst_310 [0] : vector<8x128xf32> to vector<128xf32>
    %1385 = vector.shape_cast %1384 : vector<128xf32> to vector<1x128xf32>
    %1386 = arith.mulf %1382, %1161 : vector<8x128xf32>
    %cst_311 = arith.constant dense<0.000000e+00> : vector<128xf32>
    %1387 = vector.multi_reduction <add>, %1386, %cst_311 [0] : vector<8x128xf32> to vector<128xf32>
    %1388 = vector.shape_cast %1387 : vector<128xf32> to vector<1x128xf32>
    %1389 = arith.mulf %1382, %1162 : vector<8x128xf32>
    %cst_312 = arith.constant dense<0.000000e+00> : vector<128xf32>
    %1390 = vector.multi_reduction <add>, %1389, %cst_312 [0] : vector<8x128xf32> to vector<128xf32>
    %1391 = vector.shape_cast %1390 : vector<128xf32> to vector<1x128xf32>
    %1392 = arith.mulf %1382, %1163 : vector<8x128xf32>
    %cst_313 = arith.constant dense<0.000000e+00> : vector<128xf32>
    %1393 = vector.multi_reduction <add>, %1392, %cst_313 [0] : vector<8x128xf32> to vector<128xf32>
    %1394 = vector.shape_cast %1393 : vector<128xf32> to vector<1x128xf32>
    %1395 = arith.mulf %1382, %1164 : vector<8x128xf32>
    %cst_314 = arith.constant dense<0.000000e+00> : vector<128xf32>
    %1396 = vector.multi_reduction <add>, %1395, %cst_314 [0] : vector<8x128xf32> to vector<128xf32>
    %1397 = vector.shape_cast %1396 : vector<128xf32> to vector<1x128xf32>
    %1398 = arith.mulf %1382, %1165 : vector<8x128xf32>
    %cst_315 = arith.constant dense<0.000000e+00> : vector<128xf32>
    %1399 = vector.multi_reduction <add>, %1398, %cst_315 [0] : vector<8x128xf32> to vector<128xf32>
    %1400 = vector.shape_cast %1399 : vector<128xf32> to vector<1x128xf32>
    %1401 = arith.mulf %1382, %1166 : vector<8x128xf32>
    %cst_316 = arith.constant dense<0.000000e+00> : vector<128xf32>
    %1402 = vector.multi_reduction <add>, %1401, %cst_316 [0] : vector<8x128xf32> to vector<128xf32>
    %1403 = vector.shape_cast %1402 : vector<128xf32> to vector<1x128xf32>
    %1404 = arith.mulf %1382, %1167 : vector<8x128xf32>
    %cst_317 = arith.constant dense<0.000000e+00> : vector<128xf32>
    %1405 = vector.multi_reduction <add>, %1404, %cst_317 [0] : vector<8x128xf32> to vector<128xf32>
    %1406 = vector.shape_cast %1405 : vector<128xf32> to vector<1x128xf32>
    %1407 = tpu.concatenate %1385, %1388, %1391, %1394, %1397, %1400, %1403, %1406 in 0 : vector<1x128xf32>, vector<1x128xf32>, vector<1x128xf32>, vector<1x128xf32>, vector<1x128xf32>, vector<1x128xf32>, vector<1x128xf32>, vector<1x128xf32> -> vector<8x128xf32>
    %1408 = arith.addf %1407, %31 : vector<8x128xf32>
    %cst_318 = arith.constant dense<0xFF800000> : vector<128xf32>
    %1409 = vector.multi_reduction <maximumf>, %1408, %cst_318 [0] : vector<8x128xf32> to vector<128xf32>
    %1410 = vector.shape_cast %1409 : vector<128xf32> to vector<1x128xf32>
    %1411 = vector.broadcast %1410 : vector<1x128xf32> to vector<8x128xf32>
    %1412 = arith.subf %1408, %1411 : vector<8x128xf32>
    %1413 = math.exp %1412 : vector<8x128xf32>
    %cst_319 = arith.constant dense<0.000000e+00> : vector<128xf32>
    %1414 = vector.multi_reduction <add>, %1413, %cst_319 [0] : vector<8x128xf32> to vector<128xf32>
    %1415 = vector.shape_cast %1414 : vector<128xf32> to vector<1x128xf32>
    %1416 = tpu.reciprocal %1415 {approx = true} : vector<1x128xf32> -> vector<1x128xf32>
    %1417 = vector.broadcast %1416 : vector<1x128xf32> to vector<8x128xf32>
    %1418 = arith.mulf %1413, %1417 : vector<8x128xf32>
    %1419 = vector.extract_strided_slice %1 {offsets = [5, 0], sizes = [1, 128], strides = [1, 1]} : vector<8x128xf32> to vector<1x128xf32>
    %1420 = vector.broadcast %1419 : vector<1x128xf32> to vector<8x128xf32>
    %1421 = arith.mulf %1418, %1420 : vector<8x128xf32>
    %1422 = arith.addf %1381, %1421 : vector<8x128xf32>
    %1423 = vector.extract_strided_slice %23 {offsets = [24, 0], sizes = [8, 128], strides = [1, 1]} : vector<96x128xf32> to vector<8x128xf32>
    %1424 = arith.mulf %1423, %1160 : vector<8x128xf32>
    %cst_320 = arith.constant dense<0.000000e+00> : vector<128xf32>
    %1425 = vector.multi_reduction <add>, %1424, %cst_320 [0] : vector<8x128xf32> to vector<128xf32>
    %1426 = vector.shape_cast %1425 : vector<128xf32> to vector<1x128xf32>
    %1427 = arith.mulf %1423, %1161 : vector<8x128xf32>
    %cst_321 = arith.constant dense<0.000000e+00> : vector<128xf32>
    %1428 = vector.multi_reduction <add>, %1427, %cst_321 [0] : vector<8x128xf32> to vector<128xf32>
    %1429 = vector.shape_cast %1428 : vector<128xf32> to vector<1x128xf32>
    %1430 = arith.mulf %1423, %1162 : vector<8x128xf32>
    %cst_322 = arith.constant dense<0.000000e+00> : vector<128xf32>
    %1431 = vector.multi_reduction <add>, %1430, %cst_322 [0] : vector<8x128xf32> to vector<128xf32>
    %1432 = vector.shape_cast %1431 : vector<128xf32> to vector<1x128xf32>
    %1433 = arith.mulf %1423, %1163 : vector<8x128xf32>
    %cst_323 = arith.constant dense<0.000000e+00> : vector<128xf32>
    %1434 = vector.multi_reduction <add>, %1433, %cst_323 [0] : vector<8x128xf32> to vector<128xf32>
    %1435 = vector.shape_cast %1434 : vector<128xf32> to vector<1x128xf32>
    %1436 = arith.mulf %1423, %1164 : vector<8x128xf32>
    %cst_324 = arith.constant dense<0.000000e+00> : vector<128xf32>
    %1437 = vector.multi_reduction <add>, %1436, %cst_324 [0] : vector<8x128xf32> to vector<128xf32>
    %1438 = vector.shape_cast %1437 : vector<128xf32> to vector<1x128xf32>
    %1439 = arith.mulf %1423, %1165 : vector<8x128xf32>
    %cst_325 = arith.constant dense<0.000000e+00> : vector<128xf32>
    %1440 = vector.multi_reduction <add>, %1439, %cst_325 [0] : vector<8x128xf32> to vector<128xf32>
    %1441 = vector.shape_cast %1440 : vector<128xf32> to vector<1x128xf32>
    %1442 = arith.mulf %1423, %1166 : vector<8x128xf32>
    %cst_326 = arith.constant dense<0.000000e+00> : vector<128xf32>
    %1443 = vector.multi_reduction <add>, %1442, %cst_326 [0] : vector<8x128xf32> to vector<128xf32>
    %1444 = vector.shape_cast %1443 : vector<128xf32> to vector<1x128xf32>
    %1445 = arith.mulf %1423, %1167 : vector<8x128xf32>
    %cst_327 = arith.constant dense<0.000000e+00> : vector<128xf32>
    %1446 = vector.multi_reduction <add>, %1445, %cst_327 [0] : vector<8x128xf32> to vector<128xf32>
    %1447 = vector.shape_cast %1446 : vector<128xf32> to vector<1x128xf32>
    %1448 = tpu.concatenate %1426, %1429, %1432, %1435, %1438, %1441, %1444, %1447 in 0 : vector<1x128xf32>, vector<1x128xf32>, vector<1x128xf32>, vector<1x128xf32>, vector<1x128xf32>, vector<1x128xf32>, vector<1x128xf32>, vector<1x128xf32> -> vector<8x128xf32>
    %1449 = arith.addf %1448, %31 : vector<8x128xf32>
    %cst_328 = arith.constant dense<0xFF800000> : vector<128xf32>
    %1450 = vector.multi_reduction <maximumf>, %1449, %cst_328 [0] : vector<8x128xf32> to vector<128xf32>
    %1451 = vector.shape_cast %1450 : vector<128xf32> to vector<1x128xf32>
    %1452 = vector.broadcast %1451 : vector<1x128xf32> to vector<8x128xf32>
    %1453 = arith.subf %1449, %1452 : vector<8x128xf32>
    %1454 = math.exp %1453 : vector<8x128xf32>
    %cst_329 = arith.constant dense<0.000000e+00> : vector<128xf32>
    %1455 = vector.multi_reduction <add>, %1454, %cst_329 [0] : vector<8x128xf32> to vector<128xf32>
    %1456 = vector.shape_cast %1455 : vector<128xf32> to vector<1x128xf32>
    %1457 = tpu.reciprocal %1456 {approx = true} : vector<1x128xf32> -> vector<1x128xf32>
    %1458 = vector.broadcast %1457 : vector<1x128xf32> to vector<8x128xf32>
    %1459 = arith.mulf %1454, %1458 : vector<8x128xf32>
    %1460 = vector.extract_strided_slice %1 {offsets = [6, 0], sizes = [1, 128], strides = [1, 1]} : vector<8x128xf32> to vector<1x128xf32>
    %1461 = vector.broadcast %1460 : vector<1x128xf32> to vector<8x128xf32>
    %1462 = arith.mulf %1459, %1461 : vector<8x128xf32>
    %1463 = arith.addf %1422, %1462 : vector<8x128xf32>
    %1464 = vector.extract_strided_slice %26 {offsets = [24, 0], sizes = [8, 128], strides = [1, 1]} : vector<96x128xf32> to vector<8x128xf32>
    %1465 = arith.mulf %1464, %1160 : vector<8x128xf32>
    %cst_330 = arith.constant dense<0.000000e+00> : vector<128xf32>
    %1466 = vector.multi_reduction <add>, %1465, %cst_330 [0] : vector<8x128xf32> to vector<128xf32>
    %1467 = vector.shape_cast %1466 : vector<128xf32> to vector<1x128xf32>
    %1468 = arith.mulf %1464, %1161 : vector<8x128xf32>
    %cst_331 = arith.constant dense<0.000000e+00> : vector<128xf32>
    %1469 = vector.multi_reduction <add>, %1468, %cst_331 [0] : vector<8x128xf32> to vector<128xf32>
    %1470 = vector.shape_cast %1469 : vector<128xf32> to vector<1x128xf32>
    %1471 = arith.mulf %1464, %1162 : vector<8x128xf32>
    %cst_332 = arith.constant dense<0.000000e+00> : vector<128xf32>
    %1472 = vector.multi_reduction <add>, %1471, %cst_332 [0] : vector<8x128xf32> to vector<128xf32>
    %1473 = vector.shape_cast %1472 : vector<128xf32> to vector<1x128xf32>
    %1474 = arith.mulf %1464, %1163 : vector<8x128xf32>
    %cst_333 = arith.constant dense<0.000000e+00> : vector<128xf32>
    %1475 = vector.multi_reduction <add>, %1474, %cst_333 [0] : vector<8x128xf32> to vector<128xf32>
    %1476 = vector.shape_cast %1475 : vector<128xf32> to vector<1x128xf32>
    %1477 = arith.mulf %1464, %1164 : vector<8x128xf32>
    %cst_334 = arith.constant dense<0.000000e+00> : vector<128xf32>
    %1478 = vector.multi_reduction <add>, %1477, %cst_334 [0] : vector<8x128xf32> to vector<128xf32>
    %1479 = vector.shape_cast %1478 : vector<128xf32> to vector<1x128xf32>
    %1480 = arith.mulf %1464, %1165 : vector<8x128xf32>
    %cst_335 = arith.constant dense<0.000000e+00> : vector<128xf32>
    %1481 = vector.multi_reduction <add>, %1480, %cst_335 [0] : vector<8x128xf32> to vector<128xf32>
    %1482 = vector.shape_cast %1481 : vector<128xf32> to vector<1x128xf32>
    %1483 = arith.mulf %1464, %1166 : vector<8x128xf32>
    %cst_336 = arith.constant dense<0.000000e+00> : vector<128xf32>
    %1484 = vector.multi_reduction <add>, %1483, %cst_336 [0] : vector<8x128xf32> to vector<128xf32>
    %1485 = vector.shape_cast %1484 : vector<128xf32> to vector<1x128xf32>
    %1486 = arith.mulf %1464, %1167 : vector<8x128xf32>
    %cst_337 = arith.constant dense<0.000000e+00> : vector<128xf32>
    %1487 = vector.multi_reduction <add>, %1486, %cst_337 [0] : vector<8x128xf32> to vector<128xf32>
    %1488 = vector.shape_cast %1487 : vector<128xf32> to vector<1x128xf32>
    %1489 = tpu.concatenate %1467, %1470, %1473, %1476, %1479, %1482, %1485, %1488 in 0 : vector<1x128xf32>, vector<1x128xf32>, vector<1x128xf32>, vector<1x128xf32>, vector<1x128xf32>, vector<1x128xf32>, vector<1x128xf32>, vector<1x128xf32> -> vector<8x128xf32>
    %1490 = arith.addf %1489, %31 : vector<8x128xf32>
    %cst_338 = arith.constant dense<0xFF800000> : vector<128xf32>
    %1491 = vector.multi_reduction <maximumf>, %1490, %cst_338 [0] : vector<8x128xf32> to vector<128xf32>
    %1492 = vector.shape_cast %1491 : vector<128xf32> to vector<1x128xf32>
    %1493 = vector.broadcast %1492 : vector<1x128xf32> to vector<8x128xf32>
    %1494 = arith.subf %1490, %1493 : vector<8x128xf32>
    %1495 = math.exp %1494 : vector<8x128xf32>
    %cst_339 = arith.constant dense<0.000000e+00> : vector<128xf32>
    %1496 = vector.multi_reduction <add>, %1495, %cst_339 [0] : vector<8x128xf32> to vector<128xf32>
    %1497 = vector.shape_cast %1496 : vector<128xf32> to vector<1x128xf32>
    %1498 = tpu.reciprocal %1497 {approx = true} : vector<1x128xf32> -> vector<1x128xf32>
    %1499 = vector.broadcast %1498 : vector<1x128xf32> to vector<8x128xf32>
    %1500 = arith.mulf %1495, %1499 : vector<8x128xf32>
    %1501 = vector.extract_strided_slice %1 {offsets = [7, 0], sizes = [1, 128], strides = [1, 1]} : vector<8x128xf32> to vector<1x128xf32>
    %1502 = vector.broadcast %1501 : vector<1x128xf32> to vector<8x128xf32>
    %1503 = arith.mulf %1500, %1502 : vector<8x128xf32>
    %1504 = arith.addf %1463, %1503 : vector<8x128xf32>
    %1505 = vector.extract_strided_slice %1504 {offsets = [0, 0], sizes = [1, 128], strides = [1, 1]} : vector<8x128xf32> to vector<1x128xf32>
    %1506 = vector.broadcast %1505 : vector<1x128xf32> to vector<8x128xf32>
    %1507 = arith.mulf %1506, %1168 : vector<8x128xf32>
    %1508 = vector.extract_strided_slice %1504 {offsets = [1, 0], sizes = [1, 128], strides = [1, 1]} : vector<8x128xf32> to vector<1x128xf32>
    %1509 = vector.broadcast %1508 : vector<1x128xf32> to vector<8x128xf32>
    %1510 = arith.mulf %1509, %1169 : vector<8x128xf32>
    %1511 = arith.addf %1507, %1510 : vector<8x128xf32>
    %1512 = vector.extract_strided_slice %1504 {offsets = [2, 0], sizes = [1, 128], strides = [1, 1]} : vector<8x128xf32> to vector<1x128xf32>
    %1513 = vector.broadcast %1512 : vector<1x128xf32> to vector<8x128xf32>
    %1514 = arith.mulf %1513, %1170 : vector<8x128xf32>
    %1515 = arith.addf %1511, %1514 : vector<8x128xf32>
    %1516 = vector.extract_strided_slice %1504 {offsets = [3, 0], sizes = [1, 128], strides = [1, 1]} : vector<8x128xf32> to vector<1x128xf32>
    %1517 = vector.broadcast %1516 : vector<1x128xf32> to vector<8x128xf32>
    %1518 = arith.mulf %1517, %1171 : vector<8x128xf32>
    %1519 = arith.addf %1515, %1518 : vector<8x128xf32>
    %1520 = vector.extract_strided_slice %1504 {offsets = [4, 0], sizes = [1, 128], strides = [1, 1]} : vector<8x128xf32> to vector<1x128xf32>
    %1521 = vector.broadcast %1520 : vector<1x128xf32> to vector<8x128xf32>
    %1522 = arith.mulf %1521, %1172 : vector<8x128xf32>
    %1523 = arith.addf %1519, %1522 : vector<8x128xf32>
    %1524 = vector.extract_strided_slice %1504 {offsets = [5, 0], sizes = [1, 128], strides = [1, 1]} : vector<8x128xf32> to vector<1x128xf32>
    %1525 = vector.broadcast %1524 : vector<1x128xf32> to vector<8x128xf32>
    %1526 = arith.mulf %1525, %1173 : vector<8x128xf32>
    %1527 = arith.addf %1523, %1526 : vector<8x128xf32>
    %1528 = vector.extract_strided_slice %1504 {offsets = [6, 0], sizes = [1, 128], strides = [1, 1]} : vector<8x128xf32> to vector<1x128xf32>
    %1529 = vector.broadcast %1528 : vector<1x128xf32> to vector<8x128xf32>
    %1530 = arith.mulf %1529, %1174 : vector<8x128xf32>
    %1531 = arith.addf %1527, %1530 : vector<8x128xf32>
    %1532 = vector.extract_strided_slice %1504 {offsets = [7, 0], sizes = [1, 128], strides = [1, 1]} : vector<8x128xf32> to vector<1x128xf32>
    %1533 = vector.broadcast %1532 : vector<1x128xf32> to vector<8x128xf32>
    %1534 = arith.mulf %1533, %1175 : vector<8x128xf32>
    %1535 = arith.addf %1531, %1534 : vector<8x128xf32>
    %1536 = tpu.concatenate %407, %783, %1159, %1535 in 0 : vector<8x128xf32>, vector<8x128xf32>, vector<8x128xf32>, vector<8x128xf32> -> vector<32x128xf32>
    %cst_340 = arith.constant dense<0.000000e+00> : vector<128xf32>
    %1537 = vector.multi_reduction <add>, %1, %cst_340 [0] : vector<8x128xf32> to vector<128xf32>
    %1538 = vector.shape_cast %1537 : vector<128xf32> to vector<1x128xf32>
    %cst_341 = arith.constant 1.000000e+00 : f32
    %1539 = vector.broadcast %cst_341 : f32 to vector<1x128xf32>
    %1540 = arith.maximumf %1538, %1539 : vector<1x128xf32>
    %1541 = tpu.reciprocal %1540 {approx = true} : vector<1x128xf32> -> vector<1x128xf32>
    %1542 = vector.broadcast %1541 : vector<1x128xf32> to vector<32x128xf32>
    %1543 = arith.mulf %1536, %1542 : vector<32x128xf32>
    %cst_342 = arith.constant 1.000000e+00 : f32
    %1544 = vector.broadcast %cst_342 : f32 to vector<1x128xf32>
    %1545 = arith.minimumf %1538, %1544 : vector<1x128xf32>
    %c0_343 = arith.constant 0 : index
    %c0_344 = arith.constant 0 : index
    %1546 = vector.load %arg7[%c0_343, %c0_344] : memref<256x3xf32, #tpu.memory_space<vmem>>, vector<256x1xf32>
    %c0_345 = arith.constant 0 : index
    %c1 = arith.constant 1 : index
    %1547 = vector.load %arg7[%c0_345, %c1] : memref<256x3xf32, #tpu.memory_space<vmem>>, vector<256x1xf32>
    %c0_346 = arith.constant 0 : index
    %c2 = arith.constant 2 : index
    %1548 = vector.load %arg7[%c0_346, %c2] : memref<256x3xf32, #tpu.memory_space<vmem>>, vector<256x1xf32>
    %c0_347 = arith.constant 0 : index
    %c0_348 = arith.constant 0 : index
    %1549 = vector.load %arg4[%c0_347, %c0_348] : memref<256x32xf32, #tpu.memory_space<vmem>>, vector<256x32xf32>
    %cst_349 = arith.constant dense<0.000000e+00> : vector<256x128xf32>
    %1550 = tpu.matmul %1549, %1543, %cst_349 {dimension_numbers = #tpu.dot_dimension_numbers<[1], [0], [0], [1], [0, 0, 1, 1], [], []>} : vector<256x32xf32>, vector<32x128xf32>, vector<256x128xf32> -> vector<256x128xf32>
    %1551 = vector.broadcast %1546 : vector<256x1xf32> to vector<256x128xf32>
    %1552 = arith.addf %1550, %1551 : vector<256x128xf32>
    %1553 = vector.broadcast %1547 : vector<256x1xf32> to vector<256x128xf32>
    %1554 = vector.broadcast %1545 : vector<1x128xf32> to vector<256x128xf32>
    %1555 = arith.mulf %1553, %1554 : vector<256x128xf32>
    %1556 = arith.addf %1552, %1555 : vector<256x128xf32>
    %cst_350 = arith.constant 0.000000e+00 : f32
    %1557 = vector.broadcast %cst_350 : f32 to vector<256x128xf32>
    %1558 = arith.maximumf %1556, %1557 : vector<256x128xf32>
    %c0_351 = arith.constant 0 : index
    %c0_352 = arith.constant 0 : index
    %1559 = vector.load %arg5[%c0_351, %c0_352] : memref<256x256xf32, #tpu.memory_space<vmem>>, vector<256x256xf32>
    %cst_353 = arith.constant dense<0.000000e+00> : vector<256x128xf32>
    %1560 = tpu.matmul %1559, %1558, %cst_353 {dimension_numbers = #tpu.dot_dimension_numbers<[1], [0], [0], [1], [0, 0, 1, 1], [], []>} : vector<256x256xf32>, vector<256x128xf32>, vector<256x128xf32> -> vector<256x128xf32>
    %1561 = vector.broadcast %1548 : vector<256x1xf32> to vector<256x128xf32>
    %1562 = arith.addf %1560, %1561 : vector<256x128xf32>
    %cst_354 = arith.constant 0.000000e+00 : f32
    %1563 = vector.broadcast %cst_354 : f32 to vector<256x128xf32>
    %1564 = arith.maximumf %1562, %1563 : vector<256x128xf32>
    %c0_355 = arith.constant 0 : index
    %c0_356 = arith.constant 0 : index
    %1565 = vector.load %arg6[%c0_355, %c0_356] : memref<1x256xf32, #tpu.memory_space<vmem>>, vector<1x256xf32>
    %cst_357 = arith.constant dense<0.000000e+00> : vector<1x128xf32>
    %1566 = tpu.matmul %1565, %1564, %cst_357 {dimension_numbers = #tpu.dot_dimension_numbers<[1], [0], [0], [1], [0, 0, 1, 1], [], []>} : vector<1x256xf32>, vector<256x128xf32>, vector<1x128xf32> -> vector<1x128xf32>
    %c0_358 = arith.constant 0 : index
    %c0_359 = arith.constant 0 : index
    %1567 = vector.load %arg8[%c0_358, %c0_359] : memref<1x1xf32, #tpu.memory_space<vmem>>, vector<1x1xf32>
    %1568 = vector.broadcast %1567 : vector<1x1xf32> to vector<1x128xf32>
    %1569 = arith.addf %1566, %1568 : vector<1x128xf32>
    %1570 = vector.shape_cast %1569 : vector<1x128xf32> to vector<1x1x128xf32>
    %c0_360 = arith.constant 0 : index
    %c0_361 = arith.constant 0 : index
    %c0_362 = arith.constant 0 : index
    %1571 = vector.load %arg9[%c0_360, %c0_361, %c0_362] : memref<1x1x128xf32, #tpu.memory_space<vmem>>, vector<1x1x128xf32>
    tpu.vector_store %arg9[%c0_360, %c0_361, %c0_362], %1570 {strides = array<i32>} : memref<1x1x128xf32, #tpu.memory_space<vmem>>, vector<1x1x128xf32>,
    return
  }
  func.func @transform_0(%arg0: i32) -> (i32, i32, i32) {
    %c0_i32 = arith.constant 0 : i32
    %c0_i32_0 = arith.constant 0 : i32
    %c0_i32_1 = arith.constant 0 : i32
    return %c0_i32, %c0_i32_0, %arg0 : i32, i32, i32
  }
  func.func @transform_1(%arg0: i32) -> (i32, i32) {
    %c0_i32 = arith.constant 0 : i32
    %c0_i32_0 = arith.constant 0 : i32
    return %c0_i32, %arg0 : i32, i32
  }
  func.func @transform_2(%arg0: i32) -> (i32, i32) {
    %c0_i32 = arith.constant 0 : i32
    %c0_i32_0 = arith.constant 0 : i32
    %c0_i32_1 = arith.constant 0 : i32
    return %c0_i32, %c0_i32_0 : i32, i32
  }
  func.func @transform_3(%arg0: i32) -> (i32, i32) {
    %c0_i32 = arith.constant 0 : i32
    %c0_i32_0 = arith.constant 0 : i32
    %c0_i32_1 = arith.constant 0 : i32
    return %c0_i32, %c0_i32_0 : i32, i32
  }
  func.func @transform_4(%arg0: i32) -> (i32, i32) {
    %c0_i32 = arith.constant 0 : i32
    %c0_i32_0 = arith.constant 0 : i32
    %c0_i32_1 = arith.constant 0 : i32
    return %c0_i32, %c0_i32_0 : i32, i32
  }
  func.func @transform_5(%arg0: i32) -> (i32, i32) {
    %c0_i32 = arith.constant 0 : i32
    %c0_i32_0 = arith.constant 0 : i32
    %c0_i32_1 = arith.constant 0 : i32
    return %c0_i32, %c0_i32_0 : i32, i32
  }
  func.func @transform_6(%arg0: i32) -> (i32, i32) {
    %c0_i32 = arith.constant 0 : i32
    %c0_i32_0 = arith.constant 0 : i32
    %c0_i32_1 = arith.constant 0 : i32
    return %c0_i32, %c0_i32_0 : i32, i32
  }
  func.func @transform_7(%arg0: i32) -> (i32, i32) {
    %c0_i32 = arith.constant 0 : i32
    %c0_i32_0 = arith.constant 0 : i32
    %c0_i32_1 = arith.constant 0 : i32
    return %c0_i32, %c0_i32_0 : i32, i32
  }
  func.func @transform_8(%arg0: i32) -> (i32, i32, i32) {
    %c0_i32 = arith.constant 0 : i32
    %c0_i32_0 = arith.constant 0 : i32
    %c0_i32_1 = arith.constant 0 : i32
    return %arg0, %c0_i32, %c0_i32_0 : i32, i32, i32
  }
}

</mosaic_0001>

<llo_original>
// kernel: tpu_custom_call.1
$region0: #{tpu_custom_call.1}
  #allocation0 [shape = 'u32[]', space=smem, size = 0x4, offset = 0x4, fixed_abs, tag = 'smem constant byte address 0x4 - core index']
  #allocation1 [shape = 'u32[144,128]{1,0:T(1,128)}', space=vmem, size = 0x12000, scoped, tag = 'internal scratch']
  #allocation2 [shape = 'f32[1,1]{1,0:T(1,128)S(1)}', space=vmem, size = 0x200, scoped, tag = 'scoped memory for tpu_custom_call.1']
  %s0 = inlined_call_operand.hbm [shape: f32[8,40,128], index: 0, kind: input, shape index: {}]
  %s1 = inlined_call_operand.vmem [shape: f32[8,128], index: 1, kind: input, shape index: {}]
  %s2 = inlined_call_operand.vmem [shape: f32[96,40], index: 2, kind: input, shape index: {}]
  %s3 = inlined_call_operand.vmem [shape: f32[256,32], index: 3, kind: input, shape index: {}]
  %s4 = inlined_call_operand.vmem [shape: f32[256,256], index: 4, kind: input, shape index: {}]
  %s5 = inlined_call_operand.vmem [shape: f32[1,256], index: 5, kind: input, shape index: {}]
  %s6 = inlined_call_operand.vmem [shape: f32[256,3], index: 6, kind: input, shape index: {}]
  %s7 = inlined_call_operand.<no memory space> [shape: f32[1,1], index: 7, kind: input, shape index: {}]
  %s8 = inlined_call_operand.hbm [shape: f32[1,1,128], index: 8, kind: output, shape index: {}]
  %s9 = sld [smem:[#allocation0]]
  $region46: #{tpu_custom_call.1} parent=0
    _
  %s11 = ssub.s32 1, %s9
  %s12 = scalar_select 0, %s11, %s9
  %v13 = vstv %s7
  %14 = vst [vmem:[#allocation2] sm:$0x1] %v13
  $region1: #{tpu_custom_call.1} parent=0
    #allocation3 [shape = 'u8[163840]{0}', space=vmem, size = 0x28000, scoped, tag = 'input window, operand 0, single buffered']
    #allocation4 [shape = 's32[1]{0}', space=sflag, size = 0x4, scoped, tag = 'scoped memory for tpu_custom_call.1']
    #allocation5 [shape = 's32[1]{0}', space=sflag, size = 0x4, scoped, tag = 'scoped memory for tpu_custom_call.1']
    #allocation6 [shape = 'u8[512]{0}', space=vmem, size = 0x400, scoped, tag = 'output window, operand 0, single buffered']
    %15 = vsyncpa [#allocation4], 0
    %16 = vsyncpa [#allocation5], 0
    // Predicated region
    $region2: #{tpu_custom_call.1} parent=1 // pred_check
      _
    $region3: #{tpu_custom_call.1} parent=1 // pred_check_branch
      %18 = sbr.rel (0) target = $region5
    $region4: #{tpu_custom_call.1} parent=1 // pred_region
      %s20 = ssub.s32 5120, 5120
      %21 = vsyncadd [#allocation4], %s20
      %s22 = sshll.u32 [#allocation3], 4
      %s23 = int_to_ptr.vmem [resolvable:$true] %s22
      %28 = dma.hbm_to_vmem [thread:$0]  %s0, 5120, %s23, [#allocation4], 128, 128, 8
    $region5: #{tpu_custom_call.1} parent=1 // pred_fallthru
      _
    // Predicated region
    $region6: #{tpu_custom_call.1} parent=1 // pred_check
      _
    $region7: #{tpu_custom_call.1} parent=1 // pred_check_branch
      %30 = sbr.rel (0) target = $region9
    $region8: #{tpu_custom_call.1} parent=1 // pred_region
      _
    $region9: #{tpu_custom_call.1} parent=1 // pred_fallthru
      _
    // Predicated region
    $region10: #{tpu_custom_call.1} parent=1 // pred_check
      _
    $region11: #{tpu_custom_call.1} parent=1 // pred_check_branch
      %32 = sbr.rel (0) target = $region13
    $region12: #{tpu_custom_call.1} parent=1 // pred_region
      _
    $region13: #{tpu_custom_call.1} parent=1 // pred_fallthru
      _
    // Predicated region
    $region14: #{tpu_custom_call.1} parent=1 // pred_check
      _
    $region15: #{tpu_custom_call.1} parent=1 // pred_check_branch
      %34 = sbr.rel (0) target = $region17
    $region16: #{tpu_custom_call.1} parent=1 // pred_region
      _
    $region17: #{tpu_custom_call.1} parent=1 // pred_fallthru
      _
    // Predicated region
    $region18: #{tpu_custom_call.1} parent=1 // pred_check
      _
    $region19: #{tpu_custom_call.1} parent=1 // pred_check_branch
      %36 = sbr.rel (0) target = $region21
    $region20: #{tpu_custom_call.1} parent=1 // pred_region
      _
    $region21: #{tpu_custom_call.1} parent=1 // pred_fallthru
      _
    // Predicated region
    $region22: #{tpu_custom_call.1} parent=1 // pred_check
      _
    $region23: #{tpu_custom_call.1} parent=1 // pred_check_branch
      %38 = sbr.rel (0) target = $region25
    $region24: #{tpu_custom_call.1} parent=1 // pred_region
      _
    $region25: #{tpu_custom_call.1} parent=1 // pred_fallthru
      _
    // Predicated region
    $region26: #{tpu_custom_call.1} parent=1 // pred_check
      _
    $region27: #{tpu_custom_call.1} parent=1 // pred_check_branch
      %40 = sbr.rel (0) target = $region29
    $region28: #{tpu_custom_call.1} parent=1 // pred_region
      _
    $region29: #{tpu_custom_call.1} parent=1 // pred_fallthru
      _
    // Predicated region
    $region30: #{tpu_custom_call.1} parent=1 // pred_check
      _
    $region31: #{tpu_custom_call.1} parent=1 // pred_check_branch
      %42 = sbr.rel (0) target = $region33
    $region32: #{tpu_custom_call.1} parent=1 // pred_region
      _
    $region33: #{tpu_custom_call.1} parent=1 // pred_fallthru
      _
    // Predicated region
    $region34: #{tpu_custom_call.1} parent=1 // pred_check
      _
    $region35: #{tpu_custom_call.1} parent=1 // pred_check_branch
      %44 = sbr.rel (0) target = $region37
    $region36: #{tpu_custom_call.1} parent=1 // pred_region
      %45 = dma.done [#allocation4], 5120
    $region37: #{tpu_custom_call.1} parent=1 // pred_fallthru
      _
    %v46 = vld [vmem:[#allocation3] sm:$0xff]
    %v47 = vld [vmem:[#allocation3 + $0x8] sm:$0xff]
    %v48 = vld [vmem:[#allocation3 + $0x10] sm:$0xff]
    %v49 = vld [vmem:[#allocation3 + $0x18] sm:$0xff]
    %v50 = vld [vmem:[#allocation3 + $0x20] sm:$0xff]
    %v51 = vld [vmem:[#allocation3 + $0x28] sm:$0xff]
    %v52 = vld [vmem:[#allocation3 + $0x30] sm:$0xff]
    %v53 = vld [vmem:[#allocation3 + $0x38] sm:$0xff]
    %v54 = vld [vmem:[#allocation3 + $0x40] sm:$0xff]
    %v55 = vld [vmem:[#allocation3 + $0x48] sm:$0xff]
    %v56 = vld [vmem:[#allocation3 + $0x50] sm:$0xff]
    %v57 = vld [vmem:[#allocation3 + $0x58] sm:$0xff]
    %v58 = vld [vmem:[#allocation3 + $0x60] sm:$0xff]
    %v59 = vld [vmem:[#allocation3 + $0x68] sm:$0xff]
    %v60 = vld [vmem:[#allocation3 + $0x70] sm:$0xff]
    %v61 = vld [vmem:[#allocation3 + $0x78] sm:$0xff]
    %v62 = vld [vmem:[#allocation3 + $0x80] sm:$0xff]
    %v63 = vld [vmem:[#allocation3 + $0x88] sm:$0xff]
    %v64 = vld [vmem:[#allocation3 + $0x90] sm:$0xff]
    %v65 = vld [vmem:[#allocation3 + $0x98] sm:$0xff]
    %v66 = vld [vmem:[#allocation3 + $0xa0] sm:$0xff]
    %v67 = vld [vmem:[#allocation3 + $0xa8] sm:$0xff]
    %v68 = vld [vmem:[#allocation3 + $0xb0] sm:$0xff]
    %v69 = vld [vmem:[#allocation3 + $0xb8] sm:$0xff]
    %v70 = vld [vmem:[#allocation3 + $0xc0] sm:$0xff]
    %v71 = vld [vmem:[#allocation3 + $0xc8] sm:$0xff]
    %v72 = vld [vmem:[#allocation3 + $0xd0] sm:$0xff]
    %v73 = vld [vmem:[#allocation3 + $0xd8] sm:$0xff]
    %v74 = vld [vmem:[#allocation3 + $0xe0] sm:$0xff]
    %v75 = vld [vmem:[#allocation3 + $0xe8] sm:$0xff]
    %v76 = vld [vmem:[#allocation3 + $0xf0] sm:$0xff]
    %v77 = vld [vmem:[#allocation3 + $0xf8] sm:$0xff]
    %v78 = vld [vmem:[#allocation3 + $0x100] sm:$0xff]
    %v79 = vld [vmem:[#allocation3 + $0x108] sm:$0xff]
    %v80 = vld [vmem:[#allocation3 + $0x110] sm:$0xff]
    %v81 = vld [vmem:[#allocation3 + $0x118] sm:$0xff]
    %v82 = vld [vmem:[#allocation3 + $0x120] sm:$0xff]
    %v83 = vld [vmem:[#allocation3 + $0x128] sm:$0xff]
    %v84 = vld [vmem:[#allocation3 + $0x130] sm:$0xff]
    %v85 = vld [vmem:[#allocation3 + $0x138] sm:$0xff]
    %v86 = vld [vmem:[%s1] sm:$0xff]
    %v87 = vld [vmem:[%s2] sm:$0xff]
    %v88 = vld [vmem:[%s2 + $0x8] sm:$0xff]
    %v89 = vld [vmem:[%s2 + $0x10] sm:$0xff]
    %v90 = vld [vmem:[%s2 + $0x18] sm:$0xff]
    %v91 = vld [vmem:[%s2 + $0x20] sm:$0xff]
    %v92 = vld [vmem:[%s2 + $0x28] sm:$0xff]
    %v93 = vld [vmem:[%s2 + $0x30] sm:$0xff]
    %v94 = vld [vmem:[%s2 + $0x38] sm:$0xff]
    %v95 = vld [vmem:[%s2 + $0x40] sm:$0xff]
    %v96 = vld [vmem:[%s2 + $0x48] sm:$0xff]
    %v97 = vld [vmem:[%s2 + $0x50] sm:$0xff]
    %v98 = vld [vmem:[%s2 + $0x58] sm:$0xff]
    %vm99 = vcmask 326656
    %v101 = vsel %vm99, %v87, 0
    %v104 = vsel %vm99, %v88, 0
    %v107 = vsel %vm99, %v89, 0
    %v110 = vsel %vm99, %v90, 0
    %v113 = vsel %vm99, %v91, 0
    %v116 = vsel %vm99, %v92, 0
    %v119 = vsel %vm99, %v93, 0
    %v122 = vsel %vm99, %v94, 0
    %v125 = vsel %vm99, %v95, 0
    %v128 = vsel %vm99, %v96, 0
    %v131 = vsel %vm99, %v97, 0
    %v134 = vsel %vm99, %v98, 0
    %136 = vmatprep.subr.mxu0 0.0
    %137 = vmatpush1.msra.mxu0 0.0
    %138 = vmatprep.subr.mxu0 0.0
    %139 = vmatpush1.msra.mxu0 0.0
    %140 = vmatprep.subr.mxu0 0.0
    %141 = vmatpush1.msra.mxu0 0.0
    %142 = vmatprep.subr.mxu0 0.0
    %143 = vmatpush1.msra.mxu0 0.0
    %144 = vmatprep.subr.mxu0 0.0
    %145 = vmatpush1.msra.mxu0 0.0
    %146 = vmatprep.subr.mxu0 0.0
    %147 = vmatpush1.msra.mxu0 0.0
    %148 = vmatprep.subr.mxu0 0.0
    %149 = vmatpush1.msra.mxu0 0.0
    %150 = vmatprep.subr.mxu0 0.0
    %151 = vmatpush1.msra.mxu0 0.0
    %152 = vmatprep.subr.mxu0 0.0
    %153 = vmatpush1.msra.mxu0 0.0
    %154 = vmatprep.subr.mxu0 0.0
    %155 = vmatpush1.msra.mxu0 0.0
    %156 = vmatprep.subr.mxu0 0.0
    %157 = vmatpush1.msra.mxu0 0.0
    %158 = vmatprep.subr.mxu0 0.0
    %159 = vmatpush1.msra.mxu0 %v50
    %160 = vmatprep.subr.mxu0 0.0
    %161 = vmatpush1.msra.mxu0 %v49
    %162 = vmatprep.subr.mxu0 0.0
    %163 = vmatpush1.msra.mxu0 %v48
    %164 = vmatprep.subr.mxu0 0.0
    %165 = vmatpush1.msra.mxu0 %v47
    %166 = vmatprep.subr.mxu0 0.0
    %167 = vmatpush1.msra.mxu0 %v46
    %168 = vmatprep.subr.mxu0 0.0
    %169 = vmatpush2.msra.mxu0 0.0
    %170 = vmatprep.subr.mxu0 0.0
    %171 = vmatpush2.msra.mxu0 0.0
    %172 = vmatprep.subr.mxu0 0.0
    %173 = vmatpush2.msra.mxu0 0.0
    %174 = vmatprep.subr.mxu0 0.0
    %175 = vmatpush2.msra.mxu0 0.0
    %176 = vmatprep.subr.mxu0 0.0
    %177 = vmatpush2.msra.mxu0 0.0
    %178 = vmatprep.subr.mxu0 0.0
    %179 = vmatpush2.msra.mxu0 0.0
    %180 = vmatprep.subr.mxu0 0.0
    %181 = vmatpush2.msra.mxu0 0.0
    %182 = vmatprep.subr.mxu0 0.0
    %183 = vmatpush2.msra.mxu0 0.0
    %184 = vmatprep.subr.mxu0 0.0
    %185 = vmatpush2.msra.mxu0 0.0
    %186 = vmatprep.subr.mxu0 0.0
    %187 = vmatpush2.msra.mxu0 0.0
    %188 = vmatprep.subr.mxu0 0.0
    %189 = vmatpush2.msra.mxu0 0.0
    %190 = vmatprep.subr.mxu0 0.0
    %191 = vmatpush2.msra.mxu0 0.0
    %192 = vmatprep.subr.mxu0 0.0
    %193 = vmatpush2.msra.mxu0 0.0
    %194 = vmatprep.subr.mxu0 0.0
    %195 = vmatpush2.msra.mxu0 0.0
    %196 = vmatprep.subr.mxu0 0.0
    %197 = vmatpush2.msra.mxu0 0.0
    %198 = vmatprep.subr.mxu0 0.0
    %199 = vmatpush2.msra.mxu0 0.0
    %200 = vmatprep.mubr.f32.mxu0 0.0
    %201 = vmatmul.mubr.f32.gmra.mxu0 %v101
    %v202 = vpop.f32.mrf.mxu0
    %v203 = vadd.f32 0.0, %v202
    %v204 = vpop.f32.mrf.mxu0
    %205 = vmatprep.mubr.f32.mxu0 0.0
    %206 = vmatmul.mubr.f32.gmra.mxu0 %v104
    %v207 = vpop.f32.mrf.mxu0
    %v208 = vadd.f32 0.0, %v207
    %v209 = vpop.f32.mrf.mxu0
    %210 = vmatprep.mubr.f32.mxu0 0.0
    %211 = vmatmul.mubr.f32.gmra.mxu0 %v107
    %v212 = vpop.f32.mrf.mxu0
    %v213 = vadd.f32 0.0, %v212
    %v214 = vpop.f32.mrf.mxu0
    %215 = vmatprep.mubr.f32.mxu0 0.0
    %216 = vmatmul.mubr.f32.gmra.mxu0 %v110
    %v217 = vpop.f32.mrf.mxu0
    %v218 = vadd.f32 0.0, %v217
    %v219 = vpop.f32.mrf.mxu0
    %220 = vmatprep.mubr.f32.mxu0 0.0
    %221 = vmatmul.mubr.f32.gmra.mxu0 %v113
    %v222 = vpop.f32.mrf.mxu0
    %v223 = vadd.f32 0.0, %v222
    %v224 = vpop.f32.mrf.mxu0
    %225 = vmatprep.mubr.f32.mxu0 0.0
    %226 = vmatmul.mubr.f32.gmra.mxu0 %v116
    %v227 = vpop.f32.mrf.mxu0
    %v228 = vadd.f32 0.0, %v227
    %v229 = vpop.f32.mrf.mxu0
    %230 = vmatprep.mubr.f32.mxu0 0.0
    %231 = vmatmul.mubr.f32.gmra.mxu0 %v119
    %v232 = vpop.f32.mrf.mxu0
    %v233 = vadd.f32 0.0, %v232
    %v234 = vpop.f32.mrf.mxu0
    %235 = vmatprep.mubr.f32.mxu0 0.0
    %236 = vmatmul.mubr.f32.gmra.mxu0 %v122
    %v237 = vpop.f32.mrf.mxu0
    %v238 = vadd.f32 0.0, %v237
    %v239 = vpop.f32.mrf.mxu0
    %240 = vmatprep.mubr.f32.mxu0 0.0
    %241 = vmatmul.mubr.f32.gmra.mxu0 %v125
    %v242 = vpop.f32.mrf.mxu0
    %v243 = vadd.f32 0.0, %v242
    %v244 = vpop.f32.mrf.mxu0
    %245 = vmatprep.mubr.f32.mxu0 0.0
    %246 = vmatmul.mubr.f32.gmra.mxu0 %v128
    %v247 = vpop.f32.mrf.mxu0
    %v248 = vadd.f32 0.0, %v247
    %v249 = vpop.f32.mrf.mxu0
    %250 = vmatprep.mubr.f32.mxu0 0.0
    %251 = vmatmul.mubr.f32.gmra.mxu0 %v131
    %v252 = vpop.f32.mrf.mxu0
    %v253 = vadd.f32 0.0, %v252
    %v254 = vpop.f32.mrf.mxu0
    %255 = vmatprep.mubr.f32.mxu0 0.0
    %256 = vmatmul.mubr.f32.gmra.mxu0 %v134
    %v257 = vpop.f32.mrf.mxu0
    %v258 = vadd.f32 0.0, %v257
    %v259 = vpop.f32.mrf.mxu0
    %260 = vdwg.mxu0
    %261 = vmatprep.subr.mxu0 0.0
    %262 = vmatpush1.msra.mxu0 0.0
    %263 = vmatprep.subr.mxu0 0.0
    %264 = vmatpush1.msra.mxu0 0.0
    %265 = vmatprep.subr.mxu0 0.0
    %266 = vmatpush1.msra.mxu0 0.0
    %267 = vmatprep.subr.mxu0 0.0
    %268 = vmatpush1.msra.mxu0 0.0
    %269 = vmatprep.subr.mxu0 0.0
    %270 = vmatpush1.msra.mxu0 0.0
    %271 = vmatprep.subr.mxu0 0.0
    %272 = vmatpush1.msra.mxu0 0.0
    %273 = vmatprep.subr.mxu0 0.0
    %274 = vmatpush1.msra.mxu0 0.0
    %275 = vmatprep.subr.mxu0 0.0
    %276 = vmatpush1.msra.mxu0 0.0
    %277 = vmatprep.subr.mxu0 0.0
    %278 = vmatpush1.msra.mxu0 0.0
    %279 = vmatprep.subr.mxu0 0.0
    %280 = vmatpush1.msra.mxu0 0.0
    %281 = vmatprep.subr.mxu0 0.0
    %282 = vmatpush1.msra.mxu0 0.0
    %283 = vmatprep.subr.mxu0 0.0
    %284 = vmatpush1.msra.mxu0 %v55
    %285 = vmatprep.subr.mxu0 0.0
    %286 = vmatpush1.msra.mxu0 %v54
    %287 = vmatprep.subr.mxu0 0.0
    %288 = vmatpush1.msra.mxu0 %v53
    %289 = vmatprep.subr.mxu0 0.0
    %290 = vmatpush1.msra.mxu0 %v52
    %291 = vmatprep.subr.mxu0 0.0
    %292 = vmatpush1.msra.mxu0 %v51
    %293 = vmatprep.subr.mxu0 0.0
    %294 = vmatpush2.msra.mxu0 0.0
    %295 = vmatprep.subr.mxu0 0.0
    %296 = vmatpush2.msra.mxu0 0.0
    %297 = vmatprep.subr.mxu0 0.0
    %298 = vmatpush2.msra.mxu0 0.0
    %299 = vmatprep.subr.mxu0 0.0
    %300 = vmatpush2.msra.mxu0 0.0
    %301 = vmatprep.subr.mxu0 0.0
    %302 = vmatpush2.msra.mxu0 0.0
    %303 = vmatprep.subr.mxu0 0.0
    %304 = vmatpush2.msra.mxu0 0.0
    %305 = vmatprep.subr.mxu0 0.0
    %306 = vmatpush2.msra.mxu0 0.0
    %307 = vmatprep.subr.mxu0 0.0
    %308 = vmatpush2.msra.mxu0 0.0
    %309 = vmatprep.subr.mxu0 0.0
    %310 = vmatpush2.msra.mxu0 0.0
    %311 = vmatprep.subr.mxu0 0.0
    %312 = vmatpush2.msra.mxu0 0.0
    %313 = vmatprep.subr.mxu0 0.0
    %314 = vmatpush2.msra.mxu0 0.0
    %315 = vmatprep.subr.mxu0 0.0
    %316 = vmatpush2.msra.mxu0 0.0
    %317 = vmatprep.subr.mxu0 0.0
    %318 = vmatpush2.msra.mxu0 0.0
    %319 = vmatprep.subr.mxu0 0.0
    %320 = vmatpush2.msra.mxu0 0.0
    %321 = vmatprep.subr.mxu0 0.0
    %322 = vmatpush2.msra.mxu0 0.0
    %323 = vmatprep.subr.mxu0 0.0
    %324 = vmatpush2.msra.mxu0 0.0
    %325 = vmatprep.mubr.f32.mxu0 0.0
    %326 = vmatmul.mubr.f32.gmra.mxu0 %v101
    %v327 = vpop.f32.mrf.mxu0
    %v328 = vadd.f32 0.0, %v327
    %v329 = vpop.f32.mrf.mxu0
    %330 = vmatprep.mubr.f32.mxu0 0.0
    %331 = vmatmul.mubr.f32.gmra.mxu0 %v104
    %v332 = vpop.f32.mrf.mxu0
    %v333 = vadd.f32 0.0, %v332
    %v334 = vpop.f32.mrf.mxu0
    %335 = vmatprep.mubr.f32.mxu0 0.0
    %336 = vmatmul.mubr.f32.gmra.mxu0 %v107
    %v337 = vpop.f32.mrf.mxu0
    %v338 = vadd.f32 0.0, %v337
    %v339 = vpop.f32.mrf.mxu0
    %340 = vmatprep.mubr.f32.mxu0 0.0
    %341 = vmatmul.mubr.f32.gmra.mxu0 %v110
    %v342 = vpop.f32.mrf.mxu0
    %v343 = vadd.f32 0.0, %v342
    %v344 = vpop.f32.mrf.mxu0
    %345 = vmatprep.mubr.f32.mxu0 0.0
    %346 = vmatmul.mubr.f32.gmra.mxu0 %v113
    %v347 = vpop.f32.mrf.mxu0
    %v348 = vadd.f32 0.0, %v347
    %v349 = vpop.f32.mrf.mxu0
    %350 = vmatprep.mubr.f32.mxu0 0.0
    %351 = vmatmul.mubr.f32.gmra.mxu0 %v116
    %v352 = vpop.f32.mrf.mxu0
    %v353 = vadd.f32 0.0, %v352
    %v354 = vpop.f32.mrf.mxu0
    %355 = vmatprep.mubr.f32.mxu0 0.0
    %356 = vmatmul.mubr.f32.gmra.mxu0 %v119
    %v357 = vpop.f32.mrf.mxu0
    %v358 = vadd.f32 0.0, %v357
    %v359 = vpop.f32.mrf.mxu0
    %360 = vmatprep.mubr.f32.mxu0 0.0
    %361 = vmatmul.mubr.f32.gmra.mxu0 %v122
    %v362 = vpop.f32.mrf.mxu0
    %v363 = vadd.f32 0.0, %v362
    %v364 = vpop.f32.mrf.mxu0
    %365 = vmatprep.mubr.f32.mxu0 0.0
    %366 = vmatmul.mubr.f32.gmra.mxu0 %v125
    %v367 = vpop.f32.mrf.mxu0
    %v368 = vadd.f32 0.0, %v367
    %v369 = vpop.f32.mrf.mxu0
    %370 = vmatprep.mubr.f32.mxu0 0.0
    %371 = vmatmul.mubr.f32.gmra.mxu0 %v128
    %v372 = vpop.f32.mrf.mxu0
    %v373 = vadd.f32 0.0, %v372
    %v374 = vpop.f32.mrf.mxu0
    %375 = vmatprep.mubr.f32.mxu0 0.0
    %376 = vmatmul.mubr.f32.gmra.mxu0 %v131
    %v377 = vpop.f32.mrf.mxu0
    %v378 = vadd.f32 0.0, %v377
    %v379 = vpop.f32.mrf.mxu0
    %380 = vmatprep.mubr.f32.mxu0 0.0
    %381 = vmatmul.mubr.f32.gmra.mxu0 %v134
    %v382 = vpop.f32.mrf.mxu0
    %v383 = vadd.f32 0.0, %v382
    %v384 = vpop.f32.mrf.mxu0
    %385 = vdwg.mxu0
    %386 = vmatprep.subr.mxu0 0.0
    %387 = vmatpush1.msra.mxu0 0.0
    %388 = vmatprep.subr.mxu0 0.0
    %389 = vmatpush1.msra.mxu0 0.0
    %390 = vmatprep.subr.mxu0 0.0
    %391 = vmatpush1.msra.mxu0 0.0
    %392 = vmatprep.subr.mxu0 0.0
    %393 = vmatpush1.msra.mxu0 0.0
    %394 = vmatprep.subr.mxu0 0.0
    %395 = vmatpush1.msra.mxu0 0.0
    %396 = vmatprep.subr.mxu0 0.0
    %397 = vmatpush1.msra.mxu0 0.0
    %398 = vmatprep.subr.mxu0 0.0
    %399 = vmatpush1.msra.mxu0 0.0
    %400 = vmatprep.subr.mxu0 0.0
    %401 = vmatpush1.msra.mxu0 0.0
    %402 = vmatprep.subr.mxu0 0.0
    %403 = vmatpush1.msra.mxu0 0.0
    %404 = vmatprep.subr.mxu0 0.0
    %405 = vmatpush1.msra.mxu0 0.0
    %406 = vmatprep.subr.mxu0 0.0
    %407 = vmatpush1.msra.mxu0 0.0
    %408 = vmatprep.subr.mxu0 0.0
    %409 = vmatpush1.msra.mxu0 %v60
    %410 = vmatprep.subr.mxu0 0.0
    %411 = vmatpush1.msra.mxu0 %v59
    %412 = vmatprep.subr.mxu0 0.0
    %413 = vmatpush1.msra.mxu0 %v58
    %414 = vmatprep.subr.mxu0 0.0
    %415 = vmatpush1.msra.mxu0 %v57
    %416 = vmatprep.subr.mxu0 0.0
    %417 = vmatpush1.msra.mxu0 %v56
    %418 = vmatprep.subr.mxu0 0.0
    %419 = vmatpush2.msra.mxu0 0.0
    %420 = vmatprep.subr.mxu0 0.0
    %421 = vmatpush2.msra.mxu0 0.0
    %422 = vmatprep.subr.mxu0 0.0
    %423 = vmatpush2.msra.mxu0 0.0
    %424 = vmatprep.subr.mxu0 0.0
    %425 = vmatpush2.msra.mxu0 0.0
    %426 = vmatprep.subr.mxu0 0.0
    %427 = vmatpush2.msra.mxu0 0.0
    %428 = vmatprep.subr.mxu0 0.0
    %429 = vmatpush2.msra.mxu0 0.0
    %430 = vmatprep.subr.mxu0 0.0
    %431 = vmatpush2.msra.mxu0 0.0
    %432 = vmatprep.subr.mxu0 0.0
    %433 = vmatpush2.msra.mxu0 0.0
    %434 = vmatprep.subr.mxu0 0.0
    %435 = vmatpush2.msra.mxu0 0.0
    %436 = vmatprep.subr.mxu0 0.0
    %437 = vmatpush2.msra.mxu0 0.0
    %438 = vmatprep.subr.mxu0 0.0
    %439 = vmatpush2.msra.mxu0 0.0
    %440 = vmatprep.subr.mxu0 0.0
    %441 = vmatpush2.msra.mxu0 0.0
    %442 = vmatprep.subr.mxu0 0.0
    %443 = vmatpush2.msra.mxu0 0.0
    %444 = vmatprep.subr.mxu0 0.0
    %445 = vmatpush2.msra.mxu0 0.0
    %446 = vmatprep.subr.mxu0 0.0
    %447 = vmatpush2.msra.mxu0 0.0
    %448 = vmatprep.subr.mxu0 0.0
    %449 = vmatpush2.msra.mxu0 0.0
    %450 = vmatprep.mubr.f32.mxu0 0.0
    %451 = vmatmul.mubr.f32.gmra.mxu0 %v101
    %v452 = vpop.f32.mrf.mxu0
    %v453 = vadd.f32 0.0, %v452
    %v454 = vpop.f32.mrf.mxu0
    %455 = vmatprep.mubr.f32.mxu0 0.0
    %456 = vmatmul.mubr.f32.gmra.mxu0 %v104
    %v457 = vpop.f32.mrf.mxu0
    %v458 = vadd.f32 0.0, %v457
    %v459 = vpop.f32.mrf.mxu0
    %460 = vmatprep.mubr.f32.mxu0 0.0
    %461 = vmatmul.mubr.f32.gmra.mxu0 %v107
    %v462 = vpop.f32.mrf.mxu0
    %v463 = vadd.f32 0.0, %v462
    %v464 = vpop.f32.mrf.mxu0
    %465 = vmatprep.mubr.f32.mxu0 0.0
    %466 = vmatmul.mubr.f32.gmra.mxu0 %v110
    %v467 = vpop.f32.mrf.mxu0
    %v468 = vadd.f32 0.0, %v467
    %v469 = vpop.f32.mrf.mxu0
    %470 = vmatprep.mubr.f32.mxu0 0.0
    %471 = vmatmul.mubr.f32.gmra.mxu0 %v113
    %v472 = vpop.f32.mrf.mxu0
    %v473 = vadd.f32 0.0, %v472
    %v474 = vpop.f32.mrf.mxu0
    %475 = vmatprep.mubr.f32.mxu0 0.0
    %476 = vmatmul.mubr.f32.gmra.mxu0 %v116
    %v477 = vpop.f32.mrf.mxu0
    %v478 = vadd.f32 0.0, %v477
    %v479 = vpop.f32.mrf.mxu0
    %480 = vmatprep.mubr.f32.mxu0 0.0
    %481 = vmatmul.mubr.f32.gmra.mxu0 %v119
    %v482 = vpop.f32.mrf.mxu0
    %v483 = vadd.f32 0.0, %v482
    %v484 = vpop.f32.mrf.mxu0
    %485 = vmatprep.mubr.f32.mxu0 0.0
    %486 = vmatmul.mubr.f32.gmra.mxu0 %v122
    %v487 = vpop.f32.mrf.mxu0
    %v488 = vadd.f32 0.0, %v487
    %v489 = vpop.f32.mrf.mxu0
    %490 = vmatprep.mubr.f32.mxu0 0.0
    %491 = vmatmul.mubr.f32.gmra.mxu0 %v125
    %v492 = vpop.f32.mrf.mxu0
    %v493 = vadd.f32 0.0, %v492
    %v494 = vpop.f32.mrf.mxu0
    %495 = vmatprep.mubr.f32.mxu0 0.0
    %496 = vmatmul.mubr.f32.gmra.mxu0 %v128
    %v497 = vpop.f32.mrf.mxu0
    %v498 = vadd.f32 0.0, %v497
    %v499 = vpop.f32.mrf.mxu0
    %500 = vmatprep.mubr.f32.mxu0 0.0
    %501 = vmatmul.mubr.f32.gmra.mxu0 %v131
    %v502 = vpop.f32.mrf.mxu0
    %v503 = vadd.f32 0.0, %v502
    %v504 = vpop.f32.mrf.mxu0
    %505 = vmatprep.mubr.f32.mxu0 0.0
    %506 = vmatmul.mubr.f32.gmra.mxu0 %v134
    %v507 = vpop.f32.mrf.mxu0
    %v508 = vadd.f32 0.0, %v507
    %v509 = vpop.f32.mrf.mxu0
    %510 = vdwg.mxu0
    %511 = vmatprep.subr.mxu0 0.0
    %512 = vmatpush1.msra.mxu0 0.0
    %513 = vmatprep.subr.mxu0 0.0
    %514 = vmatpush1.msra.mxu0 0.0
    %515 = vmatprep.subr.mxu0 0.0
    %516 = vmatpush1.msra.mxu0 0.0
    %517 = vmatprep.subr.mxu0 0.0
    %518 = vmatpush1.msra.mxu0 0.0
    %519 = vmatprep.subr.mxu0 0.0
    %520 = vmatpush1.msra.mxu0 0.0
    %521 = vmatprep.subr.mxu0 0.0
    %522 = vmatpush1.msra.mxu0 0.0
    %523 = vmatprep.subr.mxu0 0.0
    %524 = vmatpush1.msra.mxu0 0.0
    %525 = vmatprep.subr.mxu0 0.0
    %526 = vmatpush1.msra.mxu0 0.0
    %527 = vmatprep.subr.mxu0 0.0
    %528 = vmatpush1.msra.mxu0 0.0
    %529 = vmatprep.subr.mxu0 0.0
    %530 = vmatpush1.msra.mxu0 0.0
    %531 = vmatprep.subr.mxu0 0.0
    %532 = vmatpush1.msra.mxu0 0.0
    %533 = vmatprep.subr.mxu0 0.0
    %534 = vmatpush1.msra.mxu0 %v65
    %535 = vmatprep.subr.mxu0 0.0
    %536 = vmatpush1.msra.mxu0 %v64
    %537 = vmatprep.subr.mxu0 0.0
    %538 = vmatpush1.msra.mxu0 %v63
    %539 = vmatprep.subr.mxu0 0.0
    %540 = vmatpush1.msra.mxu0 %v62
    %541 = vmatprep.subr.mxu0 0.0
    %542 = vmatpush1.msra.mxu0 %v61
    %543 = vmatprep.subr.mxu0 0.0
    %544 = vmatpush2.msra.mxu0 0.0
    %545 = vmatprep.subr.mxu0 0.0
    %546 = vmatpush2.msra.mxu0 0.0
    %547 = vmatprep.subr.mxu0 0.0
    %548 = vmatpush2.msra.mxu0 0.0
    %549 = vmatprep.subr.mxu0 0.0
    %550 = vmatpush2.msra.mxu0 0.0
    %551 = vmatprep.subr.mxu0 0.0
    %552 = vmatpush2.msra.mxu0 0.0
    %553 = vmatprep.subr.mxu0 0.0
    %554 = vmatpush2.msra.mxu0 0.0
    %555 = vmatprep.subr.mxu0 0.0
    %556 = vmatpush2.msra.mxu0 0.0
    %557 = vmatprep.subr.mxu0 0.0
    %558 = vmatpush2.msra.mxu0 0.0
    %559 = vmatprep.subr.mxu0 0.0
    %560 = vmatpush2.msra.mxu0 0.0
    %561 = vmatprep.subr.mxu0 0.0
    %562 = vmatpush2.msra.mxu0 0.0
    %563 = vmatprep.subr.mxu0 0.0
    %564 = vmatpush2.msra.mxu0 0.0
    %565 = vmatprep.subr.mxu0 0.0
    %566 = vmatpush2.msra.mxu0 0.0
    %567 = vmatprep.subr.mxu0 0.0
    %568 = vmatpush2.msra.mxu0 0.0
    %569 = vmatprep.subr.mxu0 0.0
    %570 = vmatpush2.msra.mxu0 0.0
    %571 = vmatprep.subr.mxu0 0.0
    %572 = vmatpush2.msra.mxu0 0.0
    %573 = vmatprep.subr.mxu0 0.0
    %574 = vmatpush2.msra.mxu0 0.0
    %575 = vmatprep.mubr.f32.mxu0 0.0
    %576 = vmatmul.mubr.f32.gmra.mxu0 %v101
    %v577 = vpop.f32.mrf.mxu0
    %v578 = vadd.f32 0.0, %v577
    %v579 = vpop.f32.mrf.mxu0
    %580 = vmatprep.mubr.f32.mxu0 0.0
    %581 = vmatmul.mubr.f32.gmra.mxu0 %v104
    %v582 = vpop.f32.mrf.mxu0
    %v583 = vadd.f32 0.0, %v582
    %v584 = vpop.f32.mrf.mxu0
    %585 = vmatprep.mubr.f32.mxu0 0.0
    %586 = vmatmul.mubr.f32.gmra.mxu0 %v107
    %v587 = vpop.f32.mrf.mxu0
    %v588 = vadd.f32 0.0, %v587
    %v589 = vpop.f32.mrf.mxu0
    %590 = vmatprep.mubr.f32.mxu0 0.0
    %591 = vmatmul.mubr.f32.gmra.mxu0 %v110
    %v592 = vpop.f32.mrf.mxu0
    %v593 = vadd.f32 0.0, %v592
    %v594 = vpop.f32.mrf.mxu0
    %595 = vmatprep.mubr.f32.mxu0 0.0
    %596 = vmatmul.mubr.f32.gmra.mxu0 %v113
    %v597 = vpop.f32.mrf.mxu0
    %v598 = vadd.f32 0.0, %v597
    %v599 = vpop.f32.mrf.mxu0
    %600 = vmatprep.mubr.f32.mxu0 0.0
    %601 = vmatmul.mubr.f32.gmra.mxu0 %v116
    %v602 = vpop.f32.mrf.mxu0
    %v603 = vadd.f32 0.0, %v602
    %v604 = vpop.f32.mrf.mxu0
    %605 = vmatprep.mubr.f32.mxu0 0.0
    %606 = vmatmul.mubr.f32.gmra.mxu0 %v119
    %v607 = vpop.f32.mrf.mxu0
    %v608 = vadd.f32 0.0, %v607
    %v609 = vpop.f32.mrf.mxu0
    %610 = vmatprep.mubr.f32.mxu0 0.0
    %611 = vmatmul.mubr.f32.gmra.mxu0 %v122
    %v612 = vpop.f32.mrf.mxu0
    %v613 = vadd.f32 0.0, %v612
    %v614 = vpop.f32.mrf.mxu0
    %615 = vmatprep.mubr.f32.mxu0 0.0
    %616 = vmatmul.mubr.f32.gmra.mxu0 %v125
    %v617 = vpop.f32.mrf.mxu0
    %v618 = vadd.f32 0.0, %v617
    %v619 = vpop.f32.mrf.mxu0
    %620 = vmatprep.mubr.f32.mxu0 0.0
    %621 = vmatmul.mubr.f32.gmra.mxu0 %v128
    %v622 = vpop.f32.mrf.mxu0
    %v623 = vadd.f32 0.0, %v622
    %v624 = vpop.f32.mrf.mxu0
    %625 = vmatprep.mubr.f32.mxu0 0.0
    %626 = vmatmul.mubr.f32.gmra.mxu0 %v131
    %v627 = vpop.f32.mrf.mxu0
    %v628 = vadd.f32 0.0, %v627
    %v629 = vpop.f32.mrf.mxu0
    %630 = vmatprep.mubr.f32.mxu0 0.0
    %631 = vmatmul.mubr.f32.gmra.mxu0 %v134
    %v632 = vpop.f32.mrf.mxu0
    %v633 = vadd.f32 0.0, %v632
    %v634 = vpop.f32.mrf.mxu0
    %635 = vdwg.mxu0
    %636 = vmatprep.subr.mxu0 0.0
    %637 = vmatpush1.msra.mxu0 0.0
    %638 = vmatprep.subr.mxu0 0.0
    %639 = vmatpush1.msra.mxu0 0.0
    %640 = vmatprep.subr.mxu0 0.0
    %641 = vmatpush1.msra.mxu0 0.0
    %642 = vmatprep.subr.mxu0 0.0
    %643 = vmatpush1.msra.mxu0 0.0
    %644 = vmatprep.subr.mxu0 0.0
    %645 = vmatpush1.msra.mxu0 0.0
    %646 = vmatprep.subr.mxu0 0.0
    %647 = vmatpush1.msra.mxu0 0.0
    %648 = vmatprep.subr.mxu0 0.0
    %649 = vmatpush1.msra.mxu0 0.0
    %650 = vmatprep.subr.mxu0 0.0
    %651 = vmatpush1.msra.mxu0 0.0
    %652 = vmatprep.subr.mxu0 0.0
    %653 = vmatpush1.msra.mxu0 0.0
    %654 = vmatprep.subr.mxu0 0.0
    %655 = vmatpush1.msra.mxu0 0.0
    %656 = vmatprep.subr.mxu0 0.0
    %657 = vmatpush1.msra.mxu0 0.0
    %658 = vmatprep.subr.mxu0 0.0
    %659 = vmatpush1.msra.mxu0 %v70
    %660 = vmatprep.subr.mxu0 0.0
    %661 = vmatpush1.msra.mxu0 %v69
    %662 = vmatprep.subr.mxu0 0.0
    %663 = vmatpush1.msra.mxu0 %v68
    %664 = vmatprep.subr.mxu0 0.0
    %665 = vmatpush1.msra.mxu0 %v67
    %666 = vmatprep.subr.mxu0 0.0
    %667 = vmatpush1.msra.mxu0 %v66
    %668 = vmatprep.subr.mxu0 0.0
    %669 = vmatpush2.msra.mxu0 0.0
    %670 = vmatprep.subr.mxu0 0.0
    %671 = vmatpush2.msra.mxu0 0.0
    %672 = vmatprep.subr.mxu0 0.0
    %673 = vmatpush2.msra.mxu0 0.0
    %674 = vmatprep.subr.mxu0 0.0
    %675 = vmatpush2.msra.mxu0 0.0
    %676 = vmatprep.subr.mxu0 0.0
    %677 = vmatpush2.msra.mxu0 0.0
    %678 = vmatprep.subr.mxu0 0.0
    %679 = vmatpush2.msra.mxu0 0.0
    %680 = vmatprep.subr.mxu0 0.0
    %681 = vmatpush2.msra.mxu0 0.0
    %682 = vmatprep.subr.mxu0 0.0
    %683 = vmatpush2.msra.mxu0 0.0
    %684 = vmatprep.subr.mxu0 0.0
    %685 = vmatpush2.msra.mxu0 0.0
    %686 = vmatprep.subr.mxu0 0.0
    %687 = vmatpush2.msra.mxu0 0.0
    %688 = vmatprep.subr.mxu0 0.0
    %689 = vmatpush2.msra.mxu0 0.0
    %690 = vmatprep.subr.mxu0 0.0
    %691 = vmatpush2.msra.mxu0 0.0
    %692 = vmatprep.subr.mxu0 0.0
    %693 = vmatpush2.msra.mxu0 0.0
    %694 = vmatprep.subr.mxu0 0.0
    %695 = vmatpush2.msra.mxu0 0.0
    %696 = vmatprep.subr.mxu0 0.0
    %697 = vmatpush2.msra.mxu0 0.0
    %698 = vmatprep.subr.mxu0 0.0
    %699 = vmatpush2.msra.mxu0 0.0
    %700 = vmatprep.mubr.f32.mxu0 0.0
    %701 = vmatmul.mubr.f32.gmra.mxu0 %v101
    %v702 = vpop.f32.mrf.mxu0
    %v703 = vadd.f32 0.0, %v702
    %v704 = vpop.f32.mrf.mxu0
    %705 = vmatprep.mubr.f32.mxu0 0.0
    %706 = vmatmul.mubr.f32.gmra.mxu0 %v104
    %v707 = vpop.f32.mrf.mxu0
    %v708 = vadd.f32 0.0, %v707
    %v709 = vpop.f32.mrf.mxu0
    %710 = vmatprep.mubr.f32.mxu0 0.0
    %711 = vmatmul.mubr.f32.gmra.mxu0 %v107
    %v712 = vpop.f32.mrf.mxu0
    %v713 = vadd.f32 0.0, %v712
    %v714 = vpop.f32.mrf.mxu0
    %715 = vmatprep.mubr.f32.mxu0 0.0
    %716 = vmatmul.mubr.f32.gmra.mxu0 %v110
    %v717 = vpop.f32.mrf.mxu0
    %v718 = vadd.f32 0.0, %v717
    %v719 = vpop.f32.mrf.mxu0
    %720 = vmatprep.mubr.f32.mxu0 0.0
    %721 = vmatmul.mubr.f32.gmra.mxu0 %v113
    %v722 = vpop.f32.mrf.mxu0
    %v723 = vadd.f32 0.0, %v722
    %v724 = vpop.f32.mrf.mxu0
    %725 = vmatprep.mubr.f32.mxu0 0.0
    %726 = vmatmul.mubr.f32.gmra.mxu0 %v116
    %v727 = vpop.f32.mrf.mxu0
    %v728 = vadd.f32 0.0, %v727
    %v729 = vpop.f32.mrf.mxu0
    %730 = vmatprep.mubr.f32.mxu0 0.0
    %731 = vmatmul.mubr.f32.gmra.mxu0 %v119
    %v732 = vpop.f32.mrf.mxu0
    %v733 = vadd.f32 0.0, %v732
    %v734 = vpop.f32.mrf.mxu0
    %735 = vmatprep.mubr.f32.mxu0 0.0
    %736 = vmatmul.mubr.f32.gmra.mxu0 %v122
    %v737 = vpop.f32.mrf.mxu0
    %v738 = vadd.f32 0.0, %v737
    %v739 = vpop.f32.mrf.mxu0
    %740 = vmatprep.mubr.f32.mxu0 0.0
    %741 = vmatmul.mubr.f32.gmra.mxu0 %v125
    %v742 = vpop.f32.mrf.mxu0
    %v743 = vadd.f32 0.0, %v742
    %v744 = vpop.f32.mrf.mxu0
    %745 = vmatprep.mubr.f32.mxu0 0.0
    %746 = vmatmul.mubr.f32.gmra.mxu0 %v128
    %v747 = vpop.f32.mrf.mxu0
    %v748 = vadd.f32 0.0, %v747
    %v749 = vpop.f32.mrf.mxu0
    %750 = vmatprep.mubr.f32.mxu0 0.0
    %751 = vmatmul.mubr.f32.gmra.mxu0 %v131
    %v752 = vpop.f32.mrf.mxu0
    %v753 = vadd.f32 0.0, %v752
    %v754 = vpop.f32.mrf.mxu0
    %755 = vmatprep.mubr.f32.mxu0 0.0
    %756 = vmatmul.mubr.f32.gmra.mxu0 %v134
    %v757 = vpop.f32.mrf.mxu0
    %v758 = vadd.f32 0.0, %v757
    %v759 = vpop.f32.mrf.mxu0
    %760 = vdwg.mxu0
    %761 = vmatprep.subr.mxu0 0.0
    %762 = vmatpush1.msra.mxu0 0.0
    %763 = vmatprep.subr.mxu0 0.0
    %764 = vmatpush1.msra.mxu0 0.0
    %765 = vmatprep.subr.mxu0 0.0
    %766 = vmatpush1.msra.mxu0 0.0
    %767 = vmatprep.subr.mxu0 0.0
    %768 = vmatpush1.msra.mxu0 0.0
    %769 = vmatprep.subr.mxu0 0.0
    %770 = vmatpush1.msra.mxu0 0.0
    %771 = vmatprep.subr.mxu0 0.0
    %772 = vmatpush1.msra.mxu0 0.0
    %773 = vmatprep.subr.mxu0 0.0
    %774 = vmatpush1.msra.mxu0 0.0
    %775 = vmatprep.subr.mxu0 0.0
    %776 = vmatpush1.msra.mxu0 0.0
    %777 = vmatprep.subr.mxu0 0.0
    %778 = vmatpush1.msra.mxu0 0.0
    %779 = vmatprep.subr.mxu0 0.0
    %780 = vmatpush1.msra.mxu0 0.0
    %781 = vmatprep.subr.mxu0 0.0
    %782 = vmatpush1.msra.mxu0 0.0
    %783 = vmatprep.subr.mxu0 0.0
    %784 = vmatpush1.msra.mxu0 %v75
    %785 = vmatprep.subr.mxu0 0.0
    %786 = vmatpush1.msra.mxu0 %v74
    %787 = vmatprep.subr.mxu0 0.0
    %788 = vmatpush1.msra.mxu0 %v73
    %789 = vmatprep.subr.mxu0 0.0
    %790 = vmatpush1.msra.mxu0 %v72
    %791 = vmatprep.subr.mxu0 0.0
    %792 = vmatpush1.msra.mxu0 %v71
    %793 = vmatprep.subr.mxu0 0.0
    %794 = vmatpush2.msra.mxu0 0.0
    %795 = vmatprep.subr.mxu0 0.0
    %796 = vmatpush2.msra.mxu0 0.0
    %797 = vmatprep.subr.mxu0 0.0
    %798 = vmatpush2.msra.mxu0 0.0
    %799 = vmatprep.subr.mxu0 0.0
    %800 = vmatpush2.msra.mxu0 0.0
    %801 = vmatprep.subr.mxu0 0.0
    %802 = vmatpush2.msra.mxu0 0.0
    %803 = vmatprep.subr.mxu0 0.0
    %804 = vmatpush2.msra.mxu0 0.0
    %805 = vmatprep.subr.mxu0 0.0
    %806 = vmatpush2.msra.mxu0 0.0
    %807 = vmatprep.subr.mxu0 0.0
    %808 = vmatpush2.msra.mxu0 0.0
    %809 = vmatprep.subr.mxu0 0.0
    %810 = vmatpush2.msra.mxu0 0.0
    %811 = vmatprep.subr.mxu0 0.0
    %812 = vmatpush2.msra.mxu0 0.0
    %813 = vmatprep.subr.mxu0 0.0
    %814 = vmatpush2.msra.mxu0 0.0
    %815 = vmatprep.subr.mxu0 0.0
    %816 = vmatpush2.msra.mxu0 0.0
    %817 = vmatprep.subr.mxu0 0.0
    %818 = vmatpush2.msra.mxu0 0.0
    %819 = vmatprep.subr.mxu0 0.0
    %820 = vmatpush2.msra.mxu0 0.0
    %821 = vmatprep.subr.mxu0 0.0
    %822 = vmatpush2.msra.mxu0 0.0
    %823 = vmatprep.subr.mxu0 0.0
    %824 = vmatpush2.msra.mxu0 0.0
    %825 = vmatprep.mubr.f32.mxu0 0.0
    %826 = vmatmul.mubr.f32.gmra.mxu0 %v101
    %v827 = vpop.f32.mrf.mxu0
    %v828 = vadd.f32 0.0, %v827
    %v829 = vpop.f32.mrf.mxu0
    %830 = vmatprep.mubr.f32.mxu0 0.0
    %831 = vmatmul.mubr.f32.gmra.mxu0 %v104
    %v832 = vpop.f32.mrf.mxu0
    %v833 = vadd.f32 0.0, %v832
    %v834 = vpop.f32.mrf.mxu0
    %835 = vmatprep.mubr.f32.mxu0 0.0
    %836 = vmatmul.mubr.f32.gmra.mxu0 %v107
    %v837 = vpop.f32.mrf.mxu0
    %v838 = vadd.f32 0.0, %v837
    %v839 = vpop.f32.mrf.mxu0
    %840 = vmatprep.mubr.f32.mxu0 0.0
    %841 = vmatmul.mubr.f32.gmra.mxu0 %v110
    %v842 = vpop.f32.mrf.mxu0
    %v843 = vadd.f32 0.0, %v842
    %v844 = vpop.f32.mrf.mxu0
    %845 = vmatprep.mubr.f32.mxu0 0.0
    %846 = vmatmul.mubr.f32.gmra.mxu0 %v113
    %v847 = vpop.f32.mrf.mxu0
    %v848 = vadd.f32 0.0, %v847
    %v849 = vpop.f32.mrf.mxu0
    %850 = vmatprep.mubr.f32.mxu0 0.0
    %851 = vmatmul.mubr.f32.gmra.mxu0 %v116
    %v852 = vpop.f32.mrf.mxu0
    %v853 = vadd.f32 0.0, %v852
    %v854 = vpop.f32.mrf.mxu0
    %855 = vmatprep.mubr.f32.mxu0 0.0
    %856 = vmatmul.mubr.f32.gmra.mxu0 %v119
    %v857 = vpop.f32.mrf.mxu0
    %v858 = vadd.f32 0.0, %v857
    %v859 = vpop.f32.mrf.mxu0
    %860 = vmatprep.mubr.f32.mxu0 0.0
    %861 = vmatmul.mubr.f32.gmra.mxu0 %v122
    %v862 = vpop.f32.mrf.mxu0
    %v863 = vadd.f32 0.0, %v862
    %v864 = vpop.f32.mrf.mxu0
    %865 = vmatprep.mubr.f32.mxu0 0.0
    %866 = vmatmul.mubr.f32.gmra.mxu0 %v125
    %v867 = vpop.f32.mrf.mxu0
    %v868 = vadd.f32 0.0, %v867
    %v869 = vpop.f32.mrf.mxu0
    %870 = vmatprep.mubr.f32.mxu0 0.0
    %871 = vmatmul.mubr.f32.gmra.mxu0 %v128
    %v872 = vpop.f32.mrf.mxu0
    %v873 = vadd.f32 0.0, %v872
    %v874 = vpop.f32.mrf.mxu0
    %875 = vmatprep.mubr.f32.mxu0 0.0
    %876 = vmatmul.mubr.f32.gmra.mxu0 %v131
    %v877 = vpop.f32.mrf.mxu0
    %v878 = vadd.f32 0.0, %v877
    %v879 = vpop.f32.mrf.mxu0
    %880 = vmatprep.mubr.f32.mxu0 0.0
    %881 = vmatmul.mubr.f32.gmra.mxu0 %v134
    %v882 = vpop.f32.mrf.mxu0
    %v883 = vadd.f32 0.0, %v882
    %v884 = vpop.f32.mrf.mxu0
    %885 = vdwg.mxu0
    %886 = vmatprep.subr.mxu0 0.0
    %887 = vmatpush1.msra.mxu0 0.0
    %888 = vmatprep.subr.mxu0 0.0
    %889 = vmatpush1.msra.mxu0 0.0
    %890 = vmatprep.subr.mxu0 0.0
    %891 = vmatpush1.msra.mxu0 0.0
    %892 = vmatprep.subr.mxu0 0.0
    %893 = vmatpush1.msra.mxu0 0.0
    %894 = vmatprep.subr.mxu0 0.0
    %895 = vmatpush1.msra.mxu0 0.0
    %896 = vmatprep.subr.mxu0 0.0
    %897 = vmatpush1.msra.mxu0 0.0
    %898 = vmatprep.subr.mxu0 0.0
    %899 = vmatpush1.msra.mxu0 0.0
    %900 = vmatprep.subr.mxu0 0.0
    %901 = vmatpush1.msra.mxu0 0.0
    %902 = vmatprep.subr.mxu0 0.0
    %903 = vmatpush1.msra.mxu0 0.0
    %904 = vmatprep.subr.mxu0 0.0
    %905 = vmatpush1.msra.mxu0 0.0
    %906 = vmatprep.subr.mxu0 0.0
    %907 = vmatpush1.msra.mxu0 0.0
    %908 = vmatprep.subr.mxu0 0.0
    %909 = vmatpush1.msra.mxu0 %v80
    %910 = vmatprep.subr.mxu0 0.0
    %911 = vmatpush1.msra.mxu0 %v79
    %912 = vmatprep.subr.mxu0 0.0
    %913 = vmatpush1.msra.mxu0 %v78
    %914 = vmatprep.subr.mxu0 0.0
    %915 = vmatpush1.msra.mxu0 %v77
    %916 = vmatprep.subr.mxu0 0.0
    %917 = vmatpush1.msra.mxu0 %v76
    %918 = vmatprep.subr.mxu0 0.0
    %919 = vmatpush2.msra.mxu0 0.0
    %920 = vmatprep.subr.mxu0 0.0
    %921 = vmatpush2.msra.mxu0 0.0
    %922 = vmatprep.subr.mxu0 0.0
    %923 = vmatpush2.msra.mxu0 0.0
    %924 = vmatprep.subr.mxu0 0.0
    %925 = vmatpush2.msra.mxu0 0.0
    %926 = vmatprep.subr.mxu0 0.0
    %927 = vmatpush2.msra.mxu0 0.0
    %928 = vmatprep.subr.mxu0 0.0
    %929 = vmatpush2.msra.mxu0 0.0
    %930 = vmatprep.subr.mxu0 0.0
    %931 = vmatpush2.msra.mxu0 0.0
    %932 = vmatprep.subr.mxu0 0.0
    %933 = vmatpush2.msra.mxu0 0.0
    %934 = vmatprep.subr.mxu0 0.0
    %935 = vmatpush2.msra.mxu0 0.0
    %936 = vmatprep.subr.mxu0 0.0
    %937 = vmatpush2.msra.mxu0 0.0
    %938 = vmatprep.subr.mxu0 0.0
    %939 = vmatpush2.msra.mxu0 0.0
    %940 = vmatprep.subr.mxu0 0.0
    %941 = vmatpush2.msra.mxu0 0.0
    %942 = vmatprep.subr.mxu0 0.0
    %943 = vmatpush2.msra.mxu0 0.0
    %944 = vmatprep.subr.mxu0 0.0
    %945 = vmatpush2.msra.mxu0 0.0
    %946 = vmatprep.subr.mxu0 0.0
    %947 = vmatpush2.msra.mxu0 0.0
    %948 = vmatprep.subr.mxu0 0.0
    %949 = vmatpush2.msra.mxu0 0.0
    %950 = vmatprep.mubr.f32.mxu0 0.0
    %951 = vmatmul.mubr.f32.gmra.mxu0 %v101
    %v952 = vpop.f32.mrf.mxu0
    %v953 = vadd.f32 0.0, %v952
    %v954 = vpop.f32.mrf.mxu0
    %955 = vmatprep.mubr.f32.mxu0 0.0
    %956 = vmatmul.mubr.f32.gmra.mxu0 %v104
    %v957 = vpop.f32.mrf.mxu0
    %v958 = vadd.f32 0.0, %v957
    %v959 = vpop.f32.mrf.mxu0
    %960 = vmatprep.mubr.f32.mxu0 0.0
    %961 = vmatmul.mubr.f32.gmra.mxu0 %v107
    %v962 = vpop.f32.mrf.mxu0
    %v963 = vadd.f32 0.0, %v962
    %v964 = vpop.f32.mrf.mxu0
    %965 = vmatprep.mubr.f32.mxu0 0.0
    %966 = vmatmul.mubr.f32.gmra.mxu0 %v110
    %v967 = vpop.f32.mrf.mxu0
    %v968 = vadd.f32 0.0, %v967
    %v969 = vpop.f32.mrf.mxu0
    %970 = vmatprep.mubr.f32.mxu0 0.0
    %971 = vmatmul.mubr.f32.gmra.mxu0 %v113
    %v972 = vpop.f32.mrf.mxu0
    %v973 = vadd.f32 0.0, %v972
    %v974 = vpop.f32.mrf.mxu0
    %975 = vmatprep.mubr.f32.mxu0 0.0
    %976 = vmatmul.mubr.f32.gmra.mxu0 %v116
    %v977 = vpop.f32.mrf.mxu0
    %v978 = vadd.f32 0.0, %v977
    %v979 = vpop.f32.mrf.mxu0
    %980 = vmatprep.mubr.f32.mxu0 0.0
    %981 = vmatmul.mubr.f32.gmra.mxu0 %v119
    %v982 = vpop.f32.mrf.mxu0
    %v983 = vadd.f32 0.0, %v982
    %v984 = vpop.f32.mrf.mxu0
    %985 = vmatprep.mubr.f32.mxu0 0.0
    %986 = vmatmul.mubr.f32.gmra.mxu0 %v122
    %v987 = vpop.f32.mrf.mxu0
    %v988 = vadd.f32 0.0, %v987
    %v989 = vpop.f32.mrf.mxu0
    %990 = vmatprep.mubr.f32.mxu0 0.0
    %991 = vmatmul.mubr.f32.gmra.mxu0 %v125
    %v992 = vpop.f32.mrf.mxu0
    %v993 = vadd.f32 0.0, %v992
    %v994 = vpop.f32.mrf.mxu0
    %995 = vmatprep.mubr.f32.mxu0 0.0
    %996 = vmatmul.mubr.f32.gmra.mxu0 %v128
    %v997 = vpop.f32.mrf.mxu0
    %v998 = vadd.f32 0.0, %v997
    %v999 = vpop.f32.mrf.mxu0
    %1000 = vmatprep.mubr.f32.mxu0 0.0
    %1001 = vmatmul.mubr.f32.gmra.mxu0 %v131
    %v1002 = vpop.f32.mrf.mxu0
    %v1003 = vadd.f32 0.0, %v1002
    %v1004 = vpop.f32.mrf.mxu0
    %1005 = vmatprep.mubr.f32.mxu0 0.0
    %1006 = vmatmul.mubr.f32.gmra.mxu0 %v134
    %v1007 = vpop.f32.mrf.mxu0
    %v1008 = vadd.f32 0.0, %v1007
    %v1009 = vpop.f32.mrf.mxu0
    %1010 = vdwg.mxu0
    %1011 = vmatprep.subr.mxu0 0.0
    %1012 = vmatpush1.msra.mxu0 0.0
    %1013 = vmatprep.subr.mxu0 0.0
    %1014 = vmatpush1.msra.mxu0 0.0
    %1015 = vmatprep.subr.mxu0 0.0
    %1016 = vmatpush1.msra.mxu0 0.0
    %1017 = vmatprep.subr.mxu0 0.0
    %1018 = vmatpush1.msra.mxu0 0.0
    %1019 = vmatprep.subr.mxu0 0.0
    %1020 = vmatpush1.msra.mxu0 0.0
    %1021 = vmatprep.subr.mxu0 0.0
    %1022 = vmatpush1.msra.mxu0 0.0
    %1023 = vmatprep.subr.mxu0 0.0
    %1024 = vmatpush1.msra.mxu0 0.0
    %1025 = vmatprep.subr.mxu0 0.0
    %1026 = vmatpush1.msra.mxu0 0.0
    %1027 = vmatprep.subr.mxu0 0.0
    %1028 = vmatpush1.msra.mxu0 0.0
    %1029 = vmatprep.subr.mxu0 0.0
    %1030 = vmatpush1.msra.mxu0 0.0
    %1031 = vmatprep.subr.mxu0 0.0
    %1032 = vmatpush1.msra.mxu0 0.0
    %1033 = vmatprep.subr.mxu0 0.0
    %1034 = vmatpush1.msra.mxu0 %v85
    %1035 = vmatprep.subr.mxu0 0.0
    %1036 = vmatpush1.msra.mxu0 %v84
    %1037 = vmatprep.subr.mxu0 0.0
    %1038 = vmatpush1.msra.mxu0 %v83
    %1039 = vmatprep.subr.mxu0 0.0
    %1040 = vmatpush1.msra.mxu0 %v82
    %1041 = vmatprep.subr.mxu0 0.0
    %1042 = vmatpush1.msra.mxu0 %v81
    %1043 = vmatprep.subr.mxu0 0.0
    %1044 = vmatpush2.msra.mxu0 0.0
    %1045 = vmatprep.subr.mxu0 0.0
    %1046 = vmatpush2.msra.mxu0 0.0
    %1047 = vmatprep.subr.mxu0 0.0
    %1048 = vmatpush2.msra.mxu0 0.0
    %1049 = vmatprep.subr.mxu0 0.0
    %1050 = vmatpush2.msra.mxu0 0.0
    %1051 = vmatprep.subr.mxu0 0.0
    %1052 = vmatpush2.msra.mxu0 0.0
    %1053 = vmatprep.subr.mxu0 0.0
    %1054 = vmatpush2.msra.mxu0 0.0
    %1055 = vmatprep.subr.mxu0 0.0
    %1056 = vmatpush2.msra.mxu0 0.0
    %1057 = vmatprep.subr.mxu0 0.0
    %1058 = vmatpush2.msra.mxu0 0.0
    %1059 = vmatprep.subr.mxu0 0.0
    %1060 = vmatpush2.msra.mxu0 0.0
    %1061 = vmatprep.subr.mxu0 0.0
    %1062 = vmatpush2.msra.mxu0 0.0
    %1063 = vmatprep.subr.mxu0 0.0
    %1064 = vmatpush2.msra.mxu0 0.0
    %1065 = vmatprep.subr.mxu0 0.0
    %1066 = vmatpush2.msra.mxu0 0.0
    %1067 = vmatprep.subr.mxu0 0.0
    %1068 = vmatpush2.msra.mxu0 0.0
    %1069 = vmatprep.subr.mxu0 0.0
    %1070 = vmatpush2.msra.mxu0 0.0
    %1071 = vmatprep.subr.mxu0 0.0
    %1072 = vmatpush2.msra.mxu0 0.0
    %1073 = vmatprep.subr.mxu0 0.0
    %1074 = vmatpush2.msra.mxu0 0.0
    %1075 = vmatprep.mubr.f32.mxu0 0.0
    %1076 = vmatmul.mubr.f32.gmra.mxu0 %v101
    %v1077 = vpop.f32.mrf.mxu0
    %v1078 = vadd.f32 0.0, %v1077
    %v1079 = vpop.f32.mrf.mxu0
    %1080 = vmatprep.mubr.f32.mxu0 0.0
    %1081 = vmatmul.mubr.f32.gmra.mxu0 %v104
    %v1082 = vpop.f32.mrf.mxu0
    %v1083 = vadd.f32 0.0, %v1082
    %v1084 = vpop.f32.mrf.mxu0
    %1085 = vmatprep.mubr.f32.mxu0 0.0
    %1086 = vmatmul.mubr.f32.gmra.mxu0 %v107
    %v1087 = vpop.f32.mrf.mxu0
    %v1088 = vadd.f32 0.0, %v1087
    %v1089 = vpop.f32.mrf.mxu0
    %1090 = vmatprep.mubr.f32.mxu0 0.0
    %1091 = vmatmul.mubr.f32.gmra.mxu0 %v110
    %v1092 = vpop.f32.mrf.mxu0
    %v1093 = vadd.f32 0.0, %v1092
    %v1094 = vpop.f32.mrf.mxu0
    %1095 = vmatprep.mubr.f32.mxu0 0.0
    %1096 = vmatmul.mubr.f32.gmra.mxu0 %v113
    %v1097 = vpop.f32.mrf.mxu0
    %v1098 = vadd.f32 0.0, %v1097
    %v1099 = vpop.f32.mrf.mxu0
    %1100 = vmatprep.mubr.f32.mxu0 0.0
    %1101 = vmatmul.mubr.f32.gmra.mxu0 %v116
    %v1102 = vpop.f32.mrf.mxu0
    %v1103 = vadd.f32 0.0, %v1102
    %v1104 = vpop.f32.mrf.mxu0
    %1105 = vmatprep.mubr.f32.mxu0 0.0
    %1106 = vmatmul.mubr.f32.gmra.mxu0 %v119
    %v1107 = vpop.f32.mrf.mxu0
    %v1108 = vadd.f32 0.0, %v1107
    %v1109 = vpop.f32.mrf.mxu0
    %1110 = vmatprep.mubr.f32.mxu0 0.0
    %1111 = vmatmul.mubr.f32.gmra.mxu0 %v122
    %v1112 = vpop.f32.mrf.mxu0
    %v1113 = vadd.f32 0.0, %v1112
    %v1114 = vpop.f32.mrf.mxu0
    %1115 = vmatprep.mubr.f32.mxu0 0.0
    %1116 = vmatmul.mubr.f32.gmra.mxu0 %v125
    %v1117 = vpop.f32.mrf.mxu0
    %v1118 = vadd.f32 0.0, %v1117
    %v1119 = vpop.f32.mrf.mxu0
    %1120 = vmatprep.mubr.f32.mxu0 0.0
    %1121 = vmatmul.mubr.f32.gmra.mxu0 %v128
    %v1122 = vpop.f32.mrf.mxu0
    %v1123 = vadd.f32 0.0, %v1122
    %v1124 = vpop.f32.mrf.mxu0
    %1125 = vmatprep.mubr.f32.mxu0 0.0
    %1126 = vmatmul.mubr.f32.gmra.mxu0 %v131
    %v1127 = vpop.f32.mrf.mxu0
    %v1128 = vadd.f32 0.0, %v1127
    %v1129 = vpop.f32.mrf.mxu0
    %1130 = vmatprep.mubr.f32.mxu0 0.0
    %1131 = vmatmul.mubr.f32.gmra.mxu0 %v134
    %v1132 = vpop.f32.mrf.mxu0
    %v1133 = vadd.f32 0.0, %v1132
    %v1134 = vpop.f32.mrf.mxu0
    %1135 = vdwg.mxu0
    %vm1136 = vcmp.gt.f32.partialorder %v86, 0.5
    %v1137 = vsel %vm1136, 0.0, -1e+30
    %v1138 = vmul.f32 %v203, %v223
    %v1139 = vrot.slane %v1138, 4
    %v1140 = vadd.f32 %v1138, %v1139
    %v1141 = vrot.slane %v1140, 2
    %v1142 = vadd.f32 %v1140, %v1141
    %v1143 = vrot.slane %v1142, 1
    %v1144 = vadd.f32 %v1142, %v1143
    %v1145 = vmul.f32 %v203, %v348
    %v1146 = vrot.slane %v1145, 4
    %v1147 = vadd.f32 %v1145, %v1146
    %v1148 = vrot.slane %v1147, 2
    %v1149 = vadd.f32 %v1147, %v1148
    %v1150 = vrot.slane %v1149, 1
    %v1151 = vadd.f32 %v1149, %v1150
    %v1152 = vmul.f32 %v203, %v473
    %v1153 = vrot.slane %v1152, 4
    %v1154 = vadd.f32 %v1152, %v1153
    %v1155 = vrot.slane %v1154, 2
    %v1156 = vadd.f32 %v1154, %v1155
    %v1157 = vrot.slane %v1156, 1
    %v1158 = vadd.f32 %v1156, %v1157
    %v1159 = vmul.f32 %v203, %v598
    %v1160 = vrot.slane %v1159, 4
    %v1161 = vadd.f32 %v1159, %v1160
    %v1162 = vrot.slane %v1161, 2
    %v1163 = vadd.f32 %v1161, %v1162
    %v1164 = vrot.slane %v1163, 1
    %v1165 = vadd.f32 %v1163, %v1164
    %v1166 = vmul.f32 %v203, %v723
    %v1167 = vrot.slane %v1166, 4
    %v1168 = vadd.f32 %v1166, %v1167
    %v1169 = vrot.slane %v1168, 2
    %v1170 = vadd.f32 %v1168, %v1169
    %v1171 = vrot.slane %v1170, 1
    %v1172 = vadd.f32 %v1170, %v1171
    %v1173 = vmul.f32 %v203, %v848
    %v1174 = vrot.slane %v1173, 4
    %v1175 = vadd.f32 %v1173, %v1174
    %v1176 = vrot.slane %v1175, 2
    %v1177 = vadd.f32 %v1175, %v1176
    %v1178 = vrot.slane %v1177, 1
    %v1179 = vadd.f32 %v1177, %v1178
    %v1180 = vmul.f32 %v203, %v973
    %v1181 = vrot.slane %v1180, 4
    %v1182 = vadd.f32 %v1180, %v1181
    %v1183 = vrot.slane %v1182, 2
    %v1184 = vadd.f32 %v1182, %v1183
    %v1185 = vrot.slane %v1184, 1
    %v1186 = vadd.f32 %v1184, %v1185
    %v1187 = vmul.f32 %v203, %v1098
    %v1188 = vrot.slane %v1187, 4
    %v1189 = vadd.f32 %v1187, %v1188
    %v1190 = vrot.slane %v1189, 2
    %v1191 = vadd.f32 %v1189, %v1190
    %v1192 = vrot.slane %v1191, 1
    %v1193 = vadd.f32 %v1191, %v1192
    %vm1194 = vcmask 1040384
    %v1195 = vsel %vm1194, %v1144, %v1151
    %vm1196 = vcmask 1041408
    %v1197 = vsel %vm1196, %v1195, %v1158
    %vm1198 = vcmask 1042432
    %v1199 = vsel %vm1198, %v1197, %v1165
    %vm1200 = vcmask 1043456
    %v1201 = vsel %vm1200, %v1199, %v1172
    %vm1202 = vcmask 1044480
    %v1203 = vsel %vm1202, %v1201, %v1179
    %vm1204 = vcmask 1045504
    %v1205 = vsel %vm1204, %v1203, %v1186
    %vm1206 = vcmask 1046528
    %v1207 = vsel %vm1206, %v1205, %v1193
    %v1208 = vadd.f32 %v1207, %v1137
    %v1209 = vrot.slane %v1208, 4
    %v1210 = vmax.f32 %v1208, %v1209
    %v1211 = vrot.slane %v1210, 2
    %v1212 = vmax.f32 %v1210, %v1211
    %v1213 = vrot.slane %v1212, 1
    %v1214 = vmax.f32 %v1212, %v1213
    %v1215 = vsub.f32 %v1208, %v1214
    %v1216 = vmul.f32 %v1215, 1.442695
    %v1217 = vpow.pop %v1216
    %v1218 = vrot.slane %v1217, 4
    %v1219 = vadd.f32 %v1217, %v1218
    %v1220 = vrot.slane %v1219, 2
    %v1221 = vadd.f32 %v1219, %v1220
    %v1222 = vrot.slane %v1221, 1
    %v1223 = vadd.f32 %v1221, %v1222
    %v1224 = vrcp.pop %v1223
    %v1225 = vmul.f32 %v1217, %v1224
    %v1226 = vlaneseq
    %v1227 = vshrl.u32 %v1226, 7
    %v1228 = vsub.s32 0, %v1227
    %v1229 = vrot.slane %v86, %v1228
    %v1230 = vmul.f32 %v1225, %v1229
    %v1231 = vadd.f32 %v1230, 0.0
    %v1232 = vmul.f32 %v328, %v223
    %v1233 = vrot.slane %v1232, 4
    %v1234 = vadd.f32 %v1232, %v1233
    %v1235 = vrot.slane %v1234, 2
    %v1236 = vadd.f32 %v1234, %v1235
    %v1237 = vrot.slane %v1236, 1
    %v1238 = vadd.f32 %v1236, %v1237
    %v1239 = vmul.f32 %v328, %v348
    %v1240 = vrot.slane %v1239, 4
    %v1241 = vadd.f32 %v1239, %v1240
    %v1242 = vrot.slane %v1241, 2
    %v1243 = vadd.f32 %v1241, %v1242
    %v1244 = vrot.slane %v1243, 1
    %v1245 = vadd.f32 %v1243, %v1244
    %v1246 = vmul.f32 %v328, %v473
    %v1247 = vrot.slane %v1246, 4
    %v1248 = vadd.f32 %v1246, %v1247
    %v1249 = vrot.slane %v1248, 2
    %v1250 = vadd.f32 %v1248, %v1249
    %v1251 = vrot.slane %v1250, 1
    %v1252 = vadd.f32 %v1250, %v1251
    %v1253 = vmul.f32 %v328, %v598
    %v1254 = vrot.slane %v1253, 4
    %v1255 = vadd.f32 %v1253, %v1254
    %v1256 = vrot.slane %v1255, 2
    %v1257 = vadd.f32 %v1255, %v1256
    %v1258 = vrot.slane %v1257, 1
    %v1259 = vadd.f32 %v1257, %v1258
    %v1260 = vmul.f32 %v328, %v723
    %v1261 = vrot.slane %v1260, 4
    %v1262 = vadd.f32 %v1260, %v1261
    %v1263 = vrot.slane %v1262, 2
    %v1264 = vadd.f32 %v1262, %v1263
    %v1265 = vrot.slane %v1264, 1
    %v1266 = vadd.f32 %v1264, %v1265
    %v1267 = vmul.f32 %v328, %v848
    %v1268 = vrot.slane %v1267, 4
    %v1269 = vadd.f32 %v1267, %v1268
    %v1270 = vrot.slane %v1269, 2
    %v1271 = vadd.f32 %v1269, %v1270
    %v1272 = vrot.slane %v1271, 1
    %v1273 = vadd.f32 %v1271, %v1272
    %v1274 = vmul.f32 %v328, %v973
    %v1275 = vrot.slane %v1274, 4
    %v1276 = vadd.f32 %v1274, %v1275
    %v1277 = vrot.slane %v1276, 2
    %v1278 = vadd.f32 %v1276, %v1277
    %v1279 = vrot.slane %v1278, 1
    %v1280 = vadd.f32 %v1278, %v1279
    %v1281 = vmul.f32 %v328, %v1098
    %v1282 = vrot.slane %v1281, 4
    %v1283 = vadd.f32 %v1281, %v1282
    %v1284 = vrot.slane %v1283, 2
    %v1285 = vadd.f32 %v1283, %v1284
    %v1286 = vrot.slane %v1285, 1
    %v1287 = vadd.f32 %v1285, %v1286
    %v1288 = vsel %vm1194, %v1238, %v1245
    %v1289 = vsel %vm1196, %v1288, %v1252
    %v1290 = vsel %vm1198, %v1289, %v1259
    %v1291 = vsel %vm1200, %v1290, %v1266
    %v1292 = vsel %vm1202, %v1291, %v1273
    %v1293 = vsel %vm1204, %v1292, %v1280
    %v1294 = vsel %vm1206, %v1293, %v1287
    %v1295 = vadd.f32 %v1294, %v1137
    %v1296 = vrot.slane %v1295, 4
    %v1297 = vmax.f32 %v1295, %v1296
    %v1298 = vrot.slane %v1297, 2
    %v1299 = vmax.f32 %v1297, %v1298
    %v1300 = vrot.slane %v1299, 1
    %v1301 = vmax.f32 %v1299, %v1300
    %v1302 = vsub.f32 %v1295, %v1301
    %v1303 = vmul.f32 %v1302, 1.442695
    %v1304 = vpow.pop %v1303
    %v1305 = vrot.slane %v1304, 4
    %v1306 = vadd.f32 %v1304, %v1305
    %v1307 = vrot.slane %v1306, 2
    %v1308 = vadd.f32 %v1306, %v1307
    %v1309 = vrot.slane %v1308, 1
    %v1310 = vadd.f32 %v1308, %v1309
    %v1311 = vrcp.pop %v1310
    %v1312 = vmul.f32 %v1304, %v1311
    %v1313 = vlaneseq
    %v1314 = vshrl.u32 %v1313, 7
    %v1315 = vsub.s32 1, %v1314
    %v1316 = vrot.slane %v86, %v1315
    %v1317 = vmul.f32 %v1312, %v1316
    %v1318 = vadd.f32 %v1231, %v1317
    %v1319 = vmul.f32 %v453, %v223
    %v1320 = vrot.slane %v1319, 4
    %v1321 = vadd.f32 %v1319, %v1320
    %v1322 = vrot.slane %v1321, 2
    %v1323 = vadd.f32 %v1321, %v1322
    %v1324 = vrot.slane %v1323, 1
    %v1325 = vadd.f32 %v1323, %v1324
    %v1326 = vmul.f32 %v453, %v348
    %v1327 = vrot.slane %v1326, 4
    %v1328 = vadd.f32 %v1326, %v1327
    %v1329 = vrot.slane %v1328, 2
    %v1330 = vadd.f32 %v1328, %v1329
    %v1331 = vrot.slane %v1330, 1
    %v1332 = vadd.f32 %v1330, %v1331
    %v1333 = vmul.f32 %v453, %v473
    %v1334 = vrot.slane %v1333, 4
    %v1335 = vadd.f32 %v1333, %v1334
    %v1336 = vrot.slane %v1335, 2
    %v1337 = vadd.f32 %v1335, %v1336
    %v1338 = vrot.slane %v1337, 1
    %v1339 = vadd.f32 %v1337, %v1338
    %v1340 = vmul.f32 %v453, %v598
    %v1341 = vrot.slane %v1340, 4
    %v1342 = vadd.f32 %v1340, %v1341
    %v1343 = vrot.slane %v1342, 2
    %v1344 = vadd.f32 %v1342, %v1343
    %v1345 = vrot.slane %v1344, 1
    %v1346 = vadd.f32 %v1344, %v1345
    %v1347 = vmul.f32 %v453, %v723
    %v1348 = vrot.slane %v1347, 4
    %v1349 = vadd.f32 %v1347, %v1348
    %v1350 = vrot.slane %v1349, 2
    %v1351 = vadd.f32 %v1349, %v1350
    %v1352 = vrot.slane %v1351, 1
    %v1353 = vadd.f32 %v1351, %v1352
    %v1354 = vmul.f32 %v453, %v848
    %v1355 = vrot.slane %v1354, 4
    %v1356 = vadd.f32 %v1354, %v1355
    %v1357 = vrot.slane %v1356, 2
    %v1358 = vadd.f32 %v1356, %v1357
    %v1359 = vrot.slane %v1358, 1
    %v1360 = vadd.f32 %v1358, %v1359
    %v1361 = vmul.f32 %v453, %v973
    %v1362 = vrot.slane %v1361, 4
    %v1363 = vadd.f32 %v1361, %v1362
    %v1364 = vrot.slane %v1363, 2
    %v1365 = vadd.f32 %v1363, %v1364
    %v1366 = vrot.slane %v1365, 1
    %v1367 = vadd.f32 %v1365, %v1366
    %v1368 = vmul.f32 %v453, %v1098
    %v1369 = vrot.slane %v1368, 4
    %v1370 = vadd.f32 %v1368, %v1369
    %v1371 = vrot.slane %v1370, 2
    %v1372 = vadd.f32 %v1370, %v1371
    %v1373 = vrot.slane %v1372, 1
    %v1374 = vadd.f32 %v1372, %v1373
    %v1375 = vsel %vm1194, %v1325, %v1332
    %v1376 = vsel %vm1196, %v1375, %v1339
    %v1377 = vsel %vm1198, %v1376, %v1346
    %v1378 = vsel %vm1200, %v1377, %v1353
    %v1379 = vsel %vm1202, %v1378, %v1360
    %v1380 = vsel %vm1204, %v1379, %v1367
    %v1381 = vsel %vm1206, %v1380, %v1374
    %v1382 = vadd.f32 %v1381, %v1137
    %v1383 = vrot.slane %v1382, 4
    %v1384 = vmax.f32 %v1382, %v1383
    %v1385 = vrot.slane %v1384, 2
    %v1386 = vmax.f32 %v1384, %v1385
    %v1387 = vrot.slane %v1386, 1
    %v1388 = vmax.f32 %v1386, %v1387
    %v1389 = vsub.f32 %v1382, %v1388
    %v1390 = vmul.f32 %v1389, 1.442695
    %v1391 = vpow.pop %v1390
    %v1392 = vrot.slane %v1391, 4
    %v1393 = vadd.f32 %v1391, %v1392
    %v1394 = vrot.slane %v1393, 2
    %v1395 = vadd.f32 %v1393, %v1394
    %v1396 = vrot.slane %v1395, 1
    %v1397 = vadd.f32 %v1395, %v1396
    %v1398 = vrcp.pop %v1397
    %v1399 = vmul.f32 %v1391, %v1398
    %v1400 = vlaneseq
    %v1401 = vshrl.u32 %v1400, 7
    %v1402 = vsub.s32 2, %v1401
    %v1403 = vrot.slane %v86, %v1402
    %v1404 = vmul.f32 %v1399, %v1403
    %v1405 = vadd.f32 %v1318, %v1404
    %v1406 = vmul.f32 %v578, %v223
    %v1407 = vrot.slane %v1406, 4
    %v1408 = vadd.f32 %v1406, %v1407
    %v1409 = vrot.slane %v1408, 2
    %v1410 = vadd.f32 %v1408, %v1409
    %v1411 = vrot.slane %v1410, 1
    %v1412 = vadd.f32 %v1410, %v1411
    %v1413 = vmul.f32 %v578, %v348
    %v1414 = vrot.slane %v1413, 4
    %v1415 = vadd.f32 %v1413, %v1414
    %v1416 = vrot.slane %v1415, 2
    %v1417 = vadd.f32 %v1415, %v1416
    %v1418 = vrot.slane %v1417, 1
    %v1419 = vadd.f32 %v1417, %v1418
    %v1420 = vmul.f32 %v578, %v473
    %v1421 = vrot.slane %v1420, 4
    %v1422 = vadd.f32 %v1420, %v1421
    %v1423 = vrot.slane %v1422, 2
    %v1424 = vadd.f32 %v1422, %v1423
    %v1425 = vrot.slane %v1424, 1
    %v1426 = vadd.f32 %v1424, %v1425
    %v1427 = vmul.f32 %v578, %v598
    %v1428 = vrot.slane %v1427, 4
    %v1429 = vadd.f32 %v1427, %v1428
    %v1430 = vrot.slane %v1429, 2
    %v1431 = vadd.f32 %v1429, %v1430
    %v1432 = vrot.slane %v1431, 1
    %v1433 = vadd.f32 %v1431, %v1432
    %v1434 = vmul.f32 %v578, %v723
    %v1435 = vrot.slane %v1434, 4
    %v1436 = vadd.f32 %v1434, %v1435
    %v1437 = vrot.slane %v1436, 2
    %v1438 = vadd.f32 %v1436, %v1437
    %v1439 = vrot.slane %v1438, 1
    %v1440 = vadd.f32 %v1438, %v1439
    %v1441 = vmul.f32 %v578, %v848
    %v1442 = vrot.slane %v1441, 4
    %v1443 = vadd.f32 %v1441, %v1442
    %v1444 = vrot.slane %v1443, 2
    %v1445 = vadd.f32 %v1443, %v1444
    %v1446 = vrot.slane %v1445, 1
    %v1447 = vadd.f32 %v1445, %v1446
    %v1448 = vmul.f32 %v578, %v973
    %v1449 = vrot.slane %v1448, 4
    %v1450 = vadd.f32 %v1448, %v1449
    %v1451 = vrot.slane %v1450, 2
    %v1452 = vadd.f32 %v1450, %v1451
    %v1453 = vrot.slane %v1452, 1
    %v1454 = vadd.f32 %v1452, %v1453
    %v1455 = vmul.f32 %v578, %v1098
    %v1456 = vrot.slane %v1455, 4
    %v1457 = vadd.f32 %v1455, %v1456
    %v1458 = vrot.slane %v1457, 2
    %v1459 = vadd.f32 %v1457, %v1458
    %v1460 = vrot.slane %v1459, 1
    %v1461 = vadd.f32 %v1459, %v1460
    %v1462 = vsel %vm1194, %v1412, %v1419
    %v1463 = vsel %vm1196, %v1462, %v1426
    %v1464 = vsel %vm1198, %v1463, %v1433
    %v1465 = vsel %vm1200, %v1464, %v1440
    %v1466 = vsel %vm1202, %v1465, %v1447
    %v1467 = vsel %vm1204, %v1466, %v1454
    %v1468 = vsel %vm1206, %v1467, %v1461
    %v1469 = vadd.f32 %v1468, %v1137
    %v1470 = vrot.slane %v1469, 4
    %v1471 = vmax.f32 %v1469, %v1470
    %v1472 = vrot.slane %v1471, 2
    %v1473 = vmax.f32 %v1471, %v1472
    %v1474 = vrot.slane %v1473, 1
    %v1475 = vmax.f32 %v1473, %v1474
    %v1476 = vsub.f32 %v1469, %v1475
    %v1477 = vmul.f32 %v1476, 1.442695
    %v1478 = vpow.pop %v1477
    %v1479 = vrot.slane %v1478, 4
    %v1480 = vadd.f32 %v1478, %v1479
    %v1481 = vrot.slane %v1480, 2
    %v1482 = vadd.f32 %v1480, %v1481
    %v1483 = vrot.slane %v1482, 1
    %v1484 = vadd.f32 %v1482, %v1483
    %v1485 = vrcp.pop %v1484
    %v1486 = vmul.f32 %v1478, %v1485
    %v1487 = vlaneseq
    %v1488 = vshrl.u32 %v1487, 7
    %v1489 = vsub.s32 3, %v1488
    %v1490 = vrot.slane %v86, %v1489
    %v1491 = vmul.f32 %v1486, %v1490
    %v1492 = vadd.f32 %v1405, %v1491
    %v1493 = vmul.f32 %v703, %v223
    %v1494 = vrot.slane %v1493, 4
    %v1495 = vadd.f32 %v1493, %v1494
    %v1496 = vrot.slane %v1495, 2
    %v1497 = vadd.f32 %v1495, %v1496
    %v1498 = vrot.slane %v1497, 1
    %v1499 = vadd.f32 %v1497, %v1498
    %v1500 = vmul.f32 %v703, %v348
    %v1501 = vrot.slane %v1500, 4
    %v1502 = vadd.f32 %v1500, %v1501
    %v1503 = vrot.slane %v1502, 2
    %v1504 = vadd.f32 %v1502, %v1503
    %v1505 = vrot.slane %v1504, 1
    %v1506 = vadd.f32 %v1504, %v1505
    %v1507 = vmul.f32 %v703, %v473
    %v1508 = vrot.slane %v1507, 4
    %v1509 = vadd.f32 %v1507, %v1508
    %v1510 = vrot.slane %v1509, 2
    %v1511 = vadd.f32 %v1509, %v1510
    %v1512 = vrot.slane %v1511, 1
    %v1513 = vadd.f32 %v1511, %v1512
    %v1514 = vmul.f32 %v703, %v598
    %v1515 = vrot.slane %v1514, 4
    %v1516 = vadd.f32 %v1514, %v1515
    %v1517 = vrot.slane %v1516, 2
    %v1518 = vadd.f32 %v1516, %v1517
    %v1519 = vrot.slane %v1518, 1
    %v1520 = vadd.f32 %v1518, %v1519
    %v1521 = vmul.f32 %v703, %v723
    %v1522 = vrot.slane %v1521, 4
    %v1523 = vadd.f32 %v1521, %v1522
    %v1524 = vrot.slane %v1523, 2
    %v1525 = vadd.f32 %v1523, %v1524
    %v1526 = vrot.slane %v1525, 1
    %v1527 = vadd.f32 %v1525, %v1526
    %v1528 = vmul.f32 %v703, %v848
    %v1529 = vrot.slane %v1528, 4
    %v1530 = vadd.f32 %v1528, %v1529
    %v1531 = vrot.slane %v1530, 2
    %v1532 = vadd.f32 %v1530, %v1531
    %v1533 = vrot.slane %v1532, 1
    %v1534 = vadd.f32 %v1532, %v1533
    %v1535 = vmul.f32 %v703, %v973
    %v1536 = vrot.slane %v1535, 4
    %v1537 = vadd.f32 %v1535, %v1536
    %v1538 = vrot.slane %v1537, 2
    %v1539 = vadd.f32 %v1537, %v1538
    %v1540 = vrot.slane %v1539, 1
    %v1541 = vadd.f32 %v1539, %v1540
    %v1542 = vmul.f32 %v703, %v1098
    %v1543 = vrot.slane %v1542, 4
    %v1544 = vadd.f32 %v1542, %v1543
    %v1545 = vrot.slane %v1544, 2
    %v1546 = vadd.f32 %v1544, %v1545
    %v1547 = vrot.slane %v1546, 1
    %v1548 = vadd.f32 %v1546, %v1547
    %v1549 = vsel %vm1194, %v1499, %v1506
    %v1550 = vsel %vm1196, %v1549, %v1513
    %v1551 = vsel %vm1198, %v1550, %v1520
    %v1552 = vsel %vm1200, %v1551, %v1527
    %v1553 = vsel %vm1202, %v1552, %v1534
    %v1554 = vsel %vm1204, %v1553, %v1541
    %v1555 = vsel %vm1206, %v1554, %v1548
    %v1556 = vadd.f32 %v1555, %v1137
    %v1557 = vrot.slane %v1556, 4
    %v1558 = vmax.f32 %v1556, %v1557
    %v1559 = vrot.slane %v1558, 2
    %v1560 = vmax.f32 %v1558, %v1559
    %v1561 = vrot.slane %v1560, 1
    %v1562 = vmax.f32 %v1560, %v1561
    %v1563 = vsub.f32 %v1556, %v1562
    %v1564 = vmul.f32 %v1563, 1.442695
    %v1565 = vpow.pop %v1564
    %v1566 = vrot.slane %v1565, 4
    %v1567 = vadd.f32 %v1565, %v1566
    %v1568 = vrot.slane %v1567, 2
    %v1569 = vadd.f32 %v1567, %v1568
    %v1570 = vrot.slane %v1569, 1
    %v1571 = vadd.f32 %v1569, %v1570
    %v1572 = vrcp.pop %v1571
    %v1573 = vmul.f32 %v1565, %v1572
    %v1574 = vlaneseq
    %v1575 = vshrl.u32 %v1574, 7
    %v1576 = vsub.s32 4, %v1575
    %v1577 = vrot.slane %v86, %v1576
    %v1578 = vmul.f32 %v1573, %v1577
    %v1579 = vadd.f32 %v1492, %v1578
    %v1580 = vmul.f32 %v828, %v223
    %v1581 = vrot.slane %v1580, 4
    %v1582 = vadd.f32 %v1580, %v1581
    %v1583 = vrot.slane %v1582, 2
    %v1584 = vadd.f32 %v1582, %v1583
    %v1585 = vrot.slane %v1584, 1
    %v1586 = vadd.f32 %v1584, %v1585
    %v1587 = vmul.f32 %v828, %v348
    %v1588 = vrot.slane %v1587, 4
    %v1589 = vadd.f32 %v1587, %v1588
    %v1590 = vrot.slane %v1589, 2
    %v1591 = vadd.f32 %v1589, %v1590
    %v1592 = vrot.slane %v1591, 1
    %v1593 = vadd.f32 %v1591, %v1592
    %v1594 = vmul.f32 %v828, %v473
    %v1595 = vrot.slane %v1594, 4
    %v1596 = vadd.f32 %v1594, %v1595
    %v1597 = vrot.slane %v1596, 2
    %v1598 = vadd.f32 %v1596, %v1597
    %v1599 = vrot.slane %v1598, 1
    %v1600 = vadd.f32 %v1598, %v1599
    %v1601 = vmul.f32 %v828, %v598
    %v1602 = vrot.slane %v1601, 4
    %v1603 = vadd.f32 %v1601, %v1602
    %v1604 = vrot.slane %v1603, 2
    %v1605 = vadd.f32 %v1603, %v1604
    %v1606 = vrot.slane %v1605, 1
    %v1607 = vadd.f32 %v1605, %v1606
    %v1608 = vmul.f32 %v828, %v723
    %v1609 = vrot.slane %v1608, 4
    %v1610 = vadd.f32 %v1608, %v1609
    %v1611 = vrot.slane %v1610, 2
    %v1612 = vadd.f32 %v1610, %v1611
    %v1613 = vrot.slane %v1612, 1
    %v1614 = vadd.f32 %v1612, %v1613
    %v1615 = vmul.f32 %v828, %v848
    %v1616 = vrot.slane %v1615, 4
    %v1617 = vadd.f32 %v1615, %v1616
    %v1618 = vrot.slane %v1617, 2
    %v1619 = vadd.f32 %v1617, %v1618
    %v1620 = vrot.slane %v1619, 1
    %v1621 = vadd.f32 %v1619, %v1620
    %v1622 = vmul.f32 %v828, %v973
    %v1623 = vrot.slane %v1622, 4
    %v1624 = vadd.f32 %v1622, %v1623
    %v1625 = vrot.slane %v1624, 2
    %v1626 = vadd.f32 %v1624, %v1625
    %v1627 = vrot.slane %v1626, 1
    %v1628 = vadd.f32 %v1626, %v1627
    %v1629 = vmul.f32 %v828, %v1098
    %v1630 = vrot.slane %v1629, 4
    %v1631 = vadd.f32 %v1629, %v1630
    %v1632 = vrot.slane %v1631, 2
    %v1633 = vadd.f32 %v1631, %v1632
    %v1634 = vrot.slane %v1633, 1
    %v1635 = vadd.f32 %v1633, %v1634
    %v1636 = vsel %vm1194, %v1586, %v1593
    %v1637 = vsel %vm1196, %v1636, %v1600
    %v1638 = vsel %vm1198, %v1637, %v1607
    %v1639 = vsel %vm1200, %v1638, %v1614
    %v1640 = vsel %vm1202, %v1639, %v1621
    %v1641 = vsel %vm1204, %v1640, %v1628
    %v1642 = vsel %vm1206, %v1641, %v1635
    %v1643 = vadd.f32 %v1642, %v1137
    %v1644 = vrot.slane %v1643, 4
    %v1645 = vmax.f32 %v1643, %v1644
    %v1646 = vrot.slane %v1645, 2
    %v1647 = vmax.f32 %v1645, %v1646
    %v1648 = vrot.slane %v1647, 1
    %v1649 = vmax.f32 %v1647, %v1648
    %v1650 = vsub.f32 %v1643, %v1649
    %v1651 = vmul.f32 %v1650, 1.442695
    %v1652 = vpow.pop %v1651
    %v1653 = vrot.slane %v1652, 4
    %v1654 = vadd.f32 %v1652, %v1653
    %v1655 = vrot.slane %v1654, 2
    %v1656 = vadd.f32 %v1654, %v1655
    %v1657 = vrot.slane %v1656, 1
    %v1658 = vadd.f32 %v1656, %v1657
    %v1659 = vrcp.pop %v1658
    %v1660 = vmul.f32 %v1652, %v1659
    %v1661 = vlaneseq
    %v1662 = vshrl.u32 %v1661, 7
    %v1663 = vsub.s32 5, %v1662
    %v1664 = vrot.slane %v86, %v1663
    %v1665 = vmul.f32 %v1660, %v1664
    %v1666 = vadd.f32 %v1579, %v1665
    %v1667 = vmul.f32 %v953, %v223
    %v1668 = vrot.slane %v1667, 4
    %v1669 = vadd.f32 %v1667, %v1668
    %v1670 = vrot.slane %v1669, 2
    %v1671 = vadd.f32 %v1669, %v1670
    %v1672 = vrot.slane %v1671, 1
    %v1673 = vadd.f32 %v1671, %v1672
    %v1674 = vmul.f32 %v953, %v348
    %v1675 = vrot.slane %v1674, 4
    %v1676 = vadd.f32 %v1674, %v1675
    %v1677 = vrot.slane %v1676, 2
    %v1678 = vadd.f32 %v1676, %v1677
    %v1679 = vrot.slane %v1678, 1
    %v1680 = vadd.f32 %v1678, %v1679
    %v1681 = vmul.f32 %v953, %v473
    %v1682 = vrot.slane %v1681, 4
    %v1683 = vadd.f32 %v1681, %v1682
    %v1684 = vrot.slane %v1683, 2
    %v1685 = vadd.f32 %v1683, %v1684
    %v1686 = vrot.slane %v1685, 1
    %v1687 = vadd.f32 %v1685, %v1686
    %v1688 = vmul.f32 %v953, %v598
    %v1689 = vrot.slane %v1688, 4
    %v1690 = vadd.f32 %v1688, %v1689
    %v1691 = vrot.slane %v1690, 2
    %v1692 = vadd.f32 %v1690, %v1691
    %v1693 = vrot.slane %v1692, 1
    %v1694 = vadd.f32 %v1692, %v1693
    %v1695 = vmul.f32 %v953, %v723
    %v1696 = vrot.slane %v1695, 4
    %v1697 = vadd.f32 %v1695, %v1696
    %v1698 = vrot.slane %v1697, 2
    %v1699 = vadd.f32 %v1697, %v1698
    %v1700 = vrot.slane %v1699, 1
    %v1701 = vadd.f32 %v1699, %v1700
    %v1702 = vmul.f32 %v953, %v848
    %v1703 = vrot.slane %v1702, 4
    %v1704 = vadd.f32 %v1702, %v1703
    %v1705 = vrot.slane %v1704, 2
    %v1706 = vadd.f32 %v1704, %v1705
    %v1707 = vrot.slane %v1706, 1
    %v1708 = vadd.f32 %v1706, %v1707
    %v1709 = vmul.f32 %v953, %v973
    %v1710 = vrot.slane %v1709, 4
    %v1711 = vadd.f32 %v1709, %v1710
    %v1712 = vrot.slane %v1711, 2
    %v1713 = vadd.f32 %v1711, %v1712
    %v1714 = vrot.slane %v1713, 1
    %v1715 = vadd.f32 %v1713, %v1714
    %v1716 = vmul.f32 %v953, %v1098
    %v1717 = vrot.slane %v1716, 4
    %v1718 = vadd.f32 %v1716, %v1717
    %v1719 = vrot.slane %v1718, 2
    %v1720 = vadd.f32 %v1718, %v1719
    %v1721 = vrot.slane %v1720, 1
    %v1722 = vadd.f32 %v1720, %v1721
    %v1723 = vsel %vm1194, %v1673, %v1680
    %v1724 = vsel %vm1196, %v1723, %v1687
    %v1725 = vsel %vm1198, %v1724, %v1694
    %v1726 = vsel %vm1200, %v1725, %v1701
    %v1727 = vsel %vm1202, %v1726, %v1708
    %v1728 = vsel %vm1204, %v1727, %v1715
    %v1729 = vsel %vm1206, %v1728, %v1722
    %v1730 = vadd.f32 %v1729, %v1137
    %v1731 = vrot.slane %v1730, 4
    %v1732 = vmax.f32 %v1730, %v1731
    %v1733 = vrot.slane %v1732, 2
    %v1734 = vmax.f32 %v1732, %v1733
    %v1735 = vrot.slane %v1734, 1
    %v1736 = vmax.f32 %v1734, %v1735
    %v1737 = vsub.f32 %v1730, %v1736
    %v1738 = vmul.f32 %v1737, 1.442695
    %v1739 = vpow.pop %v1738
    %v1740 = vrot.slane %v1739, 4
    %v1741 = vadd.f32 %v1739, %v1740
    %v1742 = vrot.slane %v1741, 2
    %v1743 = vadd.f32 %v1741, %v1742
    %v1744 = vrot.slane %v1743, 1
    %v1745 = vadd.f32 %v1743, %v1744
    %v1746 = vrcp.pop %v1745
    %v1747 = vmul.f32 %v1739, %v1746
    %v1748 = vlaneseq
    %v1749 = vshrl.u32 %v1748, 7
    %v1750 = vsub.s32 6, %v1749
    %v1751 = vrot.slane %v86, %v1750
    %v1752 = vmul.f32 %v1747, %v1751
    %v1753 = vadd.f32 %v1666, %v1752
    %v1754 = vmul.f32 %v1078, %v223
    %v1755 = vrot.slane %v1754, 4
    %v1756 = vadd.f32 %v1754, %v1755
    %v1757 = vrot.slane %v1756, 2
    %v1758 = vadd.f32 %v1756, %v1757
    %v1759 = vrot.slane %v1758, 1
    %v1760 = vadd.f32 %v1758, %v1759
    %v1761 = vmul.f32 %v1078, %v348
    %v1762 = vrot.slane %v1761, 4
    %v1763 = vadd.f32 %v1761, %v1762
    %v1764 = vrot.slane %v1763, 2
    %v1765 = vadd.f32 %v1763, %v1764
    %v1766 = vrot.slane %v1765, 1
    %v1767 = vadd.f32 %v1765, %v1766
    %v1768 = vmul.f32 %v1078, %v473
    %v1769 = vrot.slane %v1768, 4
    %v1770 = vadd.f32 %v1768, %v1769
    %v1771 = vrot.slane %v1770, 2
    %v1772 = vadd.f32 %v1770, %v1771
    %v1773 = vrot.slane %v1772, 1
    %v1774 = vadd.f32 %v1772, %v1773
    %v1775 = vmul.f32 %v1078, %v598
    %v1776 = vrot.slane %v1775, 4
    %v1777 = vadd.f32 %v1775, %v1776
    %v1778 = vrot.slane %v1777, 2
    %v1779 = vadd.f32 %v1777, %v1778
    %v1780 = vrot.slane %v1779, 1
    %v1781 = vadd.f32 %v1779, %v1780
    %v1782 = vmul.f32 %v1078, %v723
    %v1783 = vrot.slane %v1782, 4
    %v1784 = vadd.f32 %v1782, %v1783
    %v1785 = vrot.slane %v1784, 2
    %v1786 = vadd.f32 %v1784, %v1785
    %v1787 = vrot.slane %v1786, 1
    %v1788 = vadd.f32 %v1786, %v1787
    %v1789 = vmul.f32 %v1078, %v848
    %v1790 = vrot.slane %v1789, 4
    %v1791 = vadd.f32 %v1789, %v1790
    %v1792 = vrot.slane %v1791, 2
    %v1793 = vadd.f32 %v1791, %v1792
    %v1794 = vrot.slane %v1793, 1
    %v1795 = vadd.f32 %v1793, %v1794
    %v1796 = vmul.f32 %v1078, %v973
    %v1797 = vrot.slane %v1796, 4
    %v1798 = vadd.f32 %v1796, %v1797
    %v1799 = vrot.slane %v1798, 2
    %v1800 = vadd.f32 %v1798, %v1799
    %v1801 = vrot.slane %v1800, 1
    %v1802 = vadd.f32 %v1800, %v1801
    %v1803 = vmul.f32 %v1078, %v1098
    %v1804 = vrot.slane %v1803, 4
    %v1805 = vadd.f32 %v1803, %v1804
    %v1806 = vrot.slane %v1805, 2
    %v1807 = vadd.f32 %v1805, %v1806
    %v1808 = vrot.slane %v1807, 1
    %v1809 = vadd.f32 %v1807, %v1808
    %v1810 = vsel %vm1194, %v1760, %v1767
    %v1811 = vsel %vm1196, %v1810, %v1774
    %v1812 = vsel %vm1198, %v1811, %v1781
    %v1813 = vsel %vm1200, %v1812, %v1788
    %v1814 = vsel %vm1202, %v1813, %v1795
    %v1815 = vsel %vm1204, %v1814, %v1802
    %v1816 = vsel %vm1206, %v1815, %v1809
    %v1817 = vadd.f32 %v1816, %v1137
    %v1818 = vrot.slane %v1817, 4
    %v1819 = vmax.f32 %v1817, %v1818
    %v1820 = vrot.slane %v1819, 2
    %v1821 = vmax.f32 %v1819, %v1820
    %v1822 = vrot.slane %v1821, 1
    %v1823 = vmax.f32 %v1821, %v1822
    %v1824 = vsub.f32 %v1817, %v1823
    %v1825 = vmul.f32 %v1824, 1.442695
    %v1826 = vpow.pop %v1825
    %v1827 = vrot.slane %v1826, 4
    %v1828 = vadd.f32 %v1826, %v1827
    %v1829 = vrot.slane %v1828, 2
    %v1830 = vadd.f32 %v1828, %v1829
    %v1831 = vrot.slane %v1830, 1
    %v1832 = vadd.f32 %v1830, %v1831
    %v1833 = vrcp.pop %v1832
    %v1834 = vmul.f32 %v1826, %v1833
    %v1835 = vlaneseq
    %v1836 = vshrl.u32 %v1835, 7
    %v1837 = vsub.s32 7, %v1836
    %v1838 = vrot.slane %v86, %v1837
    %v1839 = vmul.f32 %v1834, %v1838
    %v1840 = vadd.f32 %v1753, %v1839
    %v1841 = vlaneseq
    %v1842 = vshrl.u32 %v1841, 7
    %v1843 = vsub.s32 0, %v1842
    %v1844 = vrot.slane %v1840, %v1843
    %v1845 = vmul.f32 %v1844, %v243
    %v1846 = vlaneseq
    %v1847 = vshrl.u32 %v1846, 7
    %v1848 = vsub.s32 1, %v1847
    %v1849 = vrot.slane %v1840, %v1848
    %v1850 = vmul.f32 %v1849, %v368
    %v1851 = vadd.f32 %v1845, %v1850
    %v1852 = vlaneseq
    %v1853 = vshrl.u32 %v1852, 7
    %v1854 = vsub.s32 2, %v1853
    %v1855 = vrot.slane %v1840, %v1854
    %v1856 = vmul.f32 %v1855, %v493
    %v1857 = vadd.f32 %v1851, %v1856
    %v1858 = vlaneseq
    %v1859 = vshrl.u32 %v1858, 7
    %v1860 = vsub.s32 3, %v1859
    %v1861 = vrot.slane %v1840, %v1860
    %v1862 = vmul.f32 %v1861, %v618
    %v1863 = vadd.f32 %v1857, %v1862
    %v1864 = vlaneseq
    %v1865 = vshrl.u32 %v1864, 7
    %v1866 = vsub.s32 4, %v1865
    %v1867 = vrot.slane %v1840, %v1866
    %v1868 = vmul.f32 %v1867, %v743
    %v1869 = vadd.f32 %v1863, %v1868
    %v1870 = vlaneseq
    %v1871 = vshrl.u32 %v1870, 7
    %v1872 = vsub.s32 5, %v1871
    %v1873 = vrot.slane %v1840, %v1872
    %v1874 = vmul.f32 %v1873, %v868
    %v1875 = vadd.f32 %v1869, %v1874
    %v1876 = vlaneseq
    %v1877 = vshrl.u32 %v1876, 7
    %v1878 = vsub.s32 6, %v1877
    %v1879 = vrot.slane %v1840, %v1878
    %v1880 = vmul.f32 %v1879, %v993
    %v1881 = vadd.f32 %v1875, %v1880
    %v1882 = vlaneseq
    %v1883 = vshrl.u32 %v1882, 7
    %v1884 = vsub.s32 7, %v1883
    %v1885 = vrot.slane %v1840, %v1884
    %v1886 = vmul.f32 %v1885, %v1118
    %v1887 = vadd.f32 %v1881, %v1886
    %v1888 = vmul.f32 %v208, %v228
    %v1889 = vrot.slane %v1888, 4
    %v1890 = vadd.f32 %v1888, %v1889
    %v1891 = vrot.slane %v1890, 2
    %v1892 = vadd.f32 %v1890, %v1891
    %v1893 = vrot.slane %v1892, 1
    %v1894 = vadd.f32 %v1892, %v1893
    %v1895 = vmul.f32 %v208, %v353
    %v1896 = vrot.slane %v1895, 4
    %v1897 = vadd.f32 %v1895, %v1896
    %v1898 = vrot.slane %v1897, 2
    %v1899 = vadd.f32 %v1897, %v1898
    %v1900 = vrot.slane %v1899, 1
    %v1901 = vadd.f32 %v1899, %v1900
    %v1902 = vmul.f32 %v208, %v478
    %v1903 = vrot.slane %v1902, 4
    %v1904 = vadd.f32 %v1902, %v1903
    %v1905 = vrot.slane %v1904, 2
    %v1906 = vadd.f32 %v1904, %v1905
    %v1907 = vrot.slane %v1906, 1
    %v1908 = vadd.f32 %v1906, %v1907
    %v1909 = vmul.f32 %v208, %v603
    %v1910 = vrot.slane %v1909, 4
    %v1911 = vadd.f32 %v1909, %v1910
    %v1912 = vrot.slane %v1911, 2
    %v1913 = vadd.f32 %v1911, %v1912
    %v1914 = vrot.slane %v1913, 1
    %v1915 = vadd.f32 %v1913, %v1914
    %v1916 = vmul.f32 %v208, %v728
    %v1917 = vrot.slane %v1916, 4
    %v1918 = vadd.f32 %v1916, %v1917
    %v1919 = vrot.slane %v1918, 2
    %v1920 = vadd.f32 %v1918, %v1919
    %v1921 = vrot.slane %v1920, 1
    %v1922 = vadd.f32 %v1920, %v1921
    %v1923 = vmul.f32 %v208, %v853
    %v1924 = vrot.slane %v1923, 4
    %v1925 = vadd.f32 %v1923, %v1924
    %v1926 = vrot.slane %v1925, 2
    %v1927 = vadd.f32 %v1925, %v1926
    %v1928 = vrot.slane %v1927, 1
    %v1929 = vadd.f32 %v1927, %v1928
    %v1930 = vmul.f32 %v208, %v978
    %v1931 = vrot.slane %v1930, 4
    %v1932 = vadd.f32 %v1930, %v1931
    %v1933 = vrot.slane %v1932, 2
    %v1934 = vadd.f32 %v1932, %v1933
    %v1935 = vrot.slane %v1934, 1
    %v1936 = vadd.f32 %v1934, %v1935
    %v1937 = vmul.f32 %v208, %v1103
    %v1938 = vrot.slane %v1937, 4
    %v1939 = vadd.f32 %v1937, %v1938
    %v1940 = vrot.slane %v1939, 2
    %v1941 = vadd.f32 %v1939, %v1940
    %v1942 = vrot.slane %v1941, 1
    %v1943 = vadd.f32 %v1941, %v1942
    %v1944 = vsel %vm1194, %v1894, %v1901
    %v1945 = vsel %vm1196, %v1944, %v1908
    %v1946 = vsel %vm1198, %v1945, %v1915
    %v1947 = vsel %vm1200, %v1946, %v1922
    %v1948 = vsel %vm1202, %v1947, %v1929
    %v1949 = vsel %vm1204, %v1948, %v1936
    %v1950 = vsel %vm1206, %v1949, %v1943
    %v1951 = vadd.f32 %v1950, %v1137
    %v1952 = vrot.slane %v1951, 4
    %v1953 = vmax.f32 %v1951, %v1952
    %v1954 = vrot.slane %v1953, 2
    %v1955 = vmax.f32 %v1953, %v1954
    %v1956 = vrot.slane %v1955, 1
    %v1957 = vmax.f32 %v1955, %v1956
    %v1958 = vsub.f32 %v1951, %v1957
    %v1959 = vmul.f32 %v1958, 1.442695
    %v1960 = vpow.pop %v1959
    %v1961 = vrot.slane %v1960, 4
    %v1962 = vadd.f32 %v1960, %v1961
    %v1963 = vrot.slane %v1962, 2
    %v1964 = vadd.f32 %v1962, %v1963
    %v1965 = vrot.slane %v1964, 1
    %v1966 = vadd.f32 %v1964, %v1965
    %v1967 = vrcp.pop %v1966
    %v1968 = vmul.f32 %v1960, %v1967
    %v1969 = vmul.f32 %v1968, %v1229
    %v1970 = vadd.f32 %v1969, 0.0
    %v1971 = vmul.f32 %v333, %v228
    %v1972 = vrot.slane %v1971, 4
    %v1973 = vadd.f32 %v1971, %v1972
    %v1974 = vrot.slane %v1973, 2
    %v1975 = vadd.f32 %v1973, %v1974
    %v1976 = vrot.slane %v1975, 1
    %v1977 = vadd.f32 %v1975, %v1976
    %v1978 = vmul.f32 %v333, %v353
    %v1979 = vrot.slane %v1978, 4
    %v1980 = vadd.f32 %v1978, %v1979
    %v1981 = vrot.slane %v1980, 2
    %v1982 = vadd.f32 %v1980, %v1981
    %v1983 = vrot.slane %v1982, 1
    %v1984 = vadd.f32 %v1982, %v1983
    %v1985 = vmul.f32 %v333, %v478
    %v1986 = vrot.slane %v1985, 4
    %v1987 = vadd.f32 %v1985, %v1986
    %v1988 = vrot.slane %v1987, 2
    %v1989 = vadd.f32 %v1987, %v1988
    %v1990 = vrot.slane %v1989, 1
    %v1991 = vadd.f32 %v1989, %v1990
    %v1992 = vmul.f32 %v333, %v603
    %v1993 = vrot.slane %v1992, 4
    %v1994 = vadd.f32 %v1992, %v1993
    %v1995 = vrot.slane %v1994, 2
    %v1996 = vadd.f32 %v1994, %v1995
    %v1997 = vrot.slane %v1996, 1
    %v1998 = vadd.f32 %v1996, %v1997
    %v1999 = vmul.f32 %v333, %v728
    %v2000 = vrot.slane %v1999, 4
    %v2001 = vadd.f32 %v1999, %v2000
    %v2002 = vrot.slane %v2001, 2
    %v2003 = vadd.f32 %v2001, %v2002
    %v2004 = vrot.slane %v2003, 1
    %v2005 = vadd.f32 %v2003, %v2004
    %v2006 = vmul.f32 %v333, %v853
    %v2007 = vrot.slane %v2006, 4
    %v2008 = vadd.f32 %v2006, %v2007
    %v2009 = vrot.slane %v2008, 2
    %v2010 = vadd.f32 %v2008, %v2009
    %v2011 = vrot.slane %v2010, 1
    %v2012 = vadd.f32 %v2010, %v2011
    %v2013 = vmul.f32 %v333, %v978
    %v2014 = vrot.slane %v2013, 4
    %v2015 = vadd.f32 %v2013, %v2014
    %v2016 = vrot.slane %v2015, 2
    %v2017 = vadd.f32 %v2015, %v2016
    %v2018 = vrot.slane %v2017, 1
    %v2019 = vadd.f32 %v2017, %v2018
    %v2020 = vmul.f32 %v333, %v1103
    %v2021 = vrot.slane %v2020, 4
    %v2022 = vadd.f32 %v2020, %v2021
    %v2023 = vrot.slane %v2022, 2
    %v2024 = vadd.f32 %v2022, %v2023
    %v2025 = vrot.slane %v2024, 1
    %v2026 = vadd.f32 %v2024, %v2025
    %v2027 = vsel %vm1194, %v1977, %v1984
    %v2028 = vsel %vm1196, %v2027, %v1991
    %v2029 = vsel %vm1198, %v2028, %v1998
    %v2030 = vsel %vm1200, %v2029, %v2005
    %v2031 = vsel %vm1202, %v2030, %v2012
    %v2032 = vsel %vm1204, %v2031, %v2019
    %v2033 = vsel %vm1206, %v2032, %v2026
    %v2034 = vadd.f32 %v2033, %v1137
    %v2035 = vrot.slane %v2034, 4
    %v2036 = vmax.f32 %v2034, %v2035
    %v2037 = vrot.slane %v2036, 2
    %v2038 = vmax.f32 %v2036, %v2037
    %v2039 = vrot.slane %v2038, 1
    %v2040 = vmax.f32 %v2038, %v2039
    %v2041 = vsub.f32 %v2034, %v2040
    %v2042 = vmul.f32 %v2041, 1.442695
    %v2043 = vpow.pop %v2042
    %v2044 = vrot.slane %v2043, 4
    %v2045 = vadd.f32 %v2043, %v2044
    %v2046 = vrot.slane %v2045, 2
    %v2047 = vadd.f32 %v2045, %v2046
    %v2048 = vrot.slane %v2047, 1
    %v2049 = vadd.f32 %v2047, %v2048
    %v2050 = vrcp.pop %v2049
    %v2051 = vmul.f32 %v2043, %v2050
    %v2052 = vmul.f32 %v2051, %v1316
    %v2053 = vadd.f32 %v1970, %v2052
    %v2054 = vmul.f32 %v458, %v228
    %v2055 = vrot.slane %v2054, 4
    %v2056 = vadd.f32 %v2054, %v2055
    %v2057 = vrot.slane %v2056, 2
    %v2058 = vadd.f32 %v2056, %v2057
    %v2059 = vrot.slane %v2058, 1
    %v2060 = vadd.f32 %v2058, %v2059
    %v2061 = vmul.f32 %v458, %v353
    %v2062 = vrot.slane %v2061, 4
    %v2063 = vadd.f32 %v2061, %v2062
    %v2064 = vrot.slane %v2063, 2
    %v2065 = vadd.f32 %v2063, %v2064
    %v2066 = vrot.slane %v2065, 1
    %v2067 = vadd.f32 %v2065, %v2066
    %v2068 = vmul.f32 %v458, %v478
    %v2069 = vrot.slane %v2068, 4
    %v2070 = vadd.f32 %v2068, %v2069
    %v2071 = vrot.slane %v2070, 2
    %v2072 = vadd.f32 %v2070, %v2071
    %v2073 = vrot.slane %v2072, 1
    %v2074 = vadd.f32 %v2072, %v2073
    %v2075 = vmul.f32 %v458, %v603
    %v2076 = vrot.slane %v2075, 4
    %v2077 = vadd.f32 %v2075, %v2076
    %v2078 = vrot.slane %v2077, 2
    %v2079 = vadd.f32 %v2077, %v2078
    %v2080 = vrot.slane %v2079, 1
    %v2081 = vadd.f32 %v2079, %v2080
    %v2082 = vmul.f32 %v458, %v728
    %v2083 = vrot.slane %v2082, 4
    %v2084 = vadd.f32 %v2082, %v2083
    %v2085 = vrot.slane %v2084, 2
    %v2086 = vadd.f32 %v2084, %v2085
    %v2087 = vrot.slane %v2086, 1
    %v2088 = vadd.f32 %v2086, %v2087
    %v2089 = vmul.f32 %v458, %v853
    %v2090 = vrot.slane %v2089, 4
    %v2091 = vadd.f32 %v2089, %v2090
    %v2092 = vrot.slane %v2091, 2
    %v2093 = vadd.f32 %v2091, %v2092
    %v2094 = vrot.slane %v2093, 1
    %v2095 = vadd.f32 %v2093, %v2094
    %v2096 = vmul.f32 %v458, %v978
    %v2097 = vrot.slane %v2096, 4
    %v2098 = vadd.f32 %v2096, %v2097
    %v2099 = vrot.slane %v2098, 2
    %v2100 = vadd.f32 %v2098, %v2099
    %v2101 = vrot.slane %v2100, 1
    %v2102 = vadd.f32 %v2100, %v2101
    %v2103 = vmul.f32 %v458, %v1103
    %v2104 = vrot.slane %v2103, 4
    %v2105 = vadd.f32 %v2103, %v2104
    %v2106 = vrot.slane %v2105, 2
    %v2107 = vadd.f32 %v2105, %v2106
    %v2108 = vrot.slane %v2107, 1
    %v2109 = vadd.f32 %v2107, %v2108
    %v2110 = vsel %vm1194, %v2060, %v2067
    %v2111 = vsel %vm1196, %v2110, %v2074
    %v2112 = vsel %vm1198, %v2111, %v2081
    %v2113 = vsel %vm1200, %v2112, %v2088
    %v2114 = vsel %vm1202, %v2113, %v2095
    %v2115 = vsel %vm1204, %v2114, %v2102
    %v2116 = vsel %vm1206, %v2115, %v2109
    %v2117 = vadd.f32 %v2116, %v1137
    %v2118 = vrot.slane %v2117, 4
    %v2119 = vmax.f32 %v2117, %v2118
    %v2120 = vrot.slane %v2119, 2
    %v2121 = vmax.f32 %v2119, %v2120
    %v2122 = vrot.slane %v2121, 1
    %v2123 = vmax.f32 %v2121, %v2122
    %v2124 = vsub.f32 %v2117, %v2123
    %v2125 = vmul.f32 %v2124, 1.442695
    %v2126 = vpow.pop %v2125
    %v2127 = vrot.slane %v2126, 4
    %v2128 = vadd.f32 %v2126, %v2127
    %v2129 = vrot.slane %v2128, 2
    %v2130 = vadd.f32 %v2128, %v2129
    %v2131 = vrot.slane %v2130, 1
    %v2132 = vadd.f32 %v2130, %v2131
    %v2133 = vrcp.pop %v2132
    %v2134 = vmul.f32 %v2126, %v2133
    %v2135 = vmul.f32 %v2134, %v1403
    %v2136 = vadd.f32 %v2053, %v2135
    %v2137 = vmul.f32 %v583, %v228
    %v2138 = vrot.slane %v2137, 4
    %v2139 = vadd.f32 %v2137, %v2138
    %v2140 = vrot.slane %v2139, 2
    %v2141 = vadd.f32 %v2139, %v2140
    %v2142 = vrot.slane %v2141, 1
    %v2143 = vadd.f32 %v2141, %v2142
    %v2144 = vmul.f32 %v583, %v353
    %v2145 = vrot.slane %v2144, 4
    %v2146 = vadd.f32 %v2144, %v2145
    %v2147 = vrot.slane %v2146, 2
    %v2148 = vadd.f32 %v2146, %v2147
    %v2149 = vrot.slane %v2148, 1
    %v2150 = vadd.f32 %v2148, %v2149
    %v2151 = vmul.f32 %v583, %v478
    %v2152 = vrot.slane %v2151, 4
    %v2153 = vadd.f32 %v2151, %v2152
    %v2154 = vrot.slane %v2153, 2
    %v2155 = vadd.f32 %v2153, %v2154
    %v2156 = vrot.slane %v2155, 1
    %v2157 = vadd.f32 %v2155, %v2156
    %v2158 = vmul.f32 %v583, %v603
    %v2159 = vrot.slane %v2158, 4
    %v2160 = vadd.f32 %v2158, %v2159
    %v2161 = vrot.slane %v2160, 2
    %v2162 = vadd.f32 %v2160, %v2161
    %v2163 = vrot.slane %v2162, 1
    %v2164 = vadd.f32 %v2162, %v2163
    %v2165 = vmul.f32 %v583, %v728
    %v2166 = vrot.slane %v2165, 4
    %v2167 = vadd.f32 %v2165, %v2166
    %v2168 = vrot.slane %v2167, 2
    %v2169 = vadd.f32 %v2167, %v2168
    %v2170 = vrot.slane %v2169, 1
    %v2171 = vadd.f32 %v2169, %v2170
    %v2172 = vmul.f32 %v583, %v853
    %v2173 = vrot.slane %v2172, 4
    %v2174 = vadd.f32 %v2172, %v2173
    %v2175 = vrot.slane %v2174, 2
    %v2176 = vadd.f32 %v2174, %v2175
    %v2177 = vrot.slane %v2176, 1
    %v2178 = vadd.f32 %v2176, %v2177
    %v2179 = vmul.f32 %v583, %v978
    %v2180 = vrot.slane %v2179, 4
    %v2181 = vadd.f32 %v2179, %v2180
    %v2182 = vrot.slane %v2181, 2
    %v2183 = vadd.f32 %v2181, %v2182
    %v2184 = vrot.slane %v2183, 1
    %v2185 = vadd.f32 %v2183, %v2184
    %v2186 = vmul.f32 %v583, %v1103
    %v2187 = vrot.slane %v2186, 4
    %v2188 = vadd.f32 %v2186, %v2187
    %v2189 = vrot.slane %v2188, 2
    %v2190 = vadd.f32 %v2188, %v2189
    %v2191 = vrot.slane %v2190, 1
    %v2192 = vadd.f32 %v2190, %v2191
    %v2193 = vsel %vm1194, %v2143, %v2150
    %v2194 = vsel %vm1196, %v2193, %v2157
    %v2195 = vsel %vm1198, %v2194, %v2164
    %v2196 = vsel %vm1200, %v2195, %v2171
    %v2197 = vsel %vm1202, %v2196, %v2178
    %v2198 = vsel %vm1204, %v2197, %v2185
    %v2199 = vsel %vm1206, %v2198, %v2192
    %v2200 = vadd.f32 %v2199, %v1137
    %v2201 = vrot.slane %v2200, 4
    %v2202 = vmax.f32 %v2200, %v2201
    %v2203 = vrot.slane %v2202, 2
    %v2204 = vmax.f32 %v2202, %v2203
    %v2205 = vrot.slane %v2204, 1
    %v2206 = vmax.f32 %v2204, %v2205
    %v2207 = vsub.f32 %v2200, %v2206
    %v2208 = vmul.f32 %v2207, 1.442695
    %v2209 = vpow.pop %v2208
    %v2210 = vrot.slane %v2209, 4
    %v2211 = vadd.f32 %v2209, %v2210
    %v2212 = vrot.slane %v2211, 2
    %v2213 = vadd.f32 %v2211, %v2212
    %v2214 = vrot.slane %v2213, 1
    %v2215 = vadd.f32 %v2213, %v2214
    %v2216 = vrcp.pop %v2215
    %v2217 = vmul.f32 %v2209, %v2216
    %v2218 = vmul.f32 %v2217, %v1490
    %v2219 = vadd.f32 %v2136, %v2218
    %v2220 = vmul.f32 %v708, %v228
    %v2221 = vrot.slane %v2220, 4
    %v2222 = vadd.f32 %v2220, %v2221
    %v2223 = vrot.slane %v2222, 2
    %v2224 = vadd.f32 %v2222, %v2223
    %v2225 = vrot.slane %v2224, 1
    %v2226 = vadd.f32 %v2224, %v2225
    %v2227 = vmul.f32 %v708, %v353
    %v2228 = vrot.slane %v2227, 4
    %v2229 = vadd.f32 %v2227, %v2228
    %v2230 = vrot.slane %v2229, 2
    %v2231 = vadd.f32 %v2229, %v2230
    %v2232 = vrot.slane %v2231, 1
    %v2233 = vadd.f32 %v2231, %v2232
    %v2234 = vmul.f32 %v708, %v478
    %v2235 = vrot.slane %v2234, 4
    %v2236 = vadd.f32 %v2234, %v2235
    %v2237 = vrot.slane %v2236, 2
    %v2238 = vadd.f32 %v2236, %v2237
    %v2239 = vrot.slane %v2238, 1
    %v2240 = vadd.f32 %v2238, %v2239
    %v2241 = vmul.f32 %v708, %v603
    %v2242 = vrot.slane %v2241, 4
    %v2243 = vadd.f32 %v2241, %v2242
    %v2244 = vrot.slane %v2243, 2
    %v2245 = vadd.f32 %v2243, %v2244
    %v2246 = vrot.slane %v2245, 1
    %v2247 = vadd.f32 %v2245, %v2246
    %v2248 = vmul.f32 %v708, %v728
    %v2249 = vrot.slane %v2248, 4
    %v2250 = vadd.f32 %v2248, %v2249
    %v2251 = vrot.slane %v2250, 2
    %v2252 = vadd.f32 %v2250, %v2251
    %v2253 = vrot.slane %v2252, 1
    %v2254 = vadd.f32 %v2252, %v2253
    %v2255 = vmul.f32 %v708, %v853
    %v2256 = vrot.slane %v2255, 4
    %v2257 = vadd.f32 %v2255, %v2256
    %v2258 = vrot.slane %v2257, 2
    %v2259 = vadd.f32 %v2257, %v2258
    %v2260 = vrot.slane %v2259, 1
    %v2261 = vadd.f32 %v2259, %v2260
    %v2262 = vmul.f32 %v708, %v978
    %v2263 = vrot.slane %v2262, 4
    %v2264 = vadd.f32 %v2262, %v2263
    %v2265 = vrot.slane %v2264, 2
    %v2266 = vadd.f32 %v2264, %v2265
    %v2267 = vrot.slane %v2266, 1
    %v2268 = vadd.f32 %v2266, %v2267
    %v2269 = vmul.f32 %v708, %v1103
    %v2270 = vrot.slane %v2269, 4
    %v2271 = vadd.f32 %v2269, %v2270
    %v2272 = vrot.slane %v2271, 2
    %v2273 = vadd.f32 %v2271, %v2272
    %v2274 = vrot.slane %v2273, 1
    %v2275 = vadd.f32 %v2273, %v2274
    %v2276 = vsel %vm1194, %v2226, %v2233
    %v2277 = vsel %vm1196, %v2276, %v2240
    %v2278 = vsel %vm1198, %v2277, %v2247
    %v2279 = vsel %vm1200, %v2278, %v2254
    %v2280 = vsel %vm1202, %v2279, %v2261
    %v2281 = vsel %vm1204, %v2280, %v2268
    %v2282 = vsel %vm1206, %v2281, %v2275
    %v2283 = vadd.f32 %v2282, %v1137
    %v2284 = vrot.slane %v2283, 4
    %v2285 = vmax.f32 %v2283, %v2284
    %v2286 = vrot.slane %v2285, 2
    %v2287 = vmax.f32 %v2285, %v2286
    %v2288 = vrot.slane %v2287, 1
    %v2289 = vmax.f32 %v2287, %v2288
    %v2290 = vsub.f32 %v2283, %v2289
    %v2291 = vmul.f32 %v2290, 1.442695
    %v2292 = vpow.pop %v2291
    %v2293 = vrot.slane %v2292, 4
    %v2294 = vadd.f32 %v2292, %v2293
    %v2295 = vrot.slane %v2294, 2
    %v2296 = vadd.f32 %v2294, %v2295
    %v2297 = vrot.slane %v2296, 1
    %v2298 = vadd.f32 %v2296, %v2297
    %v2299 = vrcp.pop %v2298
    %v2300 = vmul.f32 %v2292, %v2299
    %v2301 = vmul.f32 %v2300, %v1577
    %v2302 = vadd.f32 %v2219, %v2301
    %v2303 = vmul.f32 %v833, %v228
    %v2304 = vrot.slane %v2303, 4
    %v2305 = vadd.f32 %v2303, %v2304
    %v2306 = vrot.slane %v2305, 2
    %v2307 = vadd.f32 %v2305, %v2306
    %v2308 = vrot.slane %v2307, 1
    %v2309 = vadd.f32 %v2307, %v2308
    %v2310 = vmul.f32 %v833, %v353
    %v2311 = vrot.slane %v2310, 4
    %v2312 = vadd.f32 %v2310, %v2311
    %v2313 = vrot.slane %v2312, 2
    %v2314 = vadd.f32 %v2312, %v2313
    %v2315 = vrot.slane %v2314, 1
    %v2316 = vadd.f32 %v2314, %v2315
    %v2317 = vmul.f32 %v833, %v478
    %v2318 = vrot.slane %v2317, 4
    %v2319 = vadd.f32 %v2317, %v2318
    %v2320 = vrot.slane %v2319, 2
    %v2321 = vadd.f32 %v2319, %v2320
    %v2322 = vrot.slane %v2321, 1
    %v2323 = vadd.f32 %v2321, %v2322
    %v2324 = vmul.f32 %v833, %v603
    %v2325 = vrot.slane %v2324, 4
    %v2326 = vadd.f32 %v2324, %v2325
    %v2327 = vrot.slane %v2326, 2
    %v2328 = vadd.f32 %v2326, %v2327
    %v2329 = vrot.slane %v2328, 1
    %v2330 = vadd.f32 %v2328, %v2329
    %v2331 = vmul.f32 %v833, %v728
    %v2332 = vrot.slane %v2331, 4
    %v2333 = vadd.f32 %v2331, %v2332
    %v2334 = vrot.slane %v2333, 2
    %v2335 = vadd.f32 %v2333, %v2334
    %v2336 = vrot.slane %v2335, 1
    %v2337 = vadd.f32 %v2335, %v2336
    %v2338 = vmul.f32 %v833, %v853
    %v2339 = vrot.slane %v2338, 4
    %v2340 = vadd.f32 %v2338, %v2339
    %v2341 = vrot.slane %v2340, 2
    %v2342 = vadd.f32 %v2340, %v2341
    %v2343 = vrot.slane %v2342, 1
    %v2344 = vadd.f32 %v2342, %v2343
    %v2345 = vmul.f32 %v833, %v978
    %v2346 = vrot.slane %v2345, 4
    %v2347 = vadd.f32 %v2345, %v2346
    %v2348 = vrot.slane %v2347, 2
    %v2349 = vadd.f32 %v2347, %v2348
    %v2350 = vrot.slane %v2349, 1
    %v2351 = vadd.f32 %v2349, %v2350
    %v2352 = vmul.f32 %v833, %v1103
    %v2353 = vrot.slane %v2352, 4
    %v2354 = vadd.f32 %v2352, %v2353
    %v2355 = vrot.slane %v2354, 2
    %v2356 = vadd.f32 %v2354, %v2355
    %v2357 = vrot.slane %v2356, 1
    %v2358 = vadd.f32 %v2356, %v2357
    %v2359 = vsel %vm1194, %v2309, %v2316
    %v2360 = vsel %vm1196, %v2359, %v2323
    %v2361 = vsel %vm1198, %v2360, %v2330
    %v2362 = vsel %vm1200, %v2361, %v2337
    %v2363 = vsel %vm1202, %v2362, %v2344
    %v2364 = vsel %vm1204, %v2363, %v2351
    %v2365 = vsel %vm1206, %v2364, %v2358
    %v2366 = vadd.f32 %v2365, %v1137
    %v2367 = vrot.slane %v2366, 4
    %v2368 = vmax.f32 %v2366, %v2367
    %v2369 = vrot.slane %v2368, 2
    %v2370 = vmax.f32 %v2368, %v2369
    %v2371 = vrot.slane %v2370, 1
    %v2372 = vmax.f32 %v2370, %v2371
    %v2373 = vsub.f32 %v2366, %v2372
    %v2374 = vmul.f32 %v2373, 1.442695
    %v2375 = vpow.pop %v2374
    %v2376 = vrot.slane %v2375, 4
    %v2377 = vadd.f32 %v2375, %v2376
    %v2378 = vrot.slane %v2377, 2
    %v2379 = vadd.f32 %v2377, %v2378
    %v2380 = vrot.slane %v2379, 1
    %v2381 = vadd.f32 %v2379, %v2380
    %v2382 = vrcp.pop %v2381
    %v2383 = vmul.f32 %v2375, %v2382
    %v2384 = vmul.f32 %v2383, %v1664
    %v2385 = vadd.f32 %v2302, %v2384
    %v2386 = vmul.f32 %v958, %v228
    %v2387 = vrot.slane %v2386, 4
    %v2388 = vadd.f32 %v2386, %v2387
    %v2389 = vrot.slane %v2388, 2
    %v2390 = vadd.f32 %v2388, %v2389
    %v2391 = vrot.slane %v2390, 1
    %v2392 = vadd.f32 %v2390, %v2391
    %v2393 = vmul.f32 %v958, %v353
    %v2394 = vrot.slane %v2393, 4
    %v2395 = vadd.f32 %v2393, %v2394
    %v2396 = vrot.slane %v2395, 2
    %v2397 = vadd.f32 %v2395, %v2396
    %v2398 = vrot.slane %v2397, 1
    %v2399 = vadd.f32 %v2397, %v2398
    %v2400 = vmul.f32 %v958, %v478
    %v2401 = vrot.slane %v2400, 4
    %v2402 = vadd.f32 %v2400, %v2401
    %v2403 = vrot.slane %v2402, 2
    %v2404 = vadd.f32 %v2402, %v2403
    %v2405 = vrot.slane %v2404, 1
    %v2406 = vadd.f32 %v2404, %v2405
    %v2407 = vmul.f32 %v958, %v603
    %v2408 = vrot.slane %v2407, 4
    %v2409 = vadd.f32 %v2407, %v2408
    %v2410 = vrot.slane %v2409, 2
    %v2411 = vadd.f32 %v2409, %v2410
    %v2412 = vrot.slane %v2411, 1
    %v2413 = vadd.f32 %v2411, %v2412
    %v2414 = vmul.f32 %v958, %v728
    %v2415 = vrot.slane %v2414, 4
    %v2416 = vadd.f32 %v2414, %v2415
    %v2417 = vrot.slane %v2416, 2
    %v2418 = vadd.f32 %v2416, %v2417
    %v2419 = vrot.slane %v2418, 1
    %v2420 = vadd.f32 %v2418, %v2419
    %v2421 = vmul.f32 %v958, %v853
    %v2422 = vrot.slane %v2421, 4
    %v2423 = vadd.f32 %v2421, %v2422
    %v2424 = vrot.slane %v2423, 2
    %v2425 = vadd.f32 %v2423, %v2424
    %v2426 = vrot.slane %v2425, 1
    %v2427 = vadd.f32 %v2425, %v2426
    %v2428 = vmul.f32 %v958, %v978
    %v2429 = vrot.slane %v2428, 4
    %v2430 = vadd.f32 %v2428, %v2429
    %v2431 = vrot.slane %v2430, 2
    %v2432 = vadd.f32 %v2430, %v2431
    %v2433 = vrot.slane %v2432, 1
    %v2434 = vadd.f32 %v2432, %v2433
    %v2435 = vmul.f32 %v958, %v1103
    %v2436 = vrot.slane %v2435, 4
    %v2437 = vadd.f32 %v2435, %v2436
    %v2438 = vrot.slane %v2437, 2
    %v2439 = vadd.f32 %v2437, %v2438
    %v2440 = vrot.slane %v2439, 1
    %v2441 = vadd.f32 %v2439, %v2440
    %v2442 = vsel %vm1194, %v2392, %v2399
    %v2443 = vsel %vm1196, %v2442, %v2406
    %v2444 = vsel %vm1198, %v2443, %v2413
    %v2445 = vsel %vm1200, %v2444, %v2420
    %v2446 = vsel %vm1202, %v2445, %v2427
    %v2447 = vsel %vm1204, %v2446, %v2434
    %v2448 = vsel %vm1206, %v2447, %v2441
    %v2449 = vadd.f32 %v2448, %v1137
    %v2450 = vrot.slane %v2449, 4
    %v2451 = vmax.f32 %v2449, %v2450
    %v2452 = vrot.slane %v2451, 2
    %v2453 = vmax.f32 %v2451, %v2452
    %v2454 = vrot.slane %v2453, 1
    %v2455 = vmax.f32 %v2453, %v2454
    %v2456 = vsub.f32 %v2449, %v2455
    %v2457 = vmul.f32 %v2456, 1.442695
    %v2458 = vpow.pop %v2457
    %v2459 = vrot.slane %v2458, 4
    %v2460 = vadd.f32 %v2458, %v2459
    %v2461 = vrot.slane %v2460, 2
    %v2462 = vadd.f32 %v2460, %v2461
    %v2463 = vrot.slane %v2462, 1
    %v2464 = vadd.f32 %v2462, %v2463
    %v2465 = vrcp.pop %v2464
    %v2466 = vmul.f32 %v2458, %v2465
    %v2467 = vmul.f32 %v2466, %v1751
    %v2468 = vadd.f32 %v2385, %v2467
    %v2469 = vmul.f32 %v1083, %v228
    %v2470 = vrot.slane %v2469, 4
    %v2471 = vadd.f32 %v2469, %v2470
    %v2472 = vrot.slane %v2471, 2
    %v2473 = vadd.f32 %v2471, %v2472
    %v2474 = vrot.slane %v2473, 1
    %v2475 = vadd.f32 %v2473, %v2474
    %v2476 = vmul.f32 %v1083, %v353
    %v2477 = vrot.slane %v2476, 4
    %v2478 = vadd.f32 %v2476, %v2477
    %v2479 = vrot.slane %v2478, 2
    %v2480 = vadd.f32 %v2478, %v2479
    %v2481 = vrot.slane %v2480, 1
    %v2482 = vadd.f32 %v2480, %v2481
    %v2483 = vmul.f32 %v1083, %v478
    %v2484 = vrot.slane %v2483, 4
    %v2485 = vadd.f32 %v2483, %v2484
    %v2486 = vrot.slane %v2485, 2
    %v2487 = vadd.f32 %v2485, %v2486
    %v2488 = vrot.slane %v2487, 1
    %v2489 = vadd.f32 %v2487, %v2488
    %v2490 = vmul.f32 %v1083, %v603
    %v2491 = vrot.slane %v2490, 4
    %v2492 = vadd.f32 %v2490, %v2491
    %v2493 = vrot.slane %v2492, 2
    %v2494 = vadd.f32 %v2492, %v2493
    %v2495 = vrot.slane %v2494, 1
    %v2496 = vadd.f32 %v2494, %v2495
    %v2497 = vmul.f32 %v1083, %v728
    %v2498 = vrot.slane %v2497, 4
    %v2499 = vadd.f32 %v2497, %v2498
    %v2500 = vrot.slane %v2499, 2
    %v2501 = vadd.f32 %v2499, %v2500
    %v2502 = vrot.slane %v2501, 1
    %v2503 = vadd.f32 %v2501, %v2502
    %v2504 = vmul.f32 %v1083, %v853
    %v2505 = vrot.slane %v2504, 4
    %v2506 = vadd.f32 %v2504, %v2505
    %v2507 = vrot.slane %v2506, 2
    %v2508 = vadd.f32 %v2506, %v2507
    %v2509 = vrot.slane %v2508, 1
    %v2510 = vadd.f32 %v2508, %v2509
    %v2511 = vmul.f32 %v1083, %v978
    %v2512 = vrot.slane %v2511, 4
    %v2513 = vadd.f32 %v2511, %v2512
    %v2514 = vrot.slane %v2513, 2
    %v2515 = vadd.f32 %v2513, %v2514
    %v2516 = vrot.slane %v2515, 1
    %v2517 = vadd.f32 %v2515, %v2516
    %v2518 = vmul.f32 %v1083, %v1103
    %v2519 = vrot.slane %v2518, 4
    %v2520 = vadd.f32 %v2518, %v2519
    %v2521 = vrot.slane %v2520, 2
    %v2522 = vadd.f32 %v2520, %v2521
    %v2523 = vrot.slane %v2522, 1
    %v2524 = vadd.f32 %v2522, %v2523
    %v2525 = vsel %vm1194, %v2475, %v2482
    %v2526 = vsel %vm1196, %v2525, %v2489
    %v2527 = vsel %vm1198, %v2526, %v2496
    %v2528 = vsel %vm1200, %v2527, %v2503
    %v2529 = vsel %vm1202, %v2528, %v2510
    %v2530 = vsel %vm1204, %v2529, %v2517
    %v2531 = vsel %vm1206, %v2530, %v2524
    %v2532 = vadd.f32 %v2531, %v1137
    %v2533 = vrot.slane %v2532, 4
    %v2534 = vmax.f32 %v2532, %v2533
    %v2535 = vrot.slane %v2534, 2
    %v2536 = vmax.f32 %v2534, %v2535
    %v2537 = vrot.slane %v2536, 1
    %v2538 = vmax.f32 %v2536, %v2537
    %v2539 = vsub.f32 %v2532, %v2538
    %v2540 = vmul.f32 %v2539, 1.442695
    %v2541 = vpow.pop %v2540
    %v2542 = vrot.slane %v2541, 4
    %v2543 = vadd.f32 %v2541, %v2542
    %v2544 = vrot.slane %v2543, 2
    %v2545 = vadd.f32 %v2543, %v2544
    %v2546 = vrot.slane %v2545, 1
    %v2547 = vadd.f32 %v2545, %v2546
    %v2548 = vrcp.pop %v2547
    %v2549 = vmul.f32 %v2541, %v2548
    %v2550 = vmul.f32 %v2549, %v1838
    %v2551 = vadd.f32 %v2468, %v2550
    %v2552 = vlaneseq
    %v2553 = vshrl.u32 %v2552, 7
    %v2554 = vsub.s32 0, %v2553
    %v2555 = vrot.slane %v2551, %v2554
    %v2556 = vmul.f32 %v2555, %v248
    %v2557 = vlaneseq
    %v2558 = vshrl.u32 %v2557, 7
    %v2559 = vsub.s32 1, %v2558
    %v2560 = vrot.slane %v2551, %v2559
    %v2561 = vmul.f32 %v2560, %v373
    %v2562 = vadd.f32 %v2556, %v2561
    %v2563 = vlaneseq
    %v2564 = vshrl.u32 %v2563, 7
    %v2565 = vsub.s32 2, %v2564
    %v2566 = vrot.slane %v2551, %v2565
    %v2567 = vmul.f32 %v2566, %v498
    %v2568 = vadd.f32 %v2562, %v2567
    %v2569 = vlaneseq
    %v2570 = vshrl.u32 %v2569, 7
    %v2571 = vsub.s32 3, %v2570
    %v2572 = vrot.slane %v2551, %v2571
    %v2573 = vmul.f32 %v2572, %v623
    %v2574 = vadd.f32 %v2568, %v2573
    %v2575 = vlaneseq
    %v2576 = vshrl.u32 %v2575, 7
    %v2577 = vsub.s32 4, %v2576
    %v2578 = vrot.slane %v2551, %v2577
    %v2579 = vmul.f32 %v2578, %v748
    %v2580 = vadd.f32 %v2574, %v2579
    %v2581 = vlaneseq
    %v2582 = vshrl.u32 %v2581, 7
    %v2583 = vsub.s32 5, %v2582
    %v2584 = vrot.slane %v2551, %v2583
    %v2585 = vmul.f32 %v2584, %v873
    %v2586 = vadd.f32 %v2580, %v2585
    %v2587 = vlaneseq
    %v2588 = vshrl.u32 %v2587, 7
    %v2589 = vsub.s32 6, %v2588
    %v2590 = vrot.slane %v2551, %v2589
    %v2591 = vmul.f32 %v2590, %v998
    %v2592 = vadd.f32 %v2586, %v2591
    %v2593 = vlaneseq
    %v2594 = vshrl.u32 %v2593, 7
    %v2595 = vsub.s32 7, %v2594
    %v2596 = vrot.slane %v2551, %v2595
    %v2597 = vmul.f32 %v2596, %v1123
    %v2598 = vadd.f32 %v2592, %v2597
    %v2599 = vmul.f32 %v213, %v233
    %v2600 = vrot.slane %v2599, 4
    %v2601 = vadd.f32 %v2599, %v2600
    %v2602 = vrot.slane %v2601, 2
    %v2603 = vadd.f32 %v2601, %v2602
    %v2604 = vrot.slane %v2603, 1
    %v2605 = vadd.f32 %v2603, %v2604
    %v2606 = vmul.f32 %v213, %v358
    %v2607 = vrot.slane %v2606, 4
    %v2608 = vadd.f32 %v2606, %v2607
    %v2609 = vrot.slane %v2608, 2
    %v2610 = vadd.f32 %v2608, %v2609
    %v2611 = vrot.slane %v2610, 1
    %v2612 = vadd.f32 %v2610, %v2611
    %v2613 = vmul.f32 %v213, %v483
    %v2614 = vrot.slane %v2613, 4
    %v2615 = vadd.f32 %v2613, %v2614
    %v2616 = vrot.slane %v2615, 2
    %v2617 = vadd.f32 %v2615, %v2616
    %v2618 = vrot.slane %v2617, 1
    %v2619 = vadd.f32 %v2617, %v2618
    %v2620 = vmul.f32 %v213, %v608
    %v2621 = vrot.slane %v2620, 4
    %v2622 = vadd.f32 %v2620, %v2621
    %v2623 = vrot.slane %v2622, 2
    %v2624 = vadd.f32 %v2622, %v2623
    %v2625 = vrot.slane %v2624, 1
    %v2626 = vadd.f32 %v2624, %v2625
    %v2627 = vmul.f32 %v213, %v733
    %v2628 = vrot.slane %v2627, 4
    %v2629 = vadd.f32 %v2627, %v2628
    %v2630 = vrot.slane %v2629, 2
    %v2631 = vadd.f32 %v2629, %v2630
    %v2632 = vrot.slane %v2631, 1
    %v2633 = vadd.f32 %v2631, %v2632
    %v2634 = vmul.f32 %v213, %v858
    %v2635 = vrot.slane %v2634, 4
    %v2636 = vadd.f32 %v2634, %v2635
    %v2637 = vrot.slane %v2636, 2
    %v2638 = vadd.f32 %v2636, %v2637
    %v2639 = vrot.slane %v2638, 1
    %v2640 = vadd.f32 %v2638, %v2639
    %v2641 = vmul.f32 %v213, %v983
    %v2642 = vrot.slane %v2641, 4
    %v2643 = vadd.f32 %v2641, %v2642
    %v2644 = vrot.slane %v2643, 2
    %v2645 = vadd.f32 %v2643, %v2644
    %v2646 = vrot.slane %v2645, 1
    %v2647 = vadd.f32 %v2645, %v2646
    %v2648 = vmul.f32 %v213, %v1108
    %v2649 = vrot.slane %v2648, 4
    %v2650 = vadd.f32 %v2648, %v2649
    %v2651 = vrot.slane %v2650, 2
    %v2652 = vadd.f32 %v2650, %v2651
    %v2653 = vrot.slane %v2652, 1
    %v2654 = vadd.f32 %v2652, %v2653
    %v2655 = vsel %vm1194, %v2605, %v2612
    %v2656 = vsel %vm1196, %v2655, %v2619
    %v2657 = vsel %vm1198, %v2656, %v2626
    %v2658 = vsel %vm1200, %v2657, %v2633
    %v2659 = vsel %vm1202, %v2658, %v2640
    %v2660 = vsel %vm1204, %v2659, %v2647
    %v2661 = vsel %vm1206, %v2660, %v2654
    %v2662 = vadd.f32 %v2661, %v1137
    %v2663 = vrot.slane %v2662, 4
    %v2664 = vmax.f32 %v2662, %v2663
    %v2665 = vrot.slane %v2664, 2
    %v2666 = vmax.f32 %v2664, %v2665
    %v2667 = vrot.slane %v2666, 1
    %v2668 = vmax.f32 %v2666, %v2667
    %v2669 = vsub.f32 %v2662, %v2668
    %v2670 = vmul.f32 %v2669, 1.442695
    %v2671 = vpow.pop %v2670
    %v2672 = vrot.slane %v2671, 4
    %v2673 = vadd.f32 %v2671, %v2672
    %v2674 = vrot.slane %v2673, 2
    %v2675 = vadd.f32 %v2673, %v2674
    %v2676 = vrot.slane %v2675, 1
    %v2677 = vadd.f32 %v2675, %v2676
    %v2678 = vrcp.pop %v2677
    %v2679 = vmul.f32 %v2671, %v2678
    %v2680 = vmul.f32 %v2679, %v1229
    %v2681 = vadd.f32 %v2680, 0.0
    %v2682 = vmul.f32 %v338, %v233
    %v2683 = vrot.slane %v2682, 4
    %v2684 = vadd.f32 %v2682, %v2683
    %v2685 = vrot.slane %v2684, 2
    %v2686 = vadd.f32 %v2684, %v2685
    %v2687 = vrot.slane %v2686, 1
    %v2688 = vadd.f32 %v2686, %v2687
    %v2689 = vmul.f32 %v338, %v358
    %v2690 = vrot.slane %v2689, 4
    %v2691 = vadd.f32 %v2689, %v2690
    %v2692 = vrot.slane %v2691, 2
    %v2693 = vadd.f32 %v2691, %v2692
    %v2694 = vrot.slane %v2693, 1
    %v2695 = vadd.f32 %v2693, %v2694
    %v2696 = vmul.f32 %v338, %v483
    %v2697 = vrot.slane %v2696, 4
    %v2698 = vadd.f32 %v2696, %v2697
    %v2699 = vrot.slane %v2698, 2
    %v2700 = vadd.f32 %v2698, %v2699
    %v2701 = vrot.slane %v2700, 1
    %v2702 = vadd.f32 %v2700, %v2701
    %v2703 = vmul.f32 %v338, %v608
    %v2704 = vrot.slane %v2703, 4
    %v2705 = vadd.f32 %v2703, %v2704
    %v2706 = vrot.slane %v2705, 2
    %v2707 = vadd.f32 %v2705, %v2706
    %v2708 = vrot.slane %v2707, 1
    %v2709 = vadd.f32 %v2707, %v2708
    %v2710 = vmul.f32 %v338, %v733
    %v2711 = vrot.slane %v2710, 4
    %v2712 = vadd.f32 %v2710, %v2711
    %v2713 = vrot.slane %v2712, 2
    %v2714 = vadd.f32 %v2712, %v2713
    %v2715 = vrot.slane %v2714, 1
    %v2716 = vadd.f32 %v2714, %v2715
    %v2717 = vmul.f32 %v338, %v858
    %v2718 = vrot.slane %v2717, 4
    %v2719 = vadd.f32 %v2717, %v2718
    %v2720 = vrot.slane %v2719, 2
    %v2721 = vadd.f32 %v2719, %v2720
    %v2722 = vrot.slane %v2721, 1
    %v2723 = vadd.f32 %v2721, %v2722
    %v2724 = vmul.f32 %v338, %v983
    %v2725 = vrot.slane %v2724, 4
    %v2726 = vadd.f32 %v2724, %v2725
    %v2727 = vrot.slane %v2726, 2
    %v2728 = vadd.f32 %v2726, %v2727
    %v2729 = vrot.slane %v2728, 1
    %v2730 = vadd.f32 %v2728, %v2729
    %v2731 = vmul.f32 %v338, %v1108
    %v2732 = vrot.slane %v2731, 4
    %v2733 = vadd.f32 %v2731, %v2732
    %v2734 = vrot.slane %v2733, 2
    %v2735 = vadd.f32 %v2733, %v2734
    %v2736 = vrot.slane %v2735, 1
    %v2737 = vadd.f32 %v2735, %v2736
    %v2738 = vsel %vm1194, %v2688, %v2695
    %v2739 = vsel %vm1196, %v2738, %v2702
    %v2740 = vsel %vm1198, %v2739, %v2709
    %v2741 = vsel %vm1200, %v2740, %v2716
    %v2742 = vsel %vm1202, %v2741, %v2723
    %v2743 = vsel %vm1204, %v2742, %v2730
    %v2744 = vsel %vm1206, %v2743, %v2737
    %v2745 = vadd.f32 %v2744, %v1137
    %v2746 = vrot.slane %v2745, 4
    %v2747 = vmax.f32 %v2745, %v2746
    %v2748 = vrot.slane %v2747, 2
    %v2749 = vmax.f32 %v2747, %v2748
    %v2750 = vrot.slane %v2749, 1
    %v2751 = vmax.f32 %v2749, %v2750
    %v2752 = vsub.f32 %v2745, %v2751
    %v2753 = vmul.f32 %v2752, 1.442695
    %v2754 = vpow.pop %v2753
    %v2755 = vrot.slane %v2754, 4
    %v2756 = vadd.f32 %v2754, %v2755
    %v2757 = vrot.slane %v2756, 2
    %v2758 = vadd.f32 %v2756, %v2757
    %v2759 = vrot.slane %v2758, 1
    %v2760 = vadd.f32 %v2758, %v2759
    %v2761 = vrcp.pop %v2760
    %v2762 = vmul.f32 %v2754, %v2761
    %v2763 = vmul.f32 %v2762, %v1316
    %v2764 = vadd.f32 %v2681, %v2763
    %v2765 = vmul.f32 %v463, %v233
    %v2766 = vrot.slane %v2765, 4
    %v2767 = vadd.f32 %v2765, %v2766
    %v2768 = vrot.slane %v2767, 2
    %v2769 = vadd.f32 %v2767, %v2768
    %v2770 = vrot.slane %v2769, 1
    %v2771 = vadd.f32 %v2769, %v2770
    %v2772 = vmul.f32 %v463, %v358
    %v2773 = vrot.slane %v2772, 4
    %v2774 = vadd.f32 %v2772, %v2773
    %v2775 = vrot.slane %v2774, 2
    %v2776 = vadd.f32 %v2774, %v2775
    %v2777 = vrot.slane %v2776, 1
    %v2778 = vadd.f32 %v2776, %v2777
    %v2779 = vmul.f32 %v463, %v483
    %v2780 = vrot.slane %v2779, 4
    %v2781 = vadd.f32 %v2779, %v2780
    %v2782 = vrot.slane %v2781, 2
    %v2783 = vadd.f32 %v2781, %v2782
    %v2784 = vrot.slane %v2783, 1
    %v2785 = vadd.f32 %v2783, %v2784
    %v2786 = vmul.f32 %v463, %v608
    %v2787 = vrot.slane %v2786, 4
    %v2788 = vadd.f32 %v2786, %v2787
    %v2789 = vrot.slane %v2788, 2
    %v2790 = vadd.f32 %v2788, %v2789
    %v2791 = vrot.slane %v2790, 1
    %v2792 = vadd.f32 %v2790, %v2791
    %v2793 = vmul.f32 %v463, %v733
    %v2794 = vrot.slane %v2793, 4
    %v2795 = vadd.f32 %v2793, %v2794
    %v2796 = vrot.slane %v2795, 2
    %v2797 = vadd.f32 %v2795, %v2796
    %v2798 = vrot.slane %v2797, 1
    %v2799 = vadd.f32 %v2797, %v2798
    %v2800 = vmul.f32 %v463, %v858
    %v2801 = vrot.slane %v2800, 4
    %v2802 = vadd.f32 %v2800, %v2801
    %v2803 = vrot.slane %v2802, 2
    %v2804 = vadd.f32 %v2802, %v2803
    %v2805 = vrot.slane %v2804, 1
    %v2806 = vadd.f32 %v2804, %v2805
    %v2807 = vmul.f32 %v463, %v983
    %v2808 = vrot.slane %v2807, 4
    %v2809 = vadd.f32 %v2807, %v2808
    %v2810 = vrot.slane %v2809, 2
    %v2811 = vadd.f32 %v2809, %v2810
    %v2812 = vrot.slane %v2811, 1
    %v2813 = vadd.f32 %v2811, %v2812
    %v2814 = vmul.f32 %v463, %v1108
    %v2815 = vrot.slane %v2814, 4
    %v2816 = vadd.f32 %v2814, %v2815
    %v2817 = vrot.slane %v2816, 2
    %v2818 = vadd.f32 %v2816, %v2817
    %v2819 = vrot.slane %v2818, 1
    %v2820 = vadd.f32 %v2818, %v2819
    %v2821 = vsel %vm1194, %v2771, %v2778
    %v2822 = vsel %vm1196, %v2821, %v2785
    %v2823 = vsel %vm1198, %v2822, %v2792
    %v2824 = vsel %vm1200, %v2823, %v2799
    %v2825 = vsel %vm1202, %v2824, %v2806
    %v2826 = vsel %vm1204, %v2825, %v2813
    %v2827 = vsel %vm1206, %v2826, %v2820
    %v2828 = vadd.f32 %v2827, %v1137
    %v2829 = vrot.slane %v2828, 4
    %v2830 = vmax.f32 %v2828, %v2829
    %v2831 = vrot.slane %v2830, 2
    %v2832 = vmax.f32 %v2830, %v2831
    %v2833 = vrot.slane %v2832, 1
    %v2834 = vmax.f32 %v2832, %v2833
    %v2835 = vsub.f32 %v2828, %v2834
    %v2836 = vmul.f32 %v2835, 1.442695
    %v2837 = vpow.pop %v2836
    %v2838 = vrot.slane %v2837, 4
    %v2839 = vadd.f32 %v2837, %v2838
    %v2840 = vrot.slane %v2839, 2
    %v2841 = vadd.f32 %v2839, %v2840
    %v2842 = vrot.slane %v2841, 1
    %v2843 = vadd.f32 %v2841, %v2842
    %v2844 = vrcp.pop %v2843
    %v2845 = vmul.f32 %v2837, %v2844
    %v2846 = vmul.f32 %v2845, %v1403
    %v2847 = vadd.f32 %v2764, %v2846
    %v2848 = vmul.f32 %v588, %v233
    %v2849 = vrot.slane %v2848, 4
    %v2850 = vadd.f32 %v2848, %v2849
    %v2851 = vrot.slane %v2850, 2
    %v2852 = vadd.f32 %v2850, %v2851
    %v2853 = vrot.slane %v2852, 1
    %v2854 = vadd.f32 %v2852, %v2853
    %v2855 = vmul.f32 %v588, %v358
    %v2856 = vrot.slane %v2855, 4
    %v2857 = vadd.f32 %v2855, %v2856
    %v2858 = vrot.slane %v2857, 2
    %v2859 = vadd.f32 %v2857, %v2858
    %v2860 = vrot.slane %v2859, 1
    %v2861 = vadd.f32 %v2859, %v2860
    %v2862 = vmul.f32 %v588, %v483
    %v2863 = vrot.slane %v2862, 4
    %v2864 = vadd.f32 %v2862, %v2863
    %v2865 = vrot.slane %v2864, 2
    %v2866 = vadd.f32 %v2864, %v2865
    %v2867 = vrot.slane %v2866, 1
    %v2868 = vadd.f32 %v2866, %v2867
    %v2869 = vmul.f32 %v588, %v608
    %v2870 = vrot.slane %v2869, 4
    %v2871 = vadd.f32 %v2869, %v2870
    %v2872 = vrot.slane %v2871, 2
    %v2873 = vadd.f32 %v2871, %v2872
    %v2874 = vrot.slane %v2873, 1
    %v2875 = vadd.f32 %v2873, %v2874
    %v2876 = vmul.f32 %v588, %v733
    %v2877 = vrot.slane %v2876, 4
    %v2878 = vadd.f32 %v2876, %v2877
    %v2879 = vrot.slane %v2878, 2
    %v2880 = vadd.f32 %v2878, %v2879
    %v2881 = vrot.slane %v2880, 1
    %v2882 = vadd.f32 %v2880, %v2881
    %v2883 = vmul.f32 %v588, %v858
    %v2884 = vrot.slane %v2883, 4
    %v2885 = vadd.f32 %v2883, %v2884
    %v2886 = vrot.slane %v2885, 2
    %v2887 = vadd.f32 %v2885, %v2886
    %v2888 = vrot.slane %v2887, 1
    %v2889 = vadd.f32 %v2887, %v2888
    %v2890 = vmul.f32 %v588, %v983
    %v2891 = vrot.slane %v2890, 4
    %v2892 = vadd.f32 %v2890, %v2891
    %v2893 = vrot.slane %v2892, 2
    %v2894 = vadd.f32 %v2892, %v2893
    %v2895 = vrot.slane %v2894, 1
    %v2896 = vadd.f32 %v2894, %v2895
    %v2897 = vmul.f32 %v588, %v1108
    %v2898 = vrot.slane %v2897, 4
    %v2899 = vadd.f32 %v2897, %v2898
    %v2900 = vrot.slane %v2899, 2
    %v2901 = vadd.f32 %v2899, %v2900
    %v2902 = vrot.slane %v2901, 1
    %v2903 = vadd.f32 %v2901, %v2902
    %v2904 = vsel %vm1194, %v2854, %v2861
    %v2905 = vsel %vm1196, %v2904, %v2868
    %v2906 = vsel %vm1198, %v2905, %v2875
    %v2907 = vsel %vm1200, %v2906, %v2882
    %v2908 = vsel %vm1202, %v2907, %v2889
    %v2909 = vsel %vm1204, %v2908, %v2896
    %v2910 = vsel %vm1206, %v2909, %v2903
    %v2911 = vadd.f32 %v2910, %v1137
    %v2912 = vrot.slane %v2911, 4
    %v2913 = vmax.f32 %v2911, %v2912
    %v2914 = vrot.slane %v2913, 2
    %v2915 = vmax.f32 %v2913, %v2914
    %v2916 = vrot.slane %v2915, 1
    %v2917 = vmax.f32 %v2915, %v2916
    %v2918 = vsub.f32 %v2911, %v2917
    %v2919 = vmul.f32 %v2918, 1.442695
    %v2920 = vpow.pop %v2919
    %v2921 = vrot.slane %v2920, 4
    %v2922 = vadd.f32 %v2920, %v2921
    %v2923 = vrot.slane %v2922, 2
    %v2924 = vadd.f32 %v2922, %v2923
    %v2925 = vrot.slane %v2924, 1
    %v2926 = vadd.f32 %v2924, %v2925
    %v2927 = vrcp.pop %v2926
    %v2928 = vmul.f32 %v2920, %v2927
    %v2929 = vmul.f32 %v2928, %v1490
    %v2930 = vadd.f32 %v2847, %v2929
    %v2931 = vmul.f32 %v713, %v233
    %v2932 = vrot.slane %v2931, 4
    %v2933 = vadd.f32 %v2931, %v2932
    %v2934 = vrot.slane %v2933, 2
    %v2935 = vadd.f32 %v2933, %v2934
    %v2936 = vrot.slane %v2935, 1
    %v2937 = vadd.f32 %v2935, %v2936
    %v2938 = vmul.f32 %v713, %v358
    %v2939 = vrot.slane %v2938, 4
    %v2940 = vadd.f32 %v2938, %v2939
    %v2941 = vrot.slane %v2940, 2
    %v2942 = vadd.f32 %v2940, %v2941
    %v2943 = vrot.slane %v2942, 1
    %v2944 = vadd.f32 %v2942, %v2943
    %v2945 = vmul.f32 %v713, %v483
    %v2946 = vrot.slane %v2945, 4
    %v2947 = vadd.f32 %v2945, %v2946
    %v2948 = vrot.slane %v2947, 2
    %v2949 = vadd.f32 %v2947, %v2948
    %v2950 = vrot.slane %v2949, 1
    %v2951 = vadd.f32 %v2949, %v2950
    %v2952 = vmul.f32 %v713, %v608
    %v2953 = vrot.slane %v2952, 4
    %v2954 = vadd.f32 %v2952, %v2953
    %v2955 = vrot.slane %v2954, 2
    %v2956 = vadd.f32 %v2954, %v2955
    %v2957 = vrot.slane %v2956, 1
    %v2958 = vadd.f32 %v2956, %v2957
    %v2959 = vmul.f32 %v713, %v733
    %v2960 = vrot.slane %v2959, 4
    %v2961 = vadd.f32 %v2959, %v2960
    %v2962 = vrot.slane %v2961, 2
    %v2963 = vadd.f32 %v2961, %v2962
    %v2964 = vrot.slane %v2963, 1
    %v2965 = vadd.f32 %v2963, %v2964
    %v2966 = vmul.f32 %v713, %v858
    %v2967 = vrot.slane %v2966, 4
    %v2968 = vadd.f32 %v2966, %v2967
    %v2969 = vrot.slane %v2968, 2
    %v2970 = vadd.f32 %v2968, %v2969
    %v2971 = vrot.slane %v2970, 1
    %v2972 = vadd.f32 %v2970, %v2971
    %v2973 = vmul.f32 %v713, %v983
    %v2974 = vrot.slane %v2973, 4
    %v2975 = vadd.f32 %v2973, %v2974
    %v2976 = vrot.slane %v2975, 2
    %v2977 = vadd.f32 %v2975, %v2976
    %v2978 = vrot.slane %v2977, 1
    %v2979 = vadd.f32 %v2977, %v2978
    %v2980 = vmul.f32 %v713, %v1108
    %v2981 = vrot.slane %v2980, 4
    %v2982 = vadd.f32 %v2980, %v2981
    %v2983 = vrot.slane %v2982, 2
    %v2984 = vadd.f32 %v2982, %v2983
    %v2985 = vrot.slane %v2984, 1
    %v2986 = vadd.f32 %v2984, %v2985
    %v2987 = vsel %vm1194, %v2937, %v2944
    %v2988 = vsel %vm1196, %v2987, %v2951
    %v2989 = vsel %vm1198, %v2988, %v2958
    %v2990 = vsel %vm1200, %v2989, %v2965
    %v2991 = vsel %vm1202, %v2990, %v2972
    %v2992 = vsel %vm1204, %v2991, %v2979
    %v2993 = vsel %vm1206, %v2992, %v2986
    %v2994 = vadd.f32 %v2993, %v1137
    %v2995 = vrot.slane %v2994, 4
    %v2996 = vmax.f32 %v2994, %v2995
    %v2997 = vrot.slane %v2996, 2
    %v2998 = vmax.f32 %v2996, %v2997
    %v2999 = vrot.slane %v2998, 1
    %v3000 = vmax.f32 %v2998, %v2999
    %v3001 = vsub.f32 %v2994, %v3000
    %v3002 = vmul.f32 %v3001, 1.442695
    %v3003 = vpow.pop %v3002
    %v3004 = vrot.slane %v3003, 4
    %v3005 = vadd.f32 %v3003, %v3004
    %v3006 = vrot.slane %v3005, 2
    %v3007 = vadd.f32 %v3005, %v3006
    %v3008 = vrot.slane %v3007, 1
    %v3009 = vadd.f32 %v3007, %v3008
    %v3010 = vrcp.pop %v3009
    %v3011 = vmul.f32 %v3003, %v3010
    %v3012 = vmul.f32 %v3011, %v1577
    %v3013 = vadd.f32 %v2930, %v3012
    %v3014 = vmul.f32 %v838, %v233
    %v3015 = vrot.slane %v3014, 4
    %v3016 = vadd.f32 %v3014, %v3015
    %v3017 = vrot.slane %v3016, 2
    %v3018 = vadd.f32 %v3016, %v3017
    %v3019 = vrot.slane %v3018, 1
    %v3020 = vadd.f32 %v3018, %v3019
    %v3021 = vmul.f32 %v838, %v358
    %v3022 = vrot.slane %v3021, 4
    %v3023 = vadd.f32 %v3021, %v3022
    %v3024 = vrot.slane %v3023, 2
    %v3025 = vadd.f32 %v3023, %v3024
    %v3026 = vrot.slane %v3025, 1
    %v3027 = vadd.f32 %v3025, %v3026
    %v3028 = vmul.f32 %v838, %v483
    %v3029 = vrot.slane %v3028, 4
    %v3030 = vadd.f32 %v3028, %v3029
    %v3031 = vrot.slane %v3030, 2
    %v3032 = vadd.f32 %v3030, %v3031
    %v3033 = vrot.slane %v3032, 1
    %v3034 = vadd.f32 %v3032, %v3033
    %v3035 = vmul.f32 %v838, %v608
    %v3036 = vrot.slane %v3035, 4
    %v3037 = vadd.f32 %v3035, %v3036
    %v3038 = vrot.slane %v3037, 2
    %v3039 = vadd.f32 %v3037, %v3038
    %v3040 = vrot.slane %v3039, 1
    %v3041 = vadd.f32 %v3039, %v3040
    %v3042 = vmul.f32 %v838, %v733
    %v3043 = vrot.slane %v3042, 4
    %v3044 = vadd.f32 %v3042, %v3043
    %v3045 = vrot.slane %v3044, 2
    %v3046 = vadd.f32 %v3044, %v3045
    %v3047 = vrot.slane %v3046, 1
    %v3048 = vadd.f32 %v3046, %v3047
    %v3049 = vmul.f32 %v838, %v858
    %v3050 = vrot.slane %v3049, 4
    %v3051 = vadd.f32 %v3049, %v3050
    %v3052 = vrot.slane %v3051, 2
    %v3053 = vadd.f32 %v3051, %v3052
    %v3054 = vrot.slane %v3053, 1
    %v3055 = vadd.f32 %v3053, %v3054
    %v3056 = vmul.f32 %v838, %v983
    %v3057 = vrot.slane %v3056, 4
    %v3058 = vadd.f32 %v3056, %v3057
    %v3059 = vrot.slane %v3058, 2
    %v3060 = vadd.f32 %v3058, %v3059
    %v3061 = vrot.slane %v3060, 1
    %v3062 = vadd.f32 %v3060, %v3061
    %v3063 = vmul.f32 %v838, %v1108
    %v3064 = vrot.slane %v3063, 4
    %v3065 = vadd.f32 %v3063, %v3064
    %v3066 = vrot.slane %v3065, 2
    %v3067 = vadd.f32 %v3065, %v3066
    %v3068 = vrot.slane %v3067, 1
    %v3069 = vadd.f32 %v3067, %v3068
    %v3070 = vsel %vm1194, %v3020, %v3027
    %v3071 = vsel %vm1196, %v3070, %v3034
    %v3072 = vsel %vm1198, %v3071, %v3041
    %v3073 = vsel %vm1200, %v3072, %v3048
    %v3074 = vsel %vm1202, %v3073, %v3055
    %v3075 = vsel %vm1204, %v3074, %v3062
    %v3076 = vsel %vm1206, %v3075, %v3069
    %v3077 = vadd.f32 %v3076, %v1137
    %v3078 = vrot.slane %v3077, 4
    %v3079 = vmax.f32 %v3077, %v3078
    %v3080 = vrot.slane %v3079, 2
    %v3081 = vmax.f32 %v3079, %v3080
    %v3082 = vrot.slane %v3081, 1
    %v3083 = vmax.f32 %v3081, %v3082
    %v3084 = vsub.f32 %v3077, %v3083
    %v3085 = vmul.f32 %v3084, 1.442695
    %v3086 = vpow.pop %v3085
    %v3087 = vrot.slane %v3086, 4
    %v3088 = vadd.f32 %v3086, %v3087
    %v3089 = vrot.slane %v3088, 2
    %v3090 = vadd.f32 %v3088, %v3089
    %v3091 = vrot.slane %v3090, 1
    %v3092 = vadd.f32 %v3090, %v3091
    %v3093 = vrcp.pop %v3092
    %v3094 = vmul.f32 %v3086, %v3093
    %v3095 = vmul.f32 %v3094, %v1664
    %v3096 = vadd.f32 %v3013, %v3095
    %v3097 = vmul.f32 %v963, %v233
    %v3098 = vrot.slane %v3097, 4
    %v3099 = vadd.f32 %v3097, %v3098
    %v3100 = vrot.slane %v3099, 2
    %v3101 = vadd.f32 %v3099, %v3100
    %v3102 = vrot.slane %v3101, 1
    %v3103 = vadd.f32 %v3101, %v3102
    %v3104 = vmul.f32 %v963, %v358
    %v3105 = vrot.slane %v3104, 4
    %v3106 = vadd.f32 %v3104, %v3105
    %v3107 = vrot.slane %v3106, 2
    %v3108 = vadd.f32 %v3106, %v3107
    %v3109 = vrot.slane %v3108, 1
    %v3110 = vadd.f32 %v3108, %v3109
    %v3111 = vmul.f32 %v963, %v483
    %v3112 = vrot.slane %v3111, 4
    %v3113 = vadd.f32 %v3111, %v3112
    %v3114 = vrot.slane %v3113, 2
    %v3115 = vadd.f32 %v3113, %v3114
    %v3116 = vrot.slane %v3115, 1
    %v3117 = vadd.f32 %v3115, %v3116
    %v3118 = vmul.f32 %v963, %v608
    %v3119 = vrot.slane %v3118, 4
    %v3120 = vadd.f32 %v3118, %v3119
    %v3121 = vrot.slane %v3120, 2
    %v3122 = vadd.f32 %v3120, %v3121
    %v3123 = vrot.slane %v3122, 1
    %v3124 = vadd.f32 %v3122, %v3123
    %v3125 = vmul.f32 %v963, %v733
    %v3126 = vrot.slane %v3125, 4
    %v3127 = vadd.f32 %v3125, %v3126
    %v3128 = vrot.slane %v3127, 2
    %v3129 = vadd.f32 %v3127, %v3128
    %v3130 = vrot.slane %v3129, 1
    %v3131 = vadd.f32 %v3129, %v3130
    %v3132 = vmul.f32 %v963, %v858
    %v3133 = vrot.slane %v3132, 4
    %v3134 = vadd.f32 %v3132, %v3133
    %v3135 = vrot.slane %v3134, 2
    %v3136 = vadd.f32 %v3134, %v3135
    %v3137 = vrot.slane %v3136, 1
    %v3138 = vadd.f32 %v3136, %v3137
    %v3139 = vmul.f32 %v963, %v983
    %v3140 = vrot.slane %v3139, 4
    %v3141 = vadd.f32 %v3139, %v3140
    %v3142 = vrot.slane %v3141, 2
    %v3143 = vadd.f32 %v3141, %v3142
    %v3144 = vrot.slane %v3143, 1
    %v3145 = vadd.f32 %v3143, %v3144
    %v3146 = vmul.f32 %v963, %v1108
    %v3147 = vrot.slane %v3146, 4
    %v3148 = vadd.f32 %v3146, %v3147
    %v3149 = vrot.slane %v3148, 2
    %v3150 = vadd.f32 %v3148, %v3149
    %v3151 = vrot.slane %v3150, 1
    %v3152 = vadd.f32 %v3150, %v3151
    %v3153 = vsel %vm1194, %v3103, %v3110
    %v3154 = vsel %vm1196, %v3153, %v3117
    %v3155 = vsel %vm1198, %v3154, %v3124
    %v3156 = vsel %vm1200, %v3155, %v3131
    %v3157 = vsel %vm1202, %v3156, %v3138
    %v3158 = vsel %vm1204, %v3157, %v3145
    %v3159 = vsel %vm1206, %v3158, %v3152
    %v3160 = vadd.f32 %v3159, %v1137
    %v3161 = vrot.slane %v3160, 4
    %v3162 = vmax.f32 %v3160, %v3161
    %v3163 = vrot.slane %v3162, 2
    %v3164 = vmax.f32 %v3162, %v3163
    %v3165 = vrot.slane %v3164, 1
    %v3166 = vmax.f32 %v3164, %v3165
    %v3167 = vsub.f32 %v3160, %v3166
    %v3168 = vmul.f32 %v3167, 1.442695
    %v3169 = vpow.pop %v3168
    %v3170 = vrot.slane %v3169, 4
    %v3171 = vadd.f32 %v3169, %v3170
    %v3172 = vrot.slane %v3171, 2
    %v3173 = vadd.f32 %v3171, %v3172
    %v3174 = vrot.slane %v3173, 1
    %v3175 = vadd.f32 %v3173, %v3174
    %v3176 = vrcp.pop %v3175
    %v3177 = vmul.f32 %v3169, %v3176
    %v3178 = vmul.f32 %v3177, %v1751
    %v3179 = vadd.f32 %v3096, %v3178
    %v3180 = vmul.f32 %v1088, %v233
    %v3181 = vrot.slane %v3180, 4
    %v3182 = vadd.f32 %v3180, %v3181
    %v3183 = vrot.slane %v3182, 2
    %v3184 = vadd.f32 %v3182, %v3183
    %v3185 = vrot.slane %v3184, 1
    %v3186 = vadd.f32 %v3184, %v3185
    %v3187 = vmul.f32 %v1088, %v358
    %v3188 = vrot.slane %v3187, 4
    %v3189 = vadd.f32 %v3187, %v3188
    %v3190 = vrot.slane %v3189, 2
    %v3191 = vadd.f32 %v3189, %v3190
    %v3192 = vrot.slane %v3191, 1
    %v3193 = vadd.f32 %v3191, %v3192
    %v3194 = vmul.f32 %v1088, %v483
    %v3195 = vrot.slane %v3194, 4
    %v3196 = vadd.f32 %v3194, %v3195
    %v3197 = vrot.slane %v3196, 2
    %v3198 = vadd.f32 %v3196, %v3197
    %v3199 = vrot.slane %v3198, 1
    %v3200 = vadd.f32 %v3198, %v3199
    %v3201 = vmul.f32 %v1088, %v608
    %v3202 = vrot.slane %v3201, 4
    %v3203 = vadd.f32 %v3201, %v3202
    %v3204 = vrot.slane %v3203, 2
    %v3205 = vadd.f32 %v3203, %v3204
    %v3206 = vrot.slane %v3205, 1
    %v3207 = vadd.f32 %v3205, %v3206
    %v3208 = vmul.f32 %v1088, %v733
    %v3209 = vrot.slane %v3208, 4
    %v3210 = vadd.f32 %v3208, %v3209
    %v3211 = vrot.slane %v3210, 2
    %v3212 = vadd.f32 %v3210, %v3211
    %v3213 = vrot.slane %v3212, 1
    %v3214 = vadd.f32 %v3212, %v3213
    %v3215 = vmul.f32 %v1088, %v858
    %v3216 = vrot.slane %v3215, 4
    %v3217 = vadd.f32 %v3215, %v3216
    %v3218 = vrot.slane %v3217, 2
    %v3219 = vadd.f32 %v3217, %v3218
    %v3220 = vrot.slane %v3219, 1
    %v3221 = vadd.f32 %v3219, %v3220
    %v3222 = vmul.f32 %v1088, %v983
    %v3223 = vrot.slane %v3222, 4
    %v3224 = vadd.f32 %v3222, %v3223
    %v3225 = vrot.slane %v3224, 2
    %v3226 = vadd.f32 %v3224, %v3225
    %v3227 = vrot.slane %v3226, 1
    %v3228 = vadd.f32 %v3226, %v3227
    %v3229 = vmul.f32 %v1088, %v1108
    %v3230 = vrot.slane %v3229, 4
    %v3231 = vadd.f32 %v3229, %v3230
    %v3232 = vrot.slane %v3231, 2
    %v3233 = vadd.f32 %v3231, %v3232
    %v3234 = vrot.slane %v3233, 1
    %v3235 = vadd.f32 %v3233, %v3234
    %v3236 = vsel %vm1194, %v3186, %v3193
    %v3237 = vsel %vm1196, %v3236, %v3200
    %v3238 = vsel %vm1198, %v3237, %v3207
    %v3239 = vsel %vm1200, %v3238, %v3214
    %v3240 = vsel %vm1202, %v3239, %v3221
    %v3241 = vsel %vm1204, %v3240, %v3228
    %v3242 = vsel %vm1206, %v3241, %v3235
    %v3243 = vadd.f32 %v3242, %v1137
    %v3244 = vrot.slane %v3243, 4
    %v3245 = vmax.f32 %v3243, %v3244
    %v3246 = vrot.slane %v3245, 2
    %v3247 = vmax.f32 %v3245, %v3246
    %v3248 = vrot.slane %v3247, 1
    %v3249 = vmax.f32 %v3247, %v3248
    %v3250 = vsub.f32 %v3243, %v3249
    %v3251 = vmul.f32 %v3250, 1.442695
    %v3252 = vpow.pop %v3251
    %v3253 = vrot.slane %v3252, 4
    %v3254 = vadd.f32 %v3252, %v3253
    %v3255 = vrot.slane %v3254, 2
    %v3256 = vadd.f32 %v3254, %v3255
    %v3257 = vrot.slane %v3256, 1
    %v3258 = vadd.f32 %v3256, %v3257
    %v3259 = vrcp.pop %v3258
    %v3260 = vmul.f32 %v3252, %v3259
    %v3261 = vmul.f32 %v3260, %v1838
    %v3262 = vadd.f32 %v3179, %v3261
    %v3263 = vlaneseq
    %v3264 = vshrl.u32 %v3263, 7
    %v3265 = vsub.s32 0, %v3264
    %v3266 = vrot.slane %v3262, %v3265
    %v3267 = vmul.f32 %v3266, %v253
    %v3268 = vlaneseq
    %v3269 = vshrl.u32 %v3268, 7
    %v3270 = vsub.s32 1, %v3269
    %v3271 = vrot.slane %v3262, %v3270
    %v3272 = vmul.f32 %v3271, %v378
    %v3273 = vadd.f32 %v3267, %v3272
    %v3274 = vlaneseq
    %v3275 = vshrl.u32 %v3274, 7
    %v3276 = vsub.s32 2, %v3275
    %v3277 = vrot.slane %v3262, %v3276
    %v3278 = vmul.f32 %v3277, %v503
    %v3279 = vadd.f32 %v3273, %v3278
    %v3280 = vlaneseq
    %v3281 = vshrl.u32 %v3280, 7
    %v3282 = vsub.s32 3, %v3281
    %v3283 = vrot.slane %v3262, %v3282
    %v3284 = vmul.f32 %v3283, %v628
    %v3285 = vadd.f32 %v3279, %v3284
    %v3286 = vlaneseq
    %v3287 = vshrl.u32 %v3286, 7
    %v3288 = vsub.s32 4, %v3287
    %v3289 = vrot.slane %v3262, %v3288
    %v3290 = vmul.f32 %v3289, %v753
    %v3291 = vadd.f32 %v3285, %v3290
    %v3292 = vlaneseq
    %v3293 = vshrl.u32 %v3292, 7
    %v3294 = vsub.s32 5, %v3293
    %v3295 = vrot.slane %v3262, %v3294
    %v3296 = vmul.f32 %v3295, %v878
    %v3297 = vadd.f32 %v3291, %v3296
    %v3298 = vlaneseq
    %v3299 = vshrl.u32 %v3298, 7
    %v3300 = vsub.s32 6, %v3299
    %v3301 = vrot.slane %v3262, %v3300
    %v3302 = vmul.f32 %v3301, %v1003
    %v3303 = vadd.f32 %v3297, %v3302
    %v3304 = vlaneseq
    %v3305 = vshrl.u32 %v3304, 7
    %v3306 = vsub.s32 7, %v3305
    %v3307 = vrot.slane %v3262, %v3306
    %v3308 = vmul.f32 %v3307, %v1128
    %v3309 = vadd.f32 %v3303, %v3308
    %v3310 = vmul.f32 %v218, %v238
    %v3311 = vrot.slane %v3310, 4
    %v3312 = vadd.f32 %v3310, %v3311
    %v3313 = vrot.slane %v3312, 2
    %v3314 = vadd.f32 %v3312, %v3313
    %v3315 = vrot.slane %v3314, 1
    %v3316 = vadd.f32 %v3314, %v3315
    %v3317 = vmul.f32 %v218, %v363
    %v3318 = vrot.slane %v3317, 4
    %v3319 = vadd.f32 %v3317, %v3318
    %v3320 = vrot.slane %v3319, 2
    %v3321 = vadd.f32 %v3319, %v3320
    %v3322 = vrot.slane %v3321, 1
    %v3323 = vadd.f32 %v3321, %v3322
    %v3324 = vmul.f32 %v218, %v488
    %v3325 = vrot.slane %v3324, 4
    %v3326 = vadd.f32 %v3324, %v3325
    %v3327 = vrot.slane %v3326, 2
    %v3328 = vadd.f32 %v3326, %v3327
    %v3329 = vrot.slane %v3328, 1
    %v3330 = vadd.f32 %v3328, %v3329
    %v3331 = vmul.f32 %v218, %v613
    %v3332 = vrot.slane %v3331, 4
    %v3333 = vadd.f32 %v3331, %v3332
    %v3334 = vrot.slane %v3333, 2
    %v3335 = vadd.f32 %v3333, %v3334
    %v3336 = vrot.slane %v3335, 1
    %v3337 = vadd.f32 %v3335, %v3336
    %v3338 = vmul.f32 %v218, %v738
    %v3339 = vrot.slane %v3338, 4
    %v3340 = vadd.f32 %v3338, %v3339
    %v3341 = vrot.slane %v3340, 2
    %v3342 = vadd.f32 %v3340, %v3341
    %v3343 = vrot.slane %v3342, 1
    %v3344 = vadd.f32 %v3342, %v3343
    %v3345 = vmul.f32 %v218, %v863
    %v3346 = vrot.slane %v3345, 4
    %v3347 = vadd.f32 %v3345, %v3346
    %v3348 = vrot.slane %v3347, 2
    %v3349 = vadd.f32 %v3347, %v3348
    %v3350 = vrot.slane %v3349, 1
    %v3351 = vadd.f32 %v3349, %v3350
    %v3352 = vmul.f32 %v218, %v988
    %v3353 = vrot.slane %v3352, 4
    %v3354 = vadd.f32 %v3352, %v3353
    %v3355 = vrot.slane %v3354, 2
    %v3356 = vadd.f32 %v3354, %v3355
    %v3357 = vrot.slane %v3356, 1
    %v3358 = vadd.f32 %v3356, %v3357
    %v3359 = vmul.f32 %v218, %v1113
    %v3360 = vrot.slane %v3359, 4
    %v3361 = vadd.f32 %v3359, %v3360
    %v3362 = vrot.slane %v3361, 2
    %v3363 = vadd.f32 %v3361, %v3362
    %v3364 = vrot.slane %v3363, 1
    %v3365 = vadd.f32 %v3363, %v3364
    %v3366 = vsel %vm1194, %v3316, %v3323
    %v3367 = vsel %vm1196, %v3366, %v3330
    %v3368 = vsel %vm1198, %v3367, %v3337
    %v3369 = vsel %vm1200, %v3368, %v3344
    %v3370 = vsel %vm1202, %v3369, %v3351
    %v3371 = vsel %vm1204, %v3370, %v3358
    %v3372 = vsel %vm1206, %v3371, %v3365
    %v3373 = vadd.f32 %v3372, %v1137
    %v3374 = vrot.slane %v3373, 4
    %v3375 = vmax.f32 %v3373, %v3374
    %v3376 = vrot.slane %v3375, 2
    %v3377 = vmax.f32 %v3375, %v3376
    %v3378 = vrot.slane %v3377, 1
    %v3379 = vmax.f32 %v3377, %v3378
    %v3380 = vsub.f32 %v3373, %v3379
    %v3381 = vmul.f32 %v3380, 1.442695
    %v3382 = vpow.pop %v3381
    %v3383 = vrot.slane %v3382, 4
    %v3384 = vadd.f32 %v3382, %v3383
    %v3385 = vrot.slane %v3384, 2
    %v3386 = vadd.f32 %v3384, %v3385
    %v3387 = vrot.slane %v3386, 1
    %v3388 = vadd.f32 %v3386, %v3387
    %v3389 = vrcp.pop %v3388
    %v3390 = vmul.f32 %v3382, %v3389
    %v3391 = vmul.f32 %v3390, %v1229
    %v3392 = vadd.f32 %v3391, 0.0
    %v3393 = vmul.f32 %v343, %v238
    %v3394 = vrot.slane %v3393, 4
    %v3395 = vadd.f32 %v3393, %v3394
    %v3396 = vrot.slane %v3395, 2
    %v3397 = vadd.f32 %v3395, %v3396
    %v3398 = vrot.slane %v3397, 1
    %v3399 = vadd.f32 %v3397, %v3398
    %v3400 = vmul.f32 %v343, %v363
    %v3401 = vrot.slane %v3400, 4
    %v3402 = vadd.f32 %v3400, %v3401
    %v3403 = vrot.slane %v3402, 2
    %v3404 = vadd.f32 %v3402, %v3403
    %v3405 = vrot.slane %v3404, 1
    %v3406 = vadd.f32 %v3404, %v3405
    %v3407 = vmul.f32 %v343, %v488
    %v3408 = vrot.slane %v3407, 4
    %v3409 = vadd.f32 %v3407, %v3408
    %v3410 = vrot.slane %v3409, 2
    %v3411 = vadd.f32 %v3409, %v3410
    %v3412 = vrot.slane %v3411, 1
    %v3413 = vadd.f32 %v3411, %v3412
    %v3414 = vmul.f32 %v343, %v613
    %v3415 = vrot.slane %v3414, 4
    %v3416 = vadd.f32 %v3414, %v3415
    %v3417 = vrot.slane %v3416, 2
    %v3418 = vadd.f32 %v3416, %v3417
    %v3419 = vrot.slane %v3418, 1
    %v3420 = vadd.f32 %v3418, %v3419
    %v3421 = vmul.f32 %v343, %v738
    %v3422 = vrot.slane %v3421, 4
    %v3423 = vadd.f32 %v3421, %v3422
    %v3424 = vrot.slane %v3423, 2
    %v3425 = vadd.f32 %v3423, %v3424
    %v3426 = vrot.slane %v3425, 1
    %v3427 = vadd.f32 %v3425, %v3426
    %v3428 = vmul.f32 %v343, %v863
    %v3429 = vrot.slane %v3428, 4
    %v3430 = vadd.f32 %v3428, %v3429
    %v3431 = vrot.slane %v3430, 2
    %v3432 = vadd.f32 %v3430, %v3431
    %v3433 = vrot.slane %v3432, 1
    %v3434 = vadd.f32 %v3432, %v3433
    %v3435 = vmul.f32 %v343, %v988
    %v3436 = vrot.slane %v3435, 4
    %v3437 = vadd.f32 %v3435, %v3436
    %v3438 = vrot.slane %v3437, 2
    %v3439 = vadd.f32 %v3437, %v3438
    %v3440 = vrot.slane %v3439, 1
    %v3441 = vadd.f32 %v3439, %v3440
    %v3442 = vmul.f32 %v343, %v1113
    %v3443 = vrot.slane %v3442, 4
    %v3444 = vadd.f32 %v3442, %v3443
    %v3445 = vrot.slane %v3444, 2
    %v3446 = vadd.f32 %v3444, %v3445
    %v3447 = vrot.slane %v3446, 1
    %v3448 = vadd.f32 %v3446, %v3447
    %v3449 = vsel %vm1194, %v3399, %v3406
    %v3450 = vsel %vm1196, %v3449, %v3413
    %v3451 = vsel %vm1198, %v3450, %v3420
    %v3452 = vsel %vm1200, %v3451, %v3427
    %v3453 = vsel %vm1202, %v3452, %v3434
    %v3454 = vsel %vm1204, %v3453, %v3441
    %v3455 = vsel %vm1206, %v3454, %v3448
    %v3456 = vadd.f32 %v3455, %v1137
    %v3457 = vrot.slane %v3456, 4
    %v3458 = vmax.f32 %v3456, %v3457
    %v3459 = vrot.slane %v3458, 2
    %v3460 = vmax.f32 %v3458, %v3459
    %v3461 = vrot.slane %v3460, 1
    %v3462 = vmax.f32 %v3460, %v3461
    %v3463 = vsub.f32 %v3456, %v3462
    %v3464 = vmul.f32 %v3463, 1.442695
    %v3465 = vpow.pop %v3464
    %v3466 = vrot.slane %v3465, 4
    %v3467 = vadd.f32 %v3465, %v3466
    %v3468 = vrot.slane %v3467, 2
    %v3469 = vadd.f32 %v3467, %v3468
    %v3470 = vrot.slane %v3469, 1
    %v3471 = vadd.f32 %v3469, %v3470
    %v3472 = vrcp.pop %v3471
    %v3473 = vmul.f32 %v3465, %v3472
    %v3474 = vmul.f32 %v3473, %v1316
    %v3475 = vadd.f32 %v3392, %v3474
    %v3476 = vmul.f32 %v468, %v238
    %v3477 = vrot.slane %v3476, 4
    %v3478 = vadd.f32 %v3476, %v3477
    %v3479 = vrot.slane %v3478, 2
    %v3480 = vadd.f32 %v3478, %v3479
    %v3481 = vrot.slane %v3480, 1
    %v3482 = vadd.f32 %v3480, %v3481
    %v3483 = vmul.f32 %v468, %v363
    %v3484 = vrot.slane %v3483, 4
    %v3485 = vadd.f32 %v3483, %v3484
    %v3486 = vrot.slane %v3485, 2
    %v3487 = vadd.f32 %v3485, %v3486
    %v3488 = vrot.slane %v3487, 1
    %v3489 = vadd.f32 %v3487, %v3488
    %v3490 = vmul.f32 %v468, %v488
    %v3491 = vrot.slane %v3490, 4
    %v3492 = vadd.f32 %v3490, %v3491
    %v3493 = vrot.slane %v3492, 2
    %v3494 = vadd.f32 %v3492, %v3493
    %v3495 = vrot.slane %v3494, 1
    %v3496 = vadd.f32 %v3494, %v3495
    %v3497 = vmul.f32 %v468, %v613
    %v3498 = vrot.slane %v3497, 4
    %v3499 = vadd.f32 %v3497, %v3498
    %v3500 = vrot.slane %v3499, 2
    %v3501 = vadd.f32 %v3499, %v3500
    %v3502 = vrot.slane %v3501, 1
    %v3503 = vadd.f32 %v3501, %v3502
    %v3504 = vmul.f32 %v468, %v738
    %v3505 = vrot.slane %v3504, 4
    %v3506 = vadd.f32 %v3504, %v3505
    %v3507 = vrot.slane %v3506, 2
    %v3508 = vadd.f32 %v3506, %v3507
    %v3509 = vrot.slane %v3508, 1
    %v3510 = vadd.f32 %v3508, %v3509
    %v3511 = vmul.f32 %v468, %v863
    %v3512 = vrot.slane %v3511, 4
    %v3513 = vadd.f32 %v3511, %v3512
    %v3514 = vrot.slane %v3513, 2
    %v3515 = vadd.f32 %v3513, %v3514
    %v3516 = vrot.slane %v3515, 1
    %v3517 = vadd.f32 %v3515, %v3516
    %v3518 = vmul.f32 %v468, %v988
    %v3519 = vrot.slane %v3518, 4
    %v3520 = vadd.f32 %v3518, %v3519
    %v3521 = vrot.slane %v3520, 2
    %v3522 = vadd.f32 %v3520, %v3521
    %v3523 = vrot.slane %v3522, 1
    %v3524 = vadd.f32 %v3522, %v3523
    %v3525 = vmul.f32 %v468, %v1113
    %v3526 = vrot.slane %v3525, 4
    %v3527 = vadd.f32 %v3525, %v3526
    %v3528 = vrot.slane %v3527, 2
    %v3529 = vadd.f32 %v3527, %v3528
    %v3530 = vrot.slane %v3529, 1
    %v3531 = vadd.f32 %v3529, %v3530
    %v3532 = vsel %vm1194, %v3482, %v3489
    %v3533 = vsel %vm1196, %v3532, %v3496
    %v3534 = vsel %vm1198, %v3533, %v3503
    %v3535 = vsel %vm1200, %v3534, %v3510
    %v3536 = vsel %vm1202, %v3535, %v3517
    %v3537 = vsel %vm1204, %v3536, %v3524
    %v3538 = vsel %vm1206, %v3537, %v3531
    %v3539 = vadd.f32 %v3538, %v1137
    %v3540 = vrot.slane %v3539, 4
    %v3541 = vmax.f32 %v3539, %v3540
    %v3542 = vrot.slane %v3541, 2
    %v3543 = vmax.f32 %v3541, %v3542
    %v3544 = vrot.slane %v3543, 1
    %v3545 = vmax.f32 %v3543, %v3544
    %v3546 = vsub.f32 %v3539, %v3545
    %v3547 = vmul.f32 %v3546, 1.442695
    %v3548 = vpow.pop %v3547
    %v3549 = vrot.slane %v3548, 4
    %v3550 = vadd.f32 %v3548, %v3549
    %v3551 = vrot.slane %v3550, 2
    %v3552 = vadd.f32 %v3550, %v3551
    %v3553 = vrot.slane %v3552, 1
    %v3554 = vadd.f32 %v3552, %v3553
    %v3555 = vrcp.pop %v3554
    %v3556 = vmul.f32 %v3548, %v3555
    %v3557 = vmul.f32 %v3556, %v1403
    %v3558 = vadd.f32 %v3475, %v3557
    %v3559 = vmul.f32 %v593, %v238
    %v3560 = vrot.slane %v3559, 4
    %v3561 = vadd.f32 %v3559, %v3560
    %v3562 = vrot.slane %v3561, 2
    %v3563 = vadd.f32 %v3561, %v3562
    %v3564 = vrot.slane %v3563, 1
    %v3565 = vadd.f32 %v3563, %v3564
    %v3566 = vmul.f32 %v593, %v363
    %v3567 = vrot.slane %v3566, 4
    %v3568 = vadd.f32 %v3566, %v3567
    %v3569 = vrot.slane %v3568, 2
    %v3570 = vadd.f32 %v3568, %v3569
    %v3571 = vrot.slane %v3570, 1
    %v3572 = vadd.f32 %v3570, %v3571
    %v3573 = vmul.f32 %v593, %v488
    %v3574 = vrot.slane %v3573, 4
    %v3575 = vadd.f32 %v3573, %v3574
    %v3576 = vrot.slane %v3575, 2
    %v3577 = vadd.f32 %v3575, %v3576
    %v3578 = vrot.slane %v3577, 1
    %v3579 = vadd.f32 %v3577, %v3578
    %v3580 = vmul.f32 %v593, %v613
    %v3581 = vrot.slane %v3580, 4
    %v3582 = vadd.f32 %v3580, %v3581
    %v3583 = vrot.slane %v3582, 2
    %v3584 = vadd.f32 %v3582, %v3583
    %v3585 = vrot.slane %v3584, 1
    %v3586 = vadd.f32 %v3584, %v3585
    %v3587 = vmul.f32 %v593, %v738
    %v3588 = vrot.slane %v3587, 4
    %v3589 = vadd.f32 %v3587, %v3588
    %v3590 = vrot.slane %v3589, 2
    %v3591 = vadd.f32 %v3589, %v3590
    %v3592 = vrot.slane %v3591, 1
    %v3593 = vadd.f32 %v3591, %v3592
    %v3594 = vmul.f32 %v593, %v863
    %v3595 = vrot.slane %v3594, 4
    %v3596 = vadd.f32 %v3594, %v3595
    %v3597 = vrot.slane %v3596, 2
    %v3598 = vadd.f32 %v3596, %v3597
    %v3599 = vrot.slane %v3598, 1
    %v3600 = vadd.f32 %v3598, %v3599
    %v3601 = vmul.f32 %v593, %v988
    %v3602 = vrot.slane %v3601, 4
    %v3603 = vadd.f32 %v3601, %v3602
    %v3604 = vrot.slane %v3603, 2
    %v3605 = vadd.f32 %v3603, %v3604
    %v3606 = vrot.slane %v3605, 1
    %v3607 = vadd.f32 %v3605, %v3606
    %v3608 = vmul.f32 %v593, %v1113
    %v3609 = vrot.slane %v3608, 4
    %v3610 = vadd.f32 %v3608, %v3609
    %v3611 = vrot.slane %v3610, 2
    %v3612 = vadd.f32 %v3610, %v3611
    %v3613 = vrot.slane %v3612, 1
    %v3614 = vadd.f32 %v3612, %v3613
    %v3615 = vsel %vm1194, %v3565, %v3572
    %v3616 = vsel %vm1196, %v3615, %v3579
    %v3617 = vsel %vm1198, %v3616, %v3586
    %v3618 = vsel %vm1200, %v3617, %v3593
    %v3619 = vsel %vm1202, %v3618, %v3600
    %v3620 = vsel %vm1204, %v3619, %v3607
    %v3621 = vsel %vm1206, %v3620, %v3614
    %v3622 = vadd.f32 %v3621, %v1137
    %v3623 = vrot.slane %v3622, 4
    %v3624 = vmax.f32 %v3622, %v3623
    %v3625 = vrot.slane %v3624, 2
    %v3626 = vmax.f32 %v3624, %v3625
    %v3627 = vrot.slane %v3626, 1
    %v3628 = vmax.f32 %v3626, %v3627
    %v3629 = vsub.f32 %v3622, %v3628
    %v3630 = vmul.f32 %v3629, 1.442695
    %v3631 = vpow.pop %v3630
    %v3632 = vrot.slane %v3631, 4
    %v3633 = vadd.f32 %v3631, %v3632
    %v3634 = vrot.slane %v3633, 2
    %v3635 = vadd.f32 %v3633, %v3634
    %v3636 = vrot.slane %v3635, 1
    %v3637 = vadd.f32 %v3635, %v3636
    %v3638 = vrcp.pop %v3637
    %v3639 = vmul.f32 %v3631, %v3638
    %v3640 = vmul.f32 %v3639, %v1490
    %v3641 = vadd.f32 %v3558, %v3640
    %v3642 = vmul.f32 %v718, %v238
    %v3643 = vrot.slane %v3642, 4
    %v3644 = vadd.f32 %v3642, %v3643
    %v3645 = vrot.slane %v3644, 2
    %v3646 = vadd.f32 %v3644, %v3645
    %v3647 = vrot.slane %v3646, 1
    %v3648 = vadd.f32 %v3646, %v3647
    %v3649 = vmul.f32 %v718, %v363
    %v3650 = vrot.slane %v3649, 4
    %v3651 = vadd.f32 %v3649, %v3650
    %v3652 = vrot.slane %v3651, 2
    %v3653 = vadd.f32 %v3651, %v3652
    %v3654 = vrot.slane %v3653, 1
    %v3655 = vadd.f32 %v3653, %v3654
    %v3656 = vmul.f32 %v718, %v488
    %v3657 = vrot.slane %v3656, 4
    %v3658 = vadd.f32 %v3656, %v3657
    %v3659 = vrot.slane %v3658, 2
    %v3660 = vadd.f32 %v3658, %v3659
    %v3661 = vrot.slane %v3660, 1
    %v3662 = vadd.f32 %v3660, %v3661
    %v3663 = vmul.f32 %v718, %v613
    %v3664 = vrot.slane %v3663, 4
    %v3665 = vadd.f32 %v3663, %v3664
    %v3666 = vrot.slane %v3665, 2
    %v3667 = vadd.f32 %v3665, %v3666
    %v3668 = vrot.slane %v3667, 1
    %v3669 = vadd.f32 %v3667, %v3668
    %v3670 = vmul.f32 %v718, %v738
    %v3671 = vrot.slane %v3670, 4
    %v3672 = vadd.f32 %v3670, %v3671
    %v3673 = vrot.slane %v3672, 2
    %v3674 = vadd.f32 %v3672, %v3673
    %v3675 = vrot.slane %v3674, 1
    %v3676 = vadd.f32 %v3674, %v3675
    %v3677 = vmul.f32 %v718, %v863
    %v3678 = vrot.slane %v3677, 4
    %v3679 = vadd.f32 %v3677, %v3678
    %v3680 = vrot.slane %v3679, 2
    %v3681 = vadd.f32 %v3679, %v3680
    %v3682 = vrot.slane %v3681, 1
    %v3683 = vadd.f32 %v3681, %v3682
    %v3684 = vmul.f32 %v718, %v988
    %v3685 = vrot.slane %v3684, 4
    %v3686 = vadd.f32 %v3684, %v3685
    %v3687 = vrot.slane %v3686, 2
    %v3688 = vadd.f32 %v3686, %v3687
    %v3689 = vrot.slane %v3688, 1
    %v3690 = vadd.f32 %v3688, %v3689
    %v3691 = vmul.f32 %v718, %v1113
    %v3692 = vrot.slane %v3691, 4
    %v3693 = vadd.f32 %v3691, %v3692
    %v3694 = vrot.slane %v3693, 2
    %v3695 = vadd.f32 %v3693, %v3694
    %v3696 = vrot.slane %v3695, 1
    %v3697 = vadd.f32 %v3695, %v3696
    %v3698 = vsel %vm1194, %v3648, %v3655
    %v3699 = vsel %vm1196, %v3698, %v3662
    %v3700 = vsel %vm1198, %v3699, %v3669
    %v3701 = vsel %vm1200, %v3700, %v3676
    %v3702 = vsel %vm1202, %v3701, %v3683
    %v3703 = vsel %vm1204, %v3702, %v3690
    %v3704 = vsel %vm1206, %v3703, %v3697
    %v3705 = vadd.f32 %v3704, %v1137
    %v3706 = vrot.slane %v3705, 4
    %v3707 = vmax.f32 %v3705, %v3706
    %v3708 = vrot.slane %v3707, 2
    %v3709 = vmax.f32 %v3707, %v3708
    %v3710 = vrot.slane %v3709, 1
    %v3711 = vmax.f32 %v3709, %v3710
    %v3712 = vsub.f32 %v3705, %v3711
    %v3713 = vmul.f32 %v3712, 1.442695
    %v3714 = vpow.pop %v3713
    %v3715 = vrot.slane %v3714, 4
    %v3716 = vadd.f32 %v3714, %v3715
    %v3717 = vrot.slane %v3716, 2
    %v3718 = vadd.f32 %v3716, %v3717
    %v3719 = vrot.slane %v3718, 1
    %v3720 = vadd.f32 %v3718, %v3719
    %v3721 = vrcp.pop %v3720
    %v3722 = vmul.f32 %v3714, %v3721
    %v3723 = vmul.f32 %v3722, %v1577
    %v3724 = vadd.f32 %v3641, %v3723
    %v3725 = vmul.f32 %v843, %v238
    %v3726 = vrot.slane %v3725, 4
    %v3727 = vadd.f32 %v3725, %v3726
    %v3728 = vrot.slane %v3727, 2
    %v3729 = vadd.f32 %v3727, %v3728
    %v3730 = vrot.slane %v3729, 1
    %v3731 = vadd.f32 %v3729, %v3730
    %v3732 = vmul.f32 %v843, %v363
    %v3733 = vrot.slane %v3732, 4
    %v3734 = vadd.f32 %v3732, %v3733
    %v3735 = vrot.slane %v3734, 2
    %v3736 = vadd.f32 %v3734, %v3735
    %v3737 = vrot.slane %v3736, 1
    %v3738 = vadd.f32 %v3736, %v3737
    %v3739 = vmul.f32 %v843, %v488
    %v3740 = vrot.slane %v3739, 4
    %v3741 = vadd.f32 %v3739, %v3740
    %v3742 = vrot.slane %v3741, 2
    %v3743 = vadd.f32 %v3741, %v3742
    %v3744 = vrot.slane %v3743, 1
    %v3745 = vadd.f32 %v3743, %v3744
    %v3746 = vmul.f32 %v843, %v613
    %v3747 = vrot.slane %v3746, 4
    %v3748 = vadd.f32 %v3746, %v3747
    %v3749 = vrot.slane %v3748, 2
    %v3750 = vadd.f32 %v3748, %v3749
    %v3751 = vrot.slane %v3750, 1
    %v3752 = vadd.f32 %v3750, %v3751
    %v3753 = vmul.f32 %v843, %v738
    %v3754 = vrot.slane %v3753, 4
    %v3755 = vadd.f32 %v3753, %v3754
    %v3756 = vrot.slane %v3755, 2
    %v3757 = vadd.f32 %v3755, %v3756
    %v3758 = vrot.slane %v3757, 1
    %v3759 = vadd.f32 %v3757, %v3758
    %v3760 = vmul.f32 %v843, %v863
    %v3761 = vrot.slane %v3760, 4
    %v3762 = vadd.f32 %v3760, %v3761
    %v3763 = vrot.slane %v3762, 2
    %v3764 = vadd.f32 %v3762, %v3763
    %v3765 = vrot.slane %v3764, 1
    %v3766 = vadd.f32 %v3764, %v3765
    %v3767 = vmul.f32 %v843, %v988
    %v3768 = vrot.slane %v3767, 4
    %v3769 = vadd.f32 %v3767, %v3768
    %v3770 = vrot.slane %v3769, 2
    %v3771 = vadd.f32 %v3769, %v3770
    %v3772 = vrot.slane %v3771, 1
    %v3773 = vadd.f32 %v3771, %v3772
    %v3774 = vmul.f32 %v843, %v1113
    %v3775 = vrot.slane %v3774, 4
    %v3776 = vadd.f32 %v3774, %v3775
    %v3777 = vrot.slane %v3776, 2
    %v3778 = vadd.f32 %v3776, %v3777
    %v3779 = vrot.slane %v3778, 1
    %v3780 = vadd.f32 %v3778, %v3779
    %v3781 = vsel %vm1194, %v3731, %v3738
    %v3782 = vsel %vm1196, %v3781, %v3745
    %v3783 = vsel %vm1198, %v3782, %v3752
    %v3784 = vsel %vm1200, %v3783, %v3759
    %v3785 = vsel %vm1202, %v3784, %v3766
    %v3786 = vsel %vm1204, %v3785, %v3773
    %v3787 = vsel %vm1206, %v3786, %v3780
    %v3788 = vadd.f32 %v3787, %v1137
    %v3789 = vrot.slane %v3788, 4
    %v3790 = vmax.f32 %v3788, %v3789
    %v3791 = vrot.slane %v3790, 2
    %v3792 = vmax.f32 %v3790, %v3791
    %v3793 = vrot.slane %v3792, 1
    %v3794 = vmax.f32 %v3792, %v3793
    %v3795 = vsub.f32 %v3788, %v3794
    %v3796 = vmul.f32 %v3795, 1.442695
    %v3797 = vpow.pop %v3796
    %v3798 = vrot.slane %v3797, 4
    %v3799 = vadd.f32 %v3797, %v3798
    %v3800 = vrot.slane %v3799, 2
    %v3801 = vadd.f32 %v3799, %v3800
    %v3802 = vrot.slane %v3801, 1
    %v3803 = vadd.f32 %v3801, %v3802
    %v3804 = vrcp.pop %v3803
    %v3805 = vmul.f32 %v3797, %v3804
    %v3806 = vmul.f32 %v3805, %v1664
    %v3807 = vadd.f32 %v3724, %v3806
    %v3808 = vmul.f32 %v968, %v238
    %v3809 = vrot.slane %v3808, 4
    %v3810 = vadd.f32 %v3808, %v3809
    %v3811 = vrot.slane %v3810, 2
    %v3812 = vadd.f32 %v3810, %v3811
    %v3813 = vrot.slane %v3812, 1
    %v3814 = vadd.f32 %v3812, %v3813
    %v3815 = vmul.f32 %v968, %v363
    %v3816 = vrot.slane %v3815, 4
    %v3817 = vadd.f32 %v3815, %v3816
    %v3818 = vrot.slane %v3817, 2
    %v3819 = vadd.f32 %v3817, %v3818
    %v3820 = vrot.slane %v3819, 1
    %v3821 = vadd.f32 %v3819, %v3820
    %v3822 = vmul.f32 %v968, %v488
    %v3823 = vrot.slane %v3822, 4
    %v3824 = vadd.f32 %v3822, %v3823
    %v3825 = vrot.slane %v3824, 2
    %v3826 = vadd.f32 %v3824, %v3825
    %v3827 = vrot.slane %v3826, 1
    %v3828 = vadd.f32 %v3826, %v3827
    %v3829 = vmul.f32 %v968, %v613
    %v3830 = vrot.slane %v3829, 4
    %v3831 = vadd.f32 %v3829, %v3830
    %v3832 = vrot.slane %v3831, 2
    %v3833 = vadd.f32 %v3831, %v3832
    %v3834 = vrot.slane %v3833, 1
    %v3835 = vadd.f32 %v3833, %v3834
    %v3836 = vmul.f32 %v968, %v738
    %v3837 = vrot.slane %v3836, 4
    %v3838 = vadd.f32 %v3836, %v3837
    %v3839 = vrot.slane %v3838, 2
    %v3840 = vadd.f32 %v3838, %v3839
    %v3841 = vrot.slane %v3840, 1
    %v3842 = vadd.f32 %v3840, %v3841
    %v3843 = vmul.f32 %v968, %v863
    %v3844 = vrot.slane %v3843, 4
    %v3845 = vadd.f32 %v3843, %v3844
    %v3846 = vrot.slane %v3845, 2
    %v3847 = vadd.f32 %v3845, %v3846
    %v3848 = vrot.slane %v3847, 1
    %v3849 = vadd.f32 %v3847, %v3848
    %v3850 = vmul.f32 %v968, %v988
    %v3851 = vrot.slane %v3850, 4
    %v3852 = vadd.f32 %v3850, %v3851
    %v3853 = vrot.slane %v3852, 2
    %v3854 = vadd.f32 %v3852, %v3853
    %v3855 = vrot.slane %v3854, 1
    %v3856 = vadd.f32 %v3854, %v3855
    %v3857 = vmul.f32 %v968, %v1113
    %v3858 = vrot.slane %v3857, 4
    %v3859 = vadd.f32 %v3857, %v3858
    %v3860 = vrot.slane %v3859, 2
    %v3861 = vadd.f32 %v3859, %v3860
    %v3862 = vrot.slane %v3861, 1
    %v3863 = vadd.f32 %v3861, %v3862
    %v3864 = vsel %vm1194, %v3814, %v3821
    %v3865 = vsel %vm1196, %v3864, %v3828
    %v3866 = vsel %vm1198, %v3865, %v3835
    %v3867 = vsel %vm1200, %v3866, %v3842
    %v3868 = vsel %vm1202, %v3867, %v3849
    %v3869 = vsel %vm1204, %v3868, %v3856
    %v3870 = vsel %vm1206, %v3869, %v3863
    %v3871 = vadd.f32 %v3870, %v1137
    %v3872 = vrot.slane %v3871, 4
    %v3873 = vmax.f32 %v3871, %v3872
    %v3874 = vrot.slane %v3873, 2
    %v3875 = vmax.f32 %v3873, %v3874
    %v3876 = vrot.slane %v3875, 1
    %v3877 = vmax.f32 %v3875, %v3876
    %v3878 = vsub.f32 %v3871, %v3877
    %v3879 = vmul.f32 %v3878, 1.442695
    %v3880 = vpow.pop %v3879
    %v3881 = vrot.slane %v3880, 4
    %v3882 = vadd.f32 %v3880, %v3881
    %v3883 = vrot.slane %v3882, 2
    %v3884 = vadd.f32 %v3882, %v3883
    %v3885 = vrot.slane %v3884, 1
    %v3886 = vadd.f32 %v3884, %v3885
    %v3887 = vrcp.pop %v3886
    %v3888 = vmul.f32 %v3880, %v3887
    %v3889 = vmul.f32 %v3888, %v1751
    %v3890 = vadd.f32 %v3807, %v3889
    %v3891 = vmul.f32 %v1093, %v238
    %v3892 = vrot.slane %v3891, 4
    %v3893 = vadd.f32 %v3891, %v3892
    %v3894 = vrot.slane %v3893, 2
    %v3895 = vadd.f32 %v3893, %v3894
    %v3896 = vrot.slane %v3895, 1
    %v3897 = vadd.f32 %v3895, %v3896
    %v3898 = vmul.f32 %v1093, %v363
    %v3899 = vrot.slane %v3898, 4
    %v3900 = vadd.f32 %v3898, %v3899
    %v3901 = vrot.slane %v3900, 2
    %v3902 = vadd.f32 %v3900, %v3901
    %v3903 = vrot.slane %v3902, 1
    %v3904 = vadd.f32 %v3902, %v3903
    %v3905 = vmul.f32 %v1093, %v488
    %v3906 = vrot.slane %v3905, 4
    %v3907 = vadd.f32 %v3905, %v3906
    %v3908 = vrot.slane %v3907, 2
    %v3909 = vadd.f32 %v3907, %v3908
    %v3910 = vrot.slane %v3909, 1
    %v3911 = vadd.f32 %v3909, %v3910
    %v3912 = vmul.f32 %v1093, %v613
    %v3913 = vrot.slane %v3912, 4
    %v3914 = vadd.f32 %v3912, %v3913
    %v3915 = vrot.slane %v3914, 2
    %v3916 = vadd.f32 %v3914, %v3915
    %v3917 = vrot.slane %v3916, 1
    %v3918 = vadd.f32 %v3916, %v3917
    %v3919 = vmul.f32 %v1093, %v738
    %v3920 = vrot.slane %v3919, 4
    %v3921 = vadd.f32 %v3919, %v3920
    %v3922 = vrot.slane %v3921, 2
    %v3923 = vadd.f32 %v3921, %v3922
    %v3924 = vrot.slane %v3923, 1
    %v3925 = vadd.f32 %v3923, %v3924
    %v3926 = vmul.f32 %v1093, %v863
    %v3927 = vrot.slane %v3926, 4
    %v3928 = vadd.f32 %v3926, %v3927
    %v3929 = vrot.slane %v3928, 2
    %v3930 = vadd.f32 %v3928, %v3929
    %v3931 = vrot.slane %v3930, 1
    %v3932 = vadd.f32 %v3930, %v3931
    %v3933 = vmul.f32 %v1093, %v988
    %v3934 = vrot.slane %v3933, 4
    %v3935 = vadd.f32 %v3933, %v3934
    %v3936 = vrot.slane %v3935, 2
    %v3937 = vadd.f32 %v3935, %v3936
    %v3938 = vrot.slane %v3937, 1
    %v3939 = vadd.f32 %v3937, %v3938
    %v3940 = vmul.f32 %v1093, %v1113
    %v3941 = vrot.slane %v3940, 4
    %v3942 = vadd.f32 %v3940, %v3941
    %v3943 = vrot.slane %v3942, 2
    %v3944 = vadd.f32 %v3942, %v3943
    %v3945 = vrot.slane %v3944, 1
    %v3946 = vadd.f32 %v3944, %v3945
    %v3947 = vsel %vm1194, %v3897, %v3904
    %v3948 = vsel %vm1196, %v3947, %v3911
    %v3949 = vsel %vm1198, %v3948, %v3918
    %v3950 = vsel %vm1200, %v3949, %v3925
    %v3951 = vsel %vm1202, %v3950, %v3932
    %v3952 = vsel %vm1204, %v3951, %v3939
    %v3953 = vsel %vm1206, %v3952, %v3946
    %v3954 = vadd.f32 %v3953, %v1137
    %v3955 = vrot.slane %v3954, 4
    %v3956 = vmax.f32 %v3954, %v3955
    %v3957 = vrot.slane %v3956, 2
    %v3958 = vmax.f32 %v3956, %v3957
    %v3959 = vrot.slane %v3958, 1
    %v3960 = vmax.f32 %v3958, %v3959
    %v3961 = vsub.f32 %v3954, %v3960
    %v3962 = vmul.f32 %v3961, 1.442695
    %v3963 = vpow.pop %v3962
    %v3964 = vrot.slane %v3963, 4
    %v3965 = vadd.f32 %v3963, %v3964
    %v3966 = vrot.slane %v3965, 2
    %v3967 = vadd.f32 %v3965, %v3966
    %v3968 = vrot.slane %v3967, 1
    %v3969 = vadd.f32 %v3967, %v3968
    %v3970 = vrcp.pop %v3969
    %v3971 = vmul.f32 %v3963, %v3970
    %v3972 = vmul.f32 %v3971, %v1838
    %v3973 = vadd.f32 %v3890, %v3972
    %v3974 = vlaneseq
    %v3975 = vshrl.u32 %v3974, 7
    %v3976 = vsub.s32 0, %v3975
    %v3977 = vrot.slane %v3973, %v3976
    %v3978 = vmul.f32 %v3977, %v258
    %v3979 = vlaneseq
    %v3980 = vshrl.u32 %v3979, 7
    %v3981 = vsub.s32 1, %v3980
    %v3982 = vrot.slane %v3973, %v3981
    %v3983 = vmul.f32 %v3982, %v383
    %v3984 = vadd.f32 %v3978, %v3983
    %v3985 = vlaneseq
    %v3986 = vshrl.u32 %v3985, 7
    %v3987 = vsub.s32 2, %v3986
    %v3988 = vrot.slane %v3973, %v3987
    %v3989 = vmul.f32 %v3988, %v508
    %v3990 = vadd.f32 %v3984, %v3989
    %v3991 = vlaneseq
    %v3992 = vshrl.u32 %v3991, 7
    %v3993 = vsub.s32 3, %v3992
    %v3994 = vrot.slane %v3973, %v3993
    %v3995 = vmul.f32 %v3994, %v633
    %v3996 = vadd.f32 %v3990, %v3995
    %v3997 = vlaneseq
    %v3998 = vshrl.u32 %v3997, 7
    %v3999 = vsub.s32 4, %v3998
    %v4000 = vrot.slane %v3973, %v3999
    %v4001 = vmul.f32 %v4000, %v758
    %v4002 = vadd.f32 %v3996, %v4001
    %v4003 = vlaneseq
    %v4004 = vshrl.u32 %v4003, 7
    %v4005 = vsub.s32 5, %v4004
    %v4006 = vrot.slane %v3973, %v4005
    %v4007 = vmul.f32 %v4006, %v883
    %v4008 = vadd.f32 %v4002, %v4007
    %v4009 = vlaneseq
    %v4010 = vshrl.u32 %v4009, 7
    %v4011 = vsub.s32 6, %v4010
    %v4012 = vrot.slane %v3973, %v4011
    %v4013 = vmul.f32 %v4012, %v1008
    %v4014 = vadd.f32 %v4008, %v4013
    %v4015 = vlaneseq
    %v4016 = vshrl.u32 %v4015, 7
    %v4017 = vsub.s32 7, %v4016
    %v4018 = vrot.slane %v3973, %v4017
    %v4019 = vmul.f32 %v4018, %v1133
    %v4020 = vadd.f32 %v4014, %v4019
    %v4021 = vrot.slane %v86, 4
    %v4022 = vadd.f32 %v86, %v4021
    %v4023 = vrot.slane %v4022, 2
    %v4024 = vadd.f32 %v4022, %v4023
    %v4025 = vrot.slane %v4024, 1
    %v4026 = vadd.f32 %v4024, %v4025
    %v4027 = vmax.f32 %v4026, 1.0
    %v4028 = vrcp.pop %v4027
    %v4029 = vmul.f32 %v1887, %v4028
    %v4030 = vmul.f32 %v2598, %v4028
    %v4031 = vmul.f32 %v3309, %v4028
    %v4032 = vmul.f32 %v4020, %v4028
    %v4033 = vmin.f32 %v4026, 1.0
    %v4034 = vld [vmem:[%s6] sm:$0xff]
    %v4035 = vld [vmem:[%s6 + $0x8] sm:$0xff]
    %v4036 = vld [vmem:[%s6 + $0x10] sm:$0xff]
    %v4037 = vld [vmem:[%s6 + $0x18] sm:$0xff]
    %v4038 = vld [vmem:[%s6 + $0x20] sm:$0xff]
    %v4039 = vld [vmem:[%s6 + $0x28] sm:$0xff]
    %v4040 = vld [vmem:[%s6 + $0x30] sm:$0xff]
    %v4041 = vld [vmem:[%s6 + $0x38] sm:$0xff]
    %v4042 = vld [vmem:[%s6 + $0x40] sm:$0xff]
    %v4043 = vld [vmem:[%s6 + $0x48] sm:$0xff]
    %v4044 = vld [vmem:[%s6 + $0x50] sm:$0xff]
    %v4045 = vld [vmem:[%s6 + $0x58] sm:$0xff]
    %v4046 = vld [vmem:[%s6 + $0x60] sm:$0xff]
    %v4047 = vld [vmem:[%s6 + $0x68] sm:$0xff]
    %v4048 = vld [vmem:[%s6 + $0x70] sm:$0xff]
    %v4049 = vld [vmem:[%s6 + $0x78] sm:$0xff]
    %v4050 = vld [vmem:[%s6 + $0x80] sm:$0xff]
    %v4051 = vld [vmem:[%s6 + $0x88] sm:$0xff]
    %v4052 = vld [vmem:[%s6 + $0x90] sm:$0xff]
    %v4053 = vld [vmem:[%s6 + $0x98] sm:$0xff]
    %v4054 = vld [vmem:[%s6 + $0xa0] sm:$0xff]
    %v4055 = vld [vmem:[%s6 + $0xa8] sm:$0xff]
    %v4056 = vld [vmem:[%s6 + $0xb0] sm:$0xff]
    %v4057 = vld [vmem:[%s6 + $0xb8] sm:$0xff]
    %v4058 = vld [vmem:[%s6 + $0xc0] sm:$0xff]
    %v4059 = vld [vmem:[%s6 + $0xc8] sm:$0xff]
    %v4060 = vld [vmem:[%s6 + $0xd0] sm:$0xff]
    %v4061 = vld [vmem:[%s6 + $0xd8] sm:$0xff]
    %v4062 = vld [vmem:[%s6 + $0xe0] sm:$0xff]
    %v4063 = vld [vmem:[%s6 + $0xe8] sm:$0xff]
    %v4064 = vld [vmem:[%s6 + $0xf0] sm:$0xff]
    %v4065 = vld [vmem:[%s6 + $0xf8] sm:$0xff]
    %v4066 = vld [vmem:[%s3] sm:$0xff]
    %v4067 = vld [vmem:[%s3 + $0x8] sm:$0xff]
    %v4068 = vld [vmem:[%s3 + $0x10] sm:$0xff]
    %v4069 = vld [vmem:[%s3 + $0x18] sm:$0xff]
    %v4070 = vld [vmem:[%s3 + $0x20] sm:$0xff]
    %v4071 = vld [vmem:[%s3 + $0x28] sm:$0xff]
    %v4072 = vld [vmem:[%s3 + $0x30] sm:$0xff]
    %v4073 = vld [vmem:[%s3 + $0x38] sm:$0xff]
    %v4074 = vld [vmem:[%s3 + $0x40] sm:$0xff]
    %v4075 = vld [vmem:[%s3 + $0x48] sm:$0xff]
    %v4076 = vld [vmem:[%s3 + $0x50] sm:$0xff]
    %v4077 = vld [vmem:[%s3 + $0x58] sm:$0xff]
    %v4078 = vld [vmem:[%s3 + $0x60] sm:$0xff]
    %v4079 = vld [vmem:[%s3 + $0x68] sm:$0xff]
    %v4080 = vld [vmem:[%s3 + $0x70] sm:$0xff]
    %v4081 = vld [vmem:[%s3 + $0x78] sm:$0xff]
    %v4082 = vld [vmem:[%s3 + $0x80] sm:$0xff]
    %v4083 = vld [vmem:[%s3 + $0x88] sm:$0xff]
    %v4084 = vld [vmem:[%s3 + $0x90] sm:$0xff]
    %v4085 = vld [vmem:[%s3 + $0x98] sm:$0xff]
    %v4086 = vld [vmem:[%s3 + $0xa0] sm:$0xff]
    %v4087 = vld [vmem:[%s3 + $0xa8] sm:$0xff]
    %v4088 = vld [vmem:[%s3 + $0xb0] sm:$0xff]
    %v4089 = vld [vmem:[%s3 + $0xb8] sm:$0xff]
    %v4090 = vld [vmem:[%s3 + $0xc0] sm:$0xff]
    %v4091 = vld [vmem:[%s3 + $0xc8] sm:$0xff]
    %v4092 = vld [vmem:[%s3 + $0xd0] sm:$0xff]
    %v4093 = vld [vmem:[%s3 + $0xd8] sm:$0xff]
    %v4094 = vld [vmem:[%s3 + $0xe0] sm:$0xff]
    %v4095 = vld [vmem:[%s3 + $0xe8] sm:$0xff]
    %v4096 = vld [vmem:[%s3 + $0xf0] sm:$0xff]
    %v4097 = vld [vmem:[%s3 + $0xf8] sm:$0xff]
    %4099 = vset.pattern.permute.xlu0 0
    %4100 = vperm.xlu0 %4099, %v4034
    %v4101 = vpop.permute.xlu0 %4100
    %4104 = vset.pattern.permute.xlu0 0
    %4105 = vperm.xlu0 %4104, %v4035
    %v4106 = vpop.permute.xlu0 %4105
    %4109 = vset.pattern.permute.xlu0 0
    %4110 = vperm.xlu0 %4109, %v4036
    %v4111 = vpop.permute.xlu0 %4110
    %4114 = vset.pattern.permute.xlu0 0
    %4115 = vperm.xlu0 %4114, %v4037
    %v4116 = vpop.permute.xlu0 %4115
    %4119 = vset.pattern.permute.xlu0 0
    %4120 = vperm.xlu0 %4119, %v4038
    %v4121 = vpop.permute.xlu0 %4120
    %4124 = vset.pattern.permute.xlu0 0
    %4125 = vperm.xlu0 %4124, %v4039
    %v4126 = vpop.permute.xlu0 %4125
    %4129 = vset.pattern.permute.xlu0 0
    %4130 = vperm.xlu0 %4129, %v4040
    %v4131 = vpop.permute.xlu0 %4130
    %4134 = vset.pattern.permute.xlu0 0
    %4135 = vperm.xlu0 %4134, %v4041
    %v4136 = vpop.permute.xlu0 %4135
    %4139 = vset.pattern.permute.xlu0 0
    %4140 = vperm.xlu0 %4139, %v4042
    %v4141 = vpop.permute.xlu0 %4140
    %4144 = vset.pattern.permute.xlu0 0
    %4145 = vperm.xlu0 %4144, %v4043
    %v4146 = vpop.permute.xlu0 %4145
    %4149 = vset.pattern.permute.xlu0 0
    %4150 = vperm.xlu0 %4149, %v4044
    %v4151 = vpop.permute.xlu0 %4150
    %4154 = vset.pattern.permute.xlu0 0
    %4155 = vperm.xlu0 %4154, %v4045
    %v4156 = vpop.permute.xlu0 %4155
    %4159 = vset.pattern.permute.xlu0 0
    %4160 = vperm.xlu0 %4159, %v4046
    %v4161 = vpop.permute.xlu0 %4160
    %4164 = vset.pattern.permute.xlu0 0
    %4165 = vperm.xlu0 %4164, %v4047
    %v4166 = vpop.permute.xlu0 %4165
    %4169 = vset.pattern.permute.xlu0 0
    %4170 = vperm.xlu0 %4169, %v4048
    %v4171 = vpop.permute.xlu0 %4170
    %4174 = vset.pattern.permute.xlu0 0
    %4175 = vperm.xlu0 %4174, %v4049
    %v4176 = vpop.permute.xlu0 %4175
    %4179 = vset.pattern.permute.xlu0 0
    %4180 = vperm.xlu0 %4179, %v4050
    %v4181 = vpop.permute.xlu0 %4180
    %4184 = vset.pattern.permute.xlu0 0
    %4185 = vperm.xlu0 %4184, %v4051
    %v4186 = vpop.permute.xlu0 %4185
    %4189 = vset.pattern.permute.xlu0 0
    %4190 = vperm.xlu0 %4189, %v4052
    %v4191 = vpop.permute.xlu0 %4190
    %4194 = vset.pattern.permute.xlu0 0
    %4195 = vperm.xlu0 %4194, %v4053
    %v4196 = vpop.permute.xlu0 %4195
    %4199 = vset.pattern.permute.xlu0 0
    %4200 = vperm.xlu0 %4199, %v4054
    %v4201 = vpop.permute.xlu0 %4200
    %4204 = vset.pattern.permute.xlu0 0
    %4205 = vperm.xlu0 %4204, %v4055
    %v4206 = vpop.permute.xlu0 %4205
    %4209 = vset.pattern.permute.xlu0 0
    %4210 = vperm.xlu0 %4209, %v4056
    %v4211 = vpop.permute.xlu0 %4210
    %4214 = vset.pattern.permute.xlu0 0
    %4215 = vperm.xlu0 %4214, %v4057
    %v4216 = vpop.permute.xlu0 %4215
    %4219 = vset.pattern.permute.xlu0 0
    %4220 = vperm.xlu0 %4219, %v4058
    %v4221 = vpop.permute.xlu0 %4220
    %4224 = vset.pattern.permute.xlu0 0
    %4225 = vperm.xlu0 %4224, %v4059
    %v4226 = vpop.permute.xlu0 %4225
    %4229 = vset.pattern.permute.xlu0 0
    %4230 = vperm.xlu0 %4229, %v4060
    %v4231 = vpop.permute.xlu0 %4230
    %4234 = vset.pattern.permute.xlu0 0
    %4235 = vperm.xlu0 %4234, %v4061
    %v4236 = vpop.permute.xlu0 %4235
    %4239 = vset.pattern.permute.xlu0 0
    %4240 = vperm.xlu0 %4239, %v4062
    %v4241 = vpop.permute.xlu0 %4240
    %4244 = vset.pattern.permute.xlu0 0
    %4245 = vperm.xlu0 %4244, %v4063
    %v4246 = vpop.permute.xlu0 %4245
    %4249 = vset.pattern.permute.xlu0 0
    %4250 = vperm.xlu0 %4249, %v4064
    %v4251 = vpop.permute.xlu0 %4250
    %4254 = vset.pattern.permute.xlu0 0
    %4255 = vperm.xlu0 %4254, %v4065
    %v4256 = vpop.permute.xlu0 %4255
    %vm4258 = vcmask 261120
    %v4260 = vsel %vm4258, %v4066, 0
    %v4263 = vsel %vm4258, %v4067, 0
    %v4266 = vsel %vm4258, %v4068, 0
    %v4269 = vsel %vm4258, %v4069, 0
    %v4272 = vsel %vm4258, %v4070, 0
    %v4275 = vsel %vm4258, %v4071, 0
    %v4278 = vsel %vm4258, %v4072, 0
    %v4281 = vsel %vm4258, %v4073, 0
    %v4284 = vsel %vm4258, %v4074, 0
    %v4287 = vsel %vm4258, %v4075, 0
    %v4290 = vsel %vm4258, %v4076, 0
    %v4293 = vsel %vm4258, %v4077, 0
    %v4296 = vsel %vm4258, %v4078, 0
    %v4299 = vsel %vm4258, %v4079, 0
    %v4302 = vsel %vm4258, %v4080, 0
    %v4305 = vsel %vm4258, %v4081, 0
    %v4308 = vsel %vm4258, %v4082, 0
    %v4311 = vsel %vm4258, %v4083, 0
    %v4314 = vsel %vm4258, %v4084, 0
    %v4317 = vsel %vm4258, %v4085, 0
    %v4320 = vsel %vm4258, %v4086, 0
    %v4323 = vsel %vm4258, %v4087, 0
    %v4326 = vsel %vm4258, %v4088, 0
    %v4329 = vsel %vm4258, %v4089, 0
    %v4332 = vsel %vm4258, %v4090, 0
    %v4335 = vsel %vm4258, %v4091, 0
    %v4338 = vsel %vm4258, %v4092, 0
    %v4341 = vsel %vm4258, %v4093, 0
    %v4344 = vsel %vm4258, %v4094, 0
    %v4347 = vsel %vm4258, %v4095, 0
    %v4350 = vsel %vm4258, %v4096, 0
    %v4353 = vsel %vm4258, %v4097, 0
    %4355 = vmatprep.subr.mxu0 0.0
    %4356 = vmatpush1.msra.mxu0 0.0
    %4357 = vmatprep.subr.mxu0 0.0
    %4358 = vmatpush1.msra.mxu0 0.0
    %4359 = vmatprep.subr.mxu0 0.0
    %4360 = vmatpush1.msra.mxu0 0.0
    %4361 = vmatprep.subr.mxu0 0.0
    %4362 = vmatpush1.msra.mxu0 0.0
    %4363 = vmatprep.subr.mxu0 0.0
    %4364 = vmatpush1.msra.mxu0 0.0
    %4365 = vmatprep.subr.mxu0 0.0
    %4366 = vmatpush1.msra.mxu0 0.0
    %4367 = vmatprep.subr.mxu0 0.0
    %4368 = vmatpush1.msra.mxu0 0.0
    %4369 = vmatprep.subr.mxu0 0.0
    %4370 = vmatpush1.msra.mxu0 0.0
    %4371 = vmatprep.subr.mxu0 0.0
    %4372 = vmatpush1.msra.mxu0 0.0
    %4373 = vmatprep.subr.mxu0 0.0
    %4374 = vmatpush1.msra.mxu0 0.0
    %4375 = vmatprep.subr.mxu0 0.0
    %4376 = vmatpush1.msra.mxu0 0.0
    %4377 = vmatprep.subr.mxu0 0.0
    %4378 = vmatpush1.msra.mxu0 0.0
    %4379 = vmatprep.subr.mxu0 0.0
    %4380 = vmatpush1.msra.mxu0 %v4032
    %4381 = vmatprep.subr.mxu0 0.0
    %4382 = vmatpush1.msra.mxu0 %v4031
    %4383 = vmatprep.subr.mxu0 0.0
    %4384 = vmatpush1.msra.mxu0 %v4030
    %4385 = vmatprep.subr.mxu0 0.0
    %4386 = vmatpush1.msra.mxu0 %v4029
    %4387 = vmatprep.subr.mxu0 0.0
    %4388 = vmatpush2.msra.mxu0 0.0
    %4389 = vmatprep.subr.mxu0 0.0
    %4390 = vmatpush2.msra.mxu0 0.0
    %4391 = vmatprep.subr.mxu0 0.0
    %4392 = vmatpush2.msra.mxu0 0.0
    %4393 = vmatprep.subr.mxu0 0.0
    %4394 = vmatpush2.msra.mxu0 0.0
    %4395 = vmatprep.subr.mxu0 0.0
    %4396 = vmatpush2.msra.mxu0 0.0
    %4397 = vmatprep.subr.mxu0 0.0
    %4398 = vmatpush2.msra.mxu0 0.0
    %4399 = vmatprep.subr.mxu0 0.0
    %4400 = vmatpush2.msra.mxu0 0.0
    %4401 = vmatprep.subr.mxu0 0.0
    %4402 = vmatpush2.msra.mxu0 0.0
    %4403 = vmatprep.subr.mxu0 0.0
    %4404 = vmatpush2.msra.mxu0 0.0
    %4405 = vmatprep.subr.mxu0 0.0
    %4406 = vmatpush2.msra.mxu0 0.0
    %4407 = vmatprep.subr.mxu0 0.0
    %4408 = vmatpush2.msra.mxu0 0.0
    %4409 = vmatprep.subr.mxu0 0.0
    %4410 = vmatpush2.msra.mxu0 0.0
    %4411 = vmatprep.subr.mxu0 0.0
    %4412 = vmatpush2.msra.mxu0 0.0
    %4413 = vmatprep.subr.mxu0 0.0
    %4414 = vmatpush2.msra.mxu0 0.0
    %4415 = vmatprep.subr.mxu0 0.0
    %4416 = vmatpush2.msra.mxu0 0.0
    %4417 = vmatprep.subr.mxu0 0.0
    %4418 = vmatpush2.msra.mxu0 0.0
    %4419 = vmatprep.mubr.f32.mxu0 0.0
    %4420 = vmatmul.mubr.f32.gmra.mxu0 %v4260
    %v4421 = vpop.f32.mrf.mxu0
    %v4422 = vadd.f32 %v4101, %v4421
    %v4423 = vpop.f32.mrf.mxu0
    %4424 = vmatprep.mubr.f32.mxu0 0.0
    %4425 = vmatmul.mubr.f32.gmra.mxu0 %v4263
    %v4426 = vpop.f32.mrf.mxu0
    %v4427 = vadd.f32 %v4106, %v4426
    %v4428 = vpop.f32.mrf.mxu0
    %4429 = vmatprep.mubr.f32.mxu0 0.0
    %4430 = vmatmul.mubr.f32.gmra.mxu0 %v4266
    %v4431 = vpop.f32.mrf.mxu0
    %v4432 = vadd.f32 %v4111, %v4431
    %v4433 = vpop.f32.mrf.mxu0
    %4434 = vmatprep.mubr.f32.mxu0 0.0
    %4435 = vmatmul.mubr.f32.gmra.mxu0 %v4269
    %v4436 = vpop.f32.mrf.mxu0
    %v4437 = vadd.f32 %v4116, %v4436
    %v4438 = vpop.f32.mrf.mxu0
    %4439 = vmatprep.mubr.f32.mxu0 0.0
    %4440 = vmatmul.mubr.f32.gmra.mxu0 %v4272
    %v4441 = vpop.f32.mrf.mxu0
    %v4442 = vadd.f32 %v4121, %v4441
    %v4443 = vpop.f32.mrf.mxu0
    %4444 = vmatprep.mubr.f32.mxu0 0.0
    %4445 = vmatmul.mubr.f32.gmra.mxu0 %v4275
    %v4446 = vpop.f32.mrf.mxu0
    %v4447 = vadd.f32 %v4126, %v4446
    %v4448 = vpop.f32.mrf.mxu0
    %4449 = vmatprep.mubr.f32.mxu0 0.0
    %4450 = vmatmul.mubr.f32.gmra.mxu0 %v4278
    %v4451 = vpop.f32.mrf.mxu0
    %v4452 = vadd.f32 %v4131, %v4451
    %v4453 = vpop.f32.mrf.mxu0
    %4454 = vmatprep.mubr.f32.mxu0 0.0
    %4455 = vmatmul.mubr.f32.gmra.mxu0 %v4281
    %v4456 = vpop.f32.mrf.mxu0
    %v4457 = vadd.f32 %v4136, %v4456
    %v4458 = vpop.f32.mrf.mxu0
    %4459 = vmatprep.mubr.f32.mxu0 0.0
    %4460 = vmatmul.mubr.f32.gmra.mxu0 %v4284
    %v4461 = vpop.f32.mrf.mxu0
    %v4462 = vadd.f32 %v4141, %v4461
    %v4463 = vpop.f32.mrf.mxu0
    %4464 = vmatprep.mubr.f32.mxu0 0.0
    %4465 = vmatmul.mubr.f32.gmra.mxu0 %v4287
    %v4466 = vpop.f32.mrf.mxu0
    %v4467 = vadd.f32 %v4146, %v4466
    %v4468 = vpop.f32.mrf.mxu0
    %4469 = vmatprep.mubr.f32.mxu0 0.0
    %4470 = vmatmul.mubr.f32.gmra.mxu0 %v4290
    %v4471 = vpop.f32.mrf.mxu0
    %v4472 = vadd.f32 %v4151, %v4471
    %v4473 = vpop.f32.mrf.mxu0
    %4474 = vmatprep.mubr.f32.mxu0 0.0
    %4475 = vmatmul.mubr.f32.gmra.mxu0 %v4293
    %v4476 = vpop.f32.mrf.mxu0
    %v4477 = vadd.f32 %v4156, %v4476
    %v4478 = vpop.f32.mrf.mxu0
    %4479 = vmatprep.mubr.f32.mxu0 0.0
    %4480 = vmatmul.mubr.f32.gmra.mxu0 %v4296
    %v4481 = vpop.f32.mrf.mxu0
    %v4482 = vadd.f32 %v4161, %v4481
    %v4483 = vpop.f32.mrf.mxu0
    %4484 = vmatprep.mubr.f32.mxu0 0.0
    %4485 = vmatmul.mubr.f32.gmra.mxu0 %v4299
    %v4486 = vpop.f32.mrf.mxu0
    %v4487 = vadd.f32 %v4166, %v4486
    %v4488 = vpop.f32.mrf.mxu0
    %4489 = vmatprep.mubr.f32.mxu0 0.0
    %4490 = vmatmul.mubr.f32.gmra.mxu0 %v4302
    %v4491 = vpop.f32.mrf.mxu0
    %v4492 = vadd.f32 %v4171, %v4491
    %v4493 = vpop.f32.mrf.mxu0
    %4494 = vmatprep.mubr.f32.mxu0 0.0
    %4495 = vmatmul.mubr.f32.gmra.mxu0 %v4305
    %v4496 = vpop.f32.mrf.mxu0
    %v4497 = vadd.f32 %v4176, %v4496
    %v4498 = vpop.f32.mrf.mxu0
    %4499 = vmatprep.mubr.f32.mxu0 0.0
    %4500 = vmatmul.mubr.f32.gmra.mxu0 %v4308
    %v4501 = vpop.f32.mrf.mxu0
    %v4502 = vadd.f32 %v4181, %v4501
    %v4503 = vpop.f32.mrf.mxu0
    %4504 = vmatprep.mubr.f32.mxu0 0.0
    %4505 = vmatmul.mubr.f32.gmra.mxu0 %v4311
    %v4506 = vpop.f32.mrf.mxu0
    %v4507 = vadd.f32 %v4186, %v4506
    %v4508 = vpop.f32.mrf.mxu0
    %4509 = vmatprep.mubr.f32.mxu0 0.0
    %4510 = vmatmul.mubr.f32.gmra.mxu0 %v4314
    %v4511 = vpop.f32.mrf.mxu0
    %v4512 = vadd.f32 %v4191, %v4511
    %v4513 = vpop.f32.mrf.mxu0
    %4514 = vmatprep.mubr.f32.mxu0 0.0
    %4515 = vmatmul.mubr.f32.gmra.mxu0 %v4317
    %v4516 = vpop.f32.mrf.mxu0
    %v4517 = vadd.f32 %v4196, %v4516
    %v4518 = vpop.f32.mrf.mxu0
    %4519 = vmatprep.mubr.f32.mxu0 0.0
    %4520 = vmatmul.mubr.f32.gmra.mxu0 %v4320
    %v4521 = vpop.f32.mrf.mxu0
    %v4522 = vadd.f32 %v4201, %v4521
    %v4523 = vpop.f32.mrf.mxu0
    %4524 = vmatprep.mubr.f32.mxu0 0.0
    %4525 = vmatmul.mubr.f32.gmra.mxu0 %v4323
    %v4526 = vpop.f32.mrf.mxu0
    %v4527 = vadd.f32 %v4206, %v4526
    %v4528 = vpop.f32.mrf.mxu0
    %4529 = vmatprep.mubr.f32.mxu0 0.0
    %4530 = vmatmul.mubr.f32.gmra.mxu0 %v4326
    %v4531 = vpop.f32.mrf.mxu0
    %v4532 = vadd.f32 %v4211, %v4531
    %v4533 = vpop.f32.mrf.mxu0
    %4534 = vmatprep.mubr.f32.mxu0 0.0
    %4535 = vmatmul.mubr.f32.gmra.mxu0 %v4329
    %v4536 = vpop.f32.mrf.mxu0
    %v4537 = vadd.f32 %v4216, %v4536
    %v4538 = vpop.f32.mrf.mxu0
    %4539 = vmatprep.mubr.f32.mxu0 0.0
    %4540 = vmatmul.mubr.f32.gmra.mxu0 %v4332
    %v4541 = vpop.f32.mrf.mxu0
    %v4542 = vadd.f32 %v4221, %v4541
    %v4543 = vpop.f32.mrf.mxu0
    %4544 = vmatprep.mubr.f32.mxu0 0.0
    %4545 = vmatmul.mubr.f32.gmra.mxu0 %v4335
    %v4546 = vpop.f32.mrf.mxu0
    %v4547 = vadd.f32 %v4226, %v4546
    %v4548 = vpop.f32.mrf.mxu0
    %4549 = vmatprep.mubr.f32.mxu0 0.0
    %4550 = vmatmul.mubr.f32.gmra.mxu0 %v4338
    %v4551 = vpop.f32.mrf.mxu0
    %v4552 = vadd.f32 %v4231, %v4551
    %v4553 = vpop.f32.mrf.mxu0
    %4554 = vmatprep.mubr.f32.mxu0 0.0
    %4555 = vmatmul.mubr.f32.gmra.mxu0 %v4341
    %v4556 = vpop.f32.mrf.mxu0
    %v4557 = vadd.f32 %v4236, %v4556
    %v4558 = vpop.f32.mrf.mxu0
    %4559 = vmatprep.mubr.f32.mxu0 0.0
    %4560 = vmatmul.mubr.f32.gmra.mxu0 %v4344
    %v4561 = vpop.f32.mrf.mxu0
    %v4562 = vadd.f32 %v4241, %v4561
    %v4563 = vpop.f32.mrf.mxu0
    %4564 = vmatprep.mubr.f32.mxu0 0.0
    %4565 = vmatmul.mubr.f32.gmra.mxu0 %v4347
    %v4566 = vpop.f32.mrf.mxu0
    %v4567 = vadd.f32 %v4246, %v4566
    %v4568 = vpop.f32.mrf.mxu0
    %4569 = vmatprep.mubr.f32.mxu0 0.0
    %4570 = vmatmul.mubr.f32.gmra.mxu0 %v4350
    %v4571 = vpop.f32.mrf.mxu0
    %v4572 = vadd.f32 %v4251, %v4571
    %v4573 = vpop.f32.mrf.mxu0
    %4574 = vmatprep.mubr.f32.mxu0 0.0
    %4575 = vmatmul.mubr.f32.gmra.mxu0 %v4353
    %v4576 = vpop.f32.mrf.mxu0
    %v4577 = vadd.f32 %v4256, %v4576
    %v4578 = vpop.f32.mrf.mxu0
    %4579 = vdwg.mxu0
    %4580 = vset.pattern.permute.xlu0 1
    %4581 = vperm.xlu0 %4580, %v4034
    %v4582 = vpop.permute.xlu0 %4581
    %4584 = vset.pattern.permute.xlu0 1
    %4585 = vperm.xlu0 %4584, %v4035
    %v4586 = vpop.permute.xlu0 %4585
    %4588 = vset.pattern.permute.xlu0 1
    %4589 = vperm.xlu0 %4588, %v4036
    %v4590 = vpop.permute.xlu0 %4589
    %4592 = vset.pattern.permute.xlu0 1
    %4593 = vperm.xlu0 %4592, %v4037
    %v4594 = vpop.permute.xlu0 %4593
    %4596 = vset.pattern.permute.xlu0 1
    %4597 = vperm.xlu0 %4596, %v4038
    %v4598 = vpop.permute.xlu0 %4597
    %4600 = vset.pattern.permute.xlu0 1
    %4601 = vperm.xlu0 %4600, %v4039
    %v4602 = vpop.permute.xlu0 %4601
    %4604 = vset.pattern.permute.xlu0 1
    %4605 = vperm.xlu0 %4604, %v4040
    %v4606 = vpop.permute.xlu0 %4605
    %4608 = vset.pattern.permute.xlu0 1
    %4609 = vperm.xlu0 %4608, %v4041
    %v4610 = vpop.permute.xlu0 %4609
    %4612 = vset.pattern.permute.xlu0 1
    %4613 = vperm.xlu0 %4612, %v4042
    %v4614 = vpop.permute.xlu0 %4613
    %4616 = vset.pattern.permute.xlu0 1
    %4617 = vperm.xlu0 %4616, %v4043
    %v4618 = vpop.permute.xlu0 %4617
    %4620 = vset.pattern.permute.xlu0 1
    %4621 = vperm.xlu0 %4620, %v4044
    %v4622 = vpop.permute.xlu0 %4621
    %4624 = vset.pattern.permute.xlu0 1
    %4625 = vperm.xlu0 %4624, %v4045
    %v4626 = vpop.permute.xlu0 %4625
    %4628 = vset.pattern.permute.xlu0 1
    %4629 = vperm.xlu0 %4628, %v4046
    %v4630 = vpop.permute.xlu0 %4629
    %4632 = vset.pattern.permute.xlu0 1
    %4633 = vperm.xlu0 %4632, %v4047
    %v4634 = vpop.permute.xlu0 %4633
    %4636 = vset.pattern.permute.xlu0 1
    %4637 = vperm.xlu0 %4636, %v4048
    %v4638 = vpop.permute.xlu0 %4637
    %4640 = vset.pattern.permute.xlu0 1
    %4641 = vperm.xlu0 %4640, %v4049
    %v4642 = vpop.permute.xlu0 %4641
    %4644 = vset.pattern.permute.xlu0 1
    %4645 = vperm.xlu0 %4644, %v4050
    %v4646 = vpop.permute.xlu0 %4645
    %4648 = vset.pattern.permute.xlu0 1
    %4649 = vperm.xlu0 %4648, %v4051
    %v4650 = vpop.permute.xlu0 %4649
    %4652 = vset.pattern.permute.xlu0 1
    %4653 = vperm.xlu0 %4652, %v4052
    %v4654 = vpop.permute.xlu0 %4653
    %4656 = vset.pattern.permute.xlu0 1
    %4657 = vperm.xlu0 %4656, %v4053
    %v4658 = vpop.permute.xlu0 %4657
    %4660 = vset.pattern.permute.xlu0 1
    %4661 = vperm.xlu0 %4660, %v4054
    %v4662 = vpop.permute.xlu0 %4661
    %4664 = vset.pattern.permute.xlu0 1
    %4665 = vperm.xlu0 %4664, %v4055
    %v4666 = vpop.permute.xlu0 %4665
    %4668 = vset.pattern.permute.xlu0 1
    %4669 = vperm.xlu0 %4668, %v4056
    %v4670 = vpop.permute.xlu0 %4669
    %4672 = vset.pattern.permute.xlu0 1
    %4673 = vperm.xlu0 %4672, %v4057
    %v4674 = vpop.permute.xlu0 %4673
    %4676 = vset.pattern.permute.xlu0 1
    %4677 = vperm.xlu0 %4676, %v4058
    %v4678 = vpop.permute.xlu0 %4677
    %4680 = vset.pattern.permute.xlu0 1
    %4681 = vperm.xlu0 %4680, %v4059
    %v4682 = vpop.permute.xlu0 %4681
    %4684 = vset.pattern.permute.xlu0 1
    %4685 = vperm.xlu0 %4684, %v4060
    %v4686 = vpop.permute.xlu0 %4685
    %4688 = vset.pattern.permute.xlu0 1
    %4689 = vperm.xlu0 %4688, %v4061
    %v4690 = vpop.permute.xlu0 %4689
    %4692 = vset.pattern.permute.xlu0 1
    %4693 = vperm.xlu0 %4692, %v4062
    %v4694 = vpop.permute.xlu0 %4693
    %4696 = vset.pattern.permute.xlu0 1
    %4697 = vperm.xlu0 %4696, %v4063
    %v4698 = vpop.permute.xlu0 %4697
    %4700 = vset.pattern.permute.xlu0 1
    %4701 = vperm.xlu0 %4700, %v4064
    %v4702 = vpop.permute.xlu0 %4701
    %4704 = vset.pattern.permute.xlu0 1
    %4705 = vperm.xlu0 %4704, %v4065
    %v4706 = vpop.permute.xlu0 %4705
    %v4708 = vmul.f32 %v4582, %v4033
    %v4709 = vmul.f32 %v4586, %v4033
    %v4710 = vmul.f32 %v4590, %v4033
    %v4711 = vmul.f32 %v4594, %v4033
    %v4712 = vmul.f32 %v4598, %v4033
    %v4713 = vmul.f32 %v4602, %v4033
    %v4714 = vmul.f32 %v4606, %v4033
    %v4715 = vmul.f32 %v4610, %v4033
    %v4716 = vmul.f32 %v4614, %v4033
    %v4717 = vmul.f32 %v4618, %v4033
    %v4718 = vmul.f32 %v4622, %v4033
    %v4719 = vmul.f32 %v4626, %v4033
    %v4720 = vmul.f32 %v4630, %v4033
    %v4721 = vmul.f32 %v4634, %v4033
    %v4722 = vmul.f32 %v4638, %v4033
    %v4723 = vmul.f32 %v4642, %v4033
    %v4724 = vmul.f32 %v4646, %v4033
    %v4725 = vmul.f32 %v4650, %v4033
    %v4726 = vmul.f32 %v4654, %v4033
    %v4727 = vmul.f32 %v4658, %v4033
    %v4728 = vmul.f32 %v4662, %v4033
    %v4729 = vmul.f32 %v4666, %v4033
    %v4730 = vmul.f32 %v4670, %v4033
    %v4731 = vmul.f32 %v4674, %v4033
    %v4732 = vmul.f32 %v4678, %v4033
    %v4733 = vmul.f32 %v4682, %v4033
    %v4734 = vmul.f32 %v4686, %v4033
    %v4735 = vmul.f32 %v4690, %v4033
    %v4736 = vmul.f32 %v4694, %v4033
    %v4737 = vmul.f32 %v4698, %v4033
    %v4738 = vmul.f32 %v4702, %v4033
    %v4739 = vmul.f32 %v4706, %v4033
    %v4740 = vadd.f32 %v4422, %v4708
    %v4741 = vadd.f32 %v4427, %v4709
    %v4742 = vadd.f32 %v4432, %v4710
    %v4743 = vadd.f32 %v4437, %v4711
    %v4744 = vadd.f32 %v4442, %v4712
    %v4745 = vadd.f32 %v4447, %v4713
    %v4746 = vadd.f32 %v4452, %v4714
    %v4747 = vadd.f32 %v4457, %v4715
    %v4748 = vadd.f32 %v4462, %v4716
    %v4749 = vadd.f32 %v4467, %v4717
    %v4750 = vadd.f32 %v4472, %v4718
    %v4751 = vadd.f32 %v4477, %v4719
    %v4752 = vadd.f32 %v4482, %v4720
    %v4753 = vadd.f32 %v4487, %v4721
    %v4754 = vadd.f32 %v4492, %v4722
    %v4755 = vadd.f32 %v4497, %v4723
    %v4756 = vadd.f32 %v4502, %v4724
    %v4757 = vadd.f32 %v4507, %v4725
    %v4758 = vadd.f32 %v4512, %v4726
    %v4759 = vadd.f32 %v4517, %v4727
    %v4760 = vadd.f32 %v4522, %v4728
    %v4761 = vadd.f32 %v4527, %v4729
    %v4762 = vadd.f32 %v4532, %v4730
    %v4763 = vadd.f32 %v4537, %v4731
    %v4764 = vadd.f32 %v4542, %v4732
    %v4765 = vadd.f32 %v4547, %v4733
    %v4766 = vadd.f32 %v4552, %v4734
    %v4767 = vadd.f32 %v4557, %v4735
    %v4768 = vadd.f32 %v4562, %v4736
    %v4769 = vadd.f32 %v4567, %v4737
    %v4770 = vadd.f32 %v4572, %v4738
    %v4771 = vadd.f32 %v4577, %v4739
    %v4772 = vmax.f32 %v4740, 0.0
    %v4773 = vmax.f32 %v4741, 0.0
    %v4774 = vmax.f32 %v4742, 0.0
    %v4775 = vmax.f32 %v4743, 0.0
    %v4776 = vmax.f32 %v4744, 0.0
    %v4777 = vmax.f32 %v4745, 0.0
    %v4778 = vmax.f32 %v4746, 0.0
    %v4779 = vmax.f32 %v4747, 0.0
    %v4780 = vmax.f32 %v4748, 0.0
    %v4781 = vmax.f32 %v4749, 0.0
    %v4782 = vmax.f32 %v4750, 0.0
    %v4783 = vmax.f32 %v4751, 0.0
    %v4784 = vmax.f32 %v4752, 0.0
    %v4785 = vmax.f32 %v4753, 0.0
    %v4786 = vmax.f32 %v4754, 0.0
    %v4787 = vmax.f32 %v4755, 0.0
    %v4788 = vmax.f32 %v4756, 0.0
    %v4789 = vmax.f32 %v4757, 0.0
    %v4790 = vmax.f32 %v4758, 0.0
    %v4791 = vmax.f32 %v4759, 0.0
    %v4792 = vmax.f32 %v4760, 0.0
    %v4793 = vmax.f32 %v4761, 0.0
    %v4794 = vmax.f32 %v4762, 0.0
    %v4795 = vmax.f32 %v4763, 0.0
    %v4796 = vmax.f32 %v4764, 0.0
    %v4797 = vmax.f32 %v4765, 0.0
    %v4798 = vmax.f32 %v4766, 0.0
    %v4799 = vmax.f32 %v4767, 0.0
    %v4800 = vmax.f32 %v4768, 0.0
    %v4801 = vmax.f32 %v4769, 0.0
    %v4802 = vmax.f32 %v4770, 0.0
    %v4803 = vmax.f32 %v4771, 0.0
    %v4804 = vld [vmem:[%s4] sm:$0xff]
    %v4805 = vld [vmem:[%s4 + $0x8] sm:$0xff]
    %v4806 = vld [vmem:[%s4 + $0x10] sm:$0xff]
    %v4807 = vld [vmem:[%s4 + $0x18] sm:$0xff]
    %v4808 = vld [vmem:[%s4 + $0x20] sm:$0xff]
    %v4809 = vld [vmem:[%s4 + $0x28] sm:$0xff]
    %v4810 = vld [vmem:[%s4 + $0x30] sm:$0xff]
    %v4811 = vld [vmem:[%s4 + $0x38] sm:$0xff]
    %v4812 = vld [vmem:[%s4 + $0x40] sm:$0xff]
    %v4813 = vld [vmem:[%s4 + $0x48] sm:$0xff]
    %v4814 = vld [vmem:[%s4 + $0x50] sm:$0xff]
    %v4815 = vld [vmem:[%s4 + $0x58] sm:$0xff]
    %v4816 = vld [vmem:[%s4 + $0x60] sm:$0xff]
    %v4817 = vld [vmem:[%s4 + $0x68] sm:$0xff]
    %v4818 = vld [vmem:[%s4 + $0x70] sm:$0xff]
    %v4819 = vld [vmem:[%s4 + $0x78] sm:$0xff]
    %v4820 = vld [vmem:[%s4 + $0x80] sm:$0xff]
    %v4821 = vld [vmem:[%s4 + $0x88] sm:$0xff]
    %v4822 = vld [vmem:[%s4 + $0x90] sm:$0xff]
    %v4823 = vld [vmem:[%s4 + $0x98] sm:$0xff]
    %v4824 = vld [vmem:[%s4 + $0xa0] sm:$0xff]
    %v4825 = vld [vmem:[%s4 + $0xa8] sm:$0xff]
    %v4826 = vld [vmem:[%s4 + $0xb0] sm:$0xff]
    %v4827 = vld [vmem:[%s4 + $0xb8] sm:$0xff]
    %v4828 = vld [vmem:[%s4 + $0xc0] sm:$0xff]
    %v4829 = vld [vmem:[%s4 + $0xc8] sm:$0xff]
    %v4830 = vld [vmem:[%s4 + $0xd0] sm:$0xff]
    %v4831 = vld [vmem:[%s4 + $0xd8] sm:$0xff]
    %v4832 = vld [vmem:[%s4 + $0xe0] sm:$0xff]
    %v4833 = vld [vmem:[%s4 + $0xe8] sm:$0xff]
    %v4834 = vld [vmem:[%s4 + $0xf0] sm:$0xff]
    %v4835 = vld [vmem:[%s4 + $0xf8] sm:$0xff]
    %v4836 = vld [vmem:[%s4 + $0x100] sm:$0xff]
    %v4837 = vld [vmem:[%s4 + $0x108] sm:$0xff]
    %v4838 = vld [vmem:[%s4 + $0x110] sm:$0xff]
    %v4839 = vld [vmem:[%s4 + $0x118] sm:$0xff]
    %v4840 = vld [vmem:[%s4 + $0x120] sm:$0xff]
    %v4841 = vld [vmem:[%s4 + $0x128] sm:$0xff]
    %v4842 = vld [vmem:[%s4 + $0x130] sm:$0xff]
    %v4843 = vld [vmem:[%s4 + $0x138] sm:$0xff]
    %v4844 = vld [vmem:[%s4 + $0x140] sm:$0xff]
    %v4845 = vld [vmem:[%s4 + $0x148] sm:$0xff]
    %v4846 = vld [vmem:[%s4 + $0x150] sm:$0xff]
    %v4847 = vld [vmem:[%s4 + $0x158] sm:$0xff]
    %v4848 = vld [vmem:[%s4 + $0x160] sm:$0xff]
    %v4849 = vld [vmem:[%s4 + $0x168] sm:$0xff]
    %v4850 = vld [vmem:[%s4 + $0x170] sm:$0xff]
    %v4851 = vld [vmem:[%s4 + $0x178] sm:$0xff]
    %v4852 = vld [vmem:[%s4 + $0x180] sm:$0xff]
    %v4853 = vld [vmem:[%s4 + $0x188] sm:$0xff]
    %v4854 = vld [vmem:[%s4 + $0x190] sm:$0xff]
    %v4855 = vld [vmem:[%s4 + $0x198] sm:$0xff]
    %v4856 = vld [vmem:[%s4 + $0x1a0] sm:$0xff]
    %v4857 = vld [vmem:[%s4 + $0x1a8] sm:$0xff]
    %v4858 = vld [vmem:[%s4 + $0x1b0] sm:$0xff]
    %v4859 = vld [vmem:[%s4 + $0x1b8] sm:$0xff]
    %v4860 = vld [vmem:[%s4 + $0x1c0] sm:$0xff]
    %v4861 = vld [vmem:[%s4 + $0x1c8] sm:$0xff]
    %v4862 = vld [vmem:[%s4 + $0x1d0] sm:$0xff]
    %v4863 = vld [vmem:[%s4 + $0x1d8] sm:$0xff]
    %v4864 = vld [vmem:[%s4 + $0x1e0] sm:$0xff]
    %v4865 = vld [vmem:[%s4 + $0x1e8] sm:$0xff]
    %v4866 = vld [vmem:[%s4 + $0x1f0] sm:$0xff]
    %v4867 = vld [vmem:[%s4 + $0x1f8] sm:$0xff]
    %4868 = vset.pattern.permute.xlu0 2
    %4869 = vperm.xlu0 %4868, %v4034
    %v4870 = vpop.permute.xlu0 %4869
    %4872 = vset.pattern.permute.xlu0 2
    %4873 = vperm.xlu0 %4872, %v4035
    %v4874 = vpop.permute.xlu0 %4873
    %4876 = vset.pattern.permute.xlu0 2
    %4877 = vperm.xlu0 %4876, %v4036
    %v4878 = vpop.permute.xlu0 %4877
    %4880 = vset.pattern.permute.xlu0 2
    %4881 = vperm.xlu0 %4880, %v4037
    %v4882 = vpop.permute.xlu0 %4881
    %4884 = vset.pattern.permute.xlu0 2
    %4885 = vperm.xlu0 %4884, %v4038
    %v4886 = vpop.permute.xlu0 %4885
    %4888 = vset.pattern.permute.xlu0 2
    %4889 = vperm.xlu0 %4888, %v4039
    %v4890 = vpop.permute.xlu0 %4889
    %4892 = vset.pattern.permute.xlu0 2
    %4893 = vperm.xlu0 %4892, %v4040
    %v4894 = vpop.permute.xlu0 %4893
    %4896 = vset.pattern.permute.xlu0 2
    %4897 = vperm.xlu0 %4896, %v4041
    %v4898 = vpop.permute.xlu0 %4897
    %4900 = vset.pattern.permute.xlu0 2
    %4901 = vperm.xlu0 %4900, %v4042
    %v4902 = vpop.permute.xlu0 %4901
    %4904 = vset.pattern.permute.xlu0 2
    %4905 = vperm.xlu0 %4904, %v4043
    %v4906 = vpop.permute.xlu0 %4905
    %4908 = vset.pattern.permute.xlu0 2
    %4909 = vperm.xlu0 %4908, %v4044
    %v4910 = vpop.permute.xlu0 %4909
    %4912 = vset.pattern.permute.xlu0 2
    %4913 = vperm.xlu0 %4912, %v4045
    %v4914 = vpop.permute.xlu0 %4913
    %4916 = vset.pattern.permute.xlu0 2
    %4917 = vperm.xlu0 %4916, %v4046
    %v4918 = vpop.permute.xlu0 %4917
    %4920 = vset.pattern.permute.xlu0 2
    %4921 = vperm.xlu0 %4920, %v4047
    %v4922 = vpop.permute.xlu0 %4921
    %4924 = vset.pattern.permute.xlu0 2
    %4925 = vperm.xlu0 %4924, %v4048
    %v4926 = vpop.permute.xlu0 %4925
    %4928 = vset.pattern.permute.xlu0 2
    %4929 = vperm.xlu0 %4928, %v4049
    %v4930 = vpop.permute.xlu0 %4929
    %4932 = vset.pattern.permute.xlu0 2
    %4933 = vperm.xlu0 %4932, %v4050
    %v4934 = vpop.permute.xlu0 %4933
    %4936 = vset.pattern.permute.xlu0 2
    %4937 = vperm.xlu0 %4936, %v4051
    %v4938 = vpop.permute.xlu0 %4937
    %4940 = vset.pattern.permute.xlu0 2
    %4941 = vperm.xlu0 %4940, %v4052
    %v4942 = vpop.permute.xlu0 %4941
    %4944 = vset.pattern.permute.xlu0 2
    %4945 = vperm.xlu0 %4944, %v4053
    %v4946 = vpop.permute.xlu0 %4945
    %4948 = vset.pattern.permute.xlu0 2
    %4949 = vperm.xlu0 %4948, %v4054
    %v4950 = vpop.permute.xlu0 %4949
    %4952 = vset.pattern.permute.xlu0 2
    %4953 = vperm.xlu0 %4952, %v4055
    %v4954 = vpop.permute.xlu0 %4953
    %4956 = vset.pattern.permute.xlu0 2
    %4957 = vperm.xlu0 %4956, %v4056
    %v4958 = vpop.permute.xlu0 %4957
    %4960 = vset.pattern.permute.xlu0 2
    %4961 = vperm.xlu0 %4960, %v4057
    %v4962 = vpop.permute.xlu0 %4961
    %4964 = vset.pattern.permute.xlu0 2
    %4965 = vperm.xlu0 %4964, %v4058
    %v4966 = vpop.permute.xlu0 %4965
    %4968 = vset.pattern.permute.xlu0 2
    %4969 = vperm.xlu0 %4968, %v4059
    %v4970 = vpop.permute.xlu0 %4969
    %4972 = vset.pattern.permute.xlu0 2
    %4973 = vperm.xlu0 %4972, %v4060
    %v4974 = vpop.permute.xlu0 %4973
    %4976 = vset.pattern.permute.xlu0 2
    %4977 = vperm.xlu0 %4976, %v4061
    %v4978 = vpop.permute.xlu0 %4977
    %4980 = vset.pattern.permute.xlu0 2
    %4981 = vperm.xlu0 %4980, %v4062
    %v4982 = vpop.permute.xlu0 %4981
    %4984 = vset.pattern.permute.xlu0 2
    %4985 = vperm.xlu0 %4984, %v4063
    %v4986 = vpop.permute.xlu0 %4985
    %4988 = vset.pattern.permute.xlu0 2
    %4989 = vperm.xlu0 %4988, %v4064
    %v4990 = vpop.permute.xlu0 %4989
    %4992 = vset.pattern.permute.xlu0 2
    %4993 = vperm.xlu0 %4992, %v4065
    %v4994 = vpop.permute.xlu0 %4993
    %4996 = vmatprep.subr.mxu0 0.0
    %4997 = vmatpush1.msra.mxu0 %v4787
    %4998 = vmatprep.subr.mxu0 0.0
    %4999 = vmatpush1.msra.mxu0 %v4786
    %5000 = vmatprep.subr.mxu0 0.0
    %5001 = vmatpush1.msra.mxu0 %v4785
    %5002 = vmatprep.subr.mxu0 0.0
    %5003 = vmatpush1.msra.mxu0 %v4784
    %5004 = vmatprep.subr.mxu0 0.0
    %5005 = vmatpush1.msra.mxu0 %v4783
    %5006 = vmatprep.subr.mxu0 0.0
    %5007 = vmatpush1.msra.mxu0 %v4782
    %5008 = vmatprep.subr.mxu0 0.0
    %5009 = vmatpush1.msra.mxu0 %v4781
    %5010 = vmatprep.subr.mxu0 0.0
    %5011 = vmatpush1.msra.mxu0 %v4780
    %5012 = vmatprep.subr.mxu0 0.0
    %5013 = vmatpush1.msra.mxu0 %v4779
    %5014 = vmatprep.subr.mxu0 0.0
    %5015 = vmatpush1.msra.mxu0 %v4778
    %5016 = vmatprep.subr.mxu0 0.0
    %5017 = vmatpush1.msra.mxu0 %v4777
    %5018 = vmatprep.subr.mxu0 0.0
    %5019 = vmatpush1.msra.mxu0 %v4776
    %5020 = vmatprep.subr.mxu0 0.0
    %5021 = vmatpush1.msra.mxu0 %v4775
    %5022 = vmatprep.subr.mxu0 0.0
    %5023 = vmatpush1.msra.mxu0 %v4774
    %5024 = vmatprep.subr.mxu0 0.0
    %5025 = vmatpush1.msra.mxu0 %v4773
    %5026 = vmatprep.subr.mxu0 0.0
    %5027 = vmatpush1.msra.mxu0 %v4772
    %5028 = vmatprep.subr.mxu0 0.0
    %5029 = vmatpush2.msra.mxu0 %v4803
    %5030 = vmatprep.subr.mxu0 0.0
    %5031 = vmatpush2.msra.mxu0 %v4802
    %5032 = vmatprep.subr.mxu0 0.0
    %5033 = vmatpush2.msra.mxu0 %v4801
    %5034 = vmatprep.subr.mxu0 0.0
    %5035 = vmatpush2.msra.mxu0 %v4800
    %5036 = vmatprep.subr.mxu0 0.0
    %5037 = vmatpush2.msra.mxu0 %v4799
    %5038 = vmatprep.subr.mxu0 0.0
    %5039 = vmatpush2.msra.mxu0 %v4798
    %5040 = vmatprep.subr.mxu0 0.0
    %5041 = vmatpush2.msra.mxu0 %v4797
    %5042 = vmatprep.subr.mxu0 0.0
    %5043 = vmatpush2.msra.mxu0 %v4796
    %5044 = vmatprep.subr.mxu0 0.0
    %5045 = vmatpush2.msra.mxu0 %v4795
    %5046 = vmatprep.subr.mxu0 0.0
    %5047 = vmatpush2.msra.mxu0 %v4794
    %5048 = vmatprep.subr.mxu0 0.0
    %5049 = vmatpush2.msra.mxu0 %v4793
    %5050 = vmatprep.subr.mxu0 0.0
    %5051 = vmatpush2.msra.mxu0 %v4792
    %5052 = vmatprep.subr.mxu0 0.0
    %5053 = vmatpush2.msra.mxu0 %v4791
    %5054 = vmatprep.subr.mxu0 0.0
    %5055 = vmatpush2.msra.mxu0 %v4790
    %5056 = vmatprep.subr.mxu0 0.0
    %5057 = vmatpush2.msra.mxu0 %v4789
    %5058 = vmatprep.subr.mxu0 0.0
    %5059 = vmatpush2.msra.mxu0 %v4788
    %5060 = vmatprep.mubr.f32.mxu0 %v4805
    %5061 = vmatmul.mubr.f32.gmra.mxu0 %v4804
    %v5062 = vpop.f32.mrf.mxu0
    %v5063 = vadd.f32 %v4870, %v5062
    %v5064 = vpop.f32.mrf.mxu0
    %5065 = vmatprep.mubr.f32.mxu0 %v4807
    %5066 = vmatmul.mubr.f32.gmra.mxu0 %v4806
    %v5067 = vpop.f32.mrf.mxu0
    %v5068 = vadd.f32 %v4874, %v5067
    %v5069 = vpop.f32.mrf.mxu0
    %5070 = vmatprep.mubr.f32.mxu0 %v4809
    %5071 = vmatmul.mubr.f32.gmra.mxu0 %v4808
    %v5072 = vpop.f32.mrf.mxu0
    %v5073 = vadd.f32 %v4878, %v5072
    %v5074 = vpop.f32.mrf.mxu0
    %5075 = vmatprep.mubr.f32.mxu0 %v4811
    %5076 = vmatmul.mubr.f32.gmra.mxu0 %v4810
    %v5077 = vpop.f32.mrf.mxu0
    %v5078 = vadd.f32 %v4882, %v5077
    %v5079 = vpop.f32.mrf.mxu0
    %5080 = vmatprep.mubr.f32.mxu0 %v4813
    %5081 = vmatmul.mubr.f32.gmra.mxu0 %v4812
    %v5082 = vpop.f32.mrf.mxu0
    %v5083 = vadd.f32 %v4886, %v5082
    %v5084 = vpop.f32.mrf.mxu0
    %5085 = vmatprep.mubr.f32.mxu0 %v4815
    %5086 = vmatmul.mubr.f32.gmra.mxu0 %v4814
    %v5087 = vpop.f32.mrf.mxu0
    %v5088 = vadd.f32 %v4890, %v5087
    %v5089 = vpop.f32.mrf.mxu0
    %5090 = vmatprep.mubr.f32.mxu0 %v4817
    %5091 = vmatmul.mubr.f32.gmra.mxu0 %v4816
    %v5092 = vpop.f32.mrf.mxu0
    %v5093 = vadd.f32 %v4894, %v5092
    %v5094 = vpop.f32.mrf.mxu0
    %5095 = vmatprep.mubr.f32.mxu0 %v4819
    %5096 = vmatmul.mubr.f32.gmra.mxu0 %v4818
    %v5097 = vpop.f32.mrf.mxu0
    %v5098 = vadd.f32 %v4898, %v5097
    %v5099 = vpop.f32.mrf.mxu0
    %5100 = vmatprep.mubr.f32.mxu0 %v4821
    %5101 = vmatmul.mubr.f32.gmra.mxu0 %v4820
    %v5102 = vpop.f32.mrf.mxu0
    %v5103 = vadd.f32 %v4902, %v5102
    %v5104 = vpop.f32.mrf.mxu0
    %5105 = vmatprep.mubr.f32.mxu0 %v4823
    %5106 = vmatmul.mubr.f32.gmra.mxu0 %v4822
    %v5107 = vpop.f32.mrf.mxu0
    %v5108 = vadd.f32 %v4906, %v5107
    %v5109 = vpop.f32.mrf.mxu0
    %5110 = vmatprep.mubr.f32.mxu0 %v4825
    %5111 = vmatmul.mubr.f32.gmra.mxu0 %v4824
    %v5112 = vpop.f32.mrf.mxu0
    %v5113 = vadd.f32 %v4910, %v5112
    %v5114 = vpop.f32.mrf.mxu0
    %5115 = vmatprep.mubr.f32.mxu0 %v4827
    %5116 = vmatmul.mubr.f32.gmra.mxu0 %v4826
    %v5117 = vpop.f32.mrf.mxu0
    %v5118 = vadd.f32 %v4914, %v5117
    %v5119 = vpop.f32.mrf.mxu0
    %5120 = vmatprep.mubr.f32.mxu0 %v4829
    %5121 = vmatmul.mubr.f32.gmra.mxu0 %v4828
    %v5122 = vpop.f32.mrf.mxu0
    %v5123 = vadd.f32 %v4918, %v5122
    %v5124 = vpop.f32.mrf.mxu0
    %5125 = vmatprep.mubr.f32.mxu0 %v4831
    %5126 = vmatmul.mubr.f32.gmra.mxu0 %v4830
    %v5127 = vpop.f32.mrf.mxu0
    %v5128 = vadd.f32 %v4922, %v5127
    %v5129 = vpop.f32.mrf.mxu0
    %5130 = vmatprep.mubr.f32.mxu0 %v4833
    %5131 = vmatmul.mubr.f32.gmra.mxu0 %v4832
    %v5132 = vpop.f32.mrf.mxu0
    %v5133 = vadd.f32 %v4926, %v5132
    %v5134 = vpop.f32.mrf.mxu0
    %5135 = vmatprep.mubr.f32.mxu0 %v4835
    %5136 = vmatmul.mubr.f32.gmra.mxu0 %v4834
    %v5137 = vpop.f32.mrf.mxu0
    %v5138 = vadd.f32 %v4930, %v5137
    %v5139 = vpop.f32.mrf.mxu0
    %5140 = vmatprep.mubr.f32.mxu0 %v4837
    %5141 = vmatmul.mubr.f32.gmra.mxu0 %v4836
    %v5142 = vpop.f32.mrf.mxu0
    %v5143 = vadd.f32 %v4934, %v5142
    %v5144 = vpop.f32.mrf.mxu0
    %5145 = vmatprep.mubr.f32.mxu0 %v4839
    %5146 = vmatmul.mubr.f32.gmra.mxu0 %v4838
    %v5147 = vpop.f32.mrf.mxu0
    %v5148 = vadd.f32 %v4938, %v5147
    %v5149 = vpop.f32.mrf.mxu0
    %5150 = vmatprep.mubr.f32.mxu0 %v4841
    %5151 = vmatmul.mubr.f32.gmra.mxu0 %v4840
    %v5152 = vpop.f32.mrf.mxu0
    %v5153 = vadd.f32 %v4942, %v5152
    %v5154 = vpop.f32.mrf.mxu0
    %5155 = vmatprep.mubr.f32.mxu0 %v4843
    %5156 = vmatmul.mubr.f32.gmra.mxu0 %v4842
    %v5157 = vpop.f32.mrf.mxu0
    %v5158 = vadd.f32 %v4946, %v5157
    %v5159 = vpop.f32.mrf.mxu0
    %5160 = vmatprep.mubr.f32.mxu0 %v4845
    %5161 = vmatmul.mubr.f32.gmra.mxu0 %v4844
    %v5162 = vpop.f32.mrf.mxu0
    %v5163 = vadd.f32 %v4950, %v5162
    %v5164 = vpop.f32.mrf.mxu0
    %5165 = vmatprep.mubr.f32.mxu0 %v4847
    %5166 = vmatmul.mubr.f32.gmra.mxu0 %v4846
    %v5167 = vpop.f32.mrf.mxu0
    %v5168 = vadd.f32 %v4954, %v5167
    %v5169 = vpop.f32.mrf.mxu0
    %5170 = vmatprep.mubr.f32.mxu0 %v4849
    %5171 = vmatmul.mubr.f32.gmra.mxu0 %v4848
    %v5172 = vpop.f32.mrf.mxu0
    %v5173 = vadd.f32 %v4958, %v5172
    %v5174 = vpop.f32.mrf.mxu0
    %5175 = vmatprep.mubr.f32.mxu0 %v4851
    %5176 = vmatmul.mubr.f32.gmra.mxu0 %v4850
    %v5177 = vpop.f32.mrf.mxu0
    %v5178 = vadd.f32 %v4962, %v5177
    %v5179 = vpop.f32.mrf.mxu0
    %5180 = vmatprep.mubr.f32.mxu0 %v4853
    %5181 = vmatmul.mubr.f32.gmra.mxu0 %v4852
    %v5182 = vpop.f32.mrf.mxu0
    %v5183 = vadd.f32 %v4966, %v5182
    %v5184 = vpop.f32.mrf.mxu0
    %5185 = vmatprep.mubr.f32.mxu0 %v4855
    %5186 = vmatmul.mubr.f32.gmra.mxu0 %v4854
    %v5187 = vpop.f32.mrf.mxu0
    %v5188 = vadd.f32 %v4970, %v5187
    %v5189 = vpop.f32.mrf.mxu0
    %5190 = vmatprep.mubr.f32.mxu0 %v4857
    %5191 = vmatmul.mubr.f32.gmra.mxu0 %v4856
    %v5192 = vpop.f32.mrf.mxu0
    %v5193 = vadd.f32 %v4974, %v5192
    %v5194 = vpop.f32.mrf.mxu0
    %5195 = vmatprep.mubr.f32.mxu0 %v4859
    %5196 = vmatmul.mubr.f32.gmra.mxu0 %v4858
    %v5197 = vpop.f32.mrf.mxu0
    %v5198 = vadd.f32 %v4978, %v5197
    %v5199 = vpop.f32.mrf.mxu0
    %5200 = vmatprep.mubr.f32.mxu0 %v4861
    %5201 = vmatmul.mubr.f32.gmra.mxu0 %v4860
    %v5202 = vpop.f32.mrf.mxu0
    %v5203 = vadd.f32 %v4982, %v5202
    %v5204 = vpop.f32.mrf.mxu0
    %5205 = vmatprep.mubr.f32.mxu0 %v4863
    %5206 = vmatmul.mubr.f32.gmra.mxu0 %v4862
    %v5207 = vpop.f32.mrf.mxu0
    %v5208 = vadd.f32 %v4986, %v5207
    %v5209 = vpop.f32.mrf.mxu0
    %5210 = vmatprep.mubr.f32.mxu0 %v4865
    %5211 = vmatmul.mubr.f32.gmra.mxu0 %v4864
    %v5212 = vpop.f32.mrf.mxu0
    %v5213 = vadd.f32 %v4990, %v5212
    %v5214 = vpop.f32.mrf.mxu0
    %5215 = vmatprep.mubr.f32.mxu0 %v4867
    %5216 = vmatmul.mubr.f32.gmra.mxu0 %v4866
    %v5217 = vpop.f32.mrf.mxu0
    %v5218 = vadd.f32 %v4994, %v5217
    %v5219 = vpop.f32.mrf.mxu0
    %5220 = vdwg.mxu0
    %v5221 = vmax.f32 %v5063, 0.0
    %v5222 = vmax.f32 %v5068, 0.0
    %v5223 = vmax.f32 %v5073, 0.0
    %v5224 = vmax.f32 %v5078, 0.0
    %v5225 = vmax.f32 %v5083, 0.0
    %v5226 = vmax.f32 %v5088, 0.0
    %v5227 = vmax.f32 %v5093, 0.0
    %v5228 = vmax.f32 %v5098, 0.0
    %v5229 = vmax.f32 %v5103, 0.0
    %v5230 = vmax.f32 %v5108, 0.0
    %v5231 = vmax.f32 %v5113, 0.0
    %v5232 = vmax.f32 %v5118, 0.0
    %v5233 = vmax.f32 %v5123, 0.0
    %v5234 = vmax.f32 %v5128, 0.0
    %v5235 = vmax.f32 %v5133, 0.0
    %v5236 = vmax.f32 %v5138, 0.0
    %v5237 = vmax.f32 %v5143, 0.0
    %v5238 = vmax.f32 %v5148, 0.0
    %v5239 = vmax.f32 %v5153, 0.0
    %v5240 = vmax.f32 %v5158, 0.0
    %v5241 = vmax.f32 %v5163, 0.0
    %v5242 = vmax.f32 %v5168, 0.0
    %v5243 = vmax.f32 %v5173, 0.0
    %v5244 = vmax.f32 %v5178, 0.0
    %v5245 = vmax.f32 %v5183, 0.0
    %v5246 = vmax.f32 %v5188, 0.0
    %v5247 = vmax.f32 %v5193, 0.0
    %v5248 = vmax.f32 %v5198, 0.0
    %v5249 = vmax.f32 %v5203, 0.0
    %v5250 = vmax.f32 %v5208, 0.0
    %v5251 = vmax.f32 %v5213, 0.0
    %v5252 = vmax.f32 %v5218, 0.0
    %v5253 = vld [vmem:[%s5] sm:$0x3]
    %v5254 = vld [vmem:[#allocation2] sm:$0x1]
    %5256 = vset.pattern.permute.xlu0 0
    %5257 = vperm.xlu0 %5256, %v5254
    %v5258 = vpop.permute.xlu0 %5257
    %v5260 = vlaneseq
    %v5261 = vshrl.u32 %v5260, 7
    %v5262 = vsub.s32 0, %v5261
    %v5263 = vrot.slane %v5258, %v5262
    %v5265 = vlaneseq
    %v5266 = vshrl.u32 %v5265, 7
    %v5267 = vsub.s32 0, %v5266
    %v5268 = vrot.slane %v5253, %v5267
    %v5269 = vlaneseq
    %v5270 = vshrl.u32 %v5269, 7
    %v5271 = vsub.s32 1, %v5270
    %v5272 = vrot.slane %v5253, %v5271
    %5275 = vmatprep.subr.mxu0 0.0
    %5276 = vmatpush1.msra.mxu0 %v5236
    %5277 = vmatprep.subr.mxu0 0.0
    %5278 = vmatpush1.msra.mxu0 %v5235
    %5279 = vmatprep.subr.mxu0 0.0
    %5280 = vmatpush1.msra.mxu0 %v5234
    %5281 = vmatprep.subr.mxu0 0.0
    %5282 = vmatpush1.msra.mxu0 %v5233
    %5283 = vmatprep.subr.mxu0 0.0
    %5284 = vmatpush1.msra.mxu0 %v5232
    %5285 = vmatprep.subr.mxu0 0.0
    %5286 = vmatpush1.msra.mxu0 %v5231
    %5287 = vmatprep.subr.mxu0 0.0
    %5288 = vmatpush1.msra.mxu0 %v5230
    %5289 = vmatprep.subr.mxu0 0.0
    %5290 = vmatpush1.msra.mxu0 %v5229
    %5291 = vmatprep.subr.mxu0 0.0
    %5292 = vmatpush1.msra.mxu0 %v5228
    %5293 = vmatprep.subr.mxu0 0.0
    %5294 = vmatpush1.msra.mxu0 %v5227
    %5295 = vmatprep.subr.mxu0 0.0
    %5296 = vmatpush1.msra.mxu0 %v5226
    %5297 = vmatprep.subr.mxu0 0.0
    %5298 = vmatpush1.msra.mxu0 %v5225
    %5299 = vmatprep.subr.mxu0 0.0
    %5300 = vmatpush1.msra.mxu0 %v5224
    %5301 = vmatprep.subr.mxu0 0.0
    %5302 = vmatpush1.msra.mxu0 %v5223
    %5303 = vmatprep.subr.mxu0 0.0
    %5304 = vmatpush1.msra.mxu0 %v5222
    %5305 = vmatprep.subr.mxu0 0.0
    %5306 = vmatpush1.msra.mxu0 %v5221
    %5307 = vmatprep.subr.mxu0 0.0
    %5308 = vmatpush2.msra.mxu0 %v5252
    %5309 = vmatprep.subr.mxu0 0.0
    %5310 = vmatpush2.msra.mxu0 %v5251
    %5311 = vmatprep.subr.mxu0 0.0
    %5312 = vmatpush2.msra.mxu0 %v5250
    %5313 = vmatprep.subr.mxu0 0.0
    %5314 = vmatpush2.msra.mxu0 %v5249
    %5315 = vmatprep.subr.mxu0 0.0
    %5316 = vmatpush2.msra.mxu0 %v5248
    %5317 = vmatprep.subr.mxu0 0.0
    %5318 = vmatpush2.msra.mxu0 %v5247
    %5319 = vmatprep.subr.mxu0 0.0
    %5320 = vmatpush2.msra.mxu0 %v5246
    %5321 = vmatprep.subr.mxu0 0.0
    %5322 = vmatpush2.msra.mxu0 %v5245
    %5323 = vmatprep.subr.mxu0 0.0
    %5324 = vmatpush2.msra.mxu0 %v5244
    %5325 = vmatprep.subr.mxu0 0.0
    %5326 = vmatpush2.msra.mxu0 %v5243
    %5327 = vmatprep.subr.mxu0 0.0
    %5328 = vmatpush2.msra.mxu0 %v5242
    %5329 = vmatprep.subr.mxu0 0.0
    %5330 = vmatpush2.msra.mxu0 %v5241
    %5331 = vmatprep.subr.mxu0 0.0
    %5332 = vmatpush2.msra.mxu0 %v5240
    %5333 = vmatprep.subr.mxu0 0.0
    %5334 = vmatpush2.msra.mxu0 %v5239
    %5335 = vmatprep.subr.mxu0 0.0
    %5336 = vmatpush2.msra.mxu0 %v5238
    %5337 = vmatprep.subr.mxu0 0.0
    %5338 = vmatpush2.msra.mxu0 %v5237
    %5339 = vmatprep.mubr.f32.mxu0 %v5272
    %5340 = vmatmul.mubr.f32.gmra.mxu0 %v5268
    %v5341 = vpop.f32.mrf.mxu0
    %v5342 = vadd.f32 %v5263, %v5341
    %v5343 = vpop.f32.mrf.mxu0
    %5344 = vdwg.mxu0
    %5345 = vst [vmem:[#allocation6] sm:$0x1] %v5342
    // Predicated region
    $region38: #{tpu_custom_call.1} parent=1 // pred_check
      _
    $region39: #{tpu_custom_call.1} parent=1 // pred_check_branch
      %5347 = sbr.rel (0) target = $region41
    $region40: #{tpu_custom_call.1} parent=1 // pred_region
      %s5349 = ssub.s32 16, 16
      %5350 = vsyncadd [#allocation5], %s5349
      %s5352 = sshll.u32 [#allocation6], 4
      %s5353 = int_to_ptr.vmem [resolvable:$true] %s5352
      %5355 = dma.vmem_to_hbm [thread:$0]  %s5353, 16, %s8, [#allocation5]
    $region41: #{tpu_custom_call.1} parent=1 // pred_fallthru
      _
    // Predicated region
    $region42: #{tpu_custom_call.1} parent=1 // pred_check
      _
    $region43: #{tpu_custom_call.1} parent=1 // pred_check_branch
      %5357 = sbr.rel (0) target = $region45
    $region44: #{tpu_custom_call.1} parent=1 // pred_region
      %5358 = dma.done [#allocation5], 16
    $region45: #{tpu_custom_call.1} parent=1 // pred_fallthru
      _
    %5359 = vsyncpa [#allocation4], 1
    %5360 = vsyncpa [#allocation5], 1

</llo_original>
